<compile_context>
chip_gen: v6e
topology: v6e:2x2x1
jax: 0.10.0
libtpu: 0.0.40
codegen_flags: <defaults>
</compile_context>

<pallas_src>
import jax
import jax.numpy as jnp
from jax.experimental import pallas as pl
from jax.experimental.pallas import tpu as pltpu

_BN_EPS = 1e-4


def _ceil8(n):
    return ((n + 7) // 8) * 8


def _rep_spec(shape):
    """BlockSpec for a grid-invariant (replicated) operand."""
    nd = len(shape)
    return pl.BlockSpec(shape, lambda i: (0,) * nd)


# ---------------- constant spatial operators / masks (built once) ------------

def _upsample2x_op_t(h, w):
    """(h*w, 4*h*w) 0/1 operator U with (x @ U) = nearest-2x upsample of x."""
    ho, wo = 2 * h, 2 * w
    ro = jnp.arange(ho * wo)
    src = (ro // wo // 2) * w + (ro % wo) // 2
    return (jnp.arange(h * w)[:, None] == src[None, :]).astype(jnp.float32)


def _maxpool2x2_ops_t(h, w):
    """(4, h*w, h*w/4) gather operators; elementwise max of x @ op = maxpool."""
    hp, wp = h // 2, w // 2
    rp = jnp.arange(hp * wp)
    yp, xp = rp // wp, rp % wp
    rows = jnp.arange(h * w)
    ops = []
    for dy in range(2):
        for dx in range(2):
            src = (2 * yp + dy) * w + (2 * xp + dx)
            ops.append((rows[:, None] == src[None, :]).astype(jnp.float32))
    return jnp.stack(ops)


def _conv3x3_shift_ops_t(h, w):
    """(9, h*w, h*w) 0/1 gather operators G_t: (x @ G_t)[:, p] = x[:, src_t(p)]
    (zero outside the image).  Tap order matches the in-kernel (dy, dx) loop."""
    L = h * w
    r = jnp.arange(L)
    y, x = r // w, r % w
    rows = jnp.arange(L)
    ops = []
    for dy in (-1, 0, 1):
        for dx in (-1, 0, 1):
            yy, xx = y + dy, x + dx
            valid = (yy >= 0) & (yy < h) & (xx >= 0) & (xx < w)
            src = jnp.where(valid, yy * w + xx, -1)
            ops.append((rows[:, None] == src[None, :]).astype(jnp.float32))
    return jnp.stack(ops)


def _conv3x3_masks(h, w):
    """(9, 1, h*w) boundary masks for the roll-based 3x3 'same' convolution."""
    L = h * w
    r = jnp.arange(L)
    y, x = r // w, r % w
    rows = []
    for dy in (-1, 0, 1):
        for dx in (-1, 0, 1):
            yy, xx = y + dy, x + dx
            valid = (yy >= 0) & (yy < h) & (xx >= 0) & (xx < w)
            rows.append(valid.astype(jnp.float32))
    return jnp.stack(rows).reshape(9, 1, L)


def _pack_cols(named_vecs):
    """Pack named 1-D vectors into one (P, 1) f32 column with 8-aligned slots."""
    slices, cols, off = {}, [], 0
    for name, v in named_vecs:
        n = v.shape[0]
        slot = _ceil8(n)
        col = jnp.zeros((slot,), jnp.float32).at[:n].set(v.astype(jnp.float32))
        slices[name] = (off, n)
        cols.append(col)
        off += slot
    return jnp.concatenate(cols)[:, None], slices


# ----------------------------- fused Pallas kernel ---------------------------

def _make_fused_kernel(bn_slices, cst_slices, width1):
    """Builds the fused forward kernel.  bn_slices / cst_slices are static
    (row-offset, length) tables into the packed per-sample / constant columns;
    width1 is the final spatial width (16)."""
    f32, bf16 = jnp.float32, jnp.bfloat16

    def kernel(x0_ref, bn_ref, cst_ref,
               a_w0_ref, a_w1_ref, a_w2_ref, a_w3_ref, a_up_ref, a_shift_ref,
               qkv_ref, wo_ref, pool_ref,
               b_w0_ref, b_w1_ref, b_w2_ref, b_w3_ref, b_up_ref, b_msk_ref,
               rgb_ref, o_ref):

        def bn_col(idx):                         # per-sample conditional-BN a/b
            s, n = bn_slices[idx]
            return bn_ref[0, s:s + n, :]                      # (n, 1) f32

        def cst_col(key):                        # constant per-channel columns
            s, n = cst_slices[key]
            return cst_ref[s:s + n, :]                        # (n, 1) f32

        def bn_relu(h, a, b):                    # folded BN + ReLU, (C, L)
            return jnp.maximum(h * a + b, 0.0)

        def conv1x1(h, w_ref, bias):
            return jnp.dot(w_ref[...], h.astype(bf16),
                           preferred_element_type=f32) + bias

        def conv3x3_ops(h, w_ref, bias):
            # 8x8 grid: per-tap channel mix + tiny (64,64) 0/1 gather matmul.
            hb = h.astype(bf16)
            L = h.shape[1]
            cout = w_ref.shape[1]
            acc = jnp.zeros((cout, L), f32)
            for t in range(9):
                mixed = jnp.dot(w_ref[t], hb, preferred_element_type=f32)
                acc = acc + jnp.dot(mixed.astype(bf16), a_shift_ref[t],
                                    preferred_element_type=f32)
            return acc + bias

        def conv3x3_roll(h, w_ref, bias):
            # 16x16 grid: spatial taps via XLU lane rotations + boundary masks.
            L = h.shape[1]
            cout = w_ref.shape[1]
            acc = jnp.zeros((cout, L), f32)
            t = 0
            for dy in (-1, 0, 1):
                for dx in (-1, 0, 1):
                    d = dy * width1 + dx
                    hs = h if d == 0 else pltpu.roll(h, (-d) % L, 1)
                    v = jnp.dot(w_ref[t], hs.astype(bf16),
                                preferred_element_type=f32)
                    if d != 0:
                        v = v * b_msk_ref[t]
                    acc = acc + v
                    t += 1
            return acc + bias

        def gen_block(x, ab_base, w0_ref, w1_ref, w2_ref, w3_ref, up_ref,
                      conv3x3, cb0, cb1, cb2, cb3):
            a0, b0, a1, b1, a2, b2, a3, b3 = [bn_col(ab_base + k)
                                              for k in range(8)]
            cout = w3_ref.shape[0]
            h = bn_relu(x, a0, b0)
            h = conv1x1(h, w0_ref, cb0)                       # cin -> mid
            h = bn_relu(h, a1, b1)
            h = jnp.dot(h.astype(bf16), up_ref[...],
                        preferred_element_type=f32)           # nearest 2x up
            h = conv3x3(h, w1_ref, cb1)
            h = bn_relu(h, a2, b2)
            h = conv3x3(h, w2_ref, cb2)
            h = bn_relu(h, a3, b3)
            h = conv1x1(h, w3_ref, cb3)                       # mid -> cout
            res = jnp.dot(x[:cout, :].astype(bf16), up_ref[...],
                          preferred_element_type=f32)         # drop + upsample
            return h + res

        # ------------------ GenBlock 0 : 4x4 -> 8x8 ------------------
        x = x0_ref[0]                                         # (c0, 16)
        x = gen_block(x, 0, a_w0_ref, a_w1_ref, a_w2_ref, a_w3_ref, a_up_ref,
                      conv3x3_ops,
                      cst_col('a_c0'), cst_col('a_c1'),
                      cst_col('a_c2'), cst_col('a_c3'))       # (c1, 64)

        # ------------- self-attention at 8x8 (gamma folded into wo) ----------
        xb = x.astype(bf16)
        qkv = jnp.dot(qkv_ref[...], xb, preferred_element_type=f32)
        nh = wo_ref.shape[1]                                  # c1 // 2
        nk = (qkv_ref.shape[0] - nh) // 2                     # c1 // 8
        g = qkv[:nh]
        theta = qkv[nh:nh + nk]
        phi = qkv[nh + nk:nh + 2 * nk]

        def maxpool2x2(v):                                    # (c, 64)->(c, 16)
            vb = v.astype(bf16)
            p0 = jnp.dot(vb, pool_ref[0], preferred_element_type=f32)
            p1 = jnp.dot(vb, pool_ref[1], preferred_element_type=f32)
            p2 = jnp.dot(vb, pool_ref[2], preferred_element_type=f32)
            p3 = jnp.dot(vb, pool_ref[3], preferred_element_type=f32)
            return jnp.maximum(jnp.maximum(p0, p1), jnp.maximum(p2, p3))

        phi_p = maxpool2x2(phi)                               # (nk, 16)
        g_p = maxpool2x2(g)                                   # (nh, 16)
        s = jax.lax.dot_general(theta.astype(bf16), phi_p.astype(bf16),
                                (((0,), (0,)), ((), ())),
                                preferred_element_type=f32)   # (64, 16)
        s = s - jnp.max(s, axis=-1, keepdims=True)
        pexp = jnp.exp(s)
        pexp = pexp * pl.reciprocal(jnp.sum(pexp, axis=-1, keepdims=True),
                                    approx=True)
        attn = jax.lax.dot_general(g_p.astype(bf16), pexp.astype(bf16),
                                   (((1,), (1,)), ((), ())),
                                   preferred_element_type=f32)   # (nh, 64)
        x = x + jnp.dot(wo_ref[...], attn.astype(bf16),
                        preferred_element_type=f32)              # (c1, 64)

        # ------------------ GenBlock 1 : 8x8 -> 16x16 ------------------
        x = gen_block(x, 8, b_w0_ref, b_w1_ref, b_w2_ref, b_w3_ref, b_up_ref,
                      conv3x3_roll,
                      cst_col('b_c0'), cst_col('b_c1'),
                      cst_col('b_c2'), cst_col('b_c3'))       # (c2, 256)

        # --------- output: BN + ReLU + 3x3 conv (RGB only) + tanh -----------
        h = bn_relu(x, cst_col('out_a'), cst_col('out_b'))
        rgb = conv3x3_roll(h, rgb_ref, cst_col('rgb_b'))      # (3, 256)
        o_ref[0] = jnp.tanh(rgb)                              # lane-dense NCHW

    return kernel


# ------------------------------- synthetic BigGAN ----------------------------

class BigGANPallas:
    """Scaled-down BigGAN-deep generator: 4x4 -> 8x8 (+SelfAttn) -> 16x16 RGB."""

    def __init__(self, key, ch=8, num_classes=1000, z_dim=128, embed_dim=128):
        self.z_dim, self.embed_dim = z_dim, embed_dim
        cond_dim = z_dim + embed_dim                     # 256, as in BigGAN-deep
        c0, c1, c2 = 4 * ch, 2 * ch, ch                  # 32 -> 16 -> 8 channels
        self.c0, self.c1, self.c2 = c0, c1, c2

        keys = iter(jax.random.split(key, 64))

        def nrm(shape, s=0.05):
            return s * jax.random.normal(next(keys), shape, jnp.float32)

        def make_bn(c):
            return dict(scale_w=nrm((cond_dim, c)), offset_w=nrm((cond_dim, c)),
                        mean=jnp.zeros((c,), jnp.float32),
                        var=jnp.ones((c,), jnp.float32))

        def make_block(cin, cout):                       # BigGAN-deep GenBlock
            mid = cin // 4
            return dict(
                bn0=make_bn(cin), conv0_w=nrm((1, 1, cin, mid)), conv0_b=nrm((mid,)),
                bn1=make_bn(mid), conv1_w=nrm((3, 3, mid, mid)), conv1_b=nrm((mid,)),
                bn2=make_bn(mid), conv2_w=nrm((3, 3, mid, mid)), conv2_b=nrm((mid,)),
                bn3=make_bn(mid), conv3_w=nrm((1, 1, mid, cout)), conv3_b=nrm((cout,)))

        p = {}
        p['embed_w'] = nrm((num_classes, embed_dim))     # Linear(1000,128,bias=False)
        p['gen_z_w'] = nrm((cond_dim, 4 * 4 * c0))
        p['gen_z_b'] = nrm((4 * 4 * c0,))
        p['block0'] = make_block(c0, c1)                 # 4x4   -> 8x8
        p['attn'] = dict(theta_w=nrm((c1, c1 // 8)), phi_w=nrm((c1, c1 // 8)),
                         g_w=nrm((c1, c1 // 2)), o_w=nrm((c1 // 2, c1)),
                         gamma=jnp.full((1, 1), 0.1, jnp.float32))
        p['block1'] = make_block(c1, c2)                 # 8x8   -> 16x16
        p['bn_out'] = dict(weight=jnp.ones((c2,), jnp.float32) + nrm((c2,)),
                           bias=nrm((c2,)),
                           mean=jnp.zeros((c2,), jnp.float32),
                           var=jnp.ones((c2,), jnp.float32))
        p['rgb_w'] = nrm((3, 3, c2, c2))
        p['rgb_b'] = nrm((c2,))
        self.p = p
        self._prepare_fused()
        self._fwd = jax.jit(self._forward_impl)

    # -- fold parameters into fused / matmul-friendly forms -------------------

    def _prepare_fused(self):
        p = self.p
        bf16 = jnp.bfloat16

        def fold_bn(bn):
            # y = (x-mean)*rsqrt(var+eps)*(1+cond@scale_w) + cond@offset_w
            #   = x*a + b  with a,b affine in cond -> fold into one matmul.
            inv = 1.0 / jnp.sqrt(bn['var'] + _BN_EPS)
            w_a = bn['scale_w'] * inv[None, :]
            b_a = inv
            w_b = bn['offset_w'] - bn['scale_w'] * (bn['mean'] * inv)[None, :]
            b_b = -bn['mean'] * inv
            return w_a, b_a, w_b, b_b

        # single conditioning matmul (done by XLA, kept in f32):
        # columns = [gen_z | block0 a/b x4 | block1 a/b x4]
        cols_w, cols_b, bn_sizes = [p['gen_z_w']], [p['gen_z_b']], []
        for blk in ('block0', 'block1'):
            for bn_name in ('bn0', 'bn1', 'bn2', 'bn3'):
                w_a, b_a, w_b, b_b = fold_bn(p[blk][bn_name])
                cols_w += [w_a, w_b]
                cols_b += [b_a, b_b]
                bn_sizes += [w_a.shape[1], w_b.shape[1]]
        self._cond_w = jnp.concatenate(cols_w, axis=1)
        self._cond_b = jnp.concatenate(cols_b, axis=0)
        self._genz = p['gen_z_w'].shape[1]               # 16 * c0
        self._bn_sizes = bn_sizes
        self._bn_slots = [_ceil8(n) for n in bn_sizes]
        bn_slices, off = [], 0
        for n, s in zip(bn_sizes, self._bn_slots):
            bn_slices.append((off, n))
            off += s
        self._bn_pack_rows = off                         # multiple of 8
        bn_slices = tuple(bn_slices)

        def prep_block(bp):
            cin = bp['conv0_w'].shape[2]
            mid = bp['conv0_w'].shape[3]
            cout = bp['conv3_w'].shape[3]
            w0 = bp['conv0_w'].reshape(cin, mid).T                       # (mid, cin)
            w1 = jnp.transpose(bp['conv1_w'].reshape(9, mid, mid), (0, 2, 1))
            w2 = jnp.transpose(bp['conv2_w'].reshape(9, mid, mid), (0, 2, 1))
            w3 = bp['conv3_w'].reshape(mid, cout).T                      # (cout, mid)
            return (w0.astype(bf16), w1.astype(bf16),
                    w2.astype(bf16), w3.astype(bf16))

        self._a_w = prep_block(p['block0'])
        self._b_w = prep_block(p['block1'])

        # attention: one stacked qkv matmul [g; theta; phi], gamma folded in wo
        at = p['attn']
        self._qkv_w = jnp.concatenate(
            [at['g_w'].T, at['theta_w'].T, at['phi_w'].T], axis=0).astype(bf16)
        self._wo_w = (at['gamma'][0, 0] * at['o_w']).T.astype(bf16)      # (c1, c1/2)

        # output BN (plain BatchNorm, running stats) folded to scale/shift
        bnp = p['bn_out']
        inv = 1.0 / jnp.sqrt(bnp['var'] + _BN_EPS)
        out_a = bnp['weight'] * inv
        out_b = bnp['bias'] - bnp['mean'] * out_a
        # rgb conv: only the 3 emitted channels are ever computed
        self._rgb_w = jnp.transpose(
            p['rgb_w'].reshape(9, self.c2, self.c2)[:, :, :3], (0, 2, 1)
        ).astype(bf16)                                                    # (9,3,c2)

        # constant per-channel column vectors, packed into one (P, 1) operand
        self._cst_col, cst_slices = _pack_cols([
            ('a_c0', p['block0']['conv0_b']), ('a_c1', p['block0']['conv1_b']),
            ('a_c2', p['block0']['conv2_b']), ('a_c3', p['block0']['conv3_b']),
            ('b_c0', p['block1']['conv0_b']), ('b_c1', p['block1']['conv1_b']),
            ('b_c2', p['block1']['conv2_b']), ('b_c3', p['block1']['conv3_b']),
            ('out_a', out_a), ('out_b', out_b), ('rgb_b', p['rgb_b'][:3])])

        # constant spatial operators / masks
        self._a_up = _upsample2x_op_t(4, 4).astype(bf16)        # (16, 64)
        self._b_up = _upsample2x_op_t(8, 8).astype(bf16)        # (64, 256)
        self._a_shift = _conv3x3_shift_ops_t(8, 8).astype(bf16) # (9, 64, 64)
        self._b_msk = _conv3x3_masks(16, 16)                    # (9, 1, 256) f32
        self._pool = _maxpool2x2_ops_t(8, 8).astype(bf16)       # (4, 64, 16)
        self._L_out = 16 * 16

        self._kernel = _make_fused_kernel(bn_slices, cst_slices, 16)
        self._const_operands = (self._cst_col,
                                *self._a_w, self._a_up, self._a_shift,
                                self._qkv_w, self._wo_w, self._pool,
                                *self._b_w, self._b_up, self._b_msk,
                                self._rgb_w)

    # -- pieces --------------------------------------------------------------

    def get_class_embedding(self, cls):
        # embedding lookup; no pallas_call (row gather / plain XLA matmul)
        if isinstance(cls, int):
            return self.p['embed_w'][cls][None, :]
        if hasattr(cls, 'ndim') and cls.ndim == 2:
            return jnp.dot(cls, self.p['embed_w'])
        raise ValueError

    # -- forward (mirrors BigGAN.forward of the PyTorch wrapper) --------------

    def _forward_impl(self, z, c):
        B = z.shape[0]
        cond = jnp.concatenate([z, c], axis=1).astype(jnp.float32)   # (B, 256)
        # conditioning matmul (XLA, f32): gen_z activations + all cBN a/b
        cvec = jnp.dot(cond, self._cond_w) + self._cond_b
        x0 = cvec[:, :self._genz].reshape(B, self.c0, 16)            # (B,c0,16)

        # pack all per-sample conditional-BN scale/shift columns (8-row slots)
        parts, off = [], self._genz
        for n, s in zip(self._bn_sizes, self._bn_slots):
            v = cvec[:, off:off + n]
            off += n
            if s > n:
                v = jnp.pad(v, ((0, 0), (0, s - n)))
            parts.append(v)
        bn_pack = jnp.concatenate(parts, axis=1)[:, :, None]         # (B,P,1)

        in_specs = [pl.BlockSpec((1, self.c0, 16), lambda i: (i, 0, 0)),
                    pl.BlockSpec((1, self._bn_pack_rows, 1),
                                 lambda i: (i, 0, 0))]
        in_specs += [_rep_spec(op.shape) for op in self._const_operands]

        out = pl.pallas_call(
            self._kernel,
            grid=(B,),
            in_specs=in_specs,
            out_specs=pl.BlockSpec((1, 3, self._L_out), lambda i: (i, 0, 0)),
            out_shape=jax.ShapeDtypeStruct((B, 3, self._L_out), jnp.float32),
            compiler_params=pltpu.CompilerParams(
                dimension_semantics=("parallel",)),
        )(x0, bn_pack, *self._const_operands)
        return out.reshape(B, 3, 16, 16)                 # already NCHW

    def forward(self, z, c, truncation=1.0):
        assert 0.0 < truncation <= 1.0
        assert z.ndim == 2, 'expected z to be 2D'
        assert c.ndim == 2, 'expected c to be 2D'
        assert c.shape[1] == self.embed_dim, \
            'expected c to have dim (?, 128) but got {}'.format(c.shape)
        return self._fwd(z, c)


# ---------------------------------- main -------------------------------------

if __name__ == "__main__":
    B = 2
    model = BigGANPallas(jax.random.PRNGKey(0))

    z = 0.5 * jax.random.normal(jax.random.PRNGKey(1), (B, 128), jnp.float32)
    onehot = jnp.zeros((B, 1000), jnp.float32).at[
        jnp.arange(B), jnp.array([207, 8])].set(1.0)
    c = model.get_class_embedding(onehot)                            # (B, 128)

    img = model.forward(z, c, truncation=1.0)
    img = jax.block_until_ready(img)

    assert img.shape == (B, 3, 16, 16), img.shape
    assert img.dtype == jnp.float32
    assert bool(jnp.all(jnp.isfinite(img)))
    assert bool(jnp.all(jnp.abs(img) <= 1.0))
    print("KERNEL_OK")
</pallas_src>

<mosaic_0001>
module attributes {stable_mosaic.version = 11 : i64} {
  func.func @kernel(%arg0: i32, %arg1: memref<1x32x16xf32, #tpu.memory_space<vmem>>, %arg2: memref<1x192x1xf32, #tpu.memory_space<vmem>>, %arg3: memref<96x1xf32, #tpu.memory_space<vmem>>, %arg4: memref<8x32xbf16, #tpu.memory_space<vmem>>, %arg5: memref<9x8x8xbf16, #tpu.memory_space<vmem>>, %arg6: memref<9x8x8xbf16, #tpu.memory_space<vmem>>, %arg7: memref<16x8xbf16, #tpu.memory_space<vmem>>, %arg8: memref<16x64xbf16, #tpu.memory_space<vmem>>, %arg9: memref<9x64x64xbf16, #tpu.memory_space<vmem>>, %arg10: memref<12x16xbf16, #tpu.memory_space<vmem>>, %arg11: memref<16x8xbf16, #tpu.memory_space<vmem>>, %arg12: memref<4x64x16xbf16, #tpu.memory_space<vmem>>, %arg13: memref<4x16xbf16, #tpu.memory_space<vmem>>, %arg14: memref<9x4x4xbf16, #tpu.memory_space<vmem>>, %arg15: memref<9x4x4xbf16, #tpu.memory_space<vmem>>, %arg16: memref<8x4xbf16, #tpu.memory_space<vmem>>, %arg17: memref<64x256xbf16, #tpu.memory_space<vmem>>, %arg18: memref<9x1x256xf32, #tpu.memory_space<vmem>>, %arg19: memref<9x3x8xbf16, #tpu.memory_space<vmem>>, %arg20: memref<1x3x256xf32, #tpu.memory_space<vmem>>) attributes {dimension_semantics = [#tpu.dimension_semantics<parallel>], iteration_bounds = array<i64: 2>, scalar_prefetch = 0 : i64, scratch_operands = 0 : i64, tpu.core_type = #tpu.core_type<tc>, window_params = [{transform_indices = @transform_0, window_bounds = array<i64: 1, 32, 16>}, {transform_indices = @transform_1, window_bounds = array<i64: 1, 192, 1>}, {pipeline_mode = #tpu.pipeline_mode<synchronous>, transform_indices = @transform_2, window_bounds = array<i64: 96, 1>}, {pipeline_mode = #tpu.pipeline_mode<synchronous>, transform_indices = @transform_3, window_bounds = array<i64: 8, 32>}, {pipeline_mode = #tpu.pipeline_mode<synchronous>, transform_indices = @transform_4, window_bounds = array<i64: 9, 8, 8>}, {pipeline_mode = #tpu.pipeline_mode<synchronous>, transform_indices = @transform_5, window_bounds = array<i64: 9, 8, 8>}, {pipeline_mode = #tpu.pipeline_mode<synchronous>, transform_indices = @transform_6, window_bounds = array<i64: 16, 8>}, {pipeline_mode = #tpu.pipeline_mode<synchronous>, transform_indices = @transform_7, window_bounds = array<i64: 16, 64>}, {pipeline_mode = #tpu.pipeline_mode<synchronous>, transform_indices = @transform_8, window_bounds = array<i64: 9, 64, 64>}, {pipeline_mode = #tpu.pipeline_mode<synchronous>, transform_indices = @transform_9, window_bounds = array<i64: 12, 16>}, {pipeline_mode = #tpu.pipeline_mode<synchronous>, transform_indices = @transform_10, window_bounds = array<i64: 16, 8>}, {pipeline_mode = #tpu.pipeline_mode<synchronous>, transform_indices = @transform_11, window_bounds = array<i64: 4, 64, 16>}, {pipeline_mode = #tpu.pipeline_mode<synchronous>, transform_indices = @transform_12, window_bounds = array<i64: 4, 16>}, {pipeline_mode = #tpu.pipeline_mode<synchronous>, transform_indices = @transform_13, window_bounds = array<i64: 9, 4, 4>}, {pipeline_mode = #tpu.pipeline_mode<synchronous>, transform_indices = @transform_14, window_bounds = array<i64: 9, 4, 4>}, {pipeline_mode = #tpu.pipeline_mode<synchronous>, transform_indices = @transform_15, window_bounds = array<i64: 8, 4>}, {pipeline_mode = #tpu.pipeline_mode<synchronous>, transform_indices = @transform_16, window_bounds = array<i64: 64, 256>}, {pipeline_mode = #tpu.pipeline_mode<synchronous>, transform_indices = @transform_17, window_bounds = array<i64: 9, 1, 256>}, {pipeline_mode = #tpu.pipeline_mode<synchronous>, transform_indices = @transform_18, window_bounds = array<i64: 9, 3, 8>}, {transform_indices = @transform_19, window_bounds = array<i64: 1, 3, 256>}]} {
    %c0 = arith.constant 0 : index
    %c0_0 = arith.constant 0 : index
    %c0_1 = arith.constant 0 : index
    %0 = vector.load %arg1[%c0, %c0_0, %c0_1] : memref<1x32x16xf32, #tpu.memory_space<vmem>>, vector<1x32x16xf32>
    %1 = vector.shape_cast %0 : vector<1x32x16xf32> to vector<32x16xf32>
    %c0_2 = arith.constant 0 : index
    %c0_3 = arith.constant 0 : index
    %2 = vector.load %arg3[%c0_2, %c0_3] : memref<96x1xf32, #tpu.memory_space<vmem>>, vector<8x1xf32>
    %c8 = arith.constant 8 : index
    %c0_4 = arith.constant 0 : index
    %3 = vector.load %arg3[%c8, %c0_4] : memref<96x1xf32, #tpu.memory_space<vmem>>, vector<8x1xf32>
    %c16 = arith.constant 16 : index
    %c0_5 = arith.constant 0 : index
    %4 = vector.load %arg3[%c16, %c0_5] : memref<96x1xf32, #tpu.memory_space<vmem>>, vector<8x1xf32>
    %c24 = arith.constant 24 : index
    %c0_6 = arith.constant 0 : index
    %5 = vector.load %arg3[%c24, %c0_6] : memref<96x1xf32, #tpu.memory_space<vmem>>, vector<16x1xf32>
    %c0_7 = arith.constant 0 : index
    %c0_8 = arith.constant 0 : index
    %c0_9 = arith.constant 0 : index
    %6 = vector.load %arg2[%c0_7, %c0_8, %c0_9] : memref<1x192x1xf32, #tpu.memory_space<vmem>>, vector<1x32x1xf32>
    %7 = vector.shape_cast %6 : vector<1x32x1xf32> to vector<32x1xf32>
    %c0_10 = arith.constant 0 : index
    %c32 = arith.constant 32 : index
    %c0_11 = arith.constant 0 : index
    %8 = vector.load %arg2[%c0_10, %c32, %c0_11] : memref<1x192x1xf32, #tpu.memory_space<vmem>>, vector<1x32x1xf32>
    %9 = vector.shape_cast %8 : vector<1x32x1xf32> to vector<32x1xf32>
    %c0_12 = arith.constant 0 : index
    %c64 = arith.constant 64 : index
    %c0_13 = arith.constant 0 : index
    %10 = vector.load %arg2[%c0_12, %c64, %c0_13] : memref<1x192x1xf32, #tpu.memory_space<vmem>>, vector<1x8x1xf32>
    %11 = vector.shape_cast %10 : vector<1x8x1xf32> to vector<8x1xf32>
    %c0_14 = arith.constant 0 : index
    %c72 = arith.constant 72 : index
    %c0_15 = arith.constant 0 : index
    %12 = vector.load %arg2[%c0_14, %c72, %c0_15] : memref<1x192x1xf32, #tpu.memory_space<vmem>>, vector<1x8x1xf32>
    %13 = vector.shape_cast %12 : vector<1x8x1xf32> to vector<8x1xf32>
    %c0_16 = arith.constant 0 : index
    %c80 = arith.constant 80 : index
    %c0_17 = arith.constant 0 : index
    %14 = vector.load %arg2[%c0_16, %c80, %c0_17] : memref<1x192x1xf32, #tpu.memory_space<vmem>>, vector<1x8x1xf32>
    %15 = vector.shape_cast %14 : vector<1x8x1xf32> to vector<8x1xf32>
    %c0_18 = arith.constant 0 : index
    %c88 = arith.constant 88 : index
    %c0_19 = arith.constant 0 : index
    %16 = vector.load %arg2[%c0_18, %c88, %c0_19] : memref<1x192x1xf32, #tpu.memory_space<vmem>>, vector<1x8x1xf32>
    %17 = vector.shape_cast %16 : vector<1x8x1xf32> to vector<8x1xf32>
    %c0_20 = arith.constant 0 : index
    %c96 = arith.constant 96 : index
    %c0_21 = arith.constant 0 : index
    %18 = vector.load %arg2[%c0_20, %c96, %c0_21] : memref<1x192x1xf32, #tpu.memory_space<vmem>>, vector<1x8x1xf32>
    %19 = vector.shape_cast %18 : vector<1x8x1xf32> to vector<8x1xf32>
    %c0_22 = arith.constant 0 : index
    %c104 = arith.constant 104 : index
    %c0_23 = arith.constant 0 : index
    %20 = vector.load %arg2[%c0_22, %c104, %c0_23] : memref<1x192x1xf32, #tpu.memory_space<vmem>>, vector<1x8x1xf32>
    %21 = vector.shape_cast %20 : vector<1x8x1xf32> to vector<8x1xf32>
    %22 = vector.broadcast %7 : vector<32x1xf32> to vector<32x16xf32>
    %23 = arith.mulf %1, %22 : vector<32x16xf32>
    %24 = vector.broadcast %9 : vector<32x1xf32> to vector<32x16xf32>
    %25 = arith.addf %23, %24 : vector<32x16xf32>
    %cst = arith.constant 0.000000e+00 : f32
    %26 = vector.broadcast %cst : f32 to vector<32x16xf32>
    %27 = arith.maximumf %25, %26 : vector<32x16xf32>
    %c0_24 = arith.constant 0 : index
    %c0_25 = arith.constant 0 : index
    %28 = vector.load %arg4[%c0_24, %c0_25] : memref<8x32xbf16, #tpu.memory_space<vmem>>, vector<8x32xbf16>
    %29 = arith.truncf %27 : vector<32x16xf32> to vector<32x16xbf16>
    %cst_26 = arith.constant dense<0.000000e+00> : vector<8x16xf32>
    %30 = tpu.matmul %28, %29, %cst_26 {dimension_numbers = #tpu.dot_dimension_numbers<[1], [0], [0], [1], [0, 0, 1, 1], [], []>} : vector<8x32xbf16>, vector<32x16xbf16>, vector<8x16xf32> -> vector<8x16xf32>
    %31 = vector.broadcast %2 : vector<8x1xf32> to vector<8x16xf32>
    %32 = arith.addf %30, %31 : vector<8x16xf32>
    %33 = vector.broadcast %11 : vector<8x1xf32> to vector<8x16xf32>
    %34 = arith.mulf %32, %33 : vector<8x16xf32>
    %35 = vector.broadcast %13 : vector<8x1xf32> to vector<8x16xf32>
    %36 = arith.addf %34, %35 : vector<8x16xf32>
    %cst_27 = arith.constant 0.000000e+00 : f32
    %37 = vector.broadcast %cst_27 : f32 to vector<8x16xf32>
    %38 = arith.maximumf %36, %37 : vector<8x16xf32>
    %39 = arith.truncf %38 : vector<8x16xf32> to vector<8x16xbf16>
    %c0_28 = arith.constant 0 : index
    %c0_29 = arith.constant 0 : index
    %40 = vector.load %arg8[%c0_28, %c0_29] : memref<16x64xbf16, #tpu.memory_space<vmem>>, vector<16x64xbf16>
    %cst_30 = arith.constant dense<0.000000e+00> : vector<8x64xf32>
    %41 = tpu.matmul %39, %40, %cst_30 {dimension_numbers = #tpu.dot_dimension_numbers<[1], [0], [0], [1], [0, 0, 1, 1], [], []>} : vector<8x16xbf16>, vector<16x64xbf16>, vector<8x64xf32> -> vector<8x64xf32>
    %42 = arith.truncf %41 : vector<8x64xf32> to vector<8x64xbf16>
    %cst_31 = arith.constant 0.000000e+00 : f32
    %43 = vector.broadcast %cst_31 : f32 to vector<8x64xf32>
    %c0_32 = arith.constant 0 : index
    %c0_33 = arith.constant 0 : index
    %c0_34 = arith.constant 0 : index
    %44 = vector.load %arg5[%c0_32, %c0_33, %c0_34] : memref<9x8x8xbf16, #tpu.memory_space<vmem>>, vector<1x8x8xbf16>
    %45 = vector.shape_cast %44 : vector<1x8x8xbf16> to vector<8x8xbf16>
    %cst_35 = arith.constant dense<0.000000e+00> : vector<8x64xf32>
    %46 = tpu.matmul %45, %42, %cst_35 {dimension_numbers = #tpu.dot_dimension_numbers<[1], [0], [0], [1], [0, 0, 1, 1], [], []>} : vector<8x8xbf16>, vector<8x64xbf16>, vector<8x64xf32> -> vector<8x64xf32>
    %47 = arith.truncf %46 : vector<8x64xf32> to vector<8x64xbf16>
    %c0_36 = arith.constant 0 : index
    %c0_37 = arith.constant 0 : index
    %c0_38 = arith.constant 0 : index
    %48 = vector.load %arg9[%c0_36, %c0_37, %c0_38] : memref<9x64x64xbf16, #tpu.memory_space<vmem>>, vector<1x64x64xbf16>
    %49 = vector.shape_cast %48 : vector<1x64x64xbf16> to vector<64x64xbf16>
    %cst_39 = arith.constant dense<0.000000e+00> : vector<8x64xf32>
    %50 = tpu.matmul %47, %49, %cst_39 {dimension_numbers = #tpu.dot_dimension_numbers<[1], [0], [0], [1], [0, 0, 1, 1], [], []>} : vector<8x64xbf16>, vector<64x64xbf16>, vector<8x64xf32> -> vector<8x64xf32>
    %51 = arith.addf %43, %50 : vector<8x64xf32>
    %c1 = arith.constant 1 : index
    %c0_40 = arith.constant 0 : index
    %c0_41 = arith.constant 0 : index
    %52 = vector.load %arg5[%c1, %c0_40, %c0_41] : memref<9x8x8xbf16, #tpu.memory_space<vmem>>, vector<1x8x8xbf16>
    %53 = vector.shape_cast %52 : vector<1x8x8xbf16> to vector<8x8xbf16>
    %cst_42 = arith.constant dense<0.000000e+00> : vector<8x64xf32>
    %54 = tpu.matmul %53, %42, %cst_42 {dimension_numbers = #tpu.dot_dimension_numbers<[1], [0], [0], [1], [0, 0, 1, 1], [], []>} : vector<8x8xbf16>, vector<8x64xbf16>, vector<8x64xf32> -> vector<8x64xf32>
    %55 = arith.truncf %54 : vector<8x64xf32> to vector<8x64xbf16>
    %c1_43 = arith.constant 1 : index
    %c0_44 = arith.constant 0 : index
    %c0_45 = arith.constant 0 : index
    %56 = vector.load %arg9[%c1_43, %c0_44, %c0_45] : memref<9x64x64xbf16, #tpu.memory_space<vmem>>, vector<1x64x64xbf16>
    %57 = vector.shape_cast %56 : vector<1x64x64xbf16> to vector<64x64xbf16>
    %cst_46 = arith.constant dense<0.000000e+00> : vector<8x64xf32>
    %58 = tpu.matmul %55, %57, %cst_46 {dimension_numbers = #tpu.dot_dimension_numbers<[1], [0], [0], [1], [0, 0, 1, 1], [], []>} : vector<8x64xbf16>, vector<64x64xbf16>, vector<8x64xf32> -> vector<8x64xf32>
    %59 = arith.addf %51, %58 : vector<8x64xf32>
    %c2 = arith.constant 2 : index
    %c0_47 = arith.constant 0 : index
    %c0_48 = arith.constant 0 : index
    %60 = vector.load %arg5[%c2, %c0_47, %c0_48] : memref<9x8x8xbf16, #tpu.memory_space<vmem>>, vector<1x8x8xbf16>
    %61 = vector.shape_cast %60 : vector<1x8x8xbf16> to vector<8x8xbf16>
    %cst_49 = arith.constant dense<0.000000e+00> : vector<8x64xf32>
    %62 = tpu.matmul %61, %42, %cst_49 {dimension_numbers = #tpu.dot_dimension_numbers<[1], [0], [0], [1], [0, 0, 1, 1], [], []>} : vector<8x8xbf16>, vector<8x64xbf16>, vector<8x64xf32> -> vector<8x64xf32>
    %63 = arith.truncf %62 : vector<8x64xf32> to vector<8x64xbf16>
    %c2_50 = arith.constant 2 : index
    %c0_51 = arith.constant 0 : index
    %c0_52 = arith.constant 0 : index
    %64 = vector.load %arg9[%c2_50, %c0_51, %c0_52] : memref<9x64x64xbf16, #tpu.memory_space<vmem>>, vector<1x64x64xbf16>
    %65 = vector.shape_cast %64 : vector<1x64x64xbf16> to vector<64x64xbf16>
    %cst_53 = arith.constant dense<0.000000e+00> : vector<8x64xf32>
    %66 = tpu.matmul %63, %65, %cst_53 {dimension_numbers = #tpu.dot_dimension_numbers<[1], [0], [0], [1], [0, 0, 1, 1], [], []>} : vector<8x64xbf16>, vector<64x64xbf16>, vector<8x64xf32> -> vector<8x64xf32>
    %67 = arith.addf %59, %66 : vector<8x64xf32>
    %c3 = arith.constant 3 : index
    %c0_54 = arith.constant 0 : index
    %c0_55 = arith.constant 0 : index
    %68 = vector.load %arg5[%c3, %c0_54, %c0_55] : memref<9x8x8xbf16, #tpu.memory_space<vmem>>, vector<1x8x8xbf16>
    %69 = vector.shape_cast %68 : vector<1x8x8xbf16> to vector<8x8xbf16>
    %cst_56 = arith.constant dense<0.000000e+00> : vector<8x64xf32>
    %70 = tpu.matmul %69, %42, %cst_56 {dimension_numbers = #tpu.dot_dimension_numbers<[1], [0], [0], [1], [0, 0, 1, 1], [], []>} : vector<8x8xbf16>, vector<8x64xbf16>, vector<8x64xf32> -> vector<8x64xf32>
    %71 = arith.truncf %70 : vector<8x64xf32> to vector<8x64xbf16>
    %c3_57 = arith.constant 3 : index
    %c0_58 = arith.constant 0 : index
    %c0_59 = arith.constant 0 : index
    %72 = vector.load %arg9[%c3_57, %c0_58, %c0_59] : memref<9x64x64xbf16, #tpu.memory_space<vmem>>, vector<1x64x64xbf16>
    %73 = vector.shape_cast %72 : vector<1x64x64xbf16> to vector<64x64xbf16>
    %cst_60 = arith.constant dense<0.000000e+00> : vector<8x64xf32>
    %74 = tpu.matmul %71, %73, %cst_60 {dimension_numbers = #tpu.dot_dimension_numbers<[1], [0], [0], [1], [0, 0, 1, 1], [], []>} : vector<8x64xbf16>, vector<64x64xbf16>, vector<8x64xf32> -> vector<8x64xf32>
    %75 = arith.addf %67, %74 : vector<8x64xf32>
    %c4 = arith.constant 4 : index
    %c0_61 = arith.constant 0 : index
    %c0_62 = arith.constant 0 : index
    %76 = vector.load %arg5[%c4, %c0_61, %c0_62] : memref<9x8x8xbf16, #tpu.memory_space<vmem>>, vector<1x8x8xbf16>
    %77 = vector.shape_cast %76 : vector<1x8x8xbf16> to vector<8x8xbf16>
    %cst_63 = arith.constant dense<0.000000e+00> : vector<8x64xf32>
    %78 = tpu.matmul %77, %42, %cst_63 {dimension_numbers = #tpu.dot_dimension_numbers<[1], [0], [0], [1], [0, 0, 1, 1], [], []>} : vector<8x8xbf16>, vector<8x64xbf16>, vector<8x64xf32> -> vector<8x64xf32>
    %79 = arith.truncf %78 : vector<8x64xf32> to vector<8x64xbf16>
    %c4_64 = arith.constant 4 : index
    %c0_65 = arith.constant 0 : index
    %c0_66 = arith.constant 0 : index
    %80 = vector.load %arg9[%c4_64, %c0_65, %c0_66] : memref<9x64x64xbf16, #tpu.memory_space<vmem>>, vector<1x64x64xbf16>
    %81 = vector.shape_cast %80 : vector<1x64x64xbf16> to vector<64x64xbf16>
    %cst_67 = arith.constant dense<0.000000e+00> : vector<8x64xf32>
    %82 = tpu.matmul %79, %81, %cst_67 {dimension_numbers = #tpu.dot_dimension_numbers<[1], [0], [0], [1], [0, 0, 1, 1], [], []>} : vector<8x64xbf16>, vector<64x64xbf16>, vector<8x64xf32> -> vector<8x64xf32>
    %83 = arith.addf %75, %82 : vector<8x64xf32>
    %c5 = arith.constant 5 : index
    %c0_68 = arith.constant 0 : index
    %c0_69 = arith.constant 0 : index
    %84 = vector.load %arg5[%c5, %c0_68, %c0_69] : memref<9x8x8xbf16, #tpu.memory_space<vmem>>, vector<1x8x8xbf16>
    %85 = vector.shape_cast %84 : vector<1x8x8xbf16> to vector<8x8xbf16>
    %cst_70 = arith.constant dense<0.000000e+00> : vector<8x64xf32>
    %86 = tpu.matmul %85, %42, %cst_70 {dimension_numbers = #tpu.dot_dimension_numbers<[1], [0], [0], [1], [0, 0, 1, 1], [], []>} : vector<8x8xbf16>, vector<8x64xbf16>, vector<8x64xf32> -> vector<8x64xf32>
    %87 = arith.truncf %86 : vector<8x64xf32> to vector<8x64xbf16>
    %c5_71 = arith.constant 5 : index
    %c0_72 = arith.constant 0 : index
    %c0_73 = arith.constant 0 : index
    %88 = vector.load %arg9[%c5_71, %c0_72, %c0_73] : memref<9x64x64xbf16, #tpu.memory_space<vmem>>, vector<1x64x64xbf16>
    %89 = vector.shape_cast %88 : vector<1x64x64xbf16> to vector<64x64xbf16>
    %cst_74 = arith.constant dense<0.000000e+00> : vector<8x64xf32>
    %90 = tpu.matmul %87, %89, %cst_74 {dimension_numbers = #tpu.dot_dimension_numbers<[1], [0], [0], [1], [0, 0, 1, 1], [], []>} : vector<8x64xbf16>, vector<64x64xbf16>, vector<8x64xf32> -> vector<8x64xf32>
    %91 = arith.addf %83, %90 : vector<8x64xf32>
    %c6 = arith.constant 6 : index
    %c0_75 = arith.constant 0 : index
    %c0_76 = arith.constant 0 : index
    %92 = vector.load %arg5[%c6, %c0_75, %c0_76] : memref<9x8x8xbf16, #tpu.memory_space<vmem>>, vector<1x8x8xbf16>
    %93 = vector.shape_cast %92 : vector<1x8x8xbf16> to vector<8x8xbf16>
    %cst_77 = arith.constant dense<0.000000e+00> : vector<8x64xf32>
    %94 = tpu.matmul %93, %42, %cst_77 {dimension_numbers = #tpu.dot_dimension_numbers<[1], [0], [0], [1], [0, 0, 1, 1], [], []>} : vector<8x8xbf16>, vector<8x64xbf16>, vector<8x64xf32> -> vector<8x64xf32>
    %95 = arith.truncf %94 : vector<8x64xf32> to vector<8x64xbf16>
    %c6_78 = arith.constant 6 : index
    %c0_79 = arith.constant 0 : index
    %c0_80 = arith.constant 0 : index
    %96 = vector.load %arg9[%c6_78, %c0_79, %c0_80] : memref<9x64x64xbf16, #tpu.memory_space<vmem>>, vector<1x64x64xbf16>
    %97 = vector.shape_cast %96 : vector<1x64x64xbf16> to vector<64x64xbf16>
    %cst_81 = arith.constant dense<0.000000e+00> : vector<8x64xf32>
    %98 = tpu.matmul %95, %97, %cst_81 {dimension_numbers = #tpu.dot_dimension_numbers<[1], [0], [0], [1], [0, 0, 1, 1], [], []>} : vector<8x64xbf16>, vector<64x64xbf16>, vector<8x64xf32> -> vector<8x64xf32>
    %99 = arith.addf %91, %98 : vector<8x64xf32>
    %c7 = arith.constant 7 : index
    %c0_82 = arith.constant 0 : index
    %c0_83 = arith.constant 0 : index
    %100 = vector.load %arg5[%c7, %c0_82, %c0_83] : memref<9x8x8xbf16, #tpu.memory_space<vmem>>, vector<1x8x8xbf16>
    %101 = vector.shape_cast %100 : vector<1x8x8xbf16> to vector<8x8xbf16>
    %cst_84 = arith.constant dense<0.000000e+00> : vector<8x64xf32>
    %102 = tpu.matmul %101, %42, %cst_84 {dimension_numbers = #tpu.dot_dimension_numbers<[1], [0], [0], [1], [0, 0, 1, 1], [], []>} : vector<8x8xbf16>, vector<8x64xbf16>, vector<8x64xf32> -> vector<8x64xf32>
    %103 = arith.truncf %102 : vector<8x64xf32> to vector<8x64xbf16>
    %c7_85 = arith.constant 7 : index
    %c0_86 = arith.constant 0 : index
    %c0_87 = arith.constant 0 : index
    %104 = vector.load %arg9[%c7_85, %c0_86, %c0_87] : memref<9x64x64xbf16, #tpu.memory_space<vmem>>, vector<1x64x64xbf16>
    %105 = vector.shape_cast %104 : vector<1x64x64xbf16> to vector<64x64xbf16>
    %cst_88 = arith.constant dense<0.000000e+00> : vector<8x64xf32>
    %106 = tpu.matmul %103, %105, %cst_88 {dimension_numbers = #tpu.dot_dimension_numbers<[1], [0], [0], [1], [0, 0, 1, 1], [], []>} : vector<8x64xbf16>, vector<64x64xbf16>, vector<8x64xf32> -> vector<8x64xf32>
    %107 = arith.addf %99, %106 : vector<8x64xf32>
    %c8_89 = arith.constant 8 : index
    %c0_90 = arith.constant 0 : index
    %c0_91 = arith.constant 0 : index
    %108 = vector.load %arg5[%c8_89, %c0_90, %c0_91] : memref<9x8x8xbf16, #tpu.memory_space<vmem>>, vector<1x8x8xbf16>
    %109 = vector.shape_cast %108 : vector<1x8x8xbf16> to vector<8x8xbf16>
    %cst_92 = arith.constant dense<0.000000e+00> : vector<8x64xf32>
    %110 = tpu.matmul %109, %42, %cst_92 {dimension_numbers = #tpu.dot_dimension_numbers<[1], [0], [0], [1], [0, 0, 1, 1], [], []>} : vector<8x8xbf16>, vector<8x64xbf16>, vector<8x64xf32> -> vector<8x64xf32>
    %111 = arith.truncf %110 : vector<8x64xf32> to vector<8x64xbf16>
    %c8_93 = arith.constant 8 : index
    %c0_94 = arith.constant 0 : index
    %c0_95 = arith.constant 0 : index
    %112 = vector.load %arg9[%c8_93, %c0_94, %c0_95] : memref<9x64x64xbf16, #tpu.memory_space<vmem>>, vector<1x64x64xbf16>
    %113 = vector.shape_cast %112 : vector<1x64x64xbf16> to vector<64x64xbf16>
    %cst_96 = arith.constant dense<0.000000e+00> : vector<8x64xf32>
    %114 = tpu.matmul %111, %113, %cst_96 {dimension_numbers = #tpu.dot_dimension_numbers<[1], [0], [0], [1], [0, 0, 1, 1], [], []>} : vector<8x64xbf16>, vector<64x64xbf16>, vector<8x64xf32> -> vector<8x64xf32>
    %115 = arith.addf %107, %114 : vector<8x64xf32>
    %116 = vector.broadcast %3 : vector<8x1xf32> to vector<8x64xf32>
    %117 = arith.addf %115, %116 : vector<8x64xf32>
    %118 = vector.broadcast %15 : vector<8x1xf32> to vector<8x64xf32>
    %119 = arith.mulf %117, %118 : vector<8x64xf32>
    %120 = vector.broadcast %17 : vector<8x1xf32> to vector<8x64xf32>
    %121 = arith.addf %119, %120 : vector<8x64xf32>
    %cst_97 = arith.constant 0.000000e+00 : f32
    %122 = vector.broadcast %cst_97 : f32 to vector<8x64xf32>
    %123 = arith.maximumf %121, %122 : vector<8x64xf32>
    %124 = arith.truncf %123 : vector<8x64xf32> to vector<8x64xbf16>
    %cst_98 = arith.constant 0.000000e+00 : f32
    %125 = vector.broadcast %cst_98 : f32 to vector<8x64xf32>
    %c0_99 = arith.constant 0 : index
    %c0_100 = arith.constant 0 : index
    %c0_101 = arith.constant 0 : index
    %126 = vector.load %arg6[%c0_99, %c0_100, %c0_101] : memref<9x8x8xbf16, #tpu.memory_space<vmem>>, vector<1x8x8xbf16>
    %127 = vector.shape_cast %126 : vector<1x8x8xbf16> to vector<8x8xbf16>
    %cst_102 = arith.constant dense<0.000000e+00> : vector<8x64xf32>
    %128 = tpu.matmul %127, %124, %cst_102 {dimension_numbers = #tpu.dot_dimension_numbers<[1], [0], [0], [1], [0, 0, 1, 1], [], []>} : vector<8x8xbf16>, vector<8x64xbf16>, vector<8x64xf32> -> vector<8x64xf32>
    %129 = arith.truncf %128 : vector<8x64xf32> to vector<8x64xbf16>
    %c0_103 = arith.constant 0 : index
    %c0_104 = arith.constant 0 : index
    %c0_105 = arith.constant 0 : index
    %130 = vector.load %arg9[%c0_103, %c0_104, %c0_105] : memref<9x64x64xbf16, #tpu.memory_space<vmem>>, vector<1x64x64xbf16>
    %131 = vector.shape_cast %130 : vector<1x64x64xbf16> to vector<64x64xbf16>
    %cst_106 = arith.constant dense<0.000000e+00> : vector<8x64xf32>
    %132 = tpu.matmul %129, %131, %cst_106 {dimension_numbers = #tpu.dot_dimension_numbers<[1], [0], [0], [1], [0, 0, 1, 1], [], []>} : vector<8x64xbf16>, vector<64x64xbf16>, vector<8x64xf32> -> vector<8x64xf32>
    %133 = arith.addf %125, %132 : vector<8x64xf32>
    %c1_107 = arith.constant 1 : index
    %c0_108 = arith.constant 0 : index
    %c0_109 = arith.constant 0 : index
    %134 = vector.load %arg6[%c1_107, %c0_108, %c0_109] : memref<9x8x8xbf16, #tpu.memory_space<vmem>>, vector<1x8x8xbf16>
    %135 = vector.shape_cast %134 : vector<1x8x8xbf16> to vector<8x8xbf16>
    %cst_110 = arith.constant dense<0.000000e+00> : vector<8x64xf32>
    %136 = tpu.matmul %135, %124, %cst_110 {dimension_numbers = #tpu.dot_dimension_numbers<[1], [0], [0], [1], [0, 0, 1, 1], [], []>} : vector<8x8xbf16>, vector<8x64xbf16>, vector<8x64xf32> -> vector<8x64xf32>
    %137 = arith.truncf %136 : vector<8x64xf32> to vector<8x64xbf16>
    %c1_111 = arith.constant 1 : index
    %c0_112 = arith.constant 0 : index
    %c0_113 = arith.constant 0 : index
    %138 = vector.load %arg9[%c1_111, %c0_112, %c0_113] : memref<9x64x64xbf16, #tpu.memory_space<vmem>>, vector<1x64x64xbf16>
    %139 = vector.shape_cast %138 : vector<1x64x64xbf16> to vector<64x64xbf16>
    %cst_114 = arith.constant dense<0.000000e+00> : vector<8x64xf32>
    %140 = tpu.matmul %137, %139, %cst_114 {dimension_numbers = #tpu.dot_dimension_numbers<[1], [0], [0], [1], [0, 0, 1, 1], [], []>} : vector<8x64xbf16>, vector<64x64xbf16>, vector<8x64xf32> -> vector<8x64xf32>
    %141 = arith.addf %133, %140 : vector<8x64xf32>
    %c2_115 = arith.constant 2 : index
    %c0_116 = arith.constant 0 : index
    %c0_117 = arith.constant 0 : index
    %142 = vector.load %arg6[%c2_115, %c0_116, %c0_117] : memref<9x8x8xbf16, #tpu.memory_space<vmem>>, vector<1x8x8xbf16>
    %143 = vector.shape_cast %142 : vector<1x8x8xbf16> to vector<8x8xbf16>
    %cst_118 = arith.constant dense<0.000000e+00> : vector<8x64xf32>
    %144 = tpu.matmul %143, %124, %cst_118 {dimension_numbers = #tpu.dot_dimension_numbers<[1], [0], [0], [1], [0, 0, 1, 1], [], []>} : vector<8x8xbf16>, vector<8x64xbf16>, vector<8x64xf32> -> vector<8x64xf32>
    %145 = arith.truncf %144 : vector<8x64xf32> to vector<8x64xbf16>
    %c2_119 = arith.constant 2 : index
    %c0_120 = arith.constant 0 : index
    %c0_121 = arith.constant 0 : index
    %146 = vector.load %arg9[%c2_119, %c0_120, %c0_121] : memref<9x64x64xbf16, #tpu.memory_space<vmem>>, vector<1x64x64xbf16>
    %147 = vector.shape_cast %146 : vector<1x64x64xbf16> to vector<64x64xbf16>
    %cst_122 = arith.constant dense<0.000000e+00> : vector<8x64xf32>
    %148 = tpu.matmul %145, %147, %cst_122 {dimension_numbers = #tpu.dot_dimension_numbers<[1], [0], [0], [1], [0, 0, 1, 1], [], []>} : vector<8x64xbf16>, vector<64x64xbf16>, vector<8x64xf32> -> vector<8x64xf32>
    %149 = arith.addf %141, %148 : vector<8x64xf32>
    %c3_123 = arith.constant 3 : index
    %c0_124 = arith.constant 0 : index
    %c0_125 = arith.constant 0 : index
    %150 = vector.load %arg6[%c3_123, %c0_124, %c0_125] : memref<9x8x8xbf16, #tpu.memory_space<vmem>>, vector<1x8x8xbf16>
    %151 = vector.shape_cast %150 : vector<1x8x8xbf16> to vector<8x8xbf16>
    %cst_126 = arith.constant dense<0.000000e+00> : vector<8x64xf32>
    %152 = tpu.matmul %151, %124, %cst_126 {dimension_numbers = #tpu.dot_dimension_numbers<[1], [0], [0], [1], [0, 0, 1, 1], [], []>} : vector<8x8xbf16>, vector<8x64xbf16>, vector<8x64xf32> -> vector<8x64xf32>
    %153 = arith.truncf %152 : vector<8x64xf32> to vector<8x64xbf16>
    %c3_127 = arith.constant 3 : index
    %c0_128 = arith.constant 0 : index
    %c0_129 = arith.constant 0 : index
    %154 = vector.load %arg9[%c3_127, %c0_128, %c0_129] : memref<9x64x64xbf16, #tpu.memory_space<vmem>>, vector<1x64x64xbf16>
    %155 = vector.shape_cast %154 : vector<1x64x64xbf16> to vector<64x64xbf16>
    %cst_130 = arith.constant dense<0.000000e+00> : vector<8x64xf32>
    %156 = tpu.matmul %153, %155, %cst_130 {dimension_numbers = #tpu.dot_dimension_numbers<[1], [0], [0], [1], [0, 0, 1, 1], [], []>} : vector<8x64xbf16>, vector<64x64xbf16>, vector<8x64xf32> -> vector<8x64xf32>
    %157 = arith.addf %149, %156 : vector<8x64xf32>
    %c4_131 = arith.constant 4 : index
    %c0_132 = arith.constant 0 : index
    %c0_133 = arith.constant 0 : index
    %158 = vector.load %arg6[%c4_131, %c0_132, %c0_133] : memref<9x8x8xbf16, #tpu.memory_space<vmem>>, vector<1x8x8xbf16>
    %159 = vector.shape_cast %158 : vector<1x8x8xbf16> to vector<8x8xbf16>
    %cst_134 = arith.constant dense<0.000000e+00> : vector<8x64xf32>
    %160 = tpu.matmul %159, %124, %cst_134 {dimension_numbers = #tpu.dot_dimension_numbers<[1], [0], [0], [1], [0, 0, 1, 1], [], []>} : vector<8x8xbf16>, vector<8x64xbf16>, vector<8x64xf32> -> vector<8x64xf32>
    %161 = arith.truncf %160 : vector<8x64xf32> to vector<8x64xbf16>
    %c4_135 = arith.constant 4 : index
    %c0_136 = arith.constant 0 : index
    %c0_137 = arith.constant 0 : index
    %162 = vector.load %arg9[%c4_135, %c0_136, %c0_137] : memref<9x64x64xbf16, #tpu.memory_space<vmem>>, vector<1x64x64xbf16>
    %163 = vector.shape_cast %162 : vector<1x64x64xbf16> to vector<64x64xbf16>
    %cst_138 = arith.constant dense<0.000000e+00> : vector<8x64xf32>
    %164 = tpu.matmul %161, %163, %cst_138 {dimension_numbers = #tpu.dot_dimension_numbers<[1], [0], [0], [1], [0, 0, 1, 1], [], []>} : vector<8x64xbf16>, vector<64x64xbf16>, vector<8x64xf32> -> vector<8x64xf32>
    %165 = arith.addf %157, %164 : vector<8x64xf32>
    %c5_139 = arith.constant 5 : index
    %c0_140 = arith.constant 0 : index
    %c0_141 = arith.constant 0 : index
    %166 = vector.load %arg6[%c5_139, %c0_140, %c0_141] : memref<9x8x8xbf16, #tpu.memory_space<vmem>>, vector<1x8x8xbf16>
    %167 = vector.shape_cast %166 : vector<1x8x8xbf16> to vector<8x8xbf16>
    %cst_142 = arith.constant dense<0.000000e+00> : vector<8x64xf32>
    %168 = tpu.matmul %167, %124, %cst_142 {dimension_numbers = #tpu.dot_dimension_numbers<[1], [0], [0], [1], [0, 0, 1, 1], [], []>} : vector<8x8xbf16>, vector<8x64xbf16>, vector<8x64xf32> -> vector<8x64xf32>
    %169 = arith.truncf %168 : vector<8x64xf32> to vector<8x64xbf16>
    %c5_143 = arith.constant 5 : index
    %c0_144 = arith.constant 0 : index
    %c0_145 = arith.constant 0 : index
    %170 = vector.load %arg9[%c5_143, %c0_144, %c0_145] : memref<9x64x64xbf16, #tpu.memory_space<vmem>>, vector<1x64x64xbf16>
    %171 = vector.shape_cast %170 : vector<1x64x64xbf16> to vector<64x64xbf16>
    %cst_146 = arith.constant dense<0.000000e+00> : vector<8x64xf32>
    %172 = tpu.matmul %169, %171, %cst_146 {dimension_numbers = #tpu.dot_dimension_numbers<[1], [0], [0], [1], [0, 0, 1, 1], [], []>} : vector<8x64xbf16>, vector<64x64xbf16>, vector<8x64xf32> -> vector<8x64xf32>
    %173 = arith.addf %165, %172 : vector<8x64xf32>
    %c6_147 = arith.constant 6 : index
    %c0_148 = arith.constant 0 : index
    %c0_149 = arith.constant 0 : index
    %174 = vector.load %arg6[%c6_147, %c0_148, %c0_149] : memref<9x8x8xbf16, #tpu.memory_space<vmem>>, vector<1x8x8xbf16>
    %175 = vector.shape_cast %174 : vector<1x8x8xbf16> to vector<8x8xbf16>
    %cst_150 = arith.constant dense<0.000000e+00> : vector<8x64xf32>
    %176 = tpu.matmul %175, %124, %cst_150 {dimension_numbers = #tpu.dot_dimension_numbers<[1], [0], [0], [1], [0, 0, 1, 1], [], []>} : vector<8x8xbf16>, vector<8x64xbf16>, vector<8x64xf32> -> vector<8x64xf32>
    %177 = arith.truncf %176 : vector<8x64xf32> to vector<8x64xbf16>
    %c6_151 = arith.constant 6 : index
    %c0_152 = arith.constant 0 : index
    %c0_153 = arith.constant 0 : index
    %178 = vector.load %arg9[%c6_151, %c0_152, %c0_153] : memref<9x64x64xbf16, #tpu.memory_space<vmem>>, vector<1x64x64xbf16>
    %179 = vector.shape_cast %178 : vector<1x64x64xbf16> to vector<64x64xbf16>
    %cst_154 = arith.constant dense<0.000000e+00> : vector<8x64xf32>
    %180 = tpu.matmul %177, %179, %cst_154 {dimension_numbers = #tpu.dot_dimension_numbers<[1], [0], [0], [1], [0, 0, 1, 1], [], []>} : vector<8x64xbf16>, vector<64x64xbf16>, vector<8x64xf32> -> vector<8x64xf32>
    %181 = arith.addf %173, %180 : vector<8x64xf32>
    %c7_155 = arith.constant 7 : index
    %c0_156 = arith.constant 0 : index
    %c0_157 = arith.constant 0 : index
    %182 = vector.load %arg6[%c7_155, %c0_156, %c0_157] : memref<9x8x8xbf16, #tpu.memory_space<vmem>>, vector<1x8x8xbf16>
    %183 = vector.shape_cast %182 : vector<1x8x8xbf16> to vector<8x8xbf16>
    %cst_158 = arith.constant dense<0.000000e+00> : vector<8x64xf32>
    %184 = tpu.matmul %183, %124, %cst_158 {dimension_numbers = #tpu.dot_dimension_numbers<[1], [0], [0], [1], [0, 0, 1, 1], [], []>} : vector<8x8xbf16>, vector<8x64xbf16>, vector<8x64xf32> -> vector<8x64xf32>
    %185 = arith.truncf %184 : vector<8x64xf32> to vector<8x64xbf16>
    %c7_159 = arith.constant 7 : index
    %c0_160 = arith.constant 0 : index
    %c0_161 = arith.constant 0 : index
    %186 = vector.load %arg9[%c7_159, %c0_160, %c0_161] : memref<9x64x64xbf16, #tpu.memory_space<vmem>>, vector<1x64x64xbf16>
    %187 = vector.shape_cast %186 : vector<1x64x64xbf16> to vector<64x64xbf16>
    %cst_162 = arith.constant dense<0.000000e+00> : vector<8x64xf32>
    %188 = tpu.matmul %185, %187, %cst_162 {dimension_numbers = #tpu.dot_dimension_numbers<[1], [0], [0], [1], [0, 0, 1, 1], [], []>} : vector<8x64xbf16>, vector<64x64xbf16>, vector<8x64xf32> -> vector<8x64xf32>
    %189 = arith.addf %181, %188 : vector<8x64xf32>
    %c8_163 = arith.constant 8 : index
    %c0_164 = arith.constant 0 : index
    %c0_165 = arith.constant 0 : index
    %190 = vector.load %arg6[%c8_163, %c0_164, %c0_165] : memref<9x8x8xbf16, #tpu.memory_space<vmem>>, vector<1x8x8xbf16>
    %191 = vector.shape_cast %190 : vector<1x8x8xbf16> to vector<8x8xbf16>
    %cst_166 = arith.constant dense<0.000000e+00> : vector<8x64xf32>
    %192 = tpu.matmul %191, %124, %cst_166 {dimension_numbers = #tpu.dot_dimension_numbers<[1], [0], [0], [1], [0, 0, 1, 1], [], []>} : vector<8x8xbf16>, vector<8x64xbf16>, vector<8x64xf32> -> vector<8x64xf32>
    %193 = arith.truncf %192 : vector<8x64xf32> to vector<8x64xbf16>
    %c8_167 = arith.constant 8 : index
    %c0_168 = arith.constant 0 : index
    %c0_169 = arith.constant 0 : index
    %194 = vector.load %arg9[%c8_167, %c0_168, %c0_169] : memref<9x64x64xbf16, #tpu.memory_space<vmem>>, vector<1x64x64xbf16>
    %195 = vector.shape_cast %194 : vector<1x64x64xbf16> to vector<64x64xbf16>
    %cst_170 = arith.constant dense<0.000000e+00> : vector<8x64xf32>
    %196 = tpu.matmul %193, %195, %cst_170 {dimension_numbers = #tpu.dot_dimension_numbers<[1], [0], [0], [1], [0, 0, 1, 1], [], []>} : vector<8x64xbf16>, vector<64x64xbf16>, vector<8x64xf32> -> vector<8x64xf32>
    %197 = arith.addf %189, %196 : vector<8x64xf32>
    %198 = vector.broadcast %4 : vector<8x1xf32> to vector<8x64xf32>
    %199 = arith.addf %197, %198 : vector<8x64xf32>
    %200 = vector.broadcast %19 : vector<8x1xf32> to vector<8x64xf32>
    %201 = arith.mulf %199, %200 : vector<8x64xf32>
    %202 = vector.broadcast %21 : vector<8x1xf32> to vector<8x64xf32>
    %203 = arith.addf %201, %202 : vector<8x64xf32>
    %cst_171 = arith.constant 0.000000e+00 : f32
    %204 = vector.broadcast %cst_171 : f32 to vector<8x64xf32>
    %205 = arith.maximumf %203, %204 : vector<8x64xf32>
    %c0_172 = arith.constant 0 : index
    %c0_173 = arith.constant 0 : index
    %206 = vector.load %arg7[%c0_172, %c0_173] : memref<16x8xbf16, #tpu.memory_space<vmem>>, vector<16x8xbf16>
    %207 = arith.truncf %205 : vector<8x64xf32> to vector<8x64xbf16>
    %cst_174 = arith.constant dense<0.000000e+00> : vector<16x64xf32>
    %208 = tpu.matmul %206, %207, %cst_174 {dimension_numbers = #tpu.dot_dimension_numbers<[1], [0], [0], [1], [0, 0, 1, 1], [], []>} : vector<16x8xbf16>, vector<8x64xbf16>, vector<16x64xf32> -> vector<16x64xf32>
    %209 = vector.broadcast %5 : vector<16x1xf32> to vector<16x64xf32>
    %210 = arith.addf %208, %209 : vector<16x64xf32>
    %211 = vector.extract_strided_slice %1 {offsets = [0, 0], sizes = [16, 16], strides = [1, 1]} : vector<32x16xf32> to vector<16x16xf32>
    %212 = arith.truncf %211 : vector<16x16xf32> to vector<16x16xbf16>
    %c0_175 = arith.constant 0 : index
    %c0_176 = arith.constant 0 : index
    %213 = vector.load %arg8[%c0_175, %c0_176] : memref<16x64xbf16, #tpu.memory_space<vmem>>, vector<16x64xbf16>
    %cst_177 = arith.constant dense<0.000000e+00> : vector<16x64xf32>
    %214 = tpu.matmul %212, %213, %cst_177 {dimension_numbers = #tpu.dot_dimension_numbers<[1], [0], [0], [1], [0, 0, 1, 1], [], []>} : vector<16x16xbf16>, vector<16x64xbf16>, vector<16x64xf32> -> vector<16x64xf32>
    %215 = arith.addf %210, %214 : vector<16x64xf32>
    %216 = arith.truncf %215 : vector<16x64xf32> to vector<16x64xbf16>
    %c0_178 = arith.constant 0 : index
    %c0_179 = arith.constant 0 : index
    %217 = vector.load %arg10[%c0_178, %c0_179] : memref<12x16xbf16, #tpu.memory_space<vmem>>, vector<12x16xbf16>
    %cst_180 = arith.constant dense<0.000000e+00> : vector<12x64xf32>
    %218 = tpu.matmul %217, %216, %cst_180 {dimension_numbers = #tpu.dot_dimension_numbers<[1], [0], [0], [1], [0, 0, 1, 1], [], []>} : vector<12x16xbf16>, vector<16x64xbf16>, vector<12x64xf32> -> vector<12x64xf32>
    %219 = vector.extract_strided_slice %218 {offsets = [0, 0], sizes = [8, 64], strides = [1, 1]} : vector<12x64xf32> to vector<8x64xf32>
    %220 = vector.extract_strided_slice %218 {offsets = [8, 0], sizes = [2, 64], strides = [1, 1]} : vector<12x64xf32> to vector<2x64xf32>
    %221 = vector.extract_strided_slice %218 {offsets = [10, 0], sizes = [2, 64], strides = [1, 1]} : vector<12x64xf32> to vector<2x64xf32>
    %222 = arith.truncf %221 : vector<2x64xf32> to vector<2x64xbf16>
    %c0_181 = arith.constant 0 : index
    %c0_182 = arith.constant 0 : index
    %c0_183 = arith.constant 0 : index
    %223 = vector.load %arg12[%c0_181, %c0_182, %c0_183] : memref<4x64x16xbf16, #tpu.memory_space<vmem>>, vector<1x64x16xbf16>
    %224 = vector.shape_cast %223 : vector<1x64x16xbf16> to vector<64x16xbf16>
    %cst_184 = arith.constant dense<0.000000e+00> : vector<2x16xf32>
    %225 = tpu.matmul %222, %224, %cst_184 {dimension_numbers = #tpu.dot_dimension_numbers<[1], [0], [0], [1], [0, 0, 1, 1], [], []>} : vector<2x64xbf16>, vector<64x16xbf16>, vector<2x16xf32> -> vector<2x16xf32>
    %c1_185 = arith.constant 1 : index
    %c0_186 = arith.constant 0 : index
    %c0_187 = arith.constant 0 : index
    %226 = vector.load %arg12[%c1_185, %c0_186, %c0_187] : memref<4x64x16xbf16, #tpu.memory_space<vmem>>, vector<1x64x16xbf16>
    %227 = vector.shape_cast %226 : vector<1x64x16xbf16> to vector<64x16xbf16>
    %cst_188 = arith.constant dense<0.000000e+00> : vector<2x16xf32>
    %228 = tpu.matmul %222, %227, %cst_188 {dimension_numbers = #tpu.dot_dimension_numbers<[1], [0], [0], [1], [0, 0, 1, 1], [], []>} : vector<2x64xbf16>, vector<64x16xbf16>, vector<2x16xf32> -> vector<2x16xf32>
    %c2_189 = arith.constant 2 : index
    %c0_190 = arith.constant 0 : index
    %c0_191 = arith.constant 0 : index
    %229 = vector.load %arg12[%c2_189, %c0_190, %c0_191] : memref<4x64x16xbf16, #tpu.memory_space<vmem>>, vector<1x64x16xbf16>
    %230 = vector.shape_cast %229 : vector<1x64x16xbf16> to vector<64x16xbf16>
    %cst_192 = arith.constant dense<0.000000e+00> : vector<2x16xf32>
    %231 = tpu.matmul %222, %230, %cst_192 {dimension_numbers = #tpu.dot_dimension_numbers<[1], [0], [0], [1], [0, 0, 1, 1], [], []>} : vector<2x64xbf16>, vector<64x16xbf16>, vector<2x16xf32> -> vector<2x16xf32>
    %c3_193 = arith.constant 3 : index
    %c0_194 = arith.constant 0 : index
    %c0_195 = arith.constant 0 : index
    %232 = vector.load %arg12[%c3_193, %c0_194, %c0_195] : memref<4x64x16xbf16, #tpu.memory_space<vmem>>, vector<1x64x16xbf16>
    %233 = vector.shape_cast %232 : vector<1x64x16xbf16> to vector<64x16xbf16>
    %cst_196 = arith.constant dense<0.000000e+00> : vector<2x16xf32>
    %234 = tpu.matmul %222, %233, %cst_196 {dimension_numbers = #tpu.dot_dimension_numbers<[1], [0], [0], [1], [0, 0, 1, 1], [], []>} : vector<2x64xbf16>, vector<64x16xbf16>, vector<2x16xf32> -> vector<2x16xf32>
    %235 = arith.maximumf %225, %228 : vector<2x16xf32>
    %236 = arith.maximumf %231, %234 : vector<2x16xf32>
    %237 = arith.maximumf %235, %236 : vector<2x16xf32>
    %238 = arith.truncf %219 : vector<8x64xf32> to vector<8x64xbf16>
    %c0_197 = arith.constant 0 : index
    %c0_198 = arith.constant 0 : index
    %c0_199 = arith.constant 0 : index
    %239 = vector.load %arg12[%c0_197, %c0_198, %c0_199] : memref<4x64x16xbf16, #tpu.memory_space<vmem>>, vector<1x64x16xbf16>
    %240 = vector.shape_cast %239 : vector<1x64x16xbf16> to vector<64x16xbf16>
    %cst_200 = arith.constant dense<0.000000e+00> : vector<8x16xf32>
    %241 = tpu.matmul %238, %240, %cst_200 {dimension_numbers = #tpu.dot_dimension_numbers<[1], [0], [0], [1], [0, 0, 1, 1], [], []>} : vector<8x64xbf16>, vector<64x16xbf16>, vector<8x16xf32> -> vector<8x16xf32>
    %c1_201 = arith.constant 1 : index
    %c0_202 = arith.constant 0 : index
    %c0_203 = arith.constant 0 : index
    %242 = vector.load %arg12[%c1_201, %c0_202, %c0_203] : memref<4x64x16xbf16, #tpu.memory_space<vmem>>, vector<1x64x16xbf16>
    %243 = vector.shape_cast %242 : vector<1x64x16xbf16> to vector<64x16xbf16>
    %cst_204 = arith.constant dense<0.000000e+00> : vector<8x16xf32>
    %244 = tpu.matmul %238, %243, %cst_204 {dimension_numbers = #tpu.dot_dimension_numbers<[1], [0], [0], [1], [0, 0, 1, 1], [], []>} : vector<8x64xbf16>, vector<64x16xbf16>, vector<8x16xf32> -> vector<8x16xf32>
    %c2_205 = arith.constant 2 : index
    %c0_206 = arith.constant 0 : index
    %c0_207 = arith.constant 0 : index
    %245 = vector.load %arg12[%c2_205, %c0_206, %c0_207] : memref<4x64x16xbf16, #tpu.memory_space<vmem>>, vector<1x64x16xbf16>
    %246 = vector.shape_cast %245 : vector<1x64x16xbf16> to vector<64x16xbf16>
    %cst_208 = arith.constant dense<0.000000e+00> : vector<8x16xf32>
    %247 = tpu.matmul %238, %246, %cst_208 {dimension_numbers = #tpu.dot_dimension_numbers<[1], [0], [0], [1], [0, 0, 1, 1], [], []>} : vector<8x64xbf16>, vector<64x16xbf16>, vector<8x16xf32> -> vector<8x16xf32>
    %c3_209 = arith.constant 3 : index
    %c0_210 = arith.constant 0 : index
    %c0_211 = arith.constant 0 : index
    %248 = vector.load %arg12[%c3_209, %c0_210, %c0_211] : memref<4x64x16xbf16, #tpu.memory_space<vmem>>, vector<1x64x16xbf16>
    %249 = vector.shape_cast %248 : vector<1x64x16xbf16> to vector<64x16xbf16>
    %cst_212 = arith.constant dense<0.000000e+00> : vector<8x16xf32>
    %250 = tpu.matmul %238, %249, %cst_212 {dimension_numbers = #tpu.dot_dimension_numbers<[1], [0], [0], [1], [0, 0, 1, 1], [], []>} : vector<8x64xbf16>, vector<64x16xbf16>, vector<8x16xf32> -> vector<8x16xf32>
    %251 = arith.maximumf %241, %244 : vector<8x16xf32>
    %252 = arith.maximumf %247, %250 : vector<8x16xf32>
    %253 = arith.maximumf %251, %252 : vector<8x16xf32>
    %254 = arith.truncf %220 : vector<2x64xf32> to vector<2x64xbf16>
    %255 = arith.truncf %237 : vector<2x16xf32> to vector<2x16xbf16>
    %cst_213 = arith.constant dense<0.000000e+00> : vector<64x16xf32>
    %256 = tpu.matmul %254, %255, %cst_213 {dimension_numbers = #tpu.dot_dimension_numbers<[0], [0], [1], [1], [0, 1, 1, 1], [], []>} : vector<2x64xbf16>, vector<2x16xbf16>, vector<64x16xf32> -> vector<64x16xf32>
    %cst_214 = arith.constant dense<0xFF800000> : vector<64xf32>
    %257 = vector.multi_reduction <maximumf>, %256, %cst_214 [1] : vector<64x16xf32> to vector<64xf32>
    %258 = vector.shape_cast %257 : vector<64xf32> to vector<64x1xf32>
    %259 = vector.broadcast %258 : vector<64x1xf32> to vector<64x16xf32>
    %260 = arith.subf %256, %259 : vector<64x16xf32>
    %261 = math.exp %260 : vector<64x16xf32>
    %cst_215 = arith.constant dense<0.000000e+00> : vector<64xf32>
    %262 = vector.multi_reduction <add>, %261, %cst_215 [1] : vector<64x16xf32> to vector<64xf32>
    %263 = vector.shape_cast %262 : vector<64xf32> to vector<64x1xf32>
    %264 = tpu.reciprocal %263 {approx = true} : vector<64x1xf32> -> vector<64x1xf32>
    %265 = vector.broadcast %264 : vector<64x1xf32> to vector<64x16xf32>
    %266 = arith.mulf %261, %265 : vector<64x16xf32>
    %267 = arith.truncf %253 : vector<8x16xf32> to vector<8x16xbf16>
    %268 = arith.truncf %266 : vector<64x16xf32> to vector<64x16xbf16>
    %cst_216 = arith.constant dense<0.000000e+00> : vector<8x64xf32>
    %269 = tpu.matmul %267, %268, %cst_216 {dimension_numbers = #tpu.dot_dimension_numbers<[1], [1], [0], [0], [0, 0, 1, 0], [], []>} : vector<8x16xbf16>, vector<64x16xbf16>, vector<8x64xf32> -> vector<8x64xf32>
    %c0_217 = arith.constant 0 : index
    %c0_218 = arith.constant 0 : index
    %270 = vector.load %arg11[%c0_217, %c0_218] : memref<16x8xbf16, #tpu.memory_space<vmem>>, vector<16x8xbf16>
    %271 = arith.truncf %269 : vector<8x64xf32> to vector<8x64xbf16>
    %cst_219 = arith.constant dense<0.000000e+00> : vector<16x64xf32>
    %272 = tpu.matmul %270, %271, %cst_219 {dimension_numbers = #tpu.dot_dimension_numbers<[1], [0], [0], [1], [0, 0, 1, 1], [], []>} : vector<16x8xbf16>, vector<8x64xbf16>, vector<16x64xf32> -> vector<16x64xf32>
    %273 = arith.addf %215, %272 : vector<16x64xf32>
    %c40 = arith.constant 40 : index
    %c0_220 = arith.constant 0 : index
    %274 = vector.load %arg3[%c40, %c0_220] : memref<96x1xf32, #tpu.memory_space<vmem>>, vector<4x1xf32>
    %c48 = arith.constant 48 : index
    %c0_221 = arith.constant 0 : index
    %275 = vector.load %arg3[%c48, %c0_221] : memref<96x1xf32, #tpu.memory_space<vmem>>, vector<4x1xf32>
    %c56 = arith.constant 56 : index
    %c0_222 = arith.constant 0 : index
    %276 = vector.load %arg3[%c56, %c0_222] : memref<96x1xf32, #tpu.memory_space<vmem>>, vector<4x1xf32>
    %c64_223 = arith.constant 64 : index
    %c0_224 = arith.constant 0 : index
    %277 = vector.load %arg3[%c64_223, %c0_224] : memref<96x1xf32, #tpu.memory_space<vmem>>, vector<8x1xf32>
    %c0_225 = arith.constant 0 : index
    %c112 = arith.constant 112 : index
    %c0_226 = arith.constant 0 : index
    %278 = vector.load %arg2[%c0_225, %c112, %c0_226] : memref<1x192x1xf32, #tpu.memory_space<vmem>>, vector<1x16x1xf32>
    %279 = vector.shape_cast %278 : vector<1x16x1xf32> to vector<16x1xf32>
    %c0_227 = arith.constant 0 : index
    %c128 = arith.constant 128 : index
    %c0_228 = arith.constant 0 : index
    %280 = vector.load %arg2[%c0_227, %c128, %c0_228] : memref<1x192x1xf32, #tpu.memory_space<vmem>>, vector<1x16x1xf32>
    %281 = vector.shape_cast %280 : vector<1x16x1xf32> to vector<16x1xf32>
    %c0_229 = arith.constant 0 : index
    %c144 = arith.constant 144 : index
    %c0_230 = arith.constant 0 : index
    %282 = vector.load %arg2[%c0_229, %c144, %c0_230] : memref<1x192x1xf32, #tpu.memory_space<vmem>>, vector<1x4x1xf32>
    %283 = vector.shape_cast %282 : vector<1x4x1xf32> to vector<4x1xf32>
    %c0_231 = arith.constant 0 : index
    %c152 = arith.constant 152 : index
    %c0_232 = arith.constant 0 : index
    %284 = vector.load %arg2[%c0_231, %c152, %c0_232] : memref<1x192x1xf32, #tpu.memory_space<vmem>>, vector<1x4x1xf32>
    %285 = vector.shape_cast %284 : vector<1x4x1xf32> to vector<4x1xf32>
    %c0_233 = arith.constant 0 : index
    %c160 = arith.constant 160 : index
    %c0_234 = arith.constant 0 : index
    %286 = vector.load %arg2[%c0_233, %c160, %c0_234] : memref<1x192x1xf32, #tpu.memory_space<vmem>>, vector<1x4x1xf32>
    %287 = vector.shape_cast %286 : vector<1x4x1xf32> to vector<4x1xf32>
    %c0_235 = arith.constant 0 : index
    %c168 = arith.constant 168 : index
    %c0_236 = arith.constant 0 : index
    %288 = vector.load %arg2[%c0_235, %c168, %c0_236] : memref<1x192x1xf32, #tpu.memory_space<vmem>>, vector<1x4x1xf32>
    %289 = vector.shape_cast %288 : vector<1x4x1xf32> to vector<4x1xf32>
    %c0_237 = arith.constant 0 : index
    %c176 = arith.constant 176 : index
    %c0_238 = arith.constant 0 : index
    %290 = vector.load %arg2[%c0_237, %c176, %c0_238] : memref<1x192x1xf32, #tpu.memory_space<vmem>>, vector<1x4x1xf32>
    %291 = vector.shape_cast %290 : vector<1x4x1xf32> to vector<4x1xf32>
    %c0_239 = arith.constant 0 : index
    %c184 = arith.constant 184 : index
    %c0_240 = arith.constant 0 : index
    %292 = vector.load %arg2[%c0_239, %c184, %c0_240] : memref<1x192x1xf32, #tpu.memory_space<vmem>>, vector<1x4x1xf32>
    %293 = vector.shape_cast %292 : vector<1x4x1xf32> to vector<4x1xf32>
    %294 = vector.broadcast %279 : vector<16x1xf32> to vector<16x64xf32>
    %295 = arith.mulf %273, %294 : vector<16x64xf32>
    %296 = vector.broadcast %281 : vector<16x1xf32> to vector<16x64xf32>
    %297 = arith.addf %295, %296 : vector<16x64xf32>
    %cst_241 = arith.constant 0.000000e+00 : f32
    %298 = vector.broadcast %cst_241 : f32 to vector<16x64xf32>
    %299 = arith.maximumf %297, %298 : vector<16x64xf32>
    %c0_242 = arith.constant 0 : index
    %c0_243 = arith.constant 0 : index
    %300 = vector.load %arg13[%c0_242, %c0_243] : memref<4x16xbf16, #tpu.memory_space<vmem>>, vector<4x16xbf16>
    %301 = arith.truncf %299 : vector<16x64xf32> to vector<16x64xbf16>
    %cst_244 = arith.constant dense<0.000000e+00> : vector<4x64xf32>
    %302 = tpu.matmul %300, %301, %cst_244 {dimension_numbers = #tpu.dot_dimension_numbers<[1], [0], [0], [1], [0, 0, 1, 1], [], []>} : vector<4x16xbf16>, vector<16x64xbf16>, vector<4x64xf32> -> vector<4x64xf32>
    %303 = vector.broadcast %274 : vector<4x1xf32> to vector<4x64xf32>
    %304 = arith.addf %302, %303 : vector<4x64xf32>
    %305 = vector.broadcast %283 : vector<4x1xf32> to vector<4x64xf32>
    %306 = arith.mulf %304, %305 : vector<4x64xf32>
    %307 = vector.broadcast %285 : vector<4x1xf32> to vector<4x64xf32>
    %308 = arith.addf %306, %307 : vector<4x64xf32>
    %cst_245 = arith.constant 0.000000e+00 : f32
    %309 = vector.broadcast %cst_245 : f32 to vector<4x64xf32>
    %310 = arith.maximumf %308, %309 : vector<4x64xf32>
    %311 = arith.truncf %310 : vector<4x64xf32> to vector<4x64xbf16>
    %c0_246 = arith.constant 0 : index
    %c0_247 = arith.constant 0 : index
    %312 = vector.load %arg17[%c0_246, %c0_247] : memref<64x256xbf16, #tpu.memory_space<vmem>>, vector<64x256xbf16>
    %cst_248 = arith.constant dense<0.000000e+00> : vector<4x256xf32>
    %313 = tpu.matmul %311, %312, %cst_248 {dimension_numbers = #tpu.dot_dimension_numbers<[1], [0], [0], [1], [0, 0, 1, 1], [], []>} : vector<4x64xbf16>, vector<64x256xbf16>, vector<4x256xf32> -> vector<4x256xf32>
    %cst_249 = arith.constant 0.000000e+00 : f32
    %314 = vector.broadcast %cst_249 : f32 to vector<4x256xf32>
    %c17_i32 = arith.constant 17 : i32
    %315 = tpu.dynamic_rotate %313 by %c17_i32 dim 1 : vector<4x256xf32>, i32 -> vector<4x256xf32>
    %c0_250 = arith.constant 0 : index
    %c0_251 = arith.constant 0 : index
    %c0_252 = arith.constant 0 : index
    %316 = vector.load %arg14[%c0_250, %c0_251, %c0_252] : memref<9x4x4xbf16, #tpu.memory_space<vmem>>, vector<1x4x4xbf16>
    %317 = vector.shape_cast %316 : vector<1x4x4xbf16> to vector<4x4xbf16>
    %318 = arith.truncf %315 : vector<4x256xf32> to vector<4x256xbf16>
    %cst_253 = arith.constant dense<0.000000e+00> : vector<4x256xf32>
    %319 = tpu.matmul %317, %318, %cst_253 {dimension_numbers = #tpu.dot_dimension_numbers<[1], [0], [0], [1], [0, 0, 1, 1], [], []>} : vector<4x4xbf16>, vector<4x256xbf16>, vector<4x256xf32> -> vector<4x256xf32>
    %c0_254 = arith.constant 0 : index
    %c0_255 = arith.constant 0 : index
    %c0_256 = arith.constant 0 : index
    %320 = vector.load %arg18[%c0_254, %c0_255, %c0_256] : memref<9x1x256xf32, #tpu.memory_space<vmem>>, vector<1x1x256xf32>
    %321 = vector.shape_cast %320 : vector<1x1x256xf32> to vector<1x256xf32>
    %322 = vector.broadcast %321 : vector<1x256xf32> to vector<4x256xf32>
    %323 = arith.mulf %319, %322 : vector<4x256xf32>
    %324 = arith.addf %314, %323 : vector<4x256xf32>
    %c16_i32 = arith.constant 16 : i32
    %325 = tpu.dynamic_rotate %313 by %c16_i32 dim 1 : vector<4x256xf32>, i32 -> vector<4x256xf32>
    %c1_257 = arith.constant 1 : index
    %c0_258 = arith.constant 0 : index
    %c0_259 = arith.constant 0 : index
    %326 = vector.load %arg14[%c1_257, %c0_258, %c0_259] : memref<9x4x4xbf16, #tpu.memory_space<vmem>>, vector<1x4x4xbf16>
    %327 = vector.shape_cast %326 : vector<1x4x4xbf16> to vector<4x4xbf16>
    %328 = arith.truncf %325 : vector<4x256xf32> to vector<4x256xbf16>
    %cst_260 = arith.constant dense<0.000000e+00> : vector<4x256xf32>
    %329 = tpu.matmul %327, %328, %cst_260 {dimension_numbers = #tpu.dot_dimension_numbers<[1], [0], [0], [1], [0, 0, 1, 1], [], []>} : vector<4x4xbf16>, vector<4x256xbf16>, vector<4x256xf32> -> vector<4x256xf32>
    %c1_261 = arith.constant 1 : index
    %c0_262 = arith.constant 0 : index
    %c0_263 = arith.constant 0 : index
    %330 = vector.load %arg18[%c1_261, %c0_262, %c0_263] : memref<9x1x256xf32, #tpu.memory_space<vmem>>, vector<1x1x256xf32>
    %331 = vector.shape_cast %330 : vector<1x1x256xf32> to vector<1x256xf32>
    %332 = vector.broadcast %331 : vector<1x256xf32> to vector<4x256xf32>
    %333 = arith.mulf %329, %332 : vector<4x256xf32>
    %334 = arith.addf %324, %333 : vector<4x256xf32>
    %c15_i32 = arith.constant 15 : i32
    %335 = tpu.dynamic_rotate %313 by %c15_i32 dim 1 : vector<4x256xf32>, i32 -> vector<4x256xf32>
    %c2_264 = arith.constant 2 : index
    %c0_265 = arith.constant 0 : index
    %c0_266 = arith.constant 0 : index
    %336 = vector.load %arg14[%c2_264, %c0_265, %c0_266] : memref<9x4x4xbf16, #tpu.memory_space<vmem>>, vector<1x4x4xbf16>
    %337 = vector.shape_cast %336 : vector<1x4x4xbf16> to vector<4x4xbf16>
    %338 = arith.truncf %335 : vector<4x256xf32> to vector<4x256xbf16>
    %cst_267 = arith.constant dense<0.000000e+00> : vector<4x256xf32>
    %339 = tpu.matmul %337, %338, %cst_267 {dimension_numbers = #tpu.dot_dimension_numbers<[1], [0], [0], [1], [0, 0, 1, 1], [], []>} : vector<4x4xbf16>, vector<4x256xbf16>, vector<4x256xf32> -> vector<4x256xf32>
    %c2_268 = arith.constant 2 : index
    %c0_269 = arith.constant 0 : index
    %c0_270 = arith.constant 0 : index
    %340 = vector.load %arg18[%c2_268, %c0_269, %c0_270] : memref<9x1x256xf32, #tpu.memory_space<vmem>>, vector<1x1x256xf32>
    %341 = vector.shape_cast %340 : vector<1x1x256xf32> to vector<1x256xf32>
    %342 = vector.broadcast %341 : vector<1x256xf32> to vector<4x256xf32>
    %343 = arith.mulf %339, %342 : vector<4x256xf32>
    %344 = arith.addf %334, %343 : vector<4x256xf32>
    %c1_i32 = arith.constant 1 : i32
    %345 = tpu.dynamic_rotate %313 by %c1_i32 dim 1 : vector<4x256xf32>, i32 -> vector<4x256xf32>
    %c3_271 = arith.constant 3 : index
    %c0_272 = arith.constant 0 : index
    %c0_273 = arith.constant 0 : index
    %346 = vector.load %arg14[%c3_271, %c0_272, %c0_273] : memref<9x4x4xbf16, #tpu.memory_space<vmem>>, vector<1x4x4xbf16>
    %347 = vector.shape_cast %346 : vector<1x4x4xbf16> to vector<4x4xbf16>
    %348 = arith.truncf %345 : vector<4x256xf32> to vector<4x256xbf16>
    %cst_274 = arith.constant dense<0.000000e+00> : vector<4x256xf32>
    %349 = tpu.matmul %347, %348, %cst_274 {dimension_numbers = #tpu.dot_dimension_numbers<[1], [0], [0], [1], [0, 0, 1, 1], [], []>} : vector<4x4xbf16>, vector<4x256xbf16>, vector<4x256xf32> -> vector<4x256xf32>
    %c3_275 = arith.constant 3 : index
    %c0_276 = arith.constant 0 : index
    %c0_277 = arith.constant 0 : index
    %350 = vector.load %arg18[%c3_275, %c0_276, %c0_277] : memref<9x1x256xf32, #tpu.memory_space<vmem>>, vector<1x1x256xf32>
    %351 = vector.shape_cast %350 : vector<1x1x256xf32> to vector<1x256xf32>
    %352 = vector.broadcast %351 : vector<1x256xf32> to vector<4x256xf32>
    %353 = arith.mulf %349, %352 : vector<4x256xf32>
    %354 = arith.addf %344, %353 : vector<4x256xf32>
    %c4_278 = arith.constant 4 : index
    %c0_279 = arith.constant 0 : index
    %c0_280 = arith.constant 0 : index
    %355 = vector.load %arg14[%c4_278, %c0_279, %c0_280] : memref<9x4x4xbf16, #tpu.memory_space<vmem>>, vector<1x4x4xbf16>
    %356 = vector.shape_cast %355 : vector<1x4x4xbf16> to vector<4x4xbf16>
    %357 = arith.truncf %313 : vector<4x256xf32> to vector<4x256xbf16>
    %cst_281 = arith.constant dense<0.000000e+00> : vector<4x256xf32>
    %358 = tpu.matmul %356, %357, %cst_281 {dimension_numbers = #tpu.dot_dimension_numbers<[1], [0], [0], [1], [0, 0, 1, 1], [], []>} : vector<4x4xbf16>, vector<4x256xbf16>, vector<4x256xf32> -> vector<4x256xf32>
    %359 = arith.addf %354, %358 : vector<4x256xf32>
    %c255_i32 = arith.constant 255 : i32
    %360 = tpu.dynamic_rotate %313 by %c255_i32 dim 1 : vector<4x256xf32>, i32 -> vector<4x256xf32>
    %c5_282 = arith.constant 5 : index
    %c0_283 = arith.constant 0 : index
    %c0_284 = arith.constant 0 : index
    %361 = vector.load %arg14[%c5_282, %c0_283, %c0_284] : memref<9x4x4xbf16, #tpu.memory_space<vmem>>, vector<1x4x4xbf16>
    %362 = vector.shape_cast %361 : vector<1x4x4xbf16> to vector<4x4xbf16>
    %363 = arith.truncf %360 : vector<4x256xf32> to vector<4x256xbf16>
    %cst_285 = arith.constant dense<0.000000e+00> : vector<4x256xf32>
    %364 = tpu.matmul %362, %363, %cst_285 {dimension_numbers = #tpu.dot_dimension_numbers<[1], [0], [0], [1], [0, 0, 1, 1], [], []>} : vector<4x4xbf16>, vector<4x256xbf16>, vector<4x256xf32> -> vector<4x256xf32>
    %c5_286 = arith.constant 5 : index
    %c0_287 = arith.constant 0 : index
    %c0_288 = arith.constant 0 : index
    %365 = vector.load %arg18[%c5_286, %c0_287, %c0_288] : memref<9x1x256xf32, #tpu.memory_space<vmem>>, vector<1x1x256xf32>
    %366 = vector.shape_cast %365 : vector<1x1x256xf32> to vector<1x256xf32>
    %367 = vector.broadcast %366 : vector<1x256xf32> to vector<4x256xf32>
    %368 = arith.mulf %364, %367 : vector<4x256xf32>
    %369 = arith.addf %359, %368 : vector<4x256xf32>
    %c241_i32 = arith.constant 241 : i32
    %370 = tpu.dynamic_rotate %313 by %c241_i32 dim 1 : vector<4x256xf32>, i32 -> vector<4x256xf32>
    %c6_289 = arith.constant 6 : index
    %c0_290 = arith.constant 0 : index
    %c0_291 = arith.constant 0 : index
    %371 = vector.load %arg14[%c6_289, %c0_290, %c0_291] : memref<9x4x4xbf16, #tpu.memory_space<vmem>>, vector<1x4x4xbf16>
    %372 = vector.shape_cast %371 : vector<1x4x4xbf16> to vector<4x4xbf16>
    %373 = arith.truncf %370 : vector<4x256xf32> to vector<4x256xbf16>
    %cst_292 = arith.constant dense<0.000000e+00> : vector<4x256xf32>
    %374 = tpu.matmul %372, %373, %cst_292 {dimension_numbers = #tpu.dot_dimension_numbers<[1], [0], [0], [1], [0, 0, 1, 1], [], []>} : vector<4x4xbf16>, vector<4x256xbf16>, vector<4x256xf32> -> vector<4x256xf32>
    %c6_293 = arith.constant 6 : index
    %c0_294 = arith.constant 0 : index
    %c0_295 = arith.constant 0 : index
    %375 = vector.load %arg18[%c6_293, %c0_294, %c0_295] : memref<9x1x256xf32, #tpu.memory_space<vmem>>, vector<1x1x256xf32>
    %376 = vector.shape_cast %375 : vector<1x1x256xf32> to vector<1x256xf32>
    %377 = vector.broadcast %376 : vector<1x256xf32> to vector<4x256xf32>
    %378 = arith.mulf %374, %377 : vector<4x256xf32>
    %379 = arith.addf %369, %378 : vector<4x256xf32>
    %c240_i32 = arith.constant 240 : i32
    %380 = tpu.dynamic_rotate %313 by %c240_i32 dim 1 : vector<4x256xf32>, i32 -> vector<4x256xf32>
    %c7_296 = arith.constant 7 : index
    %c0_297 = arith.constant 0 : index
    %c0_298 = arith.constant 0 : index
    %381 = vector.load %arg14[%c7_296, %c0_297, %c0_298] : memref<9x4x4xbf16, #tpu.memory_space<vmem>>, vector<1x4x4xbf16>
    %382 = vector.shape_cast %381 : vector<1x4x4xbf16> to vector<4x4xbf16>
    %383 = arith.truncf %380 : vector<4x256xf32> to vector<4x256xbf16>
    %cst_299 = arith.constant dense<0.000000e+00> : vector<4x256xf32>
    %384 = tpu.matmul %382, %383, %cst_299 {dimension_numbers = #tpu.dot_dimension_numbers<[1], [0], [0], [1], [0, 0, 1, 1], [], []>} : vector<4x4xbf16>, vector<4x256xbf16>, vector<4x256xf32> -> vector<4x256xf32>
    %c7_300 = arith.constant 7 : index
    %c0_301 = arith.constant 0 : index
    %c0_302 = arith.constant 0 : index
    %385 = vector.load %arg18[%c7_300, %c0_301, %c0_302] : memref<9x1x256xf32, #tpu.memory_space<vmem>>, vector<1x1x256xf32>
    %386 = vector.shape_cast %385 : vector<1x1x256xf32> to vector<1x256xf32>
    %387 = vector.broadcast %386 : vector<1x256xf32> to vector<4x256xf32>
    %388 = arith.mulf %384, %387 : vector<4x256xf32>
    %389 = arith.addf %379, %388 : vector<4x256xf32>
    %c239_i32 = arith.constant 239 : i32
    %390 = tpu.dynamic_rotate %313 by %c239_i32 dim 1 : vector<4x256xf32>, i32 -> vector<4x256xf32>
    %c8_303 = arith.constant 8 : index
    %c0_304 = arith.constant 0 : index
    %c0_305 = arith.constant 0 : index
    %391 = vector.load %arg14[%c8_303, %c0_304, %c0_305] : memref<9x4x4xbf16, #tpu.memory_space<vmem>>, vector<1x4x4xbf16>
    %392 = vector.shape_cast %391 : vector<1x4x4xbf16> to vector<4x4xbf16>
    %393 = arith.truncf %390 : vector<4x256xf32> to vector<4x256xbf16>
    %cst_306 = arith.constant dense<0.000000e+00> : vector<4x256xf32>
    %394 = tpu.matmul %392, %393, %cst_306 {dimension_numbers = #tpu.dot_dimension_numbers<[1], [0], [0], [1], [0, 0, 1, 1], [], []>} : vector<4x4xbf16>, vector<4x256xbf16>, vector<4x256xf32> -> vector<4x256xf32>
    %c8_307 = arith.constant 8 : index
    %c0_308 = arith.constant 0 : index
    %c0_309 = arith.constant 0 : index
    %395 = vector.load %arg18[%c8_307, %c0_308, %c0_309] : memref<9x1x256xf32, #tpu.memory_space<vmem>>, vector<1x1x256xf32>
    %396 = vector.shape_cast %395 : vector<1x1x256xf32> to vector<1x256xf32>
    %397 = vector.broadcast %396 : vector<1x256xf32> to vector<4x256xf32>
    %398 = arith.mulf %394, %397 : vector<4x256xf32>
    %399 = arith.addf %389, %398 : vector<4x256xf32>
    %400 = vector.broadcast %275 : vector<4x1xf32> to vector<4x256xf32>
    %401 = arith.addf %399, %400 : vector<4x256xf32>
    %402 = vector.broadcast %287 : vector<4x1xf32> to vector<4x256xf32>
    %403 = arith.mulf %401, %402 : vector<4x256xf32>
    %404 = vector.broadcast %289 : vector<4x1xf32> to vector<4x256xf32>
    %405 = arith.addf %403, %404 : vector<4x256xf32>
    %cst_310 = arith.constant 0.000000e+00 : f32
    %406 = vector.broadcast %cst_310 : f32 to vector<4x256xf32>
    %407 = arith.maximumf %405, %406 : vector<4x256xf32>
    %cst_311 = arith.constant 0.000000e+00 : f32
    %408 = vector.broadcast %cst_311 : f32 to vector<4x256xf32>
    %c17_i32_312 = arith.constant 17 : i32
    %409 = tpu.dynamic_rotate %407 by %c17_i32_312 dim 1 : vector<4x256xf32>, i32 -> vector<4x256xf32>
    %c0_313 = arith.constant 0 : index
    %c0_314 = arith.constant 0 : index
    %c0_315 = arith.constant 0 : index
    %410 = vector.load %arg15[%c0_313, %c0_314, %c0_315] : memref<9x4x4xbf16, #tpu.memory_space<vmem>>, vector<1x4x4xbf16>
    %411 = vector.shape_cast %410 : vector<1x4x4xbf16> to vector<4x4xbf16>
    %412 = arith.truncf %409 : vector<4x256xf32> to vector<4x256xbf16>
    %cst_316 = arith.constant dense<0.000000e+00> : vector<4x256xf32>
    %413 = tpu.matmul %411, %412, %cst_316 {dimension_numbers = #tpu.dot_dimension_numbers<[1], [0], [0], [1], [0, 0, 1, 1], [], []>} : vector<4x4xbf16>, vector<4x256xbf16>, vector<4x256xf32> -> vector<4x256xf32>
    %c0_317 = arith.constant 0 : index
    %c0_318 = arith.constant 0 : index
    %c0_319 = arith.constant 0 : index
    %414 = vector.load %arg18[%c0_317, %c0_318, %c0_319] : memref<9x1x256xf32, #tpu.memory_space<vmem>>, vector<1x1x256xf32>
    %415 = vector.shape_cast %414 : vector<1x1x256xf32> to vector<1x256xf32>
    %416 = vector.broadcast %415 : vector<1x256xf32> to vector<4x256xf32>
    %417 = arith.mulf %413, %416 : vector<4x256xf32>
    %418 = arith.addf %408, %417 : vector<4x256xf32>
    %c16_i32_320 = arith.constant 16 : i32
    %419 = tpu.dynamic_rotate %407 by %c16_i32_320 dim 1 : vector<4x256xf32>, i32 -> vector<4x256xf32>
    %c1_321 = arith.constant 1 : index
    %c0_322 = arith.constant 0 : index
    %c0_323 = arith.constant 0 : index
    %420 = vector.load %arg15[%c1_321, %c0_322, %c0_323] : memref<9x4x4xbf16, #tpu.memory_space<vmem>>, vector<1x4x4xbf16>
    %421 = vector.shape_cast %420 : vector<1x4x4xbf16> to vector<4x4xbf16>
    %422 = arith.truncf %419 : vector<4x256xf32> to vector<4x256xbf16>
    %cst_324 = arith.constant dense<0.000000e+00> : vector<4x256xf32>
    %423 = tpu.matmul %421, %422, %cst_324 {dimension_numbers = #tpu.dot_dimension_numbers<[1], [0], [0], [1], [0, 0, 1, 1], [], []>} : vector<4x4xbf16>, vector<4x256xbf16>, vector<4x256xf32> -> vector<4x256xf32>
    %c1_325 = arith.constant 1 : index
    %c0_326 = arith.constant 0 : index
    %c0_327 = arith.constant 0 : index
    %424 = vector.load %arg18[%c1_325, %c0_326, %c0_327] : memref<9x1x256xf32, #tpu.memory_space<vmem>>, vector<1x1x256xf32>
    %425 = vector.shape_cast %424 : vector<1x1x256xf32> to vector<1x256xf32>
    %426 = vector.broadcast %425 : vector<1x256xf32> to vector<4x256xf32>
    %427 = arith.mulf %423, %426 : vector<4x256xf32>
    %428 = arith.addf %418, %427 : vector<4x256xf32>
    %c15_i32_328 = arith.constant 15 : i32
    %429 = tpu.dynamic_rotate %407 by %c15_i32_328 dim 1 : vector<4x256xf32>, i32 -> vector<4x256xf32>
    %c2_329 = arith.constant 2 : index
    %c0_330 = arith.constant 0 : index
    %c0_331 = arith.constant 0 : index
    %430 = vector.load %arg15[%c2_329, %c0_330, %c0_331] : memref<9x4x4xbf16, #tpu.memory_space<vmem>>, vector<1x4x4xbf16>
    %431 = vector.shape_cast %430 : vector<1x4x4xbf16> to vector<4x4xbf16>
    %432 = arith.truncf %429 : vector<4x256xf32> to vector<4x256xbf16>
    %cst_332 = arith.constant dense<0.000000e+00> : vector<4x256xf32>
    %433 = tpu.matmul %431, %432, %cst_332 {dimension_numbers = #tpu.dot_dimension_numbers<[1], [0], [0], [1], [0, 0, 1, 1], [], []>} : vector<4x4xbf16>, vector<4x256xbf16>, vector<4x256xf32> -> vector<4x256xf32>
    %c2_333 = arith.constant 2 : index
    %c0_334 = arith.constant 0 : index
    %c0_335 = arith.constant 0 : index
    %434 = vector.load %arg18[%c2_333, %c0_334, %c0_335] : memref<9x1x256xf32, #tpu.memory_space<vmem>>, vector<1x1x256xf32>
    %435 = vector.shape_cast %434 : vector<1x1x256xf32> to vector<1x256xf32>
    %436 = vector.broadcast %435 : vector<1x256xf32> to vector<4x256xf32>
    %437 = arith.mulf %433, %436 : vector<4x256xf32>
    %438 = arith.addf %428, %437 : vector<4x256xf32>
    %c1_i32_336 = arith.constant 1 : i32
    %439 = tpu.dynamic_rotate %407 by %c1_i32_336 dim 1 : vector<4x256xf32>, i32 -> vector<4x256xf32>
    %c3_337 = arith.constant 3 : index
    %c0_338 = arith.constant 0 : index
    %c0_339 = arith.constant 0 : index
    %440 = vector.load %arg15[%c3_337, %c0_338, %c0_339] : memref<9x4x4xbf16, #tpu.memory_space<vmem>>, vector<1x4x4xbf16>
    %441 = vector.shape_cast %440 : vector<1x4x4xbf16> to vector<4x4xbf16>
    %442 = arith.truncf %439 : vector<4x256xf32> to vector<4x256xbf16>
    %cst_340 = arith.constant dense<0.000000e+00> : vector<4x256xf32>
    %443 = tpu.matmul %441, %442, %cst_340 {dimension_numbers = #tpu.dot_dimension_numbers<[1], [0], [0], [1], [0, 0, 1, 1], [], []>} : vector<4x4xbf16>, vector<4x256xbf16>, vector<4x256xf32> -> vector<4x256xf32>
    %c3_341 = arith.constant 3 : index
    %c0_342 = arith.constant 0 : index
    %c0_343 = arith.constant 0 : index
    %444 = vector.load %arg18[%c3_341, %c0_342, %c0_343] : memref<9x1x256xf32, #tpu.memory_space<vmem>>, vector<1x1x256xf32>
    %445 = vector.shape_cast %444 : vector<1x1x256xf32> to vector<1x256xf32>
    %446 = vector.broadcast %445 : vector<1x256xf32> to vector<4x256xf32>
    %447 = arith.mulf %443, %446 : vector<4x256xf32>
    %448 = arith.addf %438, %447 : vector<4x256xf32>
    %c4_344 = arith.constant 4 : index
    %c0_345 = arith.constant 0 : index
    %c0_346 = arith.constant 0 : index
    %449 = vector.load %arg15[%c4_344, %c0_345, %c0_346] : memref<9x4x4xbf16, #tpu.memory_space<vmem>>, vector<1x4x4xbf16>
    %450 = vector.shape_cast %449 : vector<1x4x4xbf16> to vector<4x4xbf16>
    %451 = arith.truncf %407 : vector<4x256xf32> to vector<4x256xbf16>
    %cst_347 = arith.constant dense<0.000000e+00> : vector<4x256xf32>
    %452 = tpu.matmul %450, %451, %cst_347 {dimension_numbers = #tpu.dot_dimension_numbers<[1], [0], [0], [1], [0, 0, 1, 1], [], []>} : vector<4x4xbf16>, vector<4x256xbf16>, vector<4x256xf32> -> vector<4x256xf32>
    %453 = arith.addf %448, %452 : vector<4x256xf32>
    %c255_i32_348 = arith.constant 255 : i32
    %454 = tpu.dynamic_rotate %407 by %c255_i32_348 dim 1 : vector<4x256xf32>, i32 -> vector<4x256xf32>
    %c5_349 = arith.constant 5 : index
    %c0_350 = arith.constant 0 : index
    %c0_351 = arith.constant 0 : index
    %455 = vector.load %arg15[%c5_349, %c0_350, %c0_351] : memref<9x4x4xbf16, #tpu.memory_space<vmem>>, vector<1x4x4xbf16>
    %456 = vector.shape_cast %455 : vector<1x4x4xbf16> to vector<4x4xbf16>
    %457 = arith.truncf %454 : vector<4x256xf32> to vector<4x256xbf16>
    %cst_352 = arith.constant dense<0.000000e+00> : vector<4x256xf32>
    %458 = tpu.matmul %456, %457, %cst_352 {dimension_numbers = #tpu.dot_dimension_numbers<[1], [0], [0], [1], [0, 0, 1, 1], [], []>} : vector<4x4xbf16>, vector<4x256xbf16>, vector<4x256xf32> -> vector<4x256xf32>
    %c5_353 = arith.constant 5 : index
    %c0_354 = arith.constant 0 : index
    %c0_355 = arith.constant 0 : index
    %459 = vector.load %arg18[%c5_353, %c0_354, %c0_355] : memref<9x1x256xf32, #tpu.memory_space<vmem>>, vector<1x1x256xf32>
    %460 = vector.shape_cast %459 : vector<1x1x256xf32> to vector<1x256xf32>
    %461 = vector.broadcast %460 : vector<1x256xf32> to vector<4x256xf32>
    %462 = arith.mulf %458, %461 : vector<4x256xf32>
    %463 = arith.addf %453, %462 : vector<4x256xf32>
    %c241_i32_356 = arith.constant 241 : i32
    %464 = tpu.dynamic_rotate %407 by %c241_i32_356 dim 1 : vector<4x256xf32>, i32 -> vector<4x256xf32>
    %c6_357 = arith.constant 6 : index
    %c0_358 = arith.constant 0 : index
    %c0_359 = arith.constant 0 : index
    %465 = vector.load %arg15[%c6_357, %c0_358, %c0_359] : memref<9x4x4xbf16, #tpu.memory_space<vmem>>, vector<1x4x4xbf16>
    %466 = vector.shape_cast %465 : vector<1x4x4xbf16> to vector<4x4xbf16>
    %467 = arith.truncf %464 : vector<4x256xf32> to vector<4x256xbf16>
    %cst_360 = arith.constant dense<0.000000e+00> : vector<4x256xf32>
    %468 = tpu.matmul %466, %467, %cst_360 {dimension_numbers = #tpu.dot_dimension_numbers<[1], [0], [0], [1], [0, 0, 1, 1], [], []>} : vector<4x4xbf16>, vector<4x256xbf16>, vector<4x256xf32> -> vector<4x256xf32>
    %c6_361 = arith.constant 6 : index
    %c0_362 = arith.constant 0 : index
    %c0_363 = arith.constant 0 : index
    %469 = vector.load %arg18[%c6_361, %c0_362, %c0_363] : memref<9x1x256xf32, #tpu.memory_space<vmem>>, vector<1x1x256xf32>
    %470 = vector.shape_cast %469 : vector<1x1x256xf32> to vector<1x256xf32>
    %471 = vector.broadcast %470 : vector<1x256xf32> to vector<4x256xf32>
    %472 = arith.mulf %468, %471 : vector<4x256xf32>
    %473 = arith.addf %463, %472 : vector<4x256xf32>
    %c240_i32_364 = arith.constant 240 : i32
    %474 = tpu.dynamic_rotate %407 by %c240_i32_364 dim 1 : vector<4x256xf32>, i32 -> vector<4x256xf32>
    %c7_365 = arith.constant 7 : index
    %c0_366 = arith.constant 0 : index
    %c0_367 = arith.constant 0 : index
    %475 = vector.load %arg15[%c7_365, %c0_366, %c0_367] : memref<9x4x4xbf16, #tpu.memory_space<vmem>>, vector<1x4x4xbf16>
    %476 = vector.shape_cast %475 : vector<1x4x4xbf16> to vector<4x4xbf16>
    %477 = arith.truncf %474 : vector<4x256xf32> to vector<4x256xbf16>
    %cst_368 = arith.constant dense<0.000000e+00> : vector<4x256xf32>
    %478 = tpu.matmul %476, %477, %cst_368 {dimension_numbers = #tpu.dot_dimension_numbers<[1], [0], [0], [1], [0, 0, 1, 1], [], []>} : vector<4x4xbf16>, vector<4x256xbf16>, vector<4x256xf32> -> vector<4x256xf32>
    %c7_369 = arith.constant 7 : index
    %c0_370 = arith.constant 0 : index
    %c0_371 = arith.constant 0 : index
    %479 = vector.load %arg18[%c7_369, %c0_370, %c0_371] : memref<9x1x256xf32, #tpu.memory_space<vmem>>, vector<1x1x256xf32>
    %480 = vector.shape_cast %479 : vector<1x1x256xf32> to vector<1x256xf32>
    %481 = vector.broadcast %480 : vector<1x256xf32> to vector<4x256xf32>
    %482 = arith.mulf %478, %481 : vector<4x256xf32>
    %483 = arith.addf %473, %482 : vector<4x256xf32>
    %c239_i32_372 = arith.constant 239 : i32
    %484 = tpu.dynamic_rotate %407 by %c239_i32_372 dim 1 : vector<4x256xf32>, i32 -> vector<4x256xf32>
    %c8_373 = arith.constant 8 : index
    %c0_374 = arith.constant 0 : index
    %c0_375 = arith.constant 0 : index
    %485 = vector.load %arg15[%c8_373, %c0_374, %c0_375] : memref<9x4x4xbf16, #tpu.memory_space<vmem>>, vector<1x4x4xbf16>
    %486 = vector.shape_cast %485 : vector<1x4x4xbf16> to vector<4x4xbf16>
    %487 = arith.truncf %484 : vector<4x256xf32> to vector<4x256xbf16>
    %cst_376 = arith.constant dense<0.000000e+00> : vector<4x256xf32>
    %488 = tpu.matmul %486, %487, %cst_376 {dimension_numbers = #tpu.dot_dimension_numbers<[1], [0], [0], [1], [0, 0, 1, 1], [], []>} : vector<4x4xbf16>, vector<4x256xbf16>, vector<4x256xf32> -> vector<4x256xf32>
    %c8_377 = arith.constant 8 : index
    %c0_378 = arith.constant 0 : index
    %c0_379 = arith.constant 0 : index
    %489 = vector.load %arg18[%c8_377, %c0_378, %c0_379] : memref<9x1x256xf32, #tpu.memory_space<vmem>>, vector<1x1x256xf32>
    %490 = vector.shape_cast %489 : vector<1x1x256xf32> to vector<1x256xf32>
    %491 = vector.broadcast %490 : vector<1x256xf32> to vector<4x256xf32>
    %492 = arith.mulf %488, %491 : vector<4x256xf32>
    %493 = arith.addf %483, %492 : vector<4x256xf32>
    %494 = vector.broadcast %276 : vector<4x1xf32> to vector<4x256xf32>
    %495 = arith.addf %493, %494 : vector<4x256xf32>
    %496 = vector.broadcast %291 : vector<4x1xf32> to vector<4x256xf32>
    %497 = arith.mulf %495, %496 : vector<4x256xf32>
    %498 = vector.broadcast %293 : vector<4x1xf32> to vector<4x256xf32>
    %499 = arith.addf %497, %498 : vector<4x256xf32>
    %cst_380 = arith.constant 0.000000e+00 : f32
    %500 = vector.broadcast %cst_380 : f32 to vector<4x256xf32>
    %501 = arith.maximumf %499, %500 : vector<4x256xf32>
    %c0_381 = arith.constant 0 : index
    %c0_382 = arith.constant 0 : index
    %502 = vector.load %arg16[%c0_381, %c0_382] : memref<8x4xbf16, #tpu.memory_space<vmem>>, vector<8x4xbf16>
    %503 = arith.truncf %501 : vector<4x256xf32> to vector<4x256xbf16>
    %cst_383 = arith.constant dense<0.000000e+00> : vector<8x256xf32>
    %504 = tpu.matmul %502, %503, %cst_383 {dimension_numbers = #tpu.dot_dimension_numbers<[1], [0], [0], [1], [0, 0, 1, 1], [], []>} : vector<8x4xbf16>, vector<4x256xbf16>, vector<8x256xf32> -> vector<8x256xf32>
    %505 = vector.broadcast %277 : vector<8x1xf32> to vector<8x256xf32>
    %506 = arith.addf %504, %505 : vector<8x256xf32>
    %507 = vector.extract_strided_slice %273 {offsets = [0, 0], sizes = [8, 64], strides = [1, 1]} : vector<16x64xf32> to vector<8x64xf32>
    %508 = arith.truncf %507 : vector<8x64xf32> to vector<8x64xbf16>
    %c0_384 = arith.constant 0 : index
    %c0_385 = arith.constant 0 : index
    %509 = vector.load %arg17[%c0_384, %c0_385] : memref<64x256xbf16, #tpu.memory_space<vmem>>, vector<64x256xbf16>
    %cst_386 = arith.constant dense<0.000000e+00> : vector<8x256xf32>
    %510 = tpu.matmul %508, %509, %cst_386 {dimension_numbers = #tpu.dot_dimension_numbers<[1], [0], [0], [1], [0, 0, 1, 1], [], []>} : vector<8x64xbf16>, vector<64x256xbf16>, vector<8x256xf32> -> vector<8x256xf32>
    %511 = arith.addf %506, %510 : vector<8x256xf32>
    %c72_387 = arith.constant 72 : index
    %c0_388 = arith.constant 0 : index
    %512 = vector.load %arg3[%c72_387, %c0_388] : memref<96x1xf32, #tpu.memory_space<vmem>>, vector<8x1xf32>
    %c80_389 = arith.constant 80 : index
    %c0_390 = arith.constant 0 : index
    %513 = vector.load %arg3[%c80_389, %c0_390] : memref<96x1xf32, #tpu.memory_space<vmem>>, vector<8x1xf32>
    %514 = vector.broadcast %512 : vector<8x1xf32> to vector<8x256xf32>
    %515 = arith.mulf %511, %514 : vector<8x256xf32>
    %516 = vector.broadcast %513 : vector<8x1xf32> to vector<8x256xf32>
    %517 = arith.addf %515, %516 : vector<8x256xf32>
    %cst_391 = arith.constant 0.000000e+00 : f32
    %518 = vector.broadcast %cst_391 : f32 to vector<8x256xf32>
    %519 = arith.maximumf %517, %518 : vector<8x256xf32>
    %c88_392 = arith.constant 88 : index
    %c0_393 = arith.constant 0 : index
    %520 = vector.load %arg3[%c88_392, %c0_393] : memref<96x1xf32, #tpu.memory_space<vmem>>, vector<3x1xf32>
    %cst_394 = arith.constant 0.000000e+00 : f32
    %521 = vector.broadcast %cst_394 : f32 to vector<3x256xf32>
    %c17_i32_395 = arith.constant 17 : i32
    %522 = tpu.dynamic_rotate %519 by %c17_i32_395 dim 1 : vector<8x256xf32>, i32 -> vector<8x256xf32>
    %c0_396 = arith.constant 0 : index
    %c0_397 = arith.constant 0 : index
    %c0_398 = arith.constant 0 : index
    %523 = vector.load %arg19[%c0_396, %c0_397, %c0_398] : memref<9x3x8xbf16, #tpu.memory_space<vmem>>, vector<1x3x8xbf16>
    %524 = vector.shape_cast %523 : vector<1x3x8xbf16> to vector<3x8xbf16>
    %525 = arith.truncf %522 : vector<8x256xf32> to vector<8x256xbf16>
    %cst_399 = arith.constant dense<0.000000e+00> : vector<3x256xf32>
    %526 = tpu.matmul %524, %525, %cst_399 {dimension_numbers = #tpu.dot_dimension_numbers<[1], [0], [0], [1], [0, 0, 1, 1], [], []>} : vector<3x8xbf16>, vector<8x256xbf16>, vector<3x256xf32> -> vector<3x256xf32>
    %c0_400 = arith.constant 0 : index
    %c0_401 = arith.constant 0 : index
    %c0_402 = arith.constant 0 : index
    %527 = vector.load %arg18[%c0_400, %c0_401, %c0_402] : memref<9x1x256xf32, #tpu.memory_space<vmem>>, vector<1x1x256xf32>
    %528 = vector.shape_cast %527 : vector<1x1x256xf32> to vector<1x256xf32>
    %529 = vector.broadcast %528 : vector<1x256xf32> to vector<3x256xf32>
    %530 = arith.mulf %526, %529 : vector<3x256xf32>
    %531 = arith.addf %521, %530 : vector<3x256xf32>
    %c16_i32_403 = arith.constant 16 : i32
    %532 = tpu.dynamic_rotate %519 by %c16_i32_403 dim 1 : vector<8x256xf32>, i32 -> vector<8x256xf32>
    %c1_404 = arith.constant 1 : index
    %c0_405 = arith.constant 0 : index
    %c0_406 = arith.constant 0 : index
    %533 = vector.load %arg19[%c1_404, %c0_405, %c0_406] : memref<9x3x8xbf16, #tpu.memory_space<vmem>>, vector<1x3x8xbf16>
    %534 = vector.shape_cast %533 : vector<1x3x8xbf16> to vector<3x8xbf16>
    %535 = arith.truncf %532 : vector<8x256xf32> to vector<8x256xbf16>
    %cst_407 = arith.constant dense<0.000000e+00> : vector<3x256xf32>
    %536 = tpu.matmul %534, %535, %cst_407 {dimension_numbers = #tpu.dot_dimension_numbers<[1], [0], [0], [1], [0, 0, 1, 1], [], []>} : vector<3x8xbf16>, vector<8x256xbf16>, vector<3x256xf32> -> vector<3x256xf32>
    %c1_408 = arith.constant 1 : index
    %c0_409 = arith.constant 0 : index
    %c0_410 = arith.constant 0 : index
    %537 = vector.load %arg18[%c1_408, %c0_409, %c0_410] : memref<9x1x256xf32, #tpu.memory_space<vmem>>, vector<1x1x256xf32>
    %538 = vector.shape_cast %537 : vector<1x1x256xf32> to vector<1x256xf32>
    %539 = vector.broadcast %538 : vector<1x256xf32> to vector<3x256xf32>
    %540 = arith.mulf %536, %539 : vector<3x256xf32>
    %541 = arith.addf %531, %540 : vector<3x256xf32>
    %c15_i32_411 = arith.constant 15 : i32
    %542 = tpu.dynamic_rotate %519 by %c15_i32_411 dim 1 : vector<8x256xf32>, i32 -> vector<8x256xf32>
    %c2_412 = arith.constant 2 : index
    %c0_413 = arith.constant 0 : index
    %c0_414 = arith.constant 0 : index
    %543 = vector.load %arg19[%c2_412, %c0_413, %c0_414] : memref<9x3x8xbf16, #tpu.memory_space<vmem>>, vector<1x3x8xbf16>
    %544 = vector.shape_cast %543 : vector<1x3x8xbf16> to vector<3x8xbf16>
    %545 = arith.truncf %542 : vector<8x256xf32> to vector<8x256xbf16>
    %cst_415 = arith.constant dense<0.000000e+00> : vector<3x256xf32>
    %546 = tpu.matmul %544, %545, %cst_415 {dimension_numbers = #tpu.dot_dimension_numbers<[1], [0], [0], [1], [0, 0, 1, 1], [], []>} : vector<3x8xbf16>, vector<8x256xbf16>, vector<3x256xf32> -> vector<3x256xf32>
    %c2_416 = arith.constant 2 : index
    %c0_417 = arith.constant 0 : index
    %c0_418 = arith.constant 0 : index
    %547 = vector.load %arg18[%c2_416, %c0_417, %c0_418] : memref<9x1x256xf32, #tpu.memory_space<vmem>>, vector<1x1x256xf32>
    %548 = vector.shape_cast %547 : vector<1x1x256xf32> to vector<1x256xf32>
    %549 = vector.broadcast %548 : vector<1x256xf32> to vector<3x256xf32>
    %550 = arith.mulf %546, %549 : vector<3x256xf32>
    %551 = arith.addf %541, %550 : vector<3x256xf32>
    %c1_i32_419 = arith.constant 1 : i32
    %552 = tpu.dynamic_rotate %519 by %c1_i32_419 dim 1 : vector<8x256xf32>, i32 -> vector<8x256xf32>
    %c3_420 = arith.constant 3 : index
    %c0_421 = arith.constant 0 : index
    %c0_422 = arith.constant 0 : index
    %553 = vector.load %arg19[%c3_420, %c0_421, %c0_422] : memref<9x3x8xbf16, #tpu.memory_space<vmem>>, vector<1x3x8xbf16>
    %554 = vector.shape_cast %553 : vector<1x3x8xbf16> to vector<3x8xbf16>
    %555 = arith.truncf %552 : vector<8x256xf32> to vector<8x256xbf16>
    %cst_423 = arith.constant dense<0.000000e+00> : vector<3x256xf32>
    %556 = tpu.matmul %554, %555, %cst_423 {dimension_numbers = #tpu.dot_dimension_numbers<[1], [0], [0], [1], [0, 0, 1, 1], [], []>} : vector<3x8xbf16>, vector<8x256xbf16>, vector<3x256xf32> -> vector<3x256xf32>
    %c3_424 = arith.constant 3 : index
    %c0_425 = arith.constant 0 : index
    %c0_426 = arith.constant 0 : index
    %557 = vector.load %arg18[%c3_424, %c0_425, %c0_426] : memref<9x1x256xf32, #tpu.memory_space<vmem>>, vector<1x1x256xf32>
    %558 = vector.shape_cast %557 : vector<1x1x256xf32> to vector<1x256xf32>
    %559 = vector.broadcast %558 : vector<1x256xf32> to vector<3x256xf32>
    %560 = arith.mulf %556, %559 : vector<3x256xf32>
    %561 = arith.addf %551, %560 : vector<3x256xf32>
    %c4_427 = arith.constant 4 : index
    %c0_428 = arith.constant 0 : index
    %c0_429 = arith.constant 0 : index
    %562 = vector.load %arg19[%c4_427, %c0_428, %c0_429] : memref<9x3x8xbf16, #tpu.memory_space<vmem>>, vector<1x3x8xbf16>
    %563 = vector.shape_cast %562 : vector<1x3x8xbf16> to vector<3x8xbf16>
    %564 = arith.truncf %519 : vector<8x256xf32> to vector<8x256xbf16>
    %cst_430 = arith.constant dense<0.000000e+00> : vector<3x256xf32>
    %565 = tpu.matmul %563, %564, %cst_430 {dimension_numbers = #tpu.dot_dimension_numbers<[1], [0], [0], [1], [0, 0, 1, 1], [], []>} : vector<3x8xbf16>, vector<8x256xbf16>, vector<3x256xf32> -> vector<3x256xf32>
    %566 = arith.addf %561, %565 : vector<3x256xf32>
    %c255_i32_431 = arith.constant 255 : i32
    %567 = tpu.dynamic_rotate %519 by %c255_i32_431 dim 1 : vector<8x256xf32>, i32 -> vector<8x256xf32>
    %c5_432 = arith.constant 5 : index
    %c0_433 = arith.constant 0 : index
    %c0_434 = arith.constant 0 : index
    %568 = vector.load %arg19[%c5_432, %c0_433, %c0_434] : memref<9x3x8xbf16, #tpu.memory_space<vmem>>, vector<1x3x8xbf16>
    %569 = vector.shape_cast %568 : vector<1x3x8xbf16> to vector<3x8xbf16>
    %570 = arith.truncf %567 : vector<8x256xf32> to vector<8x256xbf16>
    %cst_435 = arith.constant dense<0.000000e+00> : vector<3x256xf32>
    %571 = tpu.matmul %569, %570, %cst_435 {dimension_numbers = #tpu.dot_dimension_numbers<[1], [0], [0], [1], [0, 0, 1, 1], [], []>} : vector<3x8xbf16>, vector<8x256xbf16>, vector<3x256xf32> -> vector<3x256xf32>
    %c5_436 = arith.constant 5 : index
    %c0_437 = arith.constant 0 : index
    %c0_438 = arith.constant 0 : index
    %572 = vector.load %arg18[%c5_436, %c0_437, %c0_438] : memref<9x1x256xf32, #tpu.memory_space<vmem>>, vector<1x1x256xf32>
    %573 = vector.shape_cast %572 : vector<1x1x256xf32> to vector<1x256xf32>
    %574 = vector.broadcast %573 : vector<1x256xf32> to vector<3x256xf32>
    %575 = arith.mulf %571, %574 : vector<3x256xf32>
    %576 = arith.addf %566, %575 : vector<3x256xf32>
    %c241_i32_439 = arith.constant 241 : i32
    %577 = tpu.dynamic_rotate %519 by %c241_i32_439 dim 1 : vector<8x256xf32>, i32 -> vector<8x256xf32>
    %c6_440 = arith.constant 6 : index
    %c0_441 = arith.constant 0 : index
    %c0_442 = arith.constant 0 : index
    %578 = vector.load %arg19[%c6_440, %c0_441, %c0_442] : memref<9x3x8xbf16, #tpu.memory_space<vmem>>, vector<1x3x8xbf16>
    %579 = vector.shape_cast %578 : vector<1x3x8xbf16> to vector<3x8xbf16>
    %580 = arith.truncf %577 : vector<8x256xf32> to vector<8x256xbf16>
    %cst_443 = arith.constant dense<0.000000e+00> : vector<3x256xf32>
    %581 = tpu.matmul %579, %580, %cst_443 {dimension_numbers = #tpu.dot_dimension_numbers<[1], [0], [0], [1], [0, 0, 1, 1], [], []>} : vector<3x8xbf16>, vector<8x256xbf16>, vector<3x256xf32> -> vector<3x256xf32>
    %c6_444 = arith.constant 6 : index
    %c0_445 = arith.constant 0 : index
    %c0_446 = arith.constant 0 : index
    %582 = vector.load %arg18[%c6_444, %c0_445, %c0_446] : memref<9x1x256xf32, #tpu.memory_space<vmem>>, vector<1x1x256xf32>
    %583 = vector.shape_cast %582 : vector<1x1x256xf32> to vector<1x256xf32>
    %584 = vector.broadcast %583 : vector<1x256xf32> to vector<3x256xf32>
    %585 = arith.mulf %581, %584 : vector<3x256xf32>
    %586 = arith.addf %576, %585 : vector<3x256xf32>
    %c240_i32_447 = arith.constant 240 : i32
    %587 = tpu.dynamic_rotate %519 by %c240_i32_447 dim 1 : vector<8x256xf32>, i32 -> vector<8x256xf32>
    %c7_448 = arith.constant 7 : index
    %c0_449 = arith.constant 0 : index
    %c0_450 = arith.constant 0 : index
    %588 = vector.load %arg19[%c7_448, %c0_449, %c0_450] : memref<9x3x8xbf16, #tpu.memory_space<vmem>>, vector<1x3x8xbf16>
    %589 = vector.shape_cast %588 : vector<1x3x8xbf16> to vector<3x8xbf16>
    %590 = arith.truncf %587 : vector<8x256xf32> to vector<8x256xbf16>
    %cst_451 = arith.constant dense<0.000000e+00> : vector<3x256xf32>
    %591 = tpu.matmul %589, %590, %cst_451 {dimension_numbers = #tpu.dot_dimension_numbers<[1], [0], [0], [1], [0, 0, 1, 1], [], []>} : vector<3x8xbf16>, vector<8x256xbf16>, vector<3x256xf32> -> vector<3x256xf32>
    %c7_452 = arith.constant 7 : index
    %c0_453 = arith.constant 0 : index
    %c0_454 = arith.constant 0 : index
    %592 = vector.load %arg18[%c7_452, %c0_453, %c0_454] : memref<9x1x256xf32, #tpu.memory_space<vmem>>, vector<1x1x256xf32>
    %593 = vector.shape_cast %592 : vector<1x1x256xf32> to vector<1x256xf32>
    %594 = vector.broadcast %593 : vector<1x256xf32> to vector<3x256xf32>
    %595 = arith.mulf %591, %594 : vector<3x256xf32>
    %596 = arith.addf %586, %595 : vector<3x256xf32>
    %c239_i32_455 = arith.constant 239 : i32
    %597 = tpu.dynamic_rotate %519 by %c239_i32_455 dim 1 : vector<8x256xf32>, i32 -> vector<8x256xf32>
    %c8_456 = arith.constant 8 : index
    %c0_457 = arith.constant 0 : index
    %c0_458 = arith.constant 0 : index
    %598 = vector.load %arg19[%c8_456, %c0_457, %c0_458] : memref<9x3x8xbf16, #tpu.memory_space<vmem>>, vector<1x3x8xbf16>
    %599 = vector.shape_cast %598 : vector<1x3x8xbf16> to vector<3x8xbf16>
    %600 = arith.truncf %597 : vector<8x256xf32> to vector<8x256xbf16>
    %cst_459 = arith.constant dense<0.000000e+00> : vector<3x256xf32>
    %601 = tpu.matmul %599, %600, %cst_459 {dimension_numbers = #tpu.dot_dimension_numbers<[1], [0], [0], [1], [0, 0, 1, 1], [], []>} : vector<3x8xbf16>, vector<8x256xbf16>, vector<3x256xf32> -> vector<3x256xf32>
    %c8_460 = arith.constant 8 : index
    %c0_461 = arith.constant 0 : index
    %c0_462 = arith.constant 0 : index
    %602 = vector.load %arg18[%c8_460, %c0_461, %c0_462] : memref<9x1x256xf32, #tpu.memory_space<vmem>>, vector<1x1x256xf32>
    %603 = vector.shape_cast %602 : vector<1x1x256xf32> to vector<1x256xf32>
    %604 = vector.broadcast %603 : vector<1x256xf32> to vector<3x256xf32>
    %605 = arith.mulf %601, %604 : vector<3x256xf32>
    %606 = arith.addf %596, %605 : vector<3x256xf32>
    %607 = vector.broadcast %520 : vector<3x1xf32> to vector<3x256xf32>
    %608 = arith.addf %606, %607 : vector<3x256xf32>
    %609 = math.tanh %608 : vector<3x256xf32>
    %c0_463 = arith.constant 0 : index
    %c0_464 = arith.constant 0 : index
    %c0_465 = arith.constant 0 : index
    %610 = vector.load %arg20[%c0_463, %c0_464, %c0_465] : memref<1x3x256xf32, #tpu.memory_space<vmem>>, vector<1x3x256xf32>
    %611 = vector.shape_cast %610 : vector<1x3x256xf32> to vector<3x256xf32>
    %612 = vector.shape_cast %609 : vector<3x256xf32> to vector<1x3x256xf32>
    tpu.vector_store %arg20[%c0_463, %c0_464, %c0_465], %612 {strides = array<i32>} : memref<1x3x256xf32, #tpu.memory_space<vmem>>, vector<1x3x256xf32>,
    return
  }
  func.func @transform_0(%arg0: i32) -> (i32, i32, i32) {
    %c0_i32 = arith.constant 0 : i32
    %c0_i32_0 = arith.constant 0 : i32
    %c0_i32_1 = arith.constant 0 : i32
    return %arg0, %c0_i32, %c0_i32_0 : i32, i32, i32
  }
  func.func @transform_1(%arg0: i32) -> (i32, i32, i32) {
    %c0_i32 = arith.constant 0 : i32
    %c0_i32_0 = arith.constant 0 : i32
    %c0_i32_1 = arith.constant 0 : i32
    return %arg0, %c0_i32, %c0_i32_0 : i32, i32, i32
  }
  func.func @transform_2(%arg0: i32) -> (i32, i32) {
    %c0_i32 = arith.constant 0 : i32
    %c0_i32_0 = arith.constant 0 : i32
    %c0_i32_1 = arith.constant 0 : i32
    return %c0_i32, %c0_i32_0 : i32, i32
  }
  func.func @transform_3(%arg0: i32) -> (i32, i32) {
    %c0_i32 = arith.constant 0 : i32
    %c0_i32_0 = arith.constant 0 : i32
    %c0_i32_1 = arith.constant 0 : i32
    return %c0_i32, %c0_i32_0 : i32, i32
  }
  func.func @transform_4(%arg0: i32) -> (i32, i32, i32) {
    %c0_i32 = arith.constant 0 : i32
    %c0_i32_0 = arith.constant 0 : i32
    %c0_i32_1 = arith.constant 0 : i32
    %c0_i32_2 = arith.constant 0 : i32
    return %c0_i32, %c0_i32_0, %c0_i32_1 : i32, i32, i32
  }
  func.func @transform_5(%arg0: i32) -> (i32, i32, i32) {
    %c0_i32 = arith.constant 0 : i32
    %c0_i32_0 = arith.constant 0 : i32
    %c0_i32_1 = arith.constant 0 : i32
    %c0_i32_2 = arith.constant 0 : i32
    return %c0_i32, %c0_i32_0, %c0_i32_1 : i32, i32, i32
  }
  func.func @transform_6(%arg0: i32) -> (i32, i32) {
    %c0_i32 = arith.constant 0 : i32
    %c0_i32_0 = arith.constant 0 : i32
    %c0_i32_1 = arith.constant 0 : i32
    return %c0_i32, %c0_i32_0 : i32, i32
  }
  func.func @transform_7(%arg0: i32) -> (i32, i32) {
    %c0_i32 = arith.constant 0 : i32
    %c0_i32_0 = arith.constant 0 : i32
    %c0_i32_1 = arith.constant 0 : i32
    return %c0_i32, %c0_i32_0 : i32, i32
  }
  func.func @transform_8(%arg0: i32) -> (i32, i32, i32) {
    %c0_i32 = arith.constant 0 : i32
    %c0_i32_0 = arith.constant 0 : i32
    %c0_i32_1 = arith.constant 0 : i32
    %c0_i32_2 = arith.constant 0 : i32
    return %c0_i32, %c0_i32_0, %c0_i32_1 : i32, i32, i32
  }
  func.func @transform_9(%arg0: i32) -> (i32, i32) {
    %c0_i32 = arith.constant 0 : i32
    %c0_i32_0 = arith.constant 0 : i32
    %c0_i32_1 = arith.constant 0 : i32
    return %c0_i32, %c0_i32_0 : i32, i32
  }
  func.func @transform_10(%arg0: i32) -> (i32, i32) {
    %c0_i32 = arith.constant 0 : i32
    %c0_i32_0 = arith.constant 0 : i32
    %c0_i32_1 = arith.constant 0 : i32
    return %c0_i32, %c0_i32_0 : i32, i32
  }
  func.func @transform_11(%arg0: i32) -> (i32, i32, i32) {
    %c0_i32 = arith.constant 0 : i32
    %c0_i32_0 = arith.constant 0 : i32
    %c0_i32_1 = arith.constant 0 : i32
    %c0_i32_2 = arith.constant 0 : i32
    return %c0_i32, %c0_i32_0, %c0_i32_1 : i32, i32, i32
  }
  func.func @transform_12(%arg0: i32) -> (i32, i32) {
    %c0_i32 = arith.constant 0 : i32
    %c0_i32_0 = arith.constant 0 : i32
    %c0_i32_1 = arith.constant 0 : i32
    return %c0_i32, %c0_i32_0 : i32, i32
  }
  func.func @transform_13(%arg0: i32) -> (i32, i32, i32) {
    %c0_i32 = arith.constant 0 : i32
    %c0_i32_0 = arith.constant 0 : i32
    %c0_i32_1 = arith.constant 0 : i32
    %c0_i32_2 = arith.constant 0 : i32
    return %c0_i32, %c0_i32_0, %c0_i32_1 : i32, i32, i32
  }
  func.func @transform_14(%arg0: i32) -> (i32, i32, i32) {
    %c0_i32 = arith.constant 0 : i32
    %c0_i32_0 = arith.constant 0 : i32
    %c0_i32_1 = arith.constant 0 : i32
    %c0_i32_2 = arith.constant 0 : i32
    return %c0_i32, %c0_i32_0, %c0_i32_1 : i32, i32, i32
  }
  func.func @transform_15(%arg0: i32) -> (i32, i32) {
    %c0_i32 = arith.constant 0 : i32
    %c0_i32_0 = arith.constant 0 : i32
    %c0_i32_1 = arith.constant 0 : i32
    return %c0_i32, %c0_i32_0 : i32, i32
  }
  func.func @transform_16(%arg0: i32) -> (i32, i32) {
    %c0_i32 = arith.constant 0 : i32
    %c0_i32_0 = arith.constant 0 : i32
    %c0_i32_1 = arith.constant 0 : i32
    return %c0_i32, %c0_i32_0 : i32, i32
  }
  func.func @transform_17(%arg0: i32) -> (i32, i32, i32) {
    %c0_i32 = arith.constant 0 : i32
    %c0_i32_0 = arith.constant 0 : i32
    %c0_i32_1 = arith.constant 0 : i32
    %c0_i32_2 = arith.constant 0 : i32
    return %c0_i32, %c0_i32_0, %c0_i32_1 : i32, i32, i32
  }
  func.func @transform_18(%arg0: i32) -> (i32, i32, i32) {
    %c0_i32 = arith.constant 0 : i32
    %c0_i32_0 = arith.constant 0 : i32
    %c0_i32_1 = arith.constant 0 : i32
    %c0_i32_2 = arith.constant 0 : i32
    return %c0_i32, %c0_i32_0, %c0_i32_1 : i32, i32, i32
  }
  func.func @transform_19(%arg0: i32) -> (i32, i32, i32) {
    %c0_i32 = arith.constant 0 : i32
    %c0_i32_0 = arith.constant 0 : i32
    %c0_i32_1 = arith.constant 0 : i32
    return %arg0, %c0_i32, %c0_i32_0 : i32, i32, i32
  }
}

</mosaic_0001>

<llo_original>
// kernel: _forward_impl.1
$region0: #{_forward_impl.1}
  #allocation0 [shape = 'u32[]', space=smem, size = 0x4, offset = 0x4, fixed_abs, tag = 'smem constant byte address 0x4 - core index']
  #allocation1 [shape = 'u32[144,128]{1,0:T(1,128)}', space=vmem, size = 0x12000, scoped, tag = 'internal scratch']
  %s0 = inlined_call_operand.vmem [shape: f32[2,32,16], index: 0, kind: input, shape index: {}]
  %s1 = inlined_call_operand.vmem [shape: f32[2,192,1], index: 1, kind: input, shape index: {}]
  %s2 = inlined_call_operand.vmem [shape: f32[96,1], index: 2, kind: input, shape index: {}]
  %s3 = inlined_call_operand.vmem [shape: bf16[8,32], index: 3, kind: input, shape index: {}]
  %s4 = inlined_call_operand.vmem [shape: bf16[9,8,8], index: 4, kind: input, shape index: {}]
  %s5 = inlined_call_operand.vmem [shape: bf16[9,8,8], index: 5, kind: input, shape index: {}]
  %s6 = inlined_call_operand.vmem [shape: bf16[16,8], index: 6, kind: input, shape index: {}]
  %s7 = inlined_call_operand.vmem [shape: bf16[16,64], index: 7, kind: input, shape index: {}]
  %s8 = inlined_call_operand.vmem [shape: bf16[9,64,64], index: 8, kind: input, shape index: {}]
  %s9 = inlined_call_operand.vmem [shape: bf16[12,16], index: 9, kind: input, shape index: {}]
  %s10 = inlined_call_operand.vmem [shape: bf16[16,8], index: 10, kind: input, shape index: {}]
  %s11 = inlined_call_operand.vmem [shape: bf16[4,64,16], index: 11, kind: input, shape index: {}]
  %s12 = inlined_call_operand.vmem [shape: bf16[4,16], index: 12, kind: input, shape index: {}]
  %s13 = inlined_call_operand.vmem [shape: bf16[9,4,4], index: 13, kind: input, shape index: {}]
  %s14 = inlined_call_operand.vmem [shape: bf16[9,4,4], index: 14, kind: input, shape index: {}]
  %s15 = inlined_call_operand.vmem [shape: bf16[8,4], index: 15, kind: input, shape index: {}]
  %s16 = inlined_call_operand.vmem [shape: bf16[64,256], index: 16, kind: input, shape index: {}]
  %s17 = inlined_call_operand.vmem [shape: f32[9,1,256], index: 17, kind: input, shape index: {}]
  %s18 = inlined_call_operand.vmem [shape: bf16[9,3,8], index: 18, kind: input, shape index: {}]
  %s19 = inlined_call_operand.vmem [shape: f32[2,3,256], index: 19, kind: output, shape index: {}]
  %s20 = sld [smem:[#allocation0]]
  $region109: #{_forward_impl.1} parent=0
    _
  %s22 = ssub.s32 1, %s20
  %s23 = scalar_select 0, %s22, %s20
  loop: start=0, step=1, limit=4
  $region2: #{_forward_impl.1} parent=0 // loop_pre_header
    _
  $region3: #{_forward_impl.1} parent=0 // loop_header
    %s25 = sphi 0, %s29
    %p26 = scmp.ge.s32.totalorder %s25, 4
    %s35 = sphi 0, %s37
    %s38 = sphi 0, %s35
    %s39 = sphi 0, %s38
    %s55 = sphi 0, %s39
    %s61 = sphi 0, %s63
    %s64 = sphi 0, %s61
    %s65 = sphi 0, %s64
    %s81 = sphi 0, %s65
    %s85 = sphi 0, %s85
    %s87 = sphi 0, %s85
    %s88 = sphi 0, %s87
    %s102 = sphi 0, %s88
    %s106 = sphi 0, %s106
    %s108 = sphi 0, %s106
    %s109 = sphi 0, %s108
    %s123 = sphi 0, %s109
    %s127 = sphi 0, %s127
    %s129 = sphi 0, %s127
    %s130 = sphi 0, %s129
    %s144 = sphi 0, %s130
    %s148 = sphi 0, %s148
    %s150 = sphi 0, %s148
    %s151 = sphi 0, %s150
    %s165 = sphi 0, %s151
    %s169 = sphi 0, %s169
    %s171 = sphi 0, %s169
    %s172 = sphi 0, %s171
    %s186 = sphi 0, %s172
    %s190 = sphi 0, %s190
    %s192 = sphi 0, %s190
    %s193 = sphi 0, %s192
    %s207 = sphi 0, %s193
    %s211 = sphi 0, %s211
    %s213 = sphi 0, %s211
    %s214 = sphi 0, %s213
    %s228 = sphi 0, %s214
    %s232 = sphi 0, %s232
    %s234 = sphi 0, %s232
    %s235 = sphi 0, %s234
    %s249 = sphi 0, %s235
    %s253 = sphi 0, %s253
    %s255 = sphi 0, %s253
    %s256 = sphi 0, %s255
    %s270 = sphi 0, %s256
    %s274 = sphi 0, %s274
    %s276 = sphi 0, %s274
    %s277 = sphi 0, %s276
    %s291 = sphi 0, %s277
    %s295 = sphi 0, %s295
    %s297 = sphi 0, %s295
    %s298 = sphi 0, %s297
    %s312 = sphi 0, %s298
    %s316 = sphi 0, %s316
    %s318 = sphi 0, %s316
    %s319 = sphi 0, %s318
    %s333 = sphi 0, %s319
    %s337 = sphi 0, %s337
    %s339 = sphi 0, %s337
    %s340 = sphi 0, %s339
    %s354 = sphi 0, %s340
    %s358 = sphi 0, %s358
    %s360 = sphi 0, %s358
    %s361 = sphi 0, %s360
    %s375 = sphi 0, %s361
    %s379 = sphi 0, %s379
    %s381 = sphi 0, %s379
    %s382 = sphi 0, %s381
    %s396 = sphi 0, %s382
    %s400 = sphi 0, %s400
    %s402 = sphi 0, %s400
    %s403 = sphi 0, %s402
    %s417 = sphi 0, %s403
    %s421 = sphi 0, %s421
    %s423 = sphi 0, %s421
    %s424 = sphi 0, %s423
    %s438 = sphi 0, %s424
    %s444 = sphi 0, %s446
    %s447 = sphi 0, %s444
    %s448 = sphi 0, %s447
    %s464 = sphi 0, %s448
  $region4: #{_forward_impl.1} parent=0 // loop_header_branch
    %28 = sbr.rel (%p26) target = $region8
  $region5: #{_forward_impl.1} parent=0 // loop_body
    %s30 = ssub.s32 %s25, 1
    %s31 = ssub.s32 %s25, 2
    %s32 = sadd.s32 %s25, 1
    %s33 = ssub.s32 %s25, %s32
    %p34 = scmp.eq.s32.totalorder %s33, 0
    %s36 = sadd.s32 %s35, 1
    %s37 = scalar_select %p34, %s35, %s36
    %p40 = pneg %p34
    %p41 = scmp.eq.s32.totalorder %s25, 1
    %p42 = por %p40, %p41
    %p43 = scmp.ne.s32.totalorder %s35, %s38
    %p44 = scmp.eq.s32.totalorder %s25, 0
    %p45 = por %p43, %p44
    %p46 = scmp.ne.s32.totalorder %s35, %s38
    %p47 = scmp.eq.s32.totalorder %s30, 1
    %p48 = por %p46, %p47
    %p49 = scmp.ne.s32.totalorder %s38, %s39
    %p50 = scmp.eq.s32.totalorder %s30, 0
    %p51 = por %p49, %p50
    %p52 = scmp.ne.s32.totalorder %s38, %s39
    %p53 = scmp.eq.s32.totalorder %s31, 1
    %p54 = por %p52, %p53
    %p56 = scmp.ne.s32.totalorder %s39, %s55
    %p57 = scmp.eq.s32.totalorder %s31, 0
    %p58 = por %p56, %p57
    %s59 = ssub.s32 %s25, %s32
    %p60 = scmp.eq.s32.totalorder %s59, 0
    %s62 = sadd.s32 %s61, 1
    %s63 = scalar_select %p60, %s61, %s62
    %p66 = pneg %p60
    %p67 = scmp.eq.s32.totalorder %s25, 1
    %p68 = por %p66, %p67
    %p69 = scmp.ne.s32.totalorder %s61, %s64
    %p70 = scmp.eq.s32.totalorder %s25, 0
    %p71 = por %p69, %p70
    %p72 = scmp.ne.s32.totalorder %s61, %s64
    %p73 = scmp.eq.s32.totalorder %s30, 1
    %p74 = por %p72, %p73
    %p75 = scmp.ne.s32.totalorder %s64, %s65
    %p76 = scmp.eq.s32.totalorder %s30, 0
    %p77 = por %p75, %p76
    %p78 = scmp.ne.s32.totalorder %s64, %s65
    %p79 = scmp.eq.s32.totalorder %s31, 1
    %p80 = por %p78, %p79
    %p82 = scmp.ne.s32.totalorder %s65, %s81
    %p83 = scmp.eq.s32.totalorder %s31, 0
    %p84 = por %p82, %p83
    %s86 = sadd.s32 %s85, 1
    %p89 = scmp.eq.s32.totalorder %s25, 1
    %p90 = scmp.ne.s32.totalorder %s85, %s87
    %p91 = scmp.eq.s32.totalorder %s25, 0
    %p92 = por %p90, %p91
    %p93 = scmp.ne.s32.totalorder %s85, %s87
    %p94 = scmp.eq.s32.totalorder %s30, 1
    %p95 = por %p93, %p94
    %p96 = scmp.ne.s32.totalorder %s87, %s88
    %p97 = scmp.eq.s32.totalorder %s30, 0
    %p98 = por %p96, %p97
    %p99 = scmp.ne.s32.totalorder %s87, %s88
    %p100 = scmp.eq.s32.totalorder %s31, 1
    %p101 = por %p99, %p100
    %p103 = scmp.ne.s32.totalorder %s88, %s102
    %p104 = scmp.eq.s32.totalorder %s31, 0
    %p105 = por %p103, %p104
    %s107 = sadd.s32 %s106, 1
    %p110 = scmp.eq.s32.totalorder %s25, 1
    %p111 = scmp.ne.s32.totalorder %s106, %s108
    %p112 = scmp.eq.s32.totalorder %s25, 0
    %p113 = por %p111, %p112
    %p114 = scmp.ne.s32.totalorder %s106, %s108
    %p115 = scmp.eq.s32.totalorder %s30, 1
    %p116 = por %p114, %p115
    %p117 = scmp.ne.s32.totalorder %s108, %s109
    %p118 = scmp.eq.s32.totalorder %s30, 0
    %p119 = por %p117, %p118
    %p120 = scmp.ne.s32.totalorder %s108, %s109
    %p121 = scmp.eq.s32.totalorder %s31, 1
    %p122 = por %p120, %p121
    %p124 = scmp.ne.s32.totalorder %s109, %s123
    %p125 = scmp.eq.s32.totalorder %s31, 0
    %p126 = por %p124, %p125
    %s128 = sadd.s32 %s127, 1
    %p131 = scmp.eq.s32.totalorder %s25, 1
    %p132 = scmp.ne.s32.totalorder %s127, %s129
    %p133 = scmp.eq.s32.totalorder %s25, 0
    %p134 = por %p132, %p133
    %p135 = scmp.ne.s32.totalorder %s127, %s129
    %p136 = scmp.eq.s32.totalorder %s30, 1
    %p137 = por %p135, %p136
    %p138 = scmp.ne.s32.totalorder %s129, %s130
    %p139 = scmp.eq.s32.totalorder %s30, 0
    %p140 = por %p138, %p139
    %p141 = scmp.ne.s32.totalorder %s129, %s130
    %p142 = scmp.eq.s32.totalorder %s31, 1
    %p143 = por %p141, %p142
    %p145 = scmp.ne.s32.totalorder %s130, %s144
    %p146 = scmp.eq.s32.totalorder %s31, 0
    %p147 = por %p145, %p146
    %s149 = sadd.s32 %s148, 1
    %p152 = scmp.eq.s32.totalorder %s25, 1
    %p153 = scmp.ne.s32.totalorder %s148, %s150
    %p154 = scmp.eq.s32.totalorder %s25, 0
    %p155 = por %p153, %p154
    %p156 = scmp.ne.s32.totalorder %s148, %s150
    %p157 = scmp.eq.s32.totalorder %s30, 1
    %p158 = por %p156, %p157
    %p159 = scmp.ne.s32.totalorder %s150, %s151
    %p160 = scmp.eq.s32.totalorder %s30, 0
    %p161 = por %p159, %p160
    %p162 = scmp.ne.s32.totalorder %s150, %s151
    %p163 = scmp.eq.s32.totalorder %s31, 1
    %p164 = por %p162, %p163
    %p166 = scmp.ne.s32.totalorder %s151, %s165
    %p167 = scmp.eq.s32.totalorder %s31, 0
    %p168 = por %p166, %p167
    %s170 = sadd.s32 %s169, 1
    %p173 = scmp.eq.s32.totalorder %s25, 1
    %p174 = scmp.ne.s32.totalorder %s169, %s171
    %p175 = scmp.eq.s32.totalorder %s25, 0
    %p176 = por %p174, %p175
    %p177 = scmp.ne.s32.totalorder %s169, %s171
    %p178 = scmp.eq.s32.totalorder %s30, 1
    %p179 = por %p177, %p178
    %p180 = scmp.ne.s32.totalorder %s171, %s172
    %p181 = scmp.eq.s32.totalorder %s30, 0
    %p182 = por %p180, %p181
    %p183 = scmp.ne.s32.totalorder %s171, %s172
    %p184 = scmp.eq.s32.totalorder %s31, 1
    %p185 = por %p183, %p184
    %p187 = scmp.ne.s32.totalorder %s172, %s186
    %p188 = scmp.eq.s32.totalorder %s31, 0
    %p189 = por %p187, %p188
    %s191 = sadd.s32 %s190, 1
    %p194 = scmp.eq.s32.totalorder %s25, 1
    %p195 = scmp.ne.s32.totalorder %s190, %s192
    %p196 = scmp.eq.s32.totalorder %s25, 0
    %p197 = por %p195, %p196
    %p198 = scmp.ne.s32.totalorder %s190, %s192
    %p199 = scmp.eq.s32.totalorder %s30, 1
    %p200 = por %p198, %p199
    %p201 = scmp.ne.s32.totalorder %s192, %s193
    %p202 = scmp.eq.s32.totalorder %s30, 0
    %p203 = por %p201, %p202
    %p204 = scmp.ne.s32.totalorder %s192, %s193
    %p205 = scmp.eq.s32.totalorder %s31, 1
    %p206 = por %p204, %p205
    %p208 = scmp.ne.s32.totalorder %s193, %s207
    %p209 = scmp.eq.s32.totalorder %s31, 0
    %p210 = por %p208, %p209
    %s212 = sadd.s32 %s211, 1
    %p215 = scmp.eq.s32.totalorder %s25, 1
    %p216 = scmp.ne.s32.totalorder %s211, %s213
    %p217 = scmp.eq.s32.totalorder %s25, 0
    %p218 = por %p216, %p217
    %p219 = scmp.ne.s32.totalorder %s211, %s213
    %p220 = scmp.eq.s32.totalorder %s30, 1
    %p221 = por %p219, %p220
    %p222 = scmp.ne.s32.totalorder %s213, %s214
    %p223 = scmp.eq.s32.totalorder %s30, 0
    %p224 = por %p222, %p223
    %p225 = scmp.ne.s32.totalorder %s213, %s214
    %p226 = scmp.eq.s32.totalorder %s31, 1
    %p227 = por %p225, %p226
    %p229 = scmp.ne.s32.totalorder %s214, %s228
    %p230 = scmp.eq.s32.totalorder %s31, 0
    %p231 = por %p229, %p230
    %s233 = sadd.s32 %s232, 1
    %p236 = scmp.eq.s32.totalorder %s25, 1
    %p237 = scmp.ne.s32.totalorder %s232, %s234
    %p238 = scmp.eq.s32.totalorder %s25, 0
    %p239 = por %p237, %p238
    %p240 = scmp.ne.s32.totalorder %s232, %s234
    %p241 = scmp.eq.s32.totalorder %s30, 1
    %p242 = por %p240, %p241
    %p243 = scmp.ne.s32.totalorder %s234, %s235
    %p244 = scmp.eq.s32.totalorder %s30, 0
    %p245 = por %p243, %p244
    %p246 = scmp.ne.s32.totalorder %s234, %s235
    %p247 = scmp.eq.s32.totalorder %s31, 1
    %p248 = por %p246, %p247
    %p250 = scmp.ne.s32.totalorder %s235, %s249
    %p251 = scmp.eq.s32.totalorder %s31, 0
    %p252 = por %p250, %p251
    %s254 = sadd.s32 %s253, 1
    %p257 = scmp.eq.s32.totalorder %s25, 1
    %p258 = scmp.ne.s32.totalorder %s253, %s255
    %p259 = scmp.eq.s32.totalorder %s25, 0
    %p260 = por %p258, %p259
    %p261 = scmp.ne.s32.totalorder %s253, %s255
    %p262 = scmp.eq.s32.totalorder %s30, 1
    %p263 = por %p261, %p262
    %p264 = scmp.ne.s32.totalorder %s255, %s256
    %p265 = scmp.eq.s32.totalorder %s30, 0
    %p266 = por %p264, %p265
    %p267 = scmp.ne.s32.totalorder %s255, %s256
    %p268 = scmp.eq.s32.totalorder %s31, 1
    %p269 = por %p267, %p268
    %p271 = scmp.ne.s32.totalorder %s256, %s270
    %p272 = scmp.eq.s32.totalorder %s31, 0
    %p273 = por %p271, %p272
    %s275 = sadd.s32 %s274, 1
    %p278 = scmp.eq.s32.totalorder %s25, 1
    %p279 = scmp.ne.s32.totalorder %s274, %s276
    %p280 = scmp.eq.s32.totalorder %s25, 0
    %p281 = por %p279, %p280
    %p282 = scmp.ne.s32.totalorder %s274, %s276
    %p283 = scmp.eq.s32.totalorder %s30, 1
    %p284 = por %p282, %p283
    %p285 = scmp.ne.s32.totalorder %s276, %s277
    %p286 = scmp.eq.s32.totalorder %s30, 0
    %p287 = por %p285, %p286
    %p288 = scmp.ne.s32.totalorder %s276, %s277
    %p289 = scmp.eq.s32.totalorder %s31, 1
    %p290 = por %p288, %p289
    %p292 = scmp.ne.s32.totalorder %s277, %s291
    %p293 = scmp.eq.s32.totalorder %s31, 0
    %p294 = por %p292, %p293
    %s296 = sadd.s32 %s295, 1
    %p299 = scmp.eq.s32.totalorder %s25, 1
    %p300 = scmp.ne.s32.totalorder %s295, %s297
    %p301 = scmp.eq.s32.totalorder %s25, 0
    %p302 = por %p300, %p301
    %p303 = scmp.ne.s32.totalorder %s295, %s297
    %p304 = scmp.eq.s32.totalorder %s30, 1
    %p305 = por %p303, %p304
    %p306 = scmp.ne.s32.totalorder %s297, %s298
    %p307 = scmp.eq.s32.totalorder %s30, 0
    %p308 = por %p306, %p307
    %p309 = scmp.ne.s32.totalorder %s297, %s298
    %p310 = scmp.eq.s32.totalorder %s31, 1
    %p311 = por %p309, %p310
    %p313 = scmp.ne.s32.totalorder %s298, %s312
    %p314 = scmp.eq.s32.totalorder %s31, 0
    %p315 = por %p313, %p314
    %s317 = sadd.s32 %s316, 1
    %p320 = scmp.eq.s32.totalorder %s25, 1
    %p321 = scmp.ne.s32.totalorder %s316, %s318
    %p322 = scmp.eq.s32.totalorder %s25, 0
    %p323 = por %p321, %p322
    %p324 = scmp.ne.s32.totalorder %s316, %s318
    %p325 = scmp.eq.s32.totalorder %s30, 1
    %p326 = por %p324, %p325
    %p327 = scmp.ne.s32.totalorder %s318, %s319
    %p328 = scmp.eq.s32.totalorder %s30, 0
    %p329 = por %p327, %p328
    %p330 = scmp.ne.s32.totalorder %s318, %s319
    %p331 = scmp.eq.s32.totalorder %s31, 1
    %p332 = por %p330, %p331
    %p334 = scmp.ne.s32.totalorder %s319, %s333
    %p335 = scmp.eq.s32.totalorder %s31, 0
    %p336 = por %p334, %p335
    %s338 = sadd.s32 %s337, 1
    %p341 = scmp.eq.s32.totalorder %s25, 1
    %p342 = scmp.ne.s32.totalorder %s337, %s339
    %p343 = scmp.eq.s32.totalorder %s25, 0
    %p344 = por %p342, %p343
    %p345 = scmp.ne.s32.totalorder %s337, %s339
    %p346 = scmp.eq.s32.totalorder %s30, 1
    %p347 = por %p345, %p346
    %p348 = scmp.ne.s32.totalorder %s339, %s340
    %p349 = scmp.eq.s32.totalorder %s30, 0
    %p350 = por %p348, %p349
    %p351 = scmp.ne.s32.totalorder %s339, %s340
    %p352 = scmp.eq.s32.totalorder %s31, 1
    %p353 = por %p351, %p352
    %p355 = scmp.ne.s32.totalorder %s340, %s354
    %p356 = scmp.eq.s32.totalorder %s31, 0
    %p357 = por %p355, %p356
    %s359 = sadd.s32 %s358, 1
    %p362 = scmp.eq.s32.totalorder %s25, 1
    %p363 = scmp.ne.s32.totalorder %s358, %s360
    %p364 = scmp.eq.s32.totalorder %s25, 0
    %p365 = por %p363, %p364
    %p366 = scmp.ne.s32.totalorder %s358, %s360
    %p367 = scmp.eq.s32.totalorder %s30, 1
    %p368 = por %p366, %p367
    %p369 = scmp.ne.s32.totalorder %s360, %s361
    %p370 = scmp.eq.s32.totalorder %s30, 0
    %p371 = por %p369, %p370
    %p372 = scmp.ne.s32.totalorder %s360, %s361
    %p373 = scmp.eq.s32.totalorder %s31, 1
    %p374 = por %p372, %p373
    %p376 = scmp.ne.s32.totalorder %s361, %s375
    %p377 = scmp.eq.s32.totalorder %s31, 0
    %p378 = por %p376, %p377
    %s380 = sadd.s32 %s379, 1
    %p383 = scmp.eq.s32.totalorder %s25, 1
    %p384 = scmp.ne.s32.totalorder %s379, %s381
    %p385 = scmp.eq.s32.totalorder %s25, 0
    %p386 = por %p384, %p385
    %p387 = scmp.ne.s32.totalorder %s379, %s381
    %p388 = scmp.eq.s32.totalorder %s30, 1
    %p389 = por %p387, %p388
    %p390 = scmp.ne.s32.totalorder %s381, %s382
    %p391 = scmp.eq.s32.totalorder %s30, 0
    %p392 = por %p390, %p391
    %p393 = scmp.ne.s32.totalorder %s381, %s382
    %p394 = scmp.eq.s32.totalorder %s31, 1
    %p395 = por %p393, %p394
    %p397 = scmp.ne.s32.totalorder %s382, %s396
    %p398 = scmp.eq.s32.totalorder %s31, 0
    %p399 = por %p397, %p398
    %s401 = sadd.s32 %s400, 1
    %p404 = scmp.eq.s32.totalorder %s25, 1
    %p405 = scmp.ne.s32.totalorder %s400, %s402
    %p406 = scmp.eq.s32.totalorder %s25, 0
    %p407 = por %p405, %p406
    %p408 = scmp.ne.s32.totalorder %s400, %s402
    %p409 = scmp.eq.s32.totalorder %s30, 1
    %p410 = por %p408, %p409
    %p411 = scmp.ne.s32.totalorder %s402, %s403
    %p412 = scmp.eq.s32.totalorder %s30, 0
    %p413 = por %p411, %p412
    %p414 = scmp.ne.s32.totalorder %s402, %s403
    %p415 = scmp.eq.s32.totalorder %s31, 1
    %p416 = por %p414, %p415
    %p418 = scmp.ne.s32.totalorder %s403, %s417
    %p419 = scmp.eq.s32.totalorder %s31, 0
    %p420 = por %p418, %p419
    %s422 = sadd.s32 %s421, 1
    %p425 = scmp.eq.s32.totalorder %s25, 1
    %p426 = scmp.ne.s32.totalorder %s421, %s423
    %p427 = scmp.eq.s32.totalorder %s25, 0
    %p428 = por %p426, %p427
    %p429 = scmp.ne.s32.totalorder %s421, %s423
    %p430 = scmp.eq.s32.totalorder %s30, 1
    %p431 = por %p429, %p430
    %p432 = scmp.ne.s32.totalorder %s423, %s424
    %p433 = scmp.eq.s32.totalorder %s30, 0
    %p434 = por %p432, %p433
    %p435 = scmp.ne.s32.totalorder %s423, %s424
    %p436 = scmp.eq.s32.totalorder %s31, 1
    %p437 = por %p435, %p436
    %p439 = scmp.ne.s32.totalorder %s424, %s438
    %p440 = scmp.eq.s32.totalorder %s31, 0
    %p441 = por %p439, %p440
    %s442 = ssub.s32 %s25, %s32
    %p443 = scmp.eq.s32.totalorder %s442, 0
    %s445 = sadd.s32 %s444, 1
    %s446 = scalar_select %p443, %s444, %s445
    %p449 = pneg %p443
    %p450 = scmp.eq.s32.totalorder %s25, 1
    %p451 = por %p449, %p450
    %p452 = scmp.ne.s32.totalorder %s444, %s447
    %p453 = scmp.eq.s32.totalorder %s25, 0
    %p454 = por %p452, %p453
    %p455 = scmp.ne.s32.totalorder %s444, %s447
    %p456 = scmp.eq.s32.totalorder %s30, 1
    %p457 = por %p455, %p456
    %p458 = scmp.ne.s32.totalorder %s447, %s448
    %p459 = scmp.eq.s32.totalorder %s30, 0
    %p460 = por %p458, %p459
    %p461 = scmp.ne.s32.totalorder %s447, %s448
    %p462 = scmp.eq.s32.totalorder %s31, 1
    %p463 = por %p461, %p462
    %p465 = scmp.ne.s32.totalorder %s448, %s464
    %p466 = scmp.eq.s32.totalorder %s31, 0
    %p467 = por %p465, %p466
    %p468 = scmp.le.s32.totalorder 1, %s25
    %p469 = scmp.lt.s32.totalorder %s25, 3
    %p470 = pnand %p468, %p469
    %p471 = pneg %p470
    // Predicated region
    $region9: #{_forward_impl.1} parent=5 // pred_check
      _
    $region10: #{_forward_impl.1} parent=5 // pred_check_branch
      %473 = sbr.rel (%p470) target = $region12
    $region11: #{_forward_impl.1} parent=5 // pred_region
      %s474 = ssub.s32 %s25, 1
      // Predicated region
      $region13: #{_forward_impl.1} parent=11 // pred_check
        %p475 = pneg %p98
      $region14: #{_forward_impl.1} parent=11 // pred_check_branch
        %477 = sbr.rel (%p475) target = $region16
      $region15: #{_forward_impl.1} parent=11 // pred_region
        _
      $region16: #{_forward_impl.1} parent=11 // pred_fallthru
        _
      // Predicated region
      $region17: #{_forward_impl.1} parent=11 // pred_check
        %p478 = pneg %p119
      $region18: #{_forward_impl.1} parent=11 // pred_check_branch
        %480 = sbr.rel (%p478) target = $region20
      $region19: #{_forward_impl.1} parent=11 // pred_region
        _
      $region20: #{_forward_impl.1} parent=11 // pred_fallthru
        _
      // Predicated region
      $region21: #{_forward_impl.1} parent=11 // pred_check
        %p481 = pneg %p140
      $region22: #{_forward_impl.1} parent=11 // pred_check_branch
        %483 = sbr.rel (%p481) target = $region24
      $region23: #{_forward_impl.1} parent=11 // pred_region
        _
      $region24: #{_forward_impl.1} parent=11 // pred_fallthru
        _
      // Predicated region
      $region25: #{_forward_impl.1} parent=11 // pred_check
        %p484 = pneg %p161
      $region26: #{_forward_impl.1} parent=11 // pred_check_branch
        %486 = sbr.rel (%p484) target = $region28
      $region27: #{_forward_impl.1} parent=11 // pred_region
        _
      $region28: #{_forward_impl.1} parent=11 // pred_fallthru
        _
      // Predicated region
      $region29: #{_forward_impl.1} parent=11 // pred_check
        %p487 = pneg %p182
      $region30: #{_forward_impl.1} parent=11 // pred_check_branch
        %489 = sbr.rel (%p487) target = $region32
      $region31: #{_forward_impl.1} parent=11 // pred_region
        _
      $region32: #{_forward_impl.1} parent=11 // pred_fallthru
        _
      // Predicated region
      $region33: #{_forward_impl.1} parent=11 // pred_check
        %p490 = pneg %p203
      $region34: #{_forward_impl.1} parent=11 // pred_check_branch
        %492 = sbr.rel (%p490) target = $region36
      $region35: #{_forward_impl.1} parent=11 // pred_region
        _
      $region36: #{_forward_impl.1} parent=11 // pred_fallthru
        _
      // Predicated region
      $region37: #{_forward_impl.1} parent=11 // pred_check
        %p493 = pneg %p224
      $region38: #{_forward_impl.1} parent=11 // pred_check_branch
        %495 = sbr.rel (%p493) target = $region40
      $region39: #{_forward_impl.1} parent=11 // pred_region
        _
      $region40: #{_forward_impl.1} parent=11 // pred_fallthru
        _
      // Predicated region
      $region41: #{_forward_impl.1} parent=11 // pred_check
        %p496 = pneg %p245
      $region42: #{_forward_impl.1} parent=11 // pred_check_branch
        %498 = sbr.rel (%p496) target = $region44
      $region43: #{_forward_impl.1} parent=11 // pred_region
        _
      $region44: #{_forward_impl.1} parent=11 // pred_fallthru
        _
      // Predicated region
      $region45: #{_forward_impl.1} parent=11 // pred_check
        %p499 = pneg %p266
      $region46: #{_forward_impl.1} parent=11 // pred_check_branch
        %501 = sbr.rel (%p499) target = $region48
      $region47: #{_forward_impl.1} parent=11 // pred_region
        _
      $region48: #{_forward_impl.1} parent=11 // pred_fallthru
        _
      // Predicated region
      $region49: #{_forward_impl.1} parent=11 // pred_check
        %p502 = pneg %p287
      $region50: #{_forward_impl.1} parent=11 // pred_check_branch
        %504 = sbr.rel (%p502) target = $region52
      $region51: #{_forward_impl.1} parent=11 // pred_region
        _
      $region52: #{_forward_impl.1} parent=11 // pred_fallthru
        _
      // Predicated region
      $region53: #{_forward_impl.1} parent=11 // pred_check
        %p505 = pneg %p308
      $region54: #{_forward_impl.1} parent=11 // pred_check_branch
        %507 = sbr.rel (%p505) target = $region56
      $region55: #{_forward_impl.1} parent=11 // pred_region
        _
      $region56: #{_forward_impl.1} parent=11 // pred_fallthru
        _
      // Predicated region
      $region57: #{_forward_impl.1} parent=11 // pred_check
        %p508 = pneg %p329
      $region58: #{_forward_impl.1} parent=11 // pred_check_branch
        %510 = sbr.rel (%p508) target = $region60
      $region59: #{_forward_impl.1} parent=11 // pred_region
        _
      $region60: #{_forward_impl.1} parent=11 // pred_fallthru
        _
      // Predicated region
      $region61: #{_forward_impl.1} parent=11 // pred_check
        %p511 = pneg %p350
      $region62: #{_forward_impl.1} parent=11 // pred_check_branch
        %513 = sbr.rel (%p511) target = $region64
      $region63: #{_forward_impl.1} parent=11 // pred_region
        _
      $region64: #{_forward_impl.1} parent=11 // pred_fallthru
        _
      // Predicated region
      $region65: #{_forward_impl.1} parent=11 // pred_check
        %p514 = pneg %p371
      $region66: #{_forward_impl.1} parent=11 // pred_check_branch
        %516 = sbr.rel (%p514) target = $region68
      $region67: #{_forward_impl.1} parent=11 // pred_region
        _
      $region68: #{_forward_impl.1} parent=11 // pred_fallthru
        _
      // Predicated region
      $region69: #{_forward_impl.1} parent=11 // pred_check
        %p517 = pneg %p392
      $region70: #{_forward_impl.1} parent=11 // pred_check_branch
        %519 = sbr.rel (%p517) target = $region72
      $region71: #{_forward_impl.1} parent=11 // pred_region
        _
      $region72: #{_forward_impl.1} parent=11 // pred_fallthru
        _
      // Predicated region
      $region73: #{_forward_impl.1} parent=11 // pred_check
        %p520 = pneg %p413
      $region74: #{_forward_impl.1} parent=11 // pred_check_branch
        %522 = sbr.rel (%p520) target = $region76
      $region75: #{_forward_impl.1} parent=11 // pred_region
        _
      $region76: #{_forward_impl.1} parent=11 // pred_fallthru
        _
      // Predicated region
      $region77: #{_forward_impl.1} parent=11 // pred_check
        %p523 = pneg %p434
      $region78: #{_forward_impl.1} parent=11 // pred_check_branch
        %525 = sbr.rel (%p523) target = $region80
      $region79: #{_forward_impl.1} parent=11 // pred_region
        _
      $region80: #{_forward_impl.1} parent=11 // pred_fallthru
        _
    $region12: #{_forward_impl.1} parent=5 // pred_fallthru
      _
    %p526 = scmp.lt.s32.totalorder %s25, 2
    // Predicated region
    $region81: #{_forward_impl.1} parent=5 // pred_check
      %p527 = pneg %p526
    $region82: #{_forward_impl.1} parent=5 // pred_check_branch
      %529 = sbr.rel (%p527) target = $region84
    $region83: #{_forward_impl.1} parent=5 // pred_region
      // Predicated region
      $region85: #{_forward_impl.1} parent=83 // pred_check
        %p530 = pneg %p45
      $region86: #{_forward_impl.1} parent=83 // pred_check_branch
        %532 = sbr.rel (%p530) target = $region88
      $region87: #{_forward_impl.1} parent=83 // pred_region
        %p533 = scmp.lt.s32.totalorder %s25, 1
        %s534 = scalar_select %p533, %s25, 1
        %s535 = smul.addr %s534, 4
        %s536 = smul.addr %s535, 8
        %s537 = scalar_lea.vmem %s0, %s536
      $region88: #{_forward_impl.1} parent=83 // pred_fallthru
        _
      // Predicated region
      $region89: #{_forward_impl.1} parent=83 // pred_check
        %p538 = pneg %p71
      $region90: #{_forward_impl.1} parent=83 // pred_check_branch
        %540 = sbr.rel (%p538) target = $region92
      $region91: #{_forward_impl.1} parent=83 // pred_region
        %p541 = scmp.lt.s32.totalorder %s25, 1
        %s542 = scalar_select %p541, %s25, 1
        %s543 = smul.addr %s542, 24
        %s544 = smul.addr %s543, 8
        %s545 = scalar_lea.vmem %s1, %s544
      $region92: #{_forward_impl.1} parent=83 // pred_fallthru
        _
    $region84: #{_forward_impl.1} parent=5 // pred_fallthru
      _
    %p546 = scmp.le.s32.totalorder 1, %s25
    %p547 = scmp.lt.s32.totalorder %s25, 3
    %p548 = pnand %p546, %p547
    %p549 = pneg %p548
    // Predicated region
    $region93: #{_forward_impl.1} parent=5 // pred_check
      _
    $region94: #{_forward_impl.1} parent=5 // pred_check_branch
      %551 = sbr.rel (%p548) target = $region96
    $region95: #{_forward_impl.1} parent=5 // pred_region
      %s552 = ssub.s32 %s25, 1
      %p553 = scmp.lt.s32.totalorder %s30, 1
      %s554 = scalar_select %p553, %s30, 1
      %s555 = smul.addr %s554, 4
      %s556 = smul.addr %s555, 8
      %s557 = scalar_lea.vmem %s0, %s556
      %p558 = pneg %p51
      %p559 = pneg %p48
      %p560 = scmp.lt.s32.totalorder %s30, 1
      %s561 = scalar_select %p560, %s30, 1
      %s562 = smul.addr %s561, 24
      %s563 = smul.addr %s562, 8
      %s564 = scalar_lea.vmem %s1, %s563
      %p565 = pneg %p77
      %p566 = pneg %p74
      %p567 = pneg %p98
      %p568 = pneg %p95
      %p569 = pneg %p119
      %p570 = pneg %p116
      %p571 = pneg %p140
      %p572 = pneg %p137
      %p573 = pneg %p161
      %p574 = pneg %p158
      %p575 = pneg %p182
      %p576 = pneg %p179
      %p577 = pneg %p203
      %p578 = pneg %p200
      %p579 = pneg %p224
      %p580 = pneg %p221
      %p581 = pneg %p245
      %p582 = pneg %p242
      %p583 = pneg %p266
      %p584 = pneg %p263
      %p585 = pneg %p287
      %p586 = pneg %p284
      %p587 = pneg %p308
      %p588 = pneg %p305
      %p589 = pneg %p329
      %p590 = pneg %p326
      %p591 = pneg %p350
      %p592 = pneg %p347
      %p593 = pneg %p371
      %p594 = pneg %p368
      %p595 = pneg %p392
      %p596 = pneg %p389
      %p597 = pneg %p413
      %p598 = pneg %p410
      %p599 = pneg %p434
      %p600 = pneg %p431
      %p601 = pneg %p460
      %p602 = pneg %p457
      %p603 = scmp.lt.s32.totalorder %s30, 1
      %s604 = scalar_select %p603, %s30, 1
      %s605 = smul.addr %s604, 2
      %s606 = smul.addr %s605, 4
      %s607 = scalar_lea.vmem %s19, %s606
      %p608 = scmp.lt.s32.totalorder %s30, 1
      %s609 = scalar_select %p608, %s30, 1
      %s610 = smul.addr %s609, 4
      %s611 = smul.addr %s610, 8
      %s612 = scalar_lea.vmem %s0, %s611
      %p613 = scmp.lt.s32.totalorder %s30, 1
      %s614 = scalar_select %p613, %s30, 1
      %s615 = smul.addr %s614, 24
      %s616 = smul.addr %s615, 8
      %s617 = scalar_lea.vmem %s1, %s616
      %p618 = scmp.lt.s32.totalorder %s30, 1
      %s619 = scalar_select %p618, %s30, 1
      %s620 = smul.addr %s619, 2
      %s621 = smul.addr %s620, 4
      %s622 = scalar_lea.vmem %s19, %s621
      %v624 = vld [vmem:[%s612] sm:$0xff]
      %v625 = vld [vmem:[%s612 + $0x8] sm:$0xff]
      %v626 = vld [vmem:[%s612 + $0x10] sm:$0xff]
      %v627 = vld [vmem:[%s612 + $0x18] sm:$0xff]
      %v628 = vld [vmem:[%s2] sm:$0xff]
      %v629 = vld [vmem:[%s2 + $0x8] sm:$0xff]
      %v630 = vld [vmem:[%s2 + $0x10] sm:$0xff]
      %v631 = vld [vmem:[%s2 + $0x18] sm:$0xff]
      %v632 = vld [vmem:[%s2 + $0x20] sm:$0xff]
      %v633 = vld [vmem:[%s617] sm:$0xff]
      %v634 = vld [vmem:[%s617 + $0x8] sm:$0xff]
      %v635 = vld [vmem:[%s617 + $0x10] sm:$0xff]
      %v636 = vld [vmem:[%s617 + $0x18] sm:$0xff]
      %v637 = vld [vmem:[%s617 + $0x20] sm:$0xff]
      %v638 = vld [vmem:[%s617 + $0x28] sm:$0xff]
      %v639 = vld [vmem:[%s617 + $0x30] sm:$0xff]
      %v640 = vld [vmem:[%s617 + $0x38] sm:$0xff]
      %v641 = vld [vmem:[%s617 + $0x40] sm:$0xff]
      %v642 = vld [vmem:[%s617 + $0x48] sm:$0xff]
      %v643 = vld [vmem:[%s617 + $0x50] sm:$0xff]
      %v644 = vld [vmem:[%s617 + $0x58] sm:$0xff]
      %v645 = vld [vmem:[%s617 + $0x60] sm:$0xff]
      %v646 = vld [vmem:[%s617 + $0x68] sm:$0xff]
      %648 = vset.pattern.permute.xlu0 0
      %649 = vperm.xlu0 %648, %v633
      %v650 = vpop.permute.xlu0 %649
      %653 = vset.pattern.permute.xlu0 0
      %654 = vperm.xlu0 %653, %v634
      %v655 = vpop.permute.xlu0 %654
      %658 = vset.pattern.permute.xlu0 0
      %659 = vperm.xlu0 %658, %v635
      %v660 = vpop.permute.xlu0 %659
      %663 = vset.pattern.permute.xlu0 0
      %664 = vperm.xlu0 %663, %v636
      %v665 = vpop.permute.xlu0 %664
      %v667 = vmul.f32 %v624, %v650
      %v668 = vmul.f32 %v625, %v655
      %v669 = vmul.f32 %v626, %v660
      %v670 = vmul.f32 %v627, %v665
      %672 = vset.pattern.permute.xlu0 0
      %673 = vperm.xlu0 %672, %v637
      %v674 = vpop.permute.xlu0 %673
      %677 = vset.pattern.permute.xlu0 0
      %678 = vperm.xlu0 %677, %v638
      %v679 = vpop.permute.xlu0 %678
      %682 = vset.pattern.permute.xlu0 0
      %683 = vperm.xlu0 %682, %v639
      %v684 = vpop.permute.xlu0 %683
      %687 = vset.pattern.permute.xlu0 0
      %688 = vperm.xlu0 %687, %v640
      %v689 = vpop.permute.xlu0 %688
      %v691 = vadd.f32 %v667, %v674
      %v692 = vadd.f32 %v668, %v679
      %v693 = vadd.f32 %v669, %v684
      %v694 = vadd.f32 %v670, %v689
      %v695 = vmax.f32 %v691, 0.0
      %v696 = vmax.f32 %v692, 0.0
      %v697 = vmax.f32 %v693, 0.0
      %v698 = vmax.f32 %v694, 0.0
      %v699 = vld [vmem:[%s3] sm:$0xf]
      %v700 = vpack.c.bf16 %v696, %v695
      %v701 = vpack.c.bf16 %v698, %v697
      %703 = vset.pattern.permute.xlu0 0
      %704 = vperm.xlu0 %703, %v628
      %v705 = vpop.permute.xlu0 %704
      %vm707 = vcmask 261120
      %v709 = vsel %vm707, %v699, 0
      %711 = vmatprep.subr.bf16.mxu0 0
      %712 = vmatpush1.bf16.msra.mxu0 0
      %713 = vmatprep.subr.bf16.mxu0 0
      %714 = vmatpush1.bf16.msra.mxu0 0
      %715 = vmatprep.subr.bf16.mxu0 0
      %716 = vmatpush1.bf16.msra.mxu0 0
      %717 = vmatprep.subr.bf16.mxu0 0
      %718 = vmatpush1.bf16.msra.mxu0 0
      %719 = vmatprep.subr.bf16.mxu0 0
      %720 = vmatpush1.bf16.msra.mxu0 0
      %721 = vmatprep.subr.bf16.mxu0 0
      %722 = vmatpush1.bf16.msra.mxu0 0
      %723 = vmatprep.subr.bf16.mxu0 0
      %724 = vmatpush1.bf16.msra.mxu0 %v701
      %725 = vmatprep.subr.bf16.mxu0 0
      %726 = vmatpush1.bf16.msra.mxu0 %v700
      %727 = vmatprep.subr.bf16.mxu0 0
      %728 = vmatpush2.bf16.msra.mxu0 0
      %729 = vmatprep.subr.bf16.mxu0 0
      %730 = vmatpush2.bf16.msra.mxu0 0
      %731 = vmatprep.subr.bf16.mxu0 0
      %732 = vmatpush2.bf16.msra.mxu0 0
      %733 = vmatprep.subr.bf16.mxu0 0
      %734 = vmatpush2.bf16.msra.mxu0 0
      %735 = vmatprep.subr.bf16.mxu0 0
      %736 = vmatpush2.bf16.msra.mxu0 0
      %737 = vmatprep.subr.bf16.mxu0 0
      %738 = vmatpush2.bf16.msra.mxu0 0
      %739 = vmatprep.subr.bf16.mxu0 0
      %740 = vmatpush2.bf16.msra.mxu0 0
      %741 = vmatprep.subr.bf16.mxu0 0
      %742 = vmatpush2.bf16.msra.mxu0 0
      %743 = vmatprep.mubr.bf16.mxu0 0
      %744 = vmatmul.mubr.bf16.gmra.mxu0 %v709
      %v745 = vpop.f32.mrf.mxu0
      %v746 = vadd.f32 %v705, %v745
      %v747 = vpop.f32.mrf.mxu0
      %v748 = vpop.f32.mrf.mxu0
      %v749 = vpop.f32.mrf.mxu0
      %750 = vdwg.mxu0
      %752 = vset.pattern.permute.xlu0 0
      %753 = vperm.xlu0 %752, %v641
      %v754 = vpop.permute.xlu0 %753
      %v756 = vmul.f32 %v746, %v754
      %758 = vset.pattern.permute.xlu0 0
      %759 = vperm.xlu0 %758, %v642
      %v760 = vpop.permute.xlu0 %759
      %v762 = vadd.f32 %v756, %v760
      %v763 = vmax.f32 %v762, 0.0
      %v764 = vpack.c.bf16 %v763, %v763
      %v765 = vld [vmem:[%s7] sm:$0xf]
      %v766 = vld [vmem:[%s7 + $0x4] sm:$0xf]
      %v769 = vunpack.c.l.b16 %v765
      %v770 = vunpack.c.l.b16 %v766
      %v771 = vpack.c.b16 %v770, %v769
      %vm773 = vcmask 130048
      %v775 = vsel %vm773, %v764, 0
      %777 = vmatprep.subr.bf16.mxu0 0
      %778 = vmatpush1.bf16.msra.mxu0 0
      %779 = vmatprep.subr.bf16.mxu0 0
      %780 = vmatpush1.bf16.msra.mxu0 0
      %781 = vmatprep.subr.bf16.mxu0 0
      %782 = vmatpush1.bf16.msra.mxu0 0
      %783 = vmatprep.subr.bf16.mxu0 0
      %784 = vmatpush1.bf16.msra.mxu0 0
      %785 = vmatprep.subr.bf16.mxu0 0
      %786 = vmatpush1.bf16.msra.mxu0 0
      %787 = vmatprep.subr.bf16.mxu0 0
      %788 = vmatpush1.bf16.msra.mxu0 0
      %789 = vmatprep.subr.bf16.mxu0 0
      %790 = vmatpush1.bf16.msra.mxu0 0
      %791 = vmatprep.subr.bf16.mxu0 0
      %792 = vmatpush1.bf16.msra.mxu0 %v771
      %793 = vmatprep.subr.bf16.mxu0 0
      %794 = vmatpush2.bf16.msra.mxu0 0
      %795 = vmatprep.subr.bf16.mxu0 0
      %796 = vmatpush2.bf16.msra.mxu0 0
      %797 = vmatprep.subr.bf16.mxu0 0
      %798 = vmatpush2.bf16.msra.mxu0 0
      %799 = vmatprep.subr.bf16.mxu0 0
      %800 = vmatpush2.bf16.msra.mxu0 0
      %801 = vmatprep.subr.bf16.mxu0 0
      %802 = vmatpush2.bf16.msra.mxu0 0
      %803 = vmatprep.subr.bf16.mxu0 0
      %804 = vmatpush2.bf16.msra.mxu0 0
      %805 = vmatprep.subr.bf16.mxu0 0
      %806 = vmatpush2.bf16.msra.mxu0 0
      %807 = vmatprep.subr.bf16.mxu0 0
      %808 = vmatpush2.bf16.msra.mxu0 0
      %809 = vmatprep.mubr.bf16.mxu0 0
      %810 = vmatmul.mubr.bf16.gmra.mxu0 %v775
      %v811 = vpop.f32.mrf.mxu0
      %v812 = vadd.f32 0.0, %v811
      %v813 = vpop.f32.mrf.mxu0
      %v814 = vpop.f32.mrf.mxu0
      %v815 = vpop.f32.mrf.mxu0
      %816 = vdwg.mxu0
      %v817 = vpack.c.bf16 %v812, %v812
      %v818 = vld [vmem:[%s4] sm:$0xf]
      %vm819 = vcmask 64512
      %v821 = vsel %vm819, %v818, 0
      %vm823 = vcmask 1043456
      %v825 = vsel %vm823, %v817, 0
      %827 = vmatprep.subr.bf16.mxu0 0
      %828 = vmatpush1.bf16.msra.mxu0 0
      %829 = vmatprep.subr.bf16.mxu0 0
      %830 = vmatpush1.bf16.msra.mxu0 0
      %831 = vmatprep.subr.bf16.mxu0 0
      %832 = vmatpush1.bf16.msra.mxu0 0
      %833 = vmatprep.subr.bf16.mxu0 0
      %834 = vmatpush1.bf16.msra.mxu0 0
      %835 = vmatprep.subr.bf16.mxu0 0
      %836 = vmatpush1.bf16.msra.mxu0 0
      %837 = vmatprep.subr.bf16.mxu0 0
      %838 = vmatpush1.bf16.msra.mxu0 0
      %839 = vmatprep.subr.bf16.mxu0 0
      %840 = vmatpush1.bf16.msra.mxu0 0
      %841 = vmatprep.subr.bf16.mxu0 0
      %842 = vmatpush1.bf16.msra.mxu0 %v825
      %843 = vmatprep.subr.bf16.mxu0 0
      %844 = vmatpush2.bf16.msra.mxu0 0
      %845 = vmatprep.subr.bf16.mxu0 0
      %846 = vmatpush2.bf16.msra.mxu0 0
      %847 = vmatprep.subr.bf16.mxu0 0
      %848 = vmatpush2.bf16.msra.mxu0 0
      %849 = vmatprep.subr.bf16.mxu0 0
      %850 = vmatpush2.bf16.msra.mxu0 0
      %851 = vmatprep.subr.bf16.mxu0 0
      %852 = vmatpush2.bf16.msra.mxu0 0
      %853 = vmatprep.subr.bf16.mxu0 0
      %854 = vmatpush2.bf16.msra.mxu0 0
      %855 = vmatprep.subr.bf16.mxu0 0
      %856 = vmatpush2.bf16.msra.mxu0 0
      %857 = vmatprep.subr.bf16.mxu0 0
      %858 = vmatpush2.bf16.msra.mxu0 0
      %859 = vmatprep.mubr.bf16.mxu0 0
      %860 = vmatmul.mubr.bf16.gmra.mxu0 %v821
      %v861 = vpop.f32.mrf.mxu0
      %v862 = vadd.f32 0.0, %v861
      %v863 = vpop.f32.mrf.mxu0
      %v864 = vpop.f32.mrf.mxu0
      %v865 = vpop.f32.mrf.mxu0
      %866 = vdwg.mxu0
      %v867 = vpack.c.bf16 %v862, %v862
      %v868 = vld [vmem:[%s8] sm:$0xf]
      %v869 = vld [vmem:[%s8 + $0x4] sm:$0xf]
      %v870 = vld [vmem:[%s8 + $0x8] sm:$0xf]
      %v871 = vld [vmem:[%s8 + $0xc] sm:$0xf]
      %v872 = vld [vmem:[%s8 + $0x10] sm:$0xf]
      %v873 = vld [vmem:[%s8 + $0x14] sm:$0xf]
      %v874 = vld [vmem:[%s8 + $0x18] sm:$0xf]
      %v875 = vld [vmem:[%s8 + $0x1c] sm:$0xf]
      %s876 = scalar_lea.vmem %s4, 4
      %v877 = vld [vmem:[%s876] sm:$0xf]
      %v879 = vsel %vm819, %v877, 0
      %881 = vmatprep.subr.bf16.mxu0 0
      %882 = vmatpush1.bf16.msra.mxu0 0
      %883 = vmatprep.subr.bf16.mxu0 0
      %884 = vmatpush1.bf16.msra.mxu0 0
      %885 = vmatprep.subr.bf16.mxu0 0
      %886 = vmatpush1.bf16.msra.mxu0 0
      %887 = vmatprep.subr.bf16.mxu0 0
      %888 = vmatpush1.bf16.msra.mxu0 0
      %889 = vmatprep.subr.bf16.mxu0 0
      %890 = vmatpush1.bf16.msra.mxu0 0
      %891 = vmatprep.subr.bf16.mxu0 0
      %892 = vmatpush1.bf16.msra.mxu0 0
      %893 = vmatprep.subr.bf16.mxu0 0
      %894 = vmatpush1.bf16.msra.mxu0 0
      %895 = vmatprep.subr.bf16.mxu0 0
      %896 = vmatpush1.bf16.msra.mxu0 %v825
      %897 = vmatprep.subr.bf16.mxu0 0
      %898 = vmatpush2.bf16.msra.mxu0 0
      %899 = vmatprep.subr.bf16.mxu0 0
      %900 = vmatpush2.bf16.msra.mxu0 0
      %901 = vmatprep.subr.bf16.mxu0 0
      %902 = vmatpush2.bf16.msra.mxu0 0
      %903 = vmatprep.subr.bf16.mxu0 0
      %904 = vmatpush2.bf16.msra.mxu0 0
      %905 = vmatprep.subr.bf16.mxu0 0
      %906 = vmatpush2.bf16.msra.mxu0 0
      %907 = vmatprep.subr.bf16.mxu0 0
      %908 = vmatpush2.bf16.msra.mxu0 0
      %909 = vmatprep.subr.bf16.mxu0 0
      %910 = vmatpush2.bf16.msra.mxu0 0
      %911 = vmatprep.subr.bf16.mxu0 0
      %912 = vmatpush2.bf16.msra.mxu0 0
      %913 = vmatprep.mubr.bf16.mxu0 0
      %914 = vmatmul.mubr.bf16.gmra.mxu0 %v879
      %v915 = vpop.f32.mrf.mxu0
      %v916 = vadd.f32 0.0, %v915
      %v917 = vpop.f32.mrf.mxu0
      %v918 = vpop.f32.mrf.mxu0
      %v919 = vpop.f32.mrf.mxu0
      %920 = vdwg.mxu0
      %v921 = vpack.c.bf16 %v916, %v916
      %s922 = scalar_lea.vmem %s8, 32
      %v923 = vld [vmem:[%s922] sm:$0xf]
      %v924 = vld [vmem:[%s922 + $0x4] sm:$0xf]
      %v925 = vld [vmem:[%s922 + $0x8] sm:$0xf]
      %v926 = vld [vmem:[%s922 + $0xc] sm:$0xf]
      %v927 = vld [vmem:[%s922 + $0x10] sm:$0xf]
      %v928 = vld [vmem:[%s922 + $0x14] sm:$0xf]
      %v929 = vld [vmem:[%s922 + $0x18] sm:$0xf]
      %v930 = vld [vmem:[%s922 + $0x1c] sm:$0xf]
      %v939 = vunpack.c.l.b16 %v923
      %v940 = vunpack.c.l.b16 %v924
      %v941 = vunpack.c.l.b16 %v925
      %v942 = vunpack.c.l.b16 %v926
      %v943 = vunpack.c.l.b16 %v927
      %v944 = vunpack.c.l.b16 %v928
      %v945 = vunpack.c.l.b16 %v929
      %v946 = vunpack.c.l.b16 %v930
      %v947 = vpack.c.b16 %v940, %v939
      %v948 = vpack.c.b16 %v942, %v941
      %v949 = vpack.c.b16 %v944, %v943
      %v950 = vpack.c.b16 %v946, %v945
      %vm955 = vcmask 523264
      %v957 = vsel %vm955, %v921, 0
      %959 = vmatprep.subr.bf16.mxu0 0
      %960 = vmatpush1.bf16.msra.mxu0 0
      %961 = vmatprep.subr.bf16.mxu0 0
      %962 = vmatpush1.bf16.msra.mxu0 0
      %963 = vmatprep.subr.bf16.mxu0 0
      %964 = vmatpush1.bf16.msra.mxu0 0
      %965 = vmatprep.subr.bf16.mxu0 0
      %966 = vmatpush1.bf16.msra.mxu0 0
      %967 = vmatprep.subr.bf16.mxu0 0
      %968 = vmatpush1.bf16.msra.mxu0 %v950
      %969 = vmatprep.subr.bf16.mxu0 0
      %970 = vmatpush1.bf16.msra.mxu0 %v949
      %971 = vmatprep.subr.bf16.mxu0 0
      %972 = vmatpush1.bf16.msra.mxu0 %v948
      %973 = vmatprep.subr.bf16.mxu0 0
      %974 = vmatpush1.bf16.msra.mxu0 %v947
      %975 = vmatprep.subr.bf16.mxu0 0
      %976 = vmatpush2.bf16.msra.mxu0 0
      %977 = vmatprep.subr.bf16.mxu0 0
      %978 = vmatpush2.bf16.msra.mxu0 0
      %979 = vmatprep.subr.bf16.mxu0 0
      %980 = vmatpush2.bf16.msra.mxu0 0
      %981 = vmatprep.subr.bf16.mxu0 0
      %982 = vmatpush2.bf16.msra.mxu0 0
      %983 = vmatprep.subr.bf16.mxu0 0
      %984 = vmatpush2.bf16.msra.mxu0 0
      %985 = vmatprep.subr.bf16.mxu0 0
      %986 = vmatpush2.bf16.msra.mxu0 0
      %987 = vmatprep.subr.bf16.mxu0 0
      %988 = vmatpush2.bf16.msra.mxu0 0
      %989 = vmatprep.subr.bf16.mxu0 0
      %990 = vmatpush2.bf16.msra.mxu0 0
      %991 = vmatprep.mubr.bf16.mxu0 0
      %992 = vmatmul.mubr.bf16.gmra.mxu0 %v957
      %v993 = vpop.f32.mrf.mxu0
      %v994 = vadd.f32 0.0, %v993
      %v995 = vpop.f32.mrf.mxu0
      %v996 = vpop.f32.mrf.mxu0
      %v997 = vpop.f32.mrf.mxu0
      %998 = vdwg.mxu0
      %v1007 = vunpack.c.l.b16 %v868
      %v1008 = vunpack.c.l.b16 %v869
      %v1009 = vunpack.c.l.b16 %v870
      %v1010 = vunpack.c.l.b16 %v871
      %v1011 = vunpack.c.l.b16 %v872
      %v1012 = vunpack.c.l.b16 %v873
      %v1013 = vunpack.c.l.b16 %v874
      %v1014 = vunpack.c.l.b16 %v875
      %v1015 = vpack.c.b16 %v1008, %v1007
      %v1016 = vpack.c.b16 %v1010, %v1009
      %v1017 = vpack.c.b16 %v1012, %v1011
      %v1018 = vpack.c.b16 %v1014, %v1013
      %v1024 = vsel %vm955, %v867, 0
      %1026 = vmatprep.subr.bf16.mxu0 0
      %1027 = vmatpush1.bf16.msra.mxu0 0
      %1028 = vmatprep.subr.bf16.mxu0 0
      %1029 = vmatpush1.bf16.msra.mxu0 0
      %1030 = vmatprep.subr.bf16.mxu0 0
      %1031 = vmatpush1.bf16.msra.mxu0 0
      %1032 = vmatprep.subr.bf16.mxu0 0
      %1033 = vmatpush1.bf16.msra.mxu0 0
      %1034 = vmatprep.subr.bf16.mxu0 0
      %1035 = vmatpush1.bf16.msra.mxu0 %v1018
      %1036 = vmatprep.subr.bf16.mxu0 0
      %1037 = vmatpush1.bf16.msra.mxu0 %v1017
      %1038 = vmatprep.subr.bf16.mxu0 0
      %1039 = vmatpush1.bf16.msra.mxu0 %v1016
      %1040 = vmatprep.subr.bf16.mxu0 0
      %1041 = vmatpush1.bf16.msra.mxu0 %v1015
      %1042 = vmatprep.subr.bf16.mxu0 0
      %1043 = vmatpush2.bf16.msra.mxu0 0
      %1044 = vmatprep.subr.bf16.mxu0 0
      %1045 = vmatpush2.bf16.msra.mxu0 0
      %1046 = vmatprep.subr.bf16.mxu0 0
      %1047 = vmatpush2.bf16.msra.mxu0 0
      %1048 = vmatprep.subr.bf16.mxu0 0
      %1049 = vmatpush2.bf16.msra.mxu0 0
      %1050 = vmatprep.subr.bf16.mxu0 0
      %1051 = vmatpush2.bf16.msra.mxu0 0
      %1052 = vmatprep.subr.bf16.mxu0 0
      %1053 = vmatpush2.bf16.msra.mxu0 0
      %1054 = vmatprep.subr.bf16.mxu0 0
      %1055 = vmatpush2.bf16.msra.mxu0 0
      %1056 = vmatprep.subr.bf16.mxu0 0
      %1057 = vmatpush2.bf16.msra.mxu0 0
      %1058 = vmatprep.mubr.bf16.mxu0 0
      %1059 = vmatmul.mubr.bf16.gmra.mxu0 %v1024
      %v1060 = vpop.f32.mrf.mxu0
      %v1061 = vadd.f32 %v994, %v1060
      %v1062 = vpop.f32.mrf.mxu0
      %v1063 = vpop.f32.mrf.mxu0
      %v1064 = vpop.f32.mrf.mxu0
      %1065 = vdwg.mxu0
      %s1066 = scalar_lea.vmem %s4, 8
      %v1067 = vld [vmem:[%s1066] sm:$0xf]
      %v1069 = vsel %vm819, %v1067, 0
      %1071 = vmatprep.subr.bf16.mxu0 0
      %1072 = vmatpush1.bf16.msra.mxu0 0
      %1073 = vmatprep.subr.bf16.mxu0 0
      %1074 = vmatpush1.bf16.msra.mxu0 0
      %1075 = vmatprep.subr.bf16.mxu0 0
      %1076 = vmatpush1.bf16.msra.mxu0 0
      %1077 = vmatprep.subr.bf16.mxu0 0
      %1078 = vmatpush1.bf16.msra.mxu0 0
      %1079 = vmatprep.subr.bf16.mxu0 0
      %1080 = vmatpush1.bf16.msra.mxu0 0
      %1081 = vmatprep.subr.bf16.mxu0 0
      %1082 = vmatpush1.bf16.msra.mxu0 0
      %1083 = vmatprep.subr.bf16.mxu0 0
      %1084 = vmatpush1.bf16.msra.mxu0 0
      %1085 = vmatprep.subr.bf16.mxu0 0
      %1086 = vmatpush1.bf16.msra.mxu0 %v825
      %1087 = vmatprep.subr.bf16.mxu0 0
      %1088 = vmatpush2.bf16.msra.mxu0 0
      %1089 = vmatprep.subr.bf16.mxu0 0
      %1090 = vmatpush2.bf16.msra.mxu0 0
      %1091 = vmatprep.subr.bf16.mxu0 0
      %1092 = vmatpush2.bf16.msra.mxu0 0
      %1093 = vmatprep.subr.bf16.mxu0 0
      %1094 = vmatpush2.bf16.msra.mxu0 0
      %1095 = vmatprep.subr.bf16.mxu0 0
      %1096 = vmatpush2.bf16.msra.mxu0 0
      %1097 = vmatprep.subr.bf16.mxu0 0
      %1098 = vmatpush2.bf16.msra.mxu0 0
      %1099 = vmatprep.subr.bf16.mxu0 0
      %1100 = vmatpush2.bf16.msra.mxu0 0
      %1101 = vmatprep.subr.bf16.mxu0 0
      %1102 = vmatpush2.bf16.msra.mxu0 0
      %1103 = vmatprep.mubr.bf16.mxu0 0
      %1104 = vmatmul.mubr.bf16.gmra.mxu0 %v1069
      %v1105 = vpop.f32.mrf.mxu0
      %v1106 = vadd.f32 0.0, %v1105
      %v1107 = vpop.f32.mrf.mxu0
      %v1108 = vpop.f32.mrf.mxu0
      %v1109 = vpop.f32.mrf.mxu0
      %1110 = vdwg.mxu0
      %v1111 = vpack.c.bf16 %v1106, %v1106
      %s1112 = scalar_lea.vmem %s8, 64
      %v1113 = vld [vmem:[%s1112] sm:$0xf]
      %v1114 = vld [vmem:[%s1112 + $0x4] sm:$0xf]
      %v1115 = vld [vmem:[%s1112 + $0x8] sm:$0xf]
      %v1116 = vld [vmem:[%s1112 + $0xc] sm:$0xf]
      %v1117 = vld [vmem:[%s1112 + $0x10] sm:$0xf]
      %v1118 = vld [vmem:[%s1112 + $0x14] sm:$0xf]
      %v1119 = vld [vmem:[%s1112 + $0x18] sm:$0xf]
      %v1120 = vld [vmem:[%s1112 + $0x1c] sm:$0xf]
      %v1129 = vunpack.c.l.b16 %v1113
      %v1130 = vunpack.c.l.b16 %v1114
      %v1131 = vunpack.c.l.b16 %v1115
      %v1132 = vunpack.c.l.b16 %v1116
      %v1133 = vunpack.c.l.b16 %v1117
      %v1134 = vunpack.c.l.b16 %v1118
      %v1135 = vunpack.c.l.b16 %v1119
      %v1136 = vunpack.c.l.b16 %v1120
      %v1137 = vpack.c.b16 %v1130, %v1129
      %v1138 = vpack.c.b16 %v1132, %v1131
      %v1139 = vpack.c.b16 %v1134, %v1133
      %v1140 = vpack.c.b16 %v1136, %v1135
      %v1146 = vsel %vm955, %v1111, 0
      %1148 = vmatprep.subr.bf16.mxu0 0
      %1149 = vmatpush1.bf16.msra.mxu0 0
      %1150 = vmatprep.subr.bf16.mxu0 0
      %1151 = vmatpush1.bf16.msra.mxu0 0
      %1152 = vmatprep.subr.bf16.mxu0 0
      %1153 = vmatpush1.bf16.msra.mxu0 0
      %1154 = vmatprep.subr.bf16.mxu0 0
      %1155 = vmatpush1.bf16.msra.mxu0 0
      %1156 = vmatprep.subr.bf16.mxu0 0
      %1157 = vmatpush1.bf16.msra.mxu0 %v1140
      %1158 = vmatprep.subr.bf16.mxu0 0
      %1159 = vmatpush1.bf16.msra.mxu0 %v1139
      %1160 = vmatprep.subr.bf16.mxu0 0
      %1161 = vmatpush1.bf16.msra.mxu0 %v1138
      %1162 = vmatprep.subr.bf16.mxu0 0
      %1163 = vmatpush1.bf16.msra.mxu0 %v1137
      %1164 = vmatprep.subr.bf16.mxu0 0
      %1165 = vmatpush2.bf16.msra.mxu0 0
      %1166 = vmatprep.subr.bf16.mxu0 0
      %1167 = vmatpush2.bf16.msra.mxu0 0
      %1168 = vmatprep.subr.bf16.mxu0 0
      %1169 = vmatpush2.bf16.msra.mxu0 0
      %1170 = vmatprep.subr.bf16.mxu0 0
      %1171 = vmatpush2.bf16.msra.mxu0 0
      %1172 = vmatprep.subr.bf16.mxu0 0
      %1173 = vmatpush2.bf16.msra.mxu0 0
      %1174 = vmatprep.subr.bf16.mxu0 0
      %1175 = vmatpush2.bf16.msra.mxu0 0
      %1176 = vmatprep.subr.bf16.mxu0 0
      %1177 = vmatpush2.bf16.msra.mxu0 0
      %1178 = vmatprep.subr.bf16.mxu0 0
      %1179 = vmatpush2.bf16.msra.mxu0 0
      %1180 = vmatprep.mubr.bf16.mxu0 0
      %1181 = vmatmul.mubr.bf16.gmra.mxu0 %v1146
      %v1182 = vpop.f32.mrf.mxu0
      %v1183 = vadd.f32 0.0, %v1182
      %v1184 = vpop.f32.mrf.mxu0
      %v1185 = vpop.f32.mrf.mxu0
      %v1186 = vpop.f32.mrf.mxu0
      %1187 = vdwg.mxu0
      %v1188 = vadd.f32 %v1061, %v1183
      %s1189 = scalar_lea.vmem %s4, 12
      %v1190 = vld [vmem:[%s1189] sm:$0xf]
      %v1192 = vsel %vm819, %v1190, 0
      %1194 = vmatprep.subr.bf16.mxu0 0
      %1195 = vmatpush1.bf16.msra.mxu0 0
      %1196 = vmatprep.subr.bf16.mxu0 0
      %1197 = vmatpush1.bf16.msra.mxu0 0
      %1198 = vmatprep.subr.bf16.mxu0 0
      %1199 = vmatpush1.bf16.msra.mxu0 0
      %1200 = vmatprep.subr.bf16.mxu0 0
      %1201 = vmatpush1.bf16.msra.mxu0 0
      %1202 = vmatprep.subr.bf16.mxu0 0
      %1203 = vmatpush1.bf16.msra.mxu0 0
      %1204 = vmatprep.subr.bf16.mxu0 0
      %1205 = vmatpush1.bf16.msra.mxu0 0
      %1206 = vmatprep.subr.bf16.mxu0 0
      %1207 = vmatpush1.bf16.msra.mxu0 0
      %1208 = vmatprep.subr.bf16.mxu0 0
      %1209 = vmatpush1.bf16.msra.mxu0 %v825
      %1210 = vmatprep.subr.bf16.mxu0 0
      %1211 = vmatpush2.bf16.msra.mxu0 0
      %1212 = vmatprep.subr.bf16.mxu0 0
      %1213 = vmatpush2.bf16.msra.mxu0 0
      %1214 = vmatprep.subr.bf16.mxu0 0
      %1215 = vmatpush2.bf16.msra.mxu0 0
      %1216 = vmatprep.subr.bf16.mxu0 0
      %1217 = vmatpush2.bf16.msra.mxu0 0
      %1218 = vmatprep.subr.bf16.mxu0 0
      %1219 = vmatpush2.bf16.msra.mxu0 0
      %1220 = vmatprep.subr.bf16.mxu0 0
      %1221 = vmatpush2.bf16.msra.mxu0 0
      %1222 = vmatprep.subr.bf16.mxu0 0
      %1223 = vmatpush2.bf16.msra.mxu0 0
      %1224 = vmatprep.subr.bf16.mxu0 0
      %1225 = vmatpush2.bf16.msra.mxu0 0
      %1226 = vmatprep.mubr.bf16.mxu0 0
      %1227 = vmatmul.mubr.bf16.gmra.mxu0 %v1192
      %v1228 = vpop.f32.mrf.mxu0
      %v1229 = vadd.f32 0.0, %v1228
      %v1230 = vpop.f32.mrf.mxu0
      %v1231 = vpop.f32.mrf.mxu0
      %v1232 = vpop.f32.mrf.mxu0
      %1233 = vdwg.mxu0
      %v1234 = vpack.c.bf16 %v1229, %v1229
      %s1235 = scalar_lea.vmem %s8, 96
      %v1236 = vld [vmem:[%s1235] sm:$0xf]
      %v1237 = vld [vmem:[%s1235 + $0x4] sm:$0xf]
      %v1238 = vld [vmem:[%s1235 + $0x8] sm:$0xf]
      %v1239 = vld [vmem:[%s1235 + $0xc] sm:$0xf]
      %v1240 = vld [vmem:[%s1235 + $0x10] sm:$0xf]
      %v1241 = vld [vmem:[%s1235 + $0x14] sm:$0xf]
      %v1242 = vld [vmem:[%s1235 + $0x18] sm:$0xf]
      %v1243 = vld [vmem:[%s1235 + $0x1c] sm:$0xf]
      %v1252 = vunpack.c.l.b16 %v1236
      %v1253 = vunpack.c.l.b16 %v1237
      %v1254 = vunpack.c.l.b16 %v1238
      %v1255 = vunpack.c.l.b16 %v1239
      %v1256 = vunpack.c.l.b16 %v1240
      %v1257 = vunpack.c.l.b16 %v1241
      %v1258 = vunpack.c.l.b16 %v1242
      %v1259 = vunpack.c.l.b16 %v1243
      %v1260 = vpack.c.b16 %v1253, %v1252
      %v1261 = vpack.c.b16 %v1255, %v1254
      %v1262 = vpack.c.b16 %v1257, %v1256
      %v1263 = vpack.c.b16 %v1259, %v1258
      %v1269 = vsel %vm955, %v1234, 0
      %1271 = vmatprep.subr.bf16.mxu0 0
      %1272 = vmatpush1.bf16.msra.mxu0 0
      %1273 = vmatprep.subr.bf16.mxu0 0
      %1274 = vmatpush1.bf16.msra.mxu0 0
      %1275 = vmatprep.subr.bf16.mxu0 0
      %1276 = vmatpush1.bf16.msra.mxu0 0
      %1277 = vmatprep.subr.bf16.mxu0 0
      %1278 = vmatpush1.bf16.msra.mxu0 0
      %1279 = vmatprep.subr.bf16.mxu0 0
      %1280 = vmatpush1.bf16.msra.mxu0 %v1263
      %1281 = vmatprep.subr.bf16.mxu0 0
      %1282 = vmatpush1.bf16.msra.mxu0 %v1262
      %1283 = vmatprep.subr.bf16.mxu0 0
      %1284 = vmatpush1.bf16.msra.mxu0 %v1261
      %1285 = vmatprep.subr.bf16.mxu0 0
      %1286 = vmatpush1.bf16.msra.mxu0 %v1260
      %1287 = vmatprep.subr.bf16.mxu0 0
      %1288 = vmatpush2.bf16.msra.mxu0 0
      %1289 = vmatprep.subr.bf16.mxu0 0
      %1290 = vmatpush2.bf16.msra.mxu0 0
      %1291 = vmatprep.subr.bf16.mxu0 0
      %1292 = vmatpush2.bf16.msra.mxu0 0
      %1293 = vmatprep.subr.bf16.mxu0 0
      %1294 = vmatpush2.bf16.msra.mxu0 0
      %1295 = vmatprep.subr.bf16.mxu0 0
      %1296 = vmatpush2.bf16.msra.mxu0 0
      %1297 = vmatprep.subr.bf16.mxu0 0
      %1298 = vmatpush2.bf16.msra.mxu0 0
      %1299 = vmatprep.subr.bf16.mxu0 0
      %1300 = vmatpush2.bf16.msra.mxu0 0
      %1301 = vmatprep.subr.bf16.mxu0 0
      %1302 = vmatpush2.bf16.msra.mxu0 0
      %1303 = vmatprep.mubr.bf16.mxu0 0
      %1304 = vmatmul.mubr.bf16.gmra.mxu0 %v1269
      %v1305 = vpop.f32.mrf.mxu0
      %v1306 = vadd.f32 0.0, %v1305
      %v1307 = vpop.f32.mrf.mxu0
      %v1308 = vpop.f32.mrf.mxu0
      %v1309 = vpop.f32.mrf.mxu0
      %1310 = vdwg.mxu0
      %v1311 = vadd.f32 %v1188, %v1306
      %s1312 = scalar_lea.vmem %s4, 16
      %v1313 = vld [vmem:[%s1312] sm:$0xf]
      %v1315 = vsel %vm819, %v1313, 0
      %1317 = vmatprep.subr.bf16.mxu0 0
      %1318 = vmatpush1.bf16.msra.mxu0 0
      %1319 = vmatprep.subr.bf16.mxu0 0
      %1320 = vmatpush1.bf16.msra.mxu0 0
      %1321 = vmatprep.subr.bf16.mxu0 0
      %1322 = vmatpush1.bf16.msra.mxu0 0
      %1323 = vmatprep.subr.bf16.mxu0 0
      %1324 = vmatpush1.bf16.msra.mxu0 0
      %1325 = vmatprep.subr.bf16.mxu0 0
      %1326 = vmatpush1.bf16.msra.mxu0 0
      %1327 = vmatprep.subr.bf16.mxu0 0
      %1328 = vmatpush1.bf16.msra.mxu0 0
      %1329 = vmatprep.subr.bf16.mxu0 0
      %1330 = vmatpush1.bf16.msra.mxu0 0
      %1331 = vmatprep.subr.bf16.mxu0 0
      %1332 = vmatpush1.bf16.msra.mxu0 %v825
      %1333 = vmatprep.subr.bf16.mxu0 0
      %1334 = vmatpush2.bf16.msra.mxu0 0
      %1335 = vmatprep.subr.bf16.mxu0 0
      %1336 = vmatpush2.bf16.msra.mxu0 0
      %1337 = vmatprep.subr.bf16.mxu0 0
      %1338 = vmatpush2.bf16.msra.mxu0 0
      %1339 = vmatprep.subr.bf16.mxu0 0
      %1340 = vmatpush2.bf16.msra.mxu0 0
      %1341 = vmatprep.subr.bf16.mxu0 0
      %1342 = vmatpush2.bf16.msra.mxu0 0
      %1343 = vmatprep.subr.bf16.mxu0 0
      %1344 = vmatpush2.bf16.msra.mxu0 0
      %1345 = vmatprep.subr.bf16.mxu0 0
      %1346 = vmatpush2.bf16.msra.mxu0 0
      %1347 = vmatprep.subr.bf16.mxu0 0
      %1348 = vmatpush2.bf16.msra.mxu0 0
      %1349 = vmatprep.mubr.bf16.mxu0 0
      %1350 = vmatmul.mubr.bf16.gmra.mxu0 %v1315
      %v1351 = vpop.f32.mrf.mxu0
      %v1352 = vadd.f32 0.0, %v1351
      %v1353 = vpop.f32.mrf.mxu0
      %v1354 = vpop.f32.mrf.mxu0
      %v1355 = vpop.f32.mrf.mxu0
      %1356 = vdwg.mxu0
      %v1357 = vpack.c.bf16 %v1352, %v1352
      %s1358 = scalar_lea.vmem %s8, 128
      %v1359 = vld [vmem:[%s1358] sm:$0xf]
      %v1360 = vld [vmem:[%s1358 + $0x4] sm:$0xf]
      %v1361 = vld [vmem:[%s1358 + $0x8] sm:$0xf]
      %v1362 = vld [vmem:[%s1358 + $0xc] sm:$0xf]
      %v1363 = vld [vmem:[%s1358 + $0x10] sm:$0xf]
      %v1364 = vld [vmem:[%s1358 + $0x14] sm:$0xf]
      %v1365 = vld [vmem:[%s1358 + $0x18] sm:$0xf]
      %v1366 = vld [vmem:[%s1358 + $0x1c] sm:$0xf]
      %v1375 = vunpack.c.l.b16 %v1359
      %v1376 = vunpack.c.l.b16 %v1360
      %v1377 = vunpack.c.l.b16 %v1361
      %v1378 = vunpack.c.l.b16 %v1362
      %v1379 = vunpack.c.l.b16 %v1363
      %v1380 = vunpack.c.l.b16 %v1364
      %v1381 = vunpack.c.l.b16 %v1365
      %v1382 = vunpack.c.l.b16 %v1366
      %v1383 = vpack.c.b16 %v1376, %v1375
      %v1384 = vpack.c.b16 %v1378, %v1377
      %v1385 = vpack.c.b16 %v1380, %v1379
      %v1386 = vpack.c.b16 %v1382, %v1381
      %v1392 = vsel %vm955, %v1357, 0
      %1394 = vmatprep.subr.bf16.mxu0 0
      %1395 = vmatpush1.bf16.msra.mxu0 0
      %1396 = vmatprep.subr.bf16.mxu0 0
      %1397 = vmatpush1.bf16.msra.mxu0 0
      %1398 = vmatprep.subr.bf16.mxu0 0
      %1399 = vmatpush1.bf16.msra.mxu0 0
      %1400 = vmatprep.subr.bf16.mxu0 0
      %1401 = vmatpush1.bf16.msra.mxu0 0
      %1402 = vmatprep.subr.bf16.mxu0 0
      %1403 = vmatpush1.bf16.msra.mxu0 %v1386
      %1404 = vmatprep.subr.bf16.mxu0 0
      %1405 = vmatpush1.bf16.msra.mxu0 %v1385
      %1406 = vmatprep.subr.bf16.mxu0 0
      %1407 = vmatpush1.bf16.msra.mxu0 %v1384
      %1408 = vmatprep.subr.bf16.mxu0 0
      %1409 = vmatpush1.bf16.msra.mxu0 %v1383
      %1410 = vmatprep.subr.bf16.mxu0 0
      %1411 = vmatpush2.bf16.msra.mxu0 0
      %1412 = vmatprep.subr.bf16.mxu0 0
      %1413 = vmatpush2.bf16.msra.mxu0 0
      %1414 = vmatprep.subr.bf16.mxu0 0
      %1415 = vmatpush2.bf16.msra.mxu0 0
      %1416 = vmatprep.subr.bf16.mxu0 0
      %1417 = vmatpush2.bf16.msra.mxu0 0
      %1418 = vmatprep.subr.bf16.mxu0 0
      %1419 = vmatpush2.bf16.msra.mxu0 0
      %1420 = vmatprep.subr.bf16.mxu0 0
      %1421 = vmatpush2.bf16.msra.mxu0 0
      %1422 = vmatprep.subr.bf16.mxu0 0
      %1423 = vmatpush2.bf16.msra.mxu0 0
      %1424 = vmatprep.subr.bf16.mxu0 0
      %1425 = vmatpush2.bf16.msra.mxu0 0
      %1426 = vmatprep.mubr.bf16.mxu0 0
      %1427 = vmatmul.mubr.bf16.gmra.mxu0 %v1392
      %v1428 = vpop.f32.mrf.mxu0
      %v1429 = vadd.f32 0.0, %v1428
      %v1430 = vpop.f32.mrf.mxu0
      %v1431 = vpop.f32.mrf.mxu0
      %v1432 = vpop.f32.mrf.mxu0
      %1433 = vdwg.mxu0
      %v1434 = vadd.f32 %v1311, %v1429
      %s1435 = scalar_lea.vmem %s4, 20
      %v1436 = vld [vmem:[%s1435] sm:$0xf]
      %v1438 = vsel %vm819, %v1436, 0
      %1440 = vmatprep.subr.bf16.mxu0 0
      %1441 = vmatpush1.bf16.msra.mxu0 0
      %1442 = vmatprep.subr.bf16.mxu0 0
      %1443 = vmatpush1.bf16.msra.mxu0 0
      %1444 = vmatprep.subr.bf16.mxu0 0
      %1445 = vmatpush1.bf16.msra.mxu0 0
      %1446 = vmatprep.subr.bf16.mxu0 0
      %1447 = vmatpush1.bf16.msra.mxu0 0
      %1448 = vmatprep.subr.bf16.mxu0 0
      %1449 = vmatpush1.bf16.msra.mxu0 0
      %1450 = vmatprep.subr.bf16.mxu0 0
      %1451 = vmatpush1.bf16.msra.mxu0 0
      %1452 = vmatprep.subr.bf16.mxu0 0
      %1453 = vmatpush1.bf16.msra.mxu0 0
      %1454 = vmatprep.subr.bf16.mxu0 0
      %1455 = vmatpush1.bf16.msra.mxu0 %v825
      %1456 = vmatprep.subr.bf16.mxu0 0
      %1457 = vmatpush2.bf16.msra.mxu0 0
      %1458 = vmatprep.subr.bf16.mxu0 0
      %1459 = vmatpush2.bf16.msra.mxu0 0
      %1460 = vmatprep.subr.bf16.mxu0 0
      %1461 = vmatpush2.bf16.msra.mxu0 0
      %1462 = vmatprep.subr.bf16.mxu0 0
      %1463 = vmatpush2.bf16.msra.mxu0 0
      %1464 = vmatprep.subr.bf16.mxu0 0
      %1465 = vmatpush2.bf16.msra.mxu0 0
      %1466 = vmatprep.subr.bf16.mxu0 0
      %1467 = vmatpush2.bf16.msra.mxu0 0
      %1468 = vmatprep.subr.bf16.mxu0 0
      %1469 = vmatpush2.bf16.msra.mxu0 0
      %1470 = vmatprep.subr.bf16.mxu0 0
      %1471 = vmatpush2.bf16.msra.mxu0 0
      %1472 = vmatprep.mubr.bf16.mxu0 0
      %1473 = vmatmul.mubr.bf16.gmra.mxu0 %v1438
      %v1474 = vpop.f32.mrf.mxu0
      %v1475 = vadd.f32 0.0, %v1474
      %v1476 = vpop.f32.mrf.mxu0
      %v1477 = vpop.f32.mrf.mxu0
      %v1478 = vpop.f32.mrf.mxu0
      %1479 = vdwg.mxu0
      %v1480 = vpack.c.bf16 %v1475, %v1475
      %s1481 = scalar_lea.vmem %s8, 160
      %v1482 = vld [vmem:[%s1481] sm:$0xf]
      %v1483 = vld [vmem:[%s1481 + $0x4] sm:$0xf]
      %v1484 = vld [vmem:[%s1481 + $0x8] sm:$0xf]
      %v1485 = vld [vmem:[%s1481 + $0xc] sm:$0xf]
      %v1486 = vld [vmem:[%s1481 + $0x10] sm:$0xf]
      %v1487 = vld [vmem:[%s1481 + $0x14] sm:$0xf]
      %v1488 = vld [vmem:[%s1481 + $0x18] sm:$0xf]
      %v1489 = vld [vmem:[%s1481 + $0x1c] sm:$0xf]
      %v1498 = vunpack.c.l.b16 %v1482
      %v1499 = vunpack.c.l.b16 %v1483
      %v1500 = vunpack.c.l.b16 %v1484
      %v1501 = vunpack.c.l.b16 %v1485
      %v1502 = vunpack.c.l.b16 %v1486
      %v1503 = vunpack.c.l.b16 %v1487
      %v1504 = vunpack.c.l.b16 %v1488
      %v1505 = vunpack.c.l.b16 %v1489
      %v1506 = vpack.c.b16 %v1499, %v1498
      %v1507 = vpack.c.b16 %v1501, %v1500
      %v1508 = vpack.c.b16 %v1503, %v1502
      %v1509 = vpack.c.b16 %v1505, %v1504
      %v1515 = vsel %vm955, %v1480, 0
      %1517 = vmatprep.subr.bf16.mxu0 0
      %1518 = vmatpush1.bf16.msra.mxu0 0
      %1519 = vmatprep.subr.bf16.mxu0 0
      %1520 = vmatpush1.bf16.msra.mxu0 0
      %1521 = vmatprep.subr.bf16.mxu0 0
      %1522 = vmatpush1.bf16.msra.mxu0 0
      %1523 = vmatprep.subr.bf16.mxu0 0
      %1524 = vmatpush1.bf16.msra.mxu0 0
      %1525 = vmatprep.subr.bf16.mxu0 0
      %1526 = vmatpush1.bf16.msra.mxu0 %v1509
      %1527 = vmatprep.subr.bf16.mxu0 0
      %1528 = vmatpush1.bf16.msra.mxu0 %v1508
      %1529 = vmatprep.subr.bf16.mxu0 0
      %1530 = vmatpush1.bf16.msra.mxu0 %v1507
      %1531 = vmatprep.subr.bf16.mxu0 0
      %1532 = vmatpush1.bf16.msra.mxu0 %v1506
      %1533 = vmatprep.subr.bf16.mxu0 0
      %1534 = vmatpush2.bf16.msra.mxu0 0
      %1535 = vmatprep.subr.bf16.mxu0 0
      %1536 = vmatpush2.bf16.msra.mxu0 0
      %1537 = vmatprep.subr.bf16.mxu0 0
      %1538 = vmatpush2.bf16.msra.mxu0 0
      %1539 = vmatprep.subr.bf16.mxu0 0
      %1540 = vmatpush2.bf16.msra.mxu0 0
      %1541 = vmatprep.subr.bf16.mxu0 0
      %1542 = vmatpush2.bf16.msra.mxu0 0
      %1543 = vmatprep.subr.bf16.mxu0 0
      %1544 = vmatpush2.bf16.msra.mxu0 0
      %1545 = vmatprep.subr.bf16.mxu0 0
      %1546 = vmatpush2.bf16.msra.mxu0 0
      %1547 = vmatprep.subr.bf16.mxu0 0
      %1548 = vmatpush2.bf16.msra.mxu0 0
      %1549 = vmatprep.mubr.bf16.mxu0 0
      %1550 = vmatmul.mubr.bf16.gmra.mxu0 %v1515
      %v1551 = vpop.f32.mrf.mxu0
      %v1552 = vadd.f32 0.0, %v1551
      %v1553 = vpop.f32.mrf.mxu0
      %v1554 = vpop.f32.mrf.mxu0
      %v1555 = vpop.f32.mrf.mxu0
      %1556 = vdwg.mxu0
      %v1557 = vadd.f32 %v1434, %v1552
      %s1558 = scalar_lea.vmem %s4, 24
      %v1559 = vld [vmem:[%s1558] sm:$0xf]
      %v1561 = vsel %vm819, %v1559, 0
      %1563 = vmatprep.subr.bf16.mxu0 0
      %1564 = vmatpush1.bf16.msra.mxu0 0
      %1565 = vmatprep.subr.bf16.mxu0 0
      %1566 = vmatpush1.bf16.msra.mxu0 0
      %1567 = vmatprep.subr.bf16.mxu0 0
      %1568 = vmatpush1.bf16.msra.mxu0 0
      %1569 = vmatprep.subr.bf16.mxu0 0
      %1570 = vmatpush1.bf16.msra.mxu0 0
      %1571 = vmatprep.subr.bf16.mxu0 0
      %1572 = vmatpush1.bf16.msra.mxu0 0
      %1573 = vmatprep.subr.bf16.mxu0 0
      %1574 = vmatpush1.bf16.msra.mxu0 0
      %1575 = vmatprep.subr.bf16.mxu0 0
      %1576 = vmatpush1.bf16.msra.mxu0 0
      %1577 = vmatprep.subr.bf16.mxu0 0
      %1578 = vmatpush1.bf16.msra.mxu0 %v825
      %1579 = vmatprep.subr.bf16.mxu0 0
      %1580 = vmatpush2.bf16.msra.mxu0 0
      %1581 = vmatprep.subr.bf16.mxu0 0
      %1582 = vmatpush2.bf16.msra.mxu0 0
      %1583 = vmatprep.subr.bf16.mxu0 0
      %1584 = vmatpush2.bf16.msra.mxu0 0
      %1585 = vmatprep.subr.bf16.mxu0 0
      %1586 = vmatpush2.bf16.msra.mxu0 0
      %1587 = vmatprep.subr.bf16.mxu0 0
      %1588 = vmatpush2.bf16.msra.mxu0 0
      %1589 = vmatprep.subr.bf16.mxu0 0
      %1590 = vmatpush2.bf16.msra.mxu0 0
      %1591 = vmatprep.subr.bf16.mxu0 0
      %1592 = vmatpush2.bf16.msra.mxu0 0
      %1593 = vmatprep.subr.bf16.mxu0 0
      %1594 = vmatpush2.bf16.msra.mxu0 0
      %1595 = vmatprep.mubr.bf16.mxu0 0
      %1596 = vmatmul.mubr.bf16.gmra.mxu0 %v1561
      %v1597 = vpop.f32.mrf.mxu0
      %v1598 = vadd.f32 0.0, %v1597
      %v1599 = vpop.f32.mrf.mxu0
      %v1600 = vpop.f32.mrf.mxu0
      %v1601 = vpop.f32.mrf.mxu0
      %1602 = vdwg.mxu0
      %v1603 = vpack.c.bf16 %v1598, %v1598
      %s1604 = scalar_lea.vmem %s8, 192
      %v1605 = vld [vmem:[%s1604] sm:$0xf]
      %v1606 = vld [vmem:[%s1604 + $0x4] sm:$0xf]
      %v1607 = vld [vmem:[%s1604 + $0x8] sm:$0xf]
      %v1608 = vld [vmem:[%s1604 + $0xc] sm:$0xf]
      %v1609 = vld [vmem:[%s1604 + $0x10] sm:$0xf]
      %v1610 = vld [vmem:[%s1604 + $0x14] sm:$0xf]
      %v1611 = vld [vmem:[%s1604 + $0x18] sm:$0xf]
      %v1612 = vld [vmem:[%s1604 + $0x1c] sm:$0xf]
      %v1621 = vunpack.c.l.b16 %v1605
      %v1622 = vunpack.c.l.b16 %v1606
      %v1623 = vunpack.c.l.b16 %v1607
      %v1624 = vunpack.c.l.b16 %v1608
      %v1625 = vunpack.c.l.b16 %v1609
      %v1626 = vunpack.c.l.b16 %v1610
      %v1627 = vunpack.c.l.b16 %v1611
      %v1628 = vunpack.c.l.b16 %v1612
      %v1629 = vpack.c.b16 %v1622, %v1621
      %v1630 = vpack.c.b16 %v1624, %v1623
      %v1631 = vpack.c.b16 %v1626, %v1625
      %v1632 = vpack.c.b16 %v1628, %v1627
      %v1638 = vsel %vm955, %v1603, 0
      %1640 = vmatprep.subr.bf16.mxu0 0
      %1641 = vmatpush1.bf16.msra.mxu0 0
      %1642 = vmatprep.subr.bf16.mxu0 0
      %1643 = vmatpush1.bf16.msra.mxu0 0
      %1644 = vmatprep.subr.bf16.mxu0 0
      %1645 = vmatpush1.bf16.msra.mxu0 0
      %1646 = vmatprep.subr.bf16.mxu0 0
      %1647 = vmatpush1.bf16.msra.mxu0 0
      %1648 = vmatprep.subr.bf16.mxu0 0
      %1649 = vmatpush1.bf16.msra.mxu0 %v1632
      %1650 = vmatprep.subr.bf16.mxu0 0
      %1651 = vmatpush1.bf16.msra.mxu0 %v1631
      %1652 = vmatprep.subr.bf16.mxu0 0
      %1653 = vmatpush1.bf16.msra.mxu0 %v1630
      %1654 = vmatprep.subr.bf16.mxu0 0
      %1655 = vmatpush1.bf16.msra.mxu0 %v1629
      %1656 = vmatprep.subr.bf16.mxu0 0
      %1657 = vmatpush2.bf16.msra.mxu0 0
      %1658 = vmatprep.subr.bf16.mxu0 0
      %1659 = vmatpush2.bf16.msra.mxu0 0
      %1660 = vmatprep.subr.bf16.mxu0 0
      %1661 = vmatpush2.bf16.msra.mxu0 0
      %1662 = vmatprep.subr.bf16.mxu0 0
      %1663 = vmatpush2.bf16.msra.mxu0 0
      %1664 = vmatprep.subr.bf16.mxu0 0
      %1665 = vmatpush2.bf16.msra.mxu0 0
      %1666 = vmatprep.subr.bf16.mxu0 0
      %1667 = vmatpush2.bf16.msra.mxu0 0
      %1668 = vmatprep.subr.bf16.mxu0 0
      %1669 = vmatpush2.bf16.msra.mxu0 0
      %1670 = vmatprep.subr.bf16.mxu0 0
      %1671 = vmatpush2.bf16.msra.mxu0 0
      %1672 = vmatprep.mubr.bf16.mxu0 0
      %1673 = vmatmul.mubr.bf16.gmra.mxu0 %v1638
      %v1674 = vpop.f32.mrf.mxu0
      %v1675 = vadd.f32 0.0, %v1674
      %v1676 = vpop.f32.mrf.mxu0
      %v1677 = vpop.f32.mrf.mxu0
      %v1678 = vpop.f32.mrf.mxu0
      %1679 = vdwg.mxu0
      %v1680 = vadd.f32 %v1557, %v1675
      %s1681 = scalar_lea.vmem %s4, 28
      %v1682 = vld [vmem:[%s1681] sm:$0xf]
      %v1684 = vsel %vm819, %v1682, 0
      %1686 = vmatprep.subr.bf16.mxu0 0
      %1687 = vmatpush1.bf16.msra.mxu0 0
      %1688 = vmatprep.subr.bf16.mxu0 0
      %1689 = vmatpush1.bf16.msra.mxu0 0
      %1690 = vmatprep.subr.bf16.mxu0 0
      %1691 = vmatpush1.bf16.msra.mxu0 0
      %1692 = vmatprep.subr.bf16.mxu0 0
      %1693 = vmatpush1.bf16.msra.mxu0 0
      %1694 = vmatprep.subr.bf16.mxu0 0
      %1695 = vmatpush1.bf16.msra.mxu0 0
      %1696 = vmatprep.subr.bf16.mxu0 0
      %1697 = vmatpush1.bf16.msra.mxu0 0
      %1698 = vmatprep.subr.bf16.mxu0 0
      %1699 = vmatpush1.bf16.msra.mxu0 0
      %1700 = vmatprep.subr.bf16.mxu0 0
      %1701 = vmatpush1.bf16.msra.mxu0 %v825
      %1702 = vmatprep.subr.bf16.mxu0 0
      %1703 = vmatpush2.bf16.msra.mxu0 0
      %1704 = vmatprep.subr.bf16.mxu0 0
      %1705 = vmatpush2.bf16.msra.mxu0 0
      %1706 = vmatprep.subr.bf16.mxu0 0
      %1707 = vmatpush2.bf16.msra.mxu0 0
      %1708 = vmatprep.subr.bf16.mxu0 0
      %1709 = vmatpush2.bf16.msra.mxu0 0
      %1710 = vmatprep.subr.bf16.mxu0 0
      %1711 = vmatpush2.bf16.msra.mxu0 0
      %1712 = vmatprep.subr.bf16.mxu0 0
      %1713 = vmatpush2.bf16.msra.mxu0 0
      %1714 = vmatprep.subr.bf16.mxu0 0
      %1715 = vmatpush2.bf16.msra.mxu0 0
      %1716 = vmatprep.subr.bf16.mxu0 0
      %1717 = vmatpush2.bf16.msra.mxu0 0
      %1718 = vmatprep.mubr.bf16.mxu0 0
      %1719 = vmatmul.mubr.bf16.gmra.mxu0 %v1684
      %v1720 = vpop.f32.mrf.mxu0
      %v1721 = vadd.f32 0.0, %v1720
      %v1722 = vpop.f32.mrf.mxu0
      %v1723 = vpop.f32.mrf.mxu0
      %v1724 = vpop.f32.mrf.mxu0
      %1725 = vdwg.mxu0
      %v1726 = vpack.c.bf16 %v1721, %v1721
      %s1727 = scalar_lea.vmem %s8, 224
      %v1728 = vld [vmem:[%s1727] sm:$0xf]
      %v1729 = vld [vmem:[%s1727 + $0x4] sm:$0xf]
      %v1730 = vld [vmem:[%s1727 + $0x8] sm:$0xf]
      %v1731 = vld [vmem:[%s1727 + $0xc] sm:$0xf]
      %v1732 = vld [vmem:[%s1727 + $0x10] sm:$0xf]
      %v1733 = vld [vmem:[%s1727 + $0x14] sm:$0xf]
      %v1734 = vld [vmem:[%s1727 + $0x18] sm:$0xf]
      %v1735 = vld [vmem:[%s1727 + $0x1c] sm:$0xf]
      %v1744 = vunpack.c.l.b16 %v1728
      %v1745 = vunpack.c.l.b16 %v1729
      %v1746 = vunpack.c.l.b16 %v1730
      %v1747 = vunpack.c.l.b16 %v1731
      %v1748 = vunpack.c.l.b16 %v1732
      %v1749 = vunpack.c.l.b16 %v1733
      %v1750 = vunpack.c.l.b16 %v1734
      %v1751 = vunpack.c.l.b16 %v1735
      %v1752 = vpack.c.b16 %v1745, %v1744
      %v1753 = vpack.c.b16 %v1747, %v1746
      %v1754 = vpack.c.b16 %v1749, %v1748
      %v1755 = vpack.c.b16 %v1751, %v1750
      %v1761 = vsel %vm955, %v1726, 0
      %1763 = vmatprep.subr.bf16.mxu0 0
      %1764 = vmatpush1.bf16.msra.mxu0 0
      %1765 = vmatprep.subr.bf16.mxu0 0
      %1766 = vmatpush1.bf16.msra.mxu0 0
      %1767 = vmatprep.subr.bf16.mxu0 0
      %1768 = vmatpush1.bf16.msra.mxu0 0
      %1769 = vmatprep.subr.bf16.mxu0 0
      %1770 = vmatpush1.bf16.msra.mxu0 0
      %1771 = vmatprep.subr.bf16.mxu0 0
      %1772 = vmatpush1.bf16.msra.mxu0 %v1755
      %1773 = vmatprep.subr.bf16.mxu0 0
      %1774 = vmatpush1.bf16.msra.mxu0 %v1754
      %1775 = vmatprep.subr.bf16.mxu0 0
      %1776 = vmatpush1.bf16.msra.mxu0 %v1753
      %1777 = vmatprep.subr.bf16.mxu0 0
      %1778 = vmatpush1.bf16.msra.mxu0 %v1752
      %1779 = vmatprep.subr.bf16.mxu0 0
      %1780 = vmatpush2.bf16.msra.mxu0 0
      %1781 = vmatprep.subr.bf16.mxu0 0
      %1782 = vmatpush2.bf16.msra.mxu0 0
      %1783 = vmatprep.subr.bf16.mxu0 0
      %1784 = vmatpush2.bf16.msra.mxu0 0
      %1785 = vmatprep.subr.bf16.mxu0 0
      %1786 = vmatpush2.bf16.msra.mxu0 0
      %1787 = vmatprep.subr.bf16.mxu0 0
      %1788 = vmatpush2.bf16.msra.mxu0 0
      %1789 = vmatprep.subr.bf16.mxu0 0
      %1790 = vmatpush2.bf16.msra.mxu0 0
      %1791 = vmatprep.subr.bf16.mxu0 0
      %1792 = vmatpush2.bf16.msra.mxu0 0
      %1793 = vmatprep.subr.bf16.mxu0 0
      %1794 = vmatpush2.bf16.msra.mxu0 0
      %1795 = vmatprep.mubr.bf16.mxu0 0
      %1796 = vmatmul.mubr.bf16.gmra.mxu0 %v1761
      %v1797 = vpop.f32.mrf.mxu0
      %v1798 = vadd.f32 0.0, %v1797
      %v1799 = vpop.f32.mrf.mxu0
      %v1800 = vpop.f32.mrf.mxu0
      %v1801 = vpop.f32.mrf.mxu0
      %1802 = vdwg.mxu0
      %v1803 = vadd.f32 %v1680, %v1798
      %s1804 = scalar_lea.vmem %s4, 32
      %v1805 = vld [vmem:[%s1804] sm:$0xf]
      %v1807 = vsel %vm819, %v1805, 0
      %1809 = vmatprep.subr.bf16.mxu0 0
      %1810 = vmatpush1.bf16.msra.mxu0 0
      %1811 = vmatprep.subr.bf16.mxu0 0
      %1812 = vmatpush1.bf16.msra.mxu0 0
      %1813 = vmatprep.subr.bf16.mxu0 0
      %1814 = vmatpush1.bf16.msra.mxu0 0
      %1815 = vmatprep.subr.bf16.mxu0 0
      %1816 = vmatpush1.bf16.msra.mxu0 0
      %1817 = vmatprep.subr.bf16.mxu0 0
      %1818 = vmatpush1.bf16.msra.mxu0 0
      %1819 = vmatprep.subr.bf16.mxu0 0
      %1820 = vmatpush1.bf16.msra.mxu0 0
      %1821 = vmatprep.subr.bf16.mxu0 0
      %1822 = vmatpush1.bf16.msra.mxu0 0
      %1823 = vmatprep.subr.bf16.mxu0 0
      %1824 = vmatpush1.bf16.msra.mxu0 %v825
      %1825 = vmatprep.subr.bf16.mxu0 0
      %1826 = vmatpush2.bf16.msra.mxu0 0
      %1827 = vmatprep.subr.bf16.mxu0 0
      %1828 = vmatpush2.bf16.msra.mxu0 0
      %1829 = vmatprep.subr.bf16.mxu0 0
      %1830 = vmatpush2.bf16.msra.mxu0 0
      %1831 = vmatprep.subr.bf16.mxu0 0
      %1832 = vmatpush2.bf16.msra.mxu0 0
      %1833 = vmatprep.subr.bf16.mxu0 0
      %1834 = vmatpush2.bf16.msra.mxu0 0
      %1835 = vmatprep.subr.bf16.mxu0 0
      %1836 = vmatpush2.bf16.msra.mxu0 0
      %1837 = vmatprep.subr.bf16.mxu0 0
      %1838 = vmatpush2.bf16.msra.mxu0 0
      %1839 = vmatprep.subr.bf16.mxu0 0
      %1840 = vmatpush2.bf16.msra.mxu0 0
      %1841 = vmatprep.mubr.bf16.mxu0 0
      %1842 = vmatmul.mubr.bf16.gmra.mxu0 %v1807
      %v1843 = vpop.f32.mrf.mxu0
      %v1844 = vadd.f32 0.0, %v1843
      %v1845 = vpop.f32.mrf.mxu0
      %v1846 = vpop.f32.mrf.mxu0
      %v1847 = vpop.f32.mrf.mxu0
      %1848 = vdwg.mxu0
      %v1849 = vpack.c.bf16 %v1844, %v1844
      %s1850 = scalar_lea.vmem %s8, 256
      %v1851 = vld [vmem:[%s1850] sm:$0xf]
      %v1852 = vld [vmem:[%s1850 + $0x4] sm:$0xf]
      %v1853 = vld [vmem:[%s1850 + $0x8] sm:$0xf]
      %v1854 = vld [vmem:[%s1850 + $0xc] sm:$0xf]
      %v1855 = vld [vmem:[%s1850 + $0x10] sm:$0xf]
      %v1856 = vld [vmem:[%s1850 + $0x14] sm:$0xf]
      %v1857 = vld [vmem:[%s1850 + $0x18] sm:$0xf]
      %v1858 = vld [vmem:[%s1850 + $0x1c] sm:$0xf]
      %v1867 = vunpack.c.l.b16 %v1851
      %v1868 = vunpack.c.l.b16 %v1852
      %v1869 = vunpack.c.l.b16 %v1853
      %v1870 = vunpack.c.l.b16 %v1854
      %v1871 = vunpack.c.l.b16 %v1855
      %v1872 = vunpack.c.l.b16 %v1856
      %v1873 = vunpack.c.l.b16 %v1857
      %v1874 = vunpack.c.l.b16 %v1858
      %v1875 = vpack.c.b16 %v1868, %v1867
      %v1876 = vpack.c.b16 %v1870, %v1869
      %v1877 = vpack.c.b16 %v1872, %v1871
      %v1878 = vpack.c.b16 %v1874, %v1873
      %v1884 = vsel %vm955, %v1849, 0
      %1886 = vmatprep.subr.bf16.mxu0 0
      %1887 = vmatpush1.bf16.msra.mxu0 0
      %1888 = vmatprep.subr.bf16.mxu0 0
      %1889 = vmatpush1.bf16.msra.mxu0 0
      %1890 = vmatprep.subr.bf16.mxu0 0
      %1891 = vmatpush1.bf16.msra.mxu0 0
      %1892 = vmatprep.subr.bf16.mxu0 0
      %1893 = vmatpush1.bf16.msra.mxu0 0
      %1894 = vmatprep.subr.bf16.mxu0 0
      %1895 = vmatpush1.bf16.msra.mxu0 %v1878
      %1896 = vmatprep.subr.bf16.mxu0 0
      %1897 = vmatpush1.bf16.msra.mxu0 %v1877
      %1898 = vmatprep.subr.bf16.mxu0 0
      %1899 = vmatpush1.bf16.msra.mxu0 %v1876
      %1900 = vmatprep.subr.bf16.mxu0 0
      %1901 = vmatpush1.bf16.msra.mxu0 %v1875
      %1902 = vmatprep.subr.bf16.mxu0 0
      %1903 = vmatpush2.bf16.msra.mxu0 0
      %1904 = vmatprep.subr.bf16.mxu0 0
      %1905 = vmatpush2.bf16.msra.mxu0 0
      %1906 = vmatprep.subr.bf16.mxu0 0
      %1907 = vmatpush2.bf16.msra.mxu0 0
      %1908 = vmatprep.subr.bf16.mxu0 0
      %1909 = vmatpush2.bf16.msra.mxu0 0
      %1910 = vmatprep.subr.bf16.mxu0 0
      %1911 = vmatpush2.bf16.msra.mxu0 0
      %1912 = vmatprep.subr.bf16.mxu0 0
      %1913 = vmatpush2.bf16.msra.mxu0 0
      %1914 = vmatprep.subr.bf16.mxu0 0
      %1915 = vmatpush2.bf16.msra.mxu0 0
      %1916 = vmatprep.subr.bf16.mxu0 0
      %1917 = vmatpush2.bf16.msra.mxu0 0
      %1918 = vmatprep.mubr.bf16.mxu0 0
      %1919 = vmatmul.mubr.bf16.gmra.mxu0 %v1884
      %v1920 = vpop.f32.mrf.mxu0
      %v1921 = vadd.f32 0.0, %v1920
      %v1922 = vpop.f32.mrf.mxu0
      %v1923 = vpop.f32.mrf.mxu0
      %v1924 = vpop.f32.mrf.mxu0
      %1925 = vdwg.mxu0
      %v1926 = vadd.f32 %v1803, %v1921
      %1928 = vset.pattern.permute.xlu0 0
      %1929 = vperm.xlu0 %1928, %v629
      %v1930 = vpop.permute.xlu0 %1929
      %v1932 = vadd.f32 %v1926, %v1930
      %1934 = vset.pattern.permute.xlu0 0
      %1935 = vperm.xlu0 %1934, %v643
      %v1936 = vpop.permute.xlu0 %1935
      %v1938 = vmul.f32 %v1932, %v1936
      %1940 = vset.pattern.permute.xlu0 0
      %1941 = vperm.xlu0 %1940, %v644
      %v1942 = vpop.permute.xlu0 %1941
      %v1944 = vadd.f32 %v1938, %v1942
      %v1945 = vmax.f32 %v1944, 0.0
      %v1946 = vpack.c.bf16 %v1945, %v1945
      %v1947 = vld [vmem:[%s5] sm:$0xf]
      %v1949 = vsel %vm819, %v1947, 0
      %v1952 = vsel %vm823, %v1946, 0
      %1954 = vmatprep.subr.bf16.mxu0 0
      %1955 = vmatpush1.bf16.msra.mxu0 0
      %1956 = vmatprep.subr.bf16.mxu0 0
      %1957 = vmatpush1.bf16.msra.mxu0 0
      %1958 = vmatprep.subr.bf16.mxu0 0
      %1959 = vmatpush1.bf16.msra.mxu0 0
      %1960 = vmatprep.subr.bf16.mxu0 0
      %1961 = vmatpush1.bf16.msra.mxu0 0
      %1962 = vmatprep.subr.bf16.mxu0 0
      %1963 = vmatpush1.bf16.msra.mxu0 0
      %1964 = vmatprep.subr.bf16.mxu0 0
      %1965 = vmatpush1.bf16.msra.mxu0 0
      %1966 = vmatprep.subr.bf16.mxu0 0
      %1967 = vmatpush1.bf16.msra.mxu0 0
      %1968 = vmatprep.subr.bf16.mxu0 0
      %1969 = vmatpush1.bf16.msra.mxu0 %v1952
      %1970 = vmatprep.subr.bf16.mxu0 0
      %1971 = vmatpush2.bf16.msra.mxu0 0
      %1972 = vmatprep.subr.bf16.mxu0 0
      %1973 = vmatpush2.bf16.msra.mxu0 0
      %1974 = vmatprep.subr.bf16.mxu0 0
      %1975 = vmatpush2.bf16.msra.mxu0 0
      %1976 = vmatprep.subr.bf16.mxu0 0
      %1977 = vmatpush2.bf16.msra.mxu0 0
      %1978 = vmatprep.subr.bf16.mxu0 0
      %1979 = vmatpush2.bf16.msra.mxu0 0
      %1980 = vmatprep.subr.bf16.mxu0 0
      %1981 = vmatpush2.bf16.msra.mxu0 0
      %1982 = vmatprep.subr.bf16.mxu0 0
      %1983 = vmatpush2.bf16.msra.mxu0 0
      %1984 = vmatprep.subr.bf16.mxu0 0
      %1985 = vmatpush2.bf16.msra.mxu0 0
      %1986 = vmatprep.mubr.bf16.mxu0 0
      %1987 = vmatmul.mubr.bf16.gmra.mxu0 %v1949
      %v1988 = vpop.f32.mrf.mxu0
      %v1989 = vadd.f32 0.0, %v1988
      %v1990 = vpop.f32.mrf.mxu0
      %v1991 = vpop.f32.mrf.mxu0
      %v1992 = vpop.f32.mrf.mxu0
      %1993 = vdwg.mxu0
      %v1994 = vpack.c.bf16 %v1989, %v1989
      %s1995 = scalar_lea.vmem %s5, 4
      %v1996 = vld [vmem:[%s1995] sm:$0xf]
      %v1998 = vsel %vm819, %v1996, 0
      %2000 = vmatprep.subr.bf16.mxu0 0
      %2001 = vmatpush1.bf16.msra.mxu0 0
      %2002 = vmatprep.subr.bf16.mxu0 0
      %2003 = vmatpush1.bf16.msra.mxu0 0
      %2004 = vmatprep.subr.bf16.mxu0 0
      %2005 = vmatpush1.bf16.msra.mxu0 0
      %2006 = vmatprep.subr.bf16.mxu0 0
      %2007 = vmatpush1.bf16.msra.mxu0 0
      %2008 = vmatprep.subr.bf16.mxu0 0
      %2009 = vmatpush1.bf16.msra.mxu0 0
      %2010 = vmatprep.subr.bf16.mxu0 0
      %2011 = vmatpush1.bf16.msra.mxu0 0
      %2012 = vmatprep.subr.bf16.mxu0 0
      %2013 = vmatpush1.bf16.msra.mxu0 0
      %2014 = vmatprep.subr.bf16.mxu0 0
      %2015 = vmatpush1.bf16.msra.mxu0 %v1952
      %2016 = vmatprep.subr.bf16.mxu0 0
      %2017 = vmatpush2.bf16.msra.mxu0 0
      %2018 = vmatprep.subr.bf16.mxu0 0
      %2019 = vmatpush2.bf16.msra.mxu0 0
      %2020 = vmatprep.subr.bf16.mxu0 0
      %2021 = vmatpush2.bf16.msra.mxu0 0
      %2022 = vmatprep.subr.bf16.mxu0 0
      %2023 = vmatpush2.bf16.msra.mxu0 0
      %2024 = vmatprep.subr.bf16.mxu0 0
      %2025 = vmatpush2.bf16.msra.mxu0 0
      %2026 = vmatprep.subr.bf16.mxu0 0
      %2027 = vmatpush2.bf16.msra.mxu0 0
      %2028 = vmatprep.subr.bf16.mxu0 0
      %2029 = vmatpush2.bf16.msra.mxu0 0
      %2030 = vmatprep.subr.bf16.mxu0 0
      %2031 = vmatpush2.bf16.msra.mxu0 0
      %2032 = vmatprep.mubr.bf16.mxu0 0
      %2033 = vmatmul.mubr.bf16.gmra.mxu0 %v1998
      %v2034 = vpop.f32.mrf.mxu0
      %v2035 = vadd.f32 0.0, %v2034
      %v2036 = vpop.f32.mrf.mxu0
      %v2037 = vpop.f32.mrf.mxu0
      %v2038 = vpop.f32.mrf.mxu0
      %2039 = vdwg.mxu0
      %v2040 = vpack.c.bf16 %v2035, %v2035
      %v2042 = vsel %vm955, %v2040, 0
      %2044 = vmatprep.subr.bf16.mxu0 0
      %2045 = vmatpush1.bf16.msra.mxu0 0
      %2046 = vmatprep.subr.bf16.mxu0 0
      %2047 = vmatpush1.bf16.msra.mxu0 0
      %2048 = vmatprep.subr.bf16.mxu0 0
      %2049 = vmatpush1.bf16.msra.mxu0 0
      %2050 = vmatprep.subr.bf16.mxu0 0
      %2051 = vmatpush1.bf16.msra.mxu0 0
      %2052 = vmatprep.subr.bf16.mxu0 0
      %2053 = vmatpush1.bf16.msra.mxu0 %v950
      %2054 = vmatprep.subr.bf16.mxu0 0
      %2055 = vmatpush1.bf16.msra.mxu0 %v949
      %2056 = vmatprep.subr.bf16.mxu0 0
      %2057 = vmatpush1.bf16.msra.mxu0 %v948
      %2058 = vmatprep.subr.bf16.mxu0 0
      %2059 = vmatpush1.bf16.msra.mxu0 %v947
      %2060 = vmatprep.subr.bf16.mxu0 0
      %2061 = vmatpush2.bf16.msra.mxu0 0
      %2062 = vmatprep.subr.bf16.mxu0 0
      %2063 = vmatpush2.bf16.msra.mxu0 0
      %2064 = vmatprep.subr.bf16.mxu0 0
      %2065 = vmatpush2.bf16.msra.mxu0 0
      %2066 = vmatprep.subr.bf16.mxu0 0
      %2067 = vmatpush2.bf16.msra.mxu0 0
      %2068 = vmatprep.subr.bf16.mxu0 0
      %2069 = vmatpush2.bf16.msra.mxu0 0
      %2070 = vmatprep.subr.bf16.mxu0 0
      %2071 = vmatpush2.bf16.msra.mxu0 0
      %2072 = vmatprep.subr.bf16.mxu0 0
      %2073 = vmatpush2.bf16.msra.mxu0 0
      %2074 = vmatprep.subr.bf16.mxu0 0
      %2075 = vmatpush2.bf16.msra.mxu0 0
      %2076 = vmatprep.mubr.bf16.mxu0 0
      %2077 = vmatmul.mubr.bf16.gmra.mxu0 %v2042
      %v2078 = vpop.f32.mrf.mxu0
      %v2079 = vadd.f32 0.0, %v2078
      %v2080 = vpop.f32.mrf.mxu0
      %v2081 = vpop.f32.mrf.mxu0
      %v2082 = vpop.f32.mrf.mxu0
      %2083 = vdwg.mxu0
      %v2085 = vsel %vm955, %v1994, 0
      %2087 = vmatprep.subr.bf16.mxu0 0
      %2088 = vmatpush1.bf16.msra.mxu0 0
      %2089 = vmatprep.subr.bf16.mxu0 0
      %2090 = vmatpush1.bf16.msra.mxu0 0
      %2091 = vmatprep.subr.bf16.mxu0 0
      %2092 = vmatpush1.bf16.msra.mxu0 0
      %2093 = vmatprep.subr.bf16.mxu0 0
      %2094 = vmatpush1.bf16.msra.mxu0 0
      %2095 = vmatprep.subr.bf16.mxu0 0
      %2096 = vmatpush1.bf16.msra.mxu0 %v1018
      %2097 = vmatprep.subr.bf16.mxu0 0
      %2098 = vmatpush1.bf16.msra.mxu0 %v1017
      %2099 = vmatprep.subr.bf16.mxu0 0
      %2100 = vmatpush1.bf16.msra.mxu0 %v1016
      %2101 = vmatprep.subr.bf16.mxu0 0
      %2102 = vmatpush1.bf16.msra.mxu0 %v1015
      %2103 = vmatprep.subr.bf16.mxu0 0
      %2104 = vmatpush2.bf16.msra.mxu0 0
      %2105 = vmatprep.subr.bf16.mxu0 0
      %2106 = vmatpush2.bf16.msra.mxu0 0
      %2107 = vmatprep.subr.bf16.mxu0 0
      %2108 = vmatpush2.bf16.msra.mxu0 0
      %2109 = vmatprep.subr.bf16.mxu0 0
      %2110 = vmatpush2.bf16.msra.mxu0 0
      %2111 = vmatprep.subr.bf16.mxu0 0
      %2112 = vmatpush2.bf16.msra.mxu0 0
      %2113 = vmatprep.subr.bf16.mxu0 0
      %2114 = vmatpush2.bf16.msra.mxu0 0
      %2115 = vmatprep.subr.bf16.mxu0 0
      %2116 = vmatpush2.bf16.msra.mxu0 0
      %2117 = vmatprep.subr.bf16.mxu0 0
      %2118 = vmatpush2.bf16.msra.mxu0 0
      %2119 = vmatprep.mubr.bf16.mxu0 0
      %2120 = vmatmul.mubr.bf16.gmra.mxu0 %v2085
      %v2121 = vpop.f32.mrf.mxu0
      %v2122 = vadd.f32 %v2079, %v2121
      %v2123 = vpop.f32.mrf.mxu0
      %v2124 = vpop.f32.mrf.mxu0
      %v2125 = vpop.f32.mrf.mxu0
      %2126 = vdwg.mxu0
      %s2127 = scalar_lea.vmem %s5, 8
      %v2128 = vld [vmem:[%s2127] sm:$0xf]
      %v2130 = vsel %vm819, %v2128, 0
      %2132 = vmatprep.subr.bf16.mxu0 0
      %2133 = vmatpush1.bf16.msra.mxu0 0
      %2134 = vmatprep.subr.bf16.mxu0 0
      %2135 = vmatpush1.bf16.msra.mxu0 0
      %2136 = vmatprep.subr.bf16.mxu0 0
      %2137 = vmatpush1.bf16.msra.mxu0 0
      %2138 = vmatprep.subr.bf16.mxu0 0
      %2139 = vmatpush1.bf16.msra.mxu0 0
      %2140 = vmatprep.subr.bf16.mxu0 0
      %2141 = vmatpush1.bf16.msra.mxu0 0
      %2142 = vmatprep.subr.bf16.mxu0 0
      %2143 = vmatpush1.bf16.msra.mxu0 0
      %2144 = vmatprep.subr.bf16.mxu0 0
      %2145 = vmatpush1.bf16.msra.mxu0 0
      %2146 = vmatprep.subr.bf16.mxu0 0
      %2147 = vmatpush1.bf16.msra.mxu0 %v1952
      %2148 = vmatprep.subr.bf16.mxu0 0
      %2149 = vmatpush2.bf16.msra.mxu0 0
      %2150 = vmatprep.subr.bf16.mxu0 0
      %2151 = vmatpush2.bf16.msra.mxu0 0
      %2152 = vmatprep.subr.bf16.mxu0 0
      %2153 = vmatpush2.bf16.msra.mxu0 0
      %2154 = vmatprep.subr.bf16.mxu0 0
      %2155 = vmatpush2.bf16.msra.mxu0 0
      %2156 = vmatprep.subr.bf16.mxu0 0
      %2157 = vmatpush2.bf16.msra.mxu0 0
      %2158 = vmatprep.subr.bf16.mxu0 0
      %2159 = vmatpush2.bf16.msra.mxu0 0
      %2160 = vmatprep.subr.bf16.mxu0 0
      %2161 = vmatpush2.bf16.msra.mxu0 0
      %2162 = vmatprep.subr.bf16.mxu0 0
      %2163 = vmatpush2.bf16.msra.mxu0 0
      %2164 = vmatprep.mubr.bf16.mxu0 0
      %2165 = vmatmul.mubr.bf16.gmra.mxu0 %v2130
      %v2166 = vpop.f32.mrf.mxu0
      %v2167 = vadd.f32 0.0, %v2166
      %v2168 = vpop.f32.mrf.mxu0
      %v2169 = vpop.f32.mrf.mxu0
      %v2170 = vpop.f32.mrf.mxu0
      %2171 = vdwg.mxu0
      %v2172 = vpack.c.bf16 %v2167, %v2167
      %v2174 = vsel %vm955, %v2172, 0
      %2176 = vmatprep.subr.bf16.mxu0 0
      %2177 = vmatpush1.bf16.msra.mxu0 0
      %2178 = vmatprep.subr.bf16.mxu0 0
      %2179 = vmatpush1.bf16.msra.mxu0 0
      %2180 = vmatprep.subr.bf16.mxu0 0
      %2181 = vmatpush1.bf16.msra.mxu0 0
      %2182 = vmatprep.subr.bf16.mxu0 0
      %2183 = vmatpush1.bf16.msra.mxu0 0
      %2184 = vmatprep.subr.bf16.mxu0 0
      %2185 = vmatpush1.bf16.msra.mxu0 %v1140
      %2186 = vmatprep.subr.bf16.mxu0 0
      %2187 = vmatpush1.bf16.msra.mxu0 %v1139
      %2188 = vmatprep.subr.bf16.mxu0 0
      %2189 = vmatpush1.bf16.msra.mxu0 %v1138
      %2190 = vmatprep.subr.bf16.mxu0 0
      %2191 = vmatpush1.bf16.msra.mxu0 %v1137
      %2192 = vmatprep.subr.bf16.mxu0 0
      %2193 = vmatpush2.bf16.msra.mxu0 0
      %2194 = vmatprep.subr.bf16.mxu0 0
      %2195 = vmatpush2.bf16.msra.mxu0 0
      %2196 = vmatprep.subr.bf16.mxu0 0
      %2197 = vmatpush2.bf16.msra.mxu0 0
      %2198 = vmatprep.subr.bf16.mxu0 0
      %2199 = vmatpush2.bf16.msra.mxu0 0
      %2200 = vmatprep.subr.bf16.mxu0 0
      %2201 = vmatpush2.bf16.msra.mxu0 0
      %2202 = vmatprep.subr.bf16.mxu0 0
      %2203 = vmatpush2.bf16.msra.mxu0 0
      %2204 = vmatprep.subr.bf16.mxu0 0
      %2205 = vmatpush2.bf16.msra.mxu0 0
      %2206 = vmatprep.subr.bf16.mxu0 0
      %2207 = vmatpush2.bf16.msra.mxu0 0
      %2208 = vmatprep.mubr.bf16.mxu0 0
      %2209 = vmatmul.mubr.bf16.gmra.mxu0 %v2174
      %v2210 = vpop.f32.mrf.mxu0
      %v2211 = vadd.f32 0.0, %v2210
      %v2212 = vpop.f32.mrf.mxu0
      %v2213 = vpop.f32.mrf.mxu0
      %v2214 = vpop.f32.mrf.mxu0
      %2215 = vdwg.mxu0
      %v2216 = vadd.f32 %v2122, %v2211
      %s2217 = scalar_lea.vmem %s5, 12
      %v2218 = vld [vmem:[%s2217] sm:$0xf]
      %v2220 = vsel %vm819, %v2218, 0
      %2222 = vmatprep.subr.bf16.mxu0 0
      %2223 = vmatpush1.bf16.msra.mxu0 0
      %2224 = vmatprep.subr.bf16.mxu0 0
      %2225 = vmatpush1.bf16.msra.mxu0 0
      %2226 = vmatprep.subr.bf16.mxu0 0
      %2227 = vmatpush1.bf16.msra.mxu0 0
      %2228 = vmatprep.subr.bf16.mxu0 0
      %2229 = vmatpush1.bf16.msra.mxu0 0
      %2230 = vmatprep.subr.bf16.mxu0 0
      %2231 = vmatpush1.bf16.msra.mxu0 0
      %2232 = vmatprep.subr.bf16.mxu0 0
      %2233 = vmatpush1.bf16.msra.mxu0 0
      %2234 = vmatprep.subr.bf16.mxu0 0
      %2235 = vmatpush1.bf16.msra.mxu0 0
      %2236 = vmatprep.subr.bf16.mxu0 0
      %2237 = vmatpush1.bf16.msra.mxu0 %v1952
      %2238 = vmatprep.subr.bf16.mxu0 0
      %2239 = vmatpush2.bf16.msra.mxu0 0
      %2240 = vmatprep.subr.bf16.mxu0 0
      %2241 = vmatpush2.bf16.msra.mxu0 0
      %2242 = vmatprep.subr.bf16.mxu0 0
      %2243 = vmatpush2.bf16.msra.mxu0 0
      %2244 = vmatprep.subr.bf16.mxu0 0
      %2245 = vmatpush2.bf16.msra.mxu0 0
      %2246 = vmatprep.subr.bf16.mxu0 0
      %2247 = vmatpush2.bf16.msra.mxu0 0
      %2248 = vmatprep.subr.bf16.mxu0 0
      %2249 = vmatpush2.bf16.msra.mxu0 0
      %2250 = vmatprep.subr.bf16.mxu0 0
      %2251 = vmatpush2.bf16.msra.mxu0 0
      %2252 = vmatprep.subr.bf16.mxu0 0
      %2253 = vmatpush2.bf16.msra.mxu0 0
      %2254 = vmatprep.mubr.bf16.mxu0 0
      %2255 = vmatmul.mubr.bf16.gmra.mxu0 %v2220
      %v2256 = vpop.f32.mrf.mxu0
      %v2257 = vadd.f32 0.0, %v2256
      %v2258 = vpop.f32.mrf.mxu0
      %v2259 = vpop.f32.mrf.mxu0
      %v2260 = vpop.f32.mrf.mxu0
      %2261 = vdwg.mxu0
      %v2262 = vpack.c.bf16 %v2257, %v2257
      %v2264 = vsel %vm955, %v2262, 0
      %2266 = vmatprep.subr.bf16.mxu0 0
      %2267 = vmatpush1.bf16.msra.mxu0 0
      %2268 = vmatprep.subr.bf16.mxu0 0
      %2269 = vmatpush1.bf16.msra.mxu0 0
      %2270 = vmatprep.subr.bf16.mxu0 0
      %2271 = vmatpush1.bf16.msra.mxu0 0
      %2272 = vmatprep.subr.bf16.mxu0 0
      %2273 = vmatpush1.bf16.msra.mxu0 0
      %2274 = vmatprep.subr.bf16.mxu0 0
      %2275 = vmatpush1.bf16.msra.mxu0 %v1263
      %2276 = vmatprep.subr.bf16.mxu0 0
      %2277 = vmatpush1.bf16.msra.mxu0 %v1262
      %2278 = vmatprep.subr.bf16.mxu0 0
      %2279 = vmatpush1.bf16.msra.mxu0 %v1261
      %2280 = vmatprep.subr.bf16.mxu0 0
      %2281 = vmatpush1.bf16.msra.mxu0 %v1260
      %2282 = vmatprep.subr.bf16.mxu0 0
      %2283 = vmatpush2.bf16.msra.mxu0 0
      %2284 = vmatprep.subr.bf16.mxu0 0
      %2285 = vmatpush2.bf16.msra.mxu0 0
      %2286 = vmatprep.subr.bf16.mxu0 0
      %2287 = vmatpush2.bf16.msra.mxu0 0
      %2288 = vmatprep.subr.bf16.mxu0 0
      %2289 = vmatpush2.bf16.msra.mxu0 0
      %2290 = vmatprep.subr.bf16.mxu0 0
      %2291 = vmatpush2.bf16.msra.mxu0 0
      %2292 = vmatprep.subr.bf16.mxu0 0
      %2293 = vmatpush2.bf16.msra.mxu0 0
      %2294 = vmatprep.subr.bf16.mxu0 0
      %2295 = vmatpush2.bf16.msra.mxu0 0
      %2296 = vmatprep.subr.bf16.mxu0 0
      %2297 = vmatpush2.bf16.msra.mxu0 0
      %2298 = vmatprep.mubr.bf16.mxu0 0
      %2299 = vmatmul.mubr.bf16.gmra.mxu0 %v2264
      %v2300 = vpop.f32.mrf.mxu0
      %v2301 = vadd.f32 0.0, %v2300
      %v2302 = vpop.f32.mrf.mxu0
      %v2303 = vpop.f32.mrf.mxu0
      %v2304 = vpop.f32.mrf.mxu0
      %2305 = vdwg.mxu0
      %v2306 = vadd.f32 %v2216, %v2301
      %s2307 = scalar_lea.vmem %s5, 16
      %v2308 = vld [vmem:[%s2307] sm:$0xf]
      %v2310 = vsel %vm819, %v2308, 0
      %2312 = vmatprep.subr.bf16.mxu0 0
      %2313 = vmatpush1.bf16.msra.mxu0 0
      %2314 = vmatprep.subr.bf16.mxu0 0
      %2315 = vmatpush1.bf16.msra.mxu0 0
      %2316 = vmatprep.subr.bf16.mxu0 0
      %2317 = vmatpush1.bf16.msra.mxu0 0
      %2318 = vmatprep.subr.bf16.mxu0 0
      %2319 = vmatpush1.bf16.msra.mxu0 0
      %2320 = vmatprep.subr.bf16.mxu0 0
      %2321 = vmatpush1.bf16.msra.mxu0 0
      %2322 = vmatprep.subr.bf16.mxu0 0
      %2323 = vmatpush1.bf16.msra.mxu0 0
      %2324 = vmatprep.subr.bf16.mxu0 0
      %2325 = vmatpush1.bf16.msra.mxu0 0
      %2326 = vmatprep.subr.bf16.mxu0 0
      %2327 = vmatpush1.bf16.msra.mxu0 %v1952
      %2328 = vmatprep.subr.bf16.mxu0 0
      %2329 = vmatpush2.bf16.msra.mxu0 0
      %2330 = vmatprep.subr.bf16.mxu0 0
      %2331 = vmatpush2.bf16.msra.mxu0 0
      %2332 = vmatprep.subr.bf16.mxu0 0
      %2333 = vmatpush2.bf16.msra.mxu0 0
      %2334 = vmatprep.subr.bf16.mxu0 0
      %2335 = vmatpush2.bf16.msra.mxu0 0
      %2336 = vmatprep.subr.bf16.mxu0 0
      %2337 = vmatpush2.bf16.msra.mxu0 0
      %2338 = vmatprep.subr.bf16.mxu0 0
      %2339 = vmatpush2.bf16.msra.mxu0 0
      %2340 = vmatprep.subr.bf16.mxu0 0
      %2341 = vmatpush2.bf16.msra.mxu0 0
      %2342 = vmatprep.subr.bf16.mxu0 0
      %2343 = vmatpush2.bf16.msra.mxu0 0
      %2344 = vmatprep.mubr.bf16.mxu0 0
      %2345 = vmatmul.mubr.bf16.gmra.mxu0 %v2310
      %v2346 = vpop.f32.mrf.mxu0
      %v2347 = vadd.f32 0.0, %v2346
      %v2348 = vpop.f32.mrf.mxu0
      %v2349 = vpop.f32.mrf.mxu0
      %v2350 = vpop.f32.mrf.mxu0
      %2351 = vdwg.mxu0
      %v2352 = vpack.c.bf16 %v2347, %v2347
      %v2354 = vsel %vm955, %v2352, 0
      %2356 = vmatprep.subr.bf16.mxu0 0
      %2357 = vmatpush1.bf16.msra.mxu0 0
      %2358 = vmatprep.subr.bf16.mxu0 0
      %2359 = vmatpush1.bf16.msra.mxu0 0
      %2360 = vmatprep.subr.bf16.mxu0 0
      %2361 = vmatpush1.bf16.msra.mxu0 0
      %2362 = vmatprep.subr.bf16.mxu0 0
      %2363 = vmatpush1.bf16.msra.mxu0 0
      %2364 = vmatprep.subr.bf16.mxu0 0
      %2365 = vmatpush1.bf16.msra.mxu0 %v1386
      %2366 = vmatprep.subr.bf16.mxu0 0
      %2367 = vmatpush1.bf16.msra.mxu0 %v1385
      %2368 = vmatprep.subr.bf16.mxu0 0
      %2369 = vmatpush1.bf16.msra.mxu0 %v1384
      %2370 = vmatprep.subr.bf16.mxu0 0
      %2371 = vmatpush1.bf16.msra.mxu0 %v1383
      %2372 = vmatprep.subr.bf16.mxu0 0
      %2373 = vmatpush2.bf16.msra.mxu0 0
      %2374 = vmatprep.subr.bf16.mxu0 0
      %2375 = vmatpush2.bf16.msra.mxu0 0
      %2376 = vmatprep.subr.bf16.mxu0 0
      %2377 = vmatpush2.bf16.msra.mxu0 0
      %2378 = vmatprep.subr.bf16.mxu0 0
      %2379 = vmatpush2.bf16.msra.mxu0 0
      %2380 = vmatprep.subr.bf16.mxu0 0
      %2381 = vmatpush2.bf16.msra.mxu0 0
      %2382 = vmatprep.subr.bf16.mxu0 0
      %2383 = vmatpush2.bf16.msra.mxu0 0
      %2384 = vmatprep.subr.bf16.mxu0 0
      %2385 = vmatpush2.bf16.msra.mxu0 0
      %2386 = vmatprep.subr.bf16.mxu0 0
      %2387 = vmatpush2.bf16.msra.mxu0 0
      %2388 = vmatprep.mubr.bf16.mxu0 0
      %2389 = vmatmul.mubr.bf16.gmra.mxu0 %v2354
      %v2390 = vpop.f32.mrf.mxu0
      %v2391 = vadd.f32 0.0, %v2390
      %v2392 = vpop.f32.mrf.mxu0
      %v2393 = vpop.f32.mrf.mxu0
      %v2394 = vpop.f32.mrf.mxu0
      %2395 = vdwg.mxu0
      %v2396 = vadd.f32 %v2306, %v2391
      %s2397 = scalar_lea.vmem %s5, 20
      %v2398 = vld [vmem:[%s2397] sm:$0xf]
      %v2400 = vsel %vm819, %v2398, 0
      %2402 = vmatprep.subr.bf16.mxu0 0
      %2403 = vmatpush1.bf16.msra.mxu0 0
      %2404 = vmatprep.subr.bf16.mxu0 0
      %2405 = vmatpush1.bf16.msra.mxu0 0
      %2406 = vmatprep.subr.bf16.mxu0 0
      %2407 = vmatpush1.bf16.msra.mxu0 0
      %2408 = vmatprep.subr.bf16.mxu0 0
      %2409 = vmatpush1.bf16.msra.mxu0 0
      %2410 = vmatprep.subr.bf16.mxu0 0
      %2411 = vmatpush1.bf16.msra.mxu0 0
      %2412 = vmatprep.subr.bf16.mxu0 0
      %2413 = vmatpush1.bf16.msra.mxu0 0
      %2414 = vmatprep.subr.bf16.mxu0 0
      %2415 = vmatpush1.bf16.msra.mxu0 0
      %2416 = vmatprep.subr.bf16.mxu0 0
      %2417 = vmatpush1.bf16.msra.mxu0 %v1952
      %2418 = vmatprep.subr.bf16.mxu0 0
      %2419 = vmatpush2.bf16.msra.mxu0 0
      %2420 = vmatprep.subr.bf16.mxu0 0
      %2421 = vmatpush2.bf16.msra.mxu0 0
      %2422 = vmatprep.subr.bf16.mxu0 0
      %2423 = vmatpush2.bf16.msra.mxu0 0
      %2424 = vmatprep.subr.bf16.mxu0 0
      %2425 = vmatpush2.bf16.msra.mxu0 0
      %2426 = vmatprep.subr.bf16.mxu0 0
      %2427 = vmatpush2.bf16.msra.mxu0 0
      %2428 = vmatprep.subr.bf16.mxu0 0
      %2429 = vmatpush2.bf16.msra.mxu0 0
      %2430 = vmatprep.subr.bf16.mxu0 0
      %2431 = vmatpush2.bf16.msra.mxu0 0
      %2432 = vmatprep.subr.bf16.mxu0 0
      %2433 = vmatpush2.bf16.msra.mxu0 0
      %2434 = vmatprep.mubr.bf16.mxu0 0
      %2435 = vmatmul.mubr.bf16.gmra.mxu0 %v2400
      %v2436 = vpop.f32.mrf.mxu0
      %v2437 = vadd.f32 0.0, %v2436
      %v2438 = vpop.f32.mrf.mxu0
      %v2439 = vpop.f32.mrf.mxu0
      %v2440 = vpop.f32.mrf.mxu0
      %2441 = vdwg.mxu0
      %v2442 = vpack.c.bf16 %v2437, %v2437
      %v2444 = vsel %vm955, %v2442, 0
      %2446 = vmatprep.subr.bf16.mxu0 0
      %2447 = vmatpush1.bf16.msra.mxu0 0
      %2448 = vmatprep.subr.bf16.mxu0 0
      %2449 = vmatpush1.bf16.msra.mxu0 0
      %2450 = vmatprep.subr.bf16.mxu0 0
      %2451 = vmatpush1.bf16.msra.mxu0 0
      %2452 = vmatprep.subr.bf16.mxu0 0
      %2453 = vmatpush1.bf16.msra.mxu0 0
      %2454 = vmatprep.subr.bf16.mxu0 0
      %2455 = vmatpush1.bf16.msra.mxu0 %v1509
      %2456 = vmatprep.subr.bf16.mxu0 0
      %2457 = vmatpush1.bf16.msra.mxu0 %v1508
      %2458 = vmatprep.subr.bf16.mxu0 0
      %2459 = vmatpush1.bf16.msra.mxu0 %v1507
      %2460 = vmatprep.subr.bf16.mxu0 0
      %2461 = vmatpush1.bf16.msra.mxu0 %v1506
      %2462 = vmatprep.subr.bf16.mxu0 0
      %2463 = vmatpush2.bf16.msra.mxu0 0
      %2464 = vmatprep.subr.bf16.mxu0 0
      %2465 = vmatpush2.bf16.msra.mxu0 0
      %2466 = vmatprep.subr.bf16.mxu0 0
      %2467 = vmatpush2.bf16.msra.mxu0 0
      %2468 = vmatprep.subr.bf16.mxu0 0
      %2469 = vmatpush2.bf16.msra.mxu0 0
      %2470 = vmatprep.subr.bf16.mxu0 0
      %2471 = vmatpush2.bf16.msra.mxu0 0
      %2472 = vmatprep.subr.bf16.mxu0 0
      %2473 = vmatpush2.bf16.msra.mxu0 0
      %2474 = vmatprep.subr.bf16.mxu0 0
      %2475 = vmatpush2.bf16.msra.mxu0 0
      %2476 = vmatprep.subr.bf16.mxu0 0
      %2477 = vmatpush2.bf16.msra.mxu0 0
      %2478 = vmatprep.mubr.bf16.mxu0 0
      %2479 = vmatmul.mubr.bf16.gmra.mxu0 %v2444
      %v2480 = vpop.f32.mrf.mxu0
      %v2481 = vadd.f32 0.0, %v2480
      %v2482 = vpop.f32.mrf.mxu0
      %v2483 = vpop.f32.mrf.mxu0
      %v2484 = vpop.f32.mrf.mxu0
      %2485 = vdwg.mxu0
      %v2486 = vadd.f32 %v2396, %v2481
      %s2487 = scalar_lea.vmem %s5, 24
      %v2488 = vld [vmem:[%s2487] sm:$0xf]
      %v2490 = vsel %vm819, %v2488, 0
      %2492 = vmatprep.subr.bf16.mxu0 0
      %2493 = vmatpush1.bf16.msra.mxu0 0
      %2494 = vmatprep.subr.bf16.mxu0 0
      %2495 = vmatpush1.bf16.msra.mxu0 0
      %2496 = vmatprep.subr.bf16.mxu0 0
      %2497 = vmatpush1.bf16.msra.mxu0 0
      %2498 = vmatprep.subr.bf16.mxu0 0
      %2499 = vmatpush1.bf16.msra.mxu0 0
      %2500 = vmatprep.subr.bf16.mxu0 0
      %2501 = vmatpush1.bf16.msra.mxu0 0
      %2502 = vmatprep.subr.bf16.mxu0 0
      %2503 = vmatpush1.bf16.msra.mxu0 0
      %2504 = vmatprep.subr.bf16.mxu0 0
      %2505 = vmatpush1.bf16.msra.mxu0 0
      %2506 = vmatprep.subr.bf16.mxu0 0
      %2507 = vmatpush1.bf16.msra.mxu0 %v1952
      %2508 = vmatprep.subr.bf16.mxu0 0
      %2509 = vmatpush2.bf16.msra.mxu0 0
      %2510 = vmatprep.subr.bf16.mxu0 0
      %2511 = vmatpush2.bf16.msra.mxu0 0
      %2512 = vmatprep.subr.bf16.mxu0 0
      %2513 = vmatpush2.bf16.msra.mxu0 0
      %2514 = vmatprep.subr.bf16.mxu0 0
      %2515 = vmatpush2.bf16.msra.mxu0 0
      %2516 = vmatprep.subr.bf16.mxu0 0
      %2517 = vmatpush2.bf16.msra.mxu0 0
      %2518 = vmatprep.subr.bf16.mxu0 0
      %2519 = vmatpush2.bf16.msra.mxu0 0
      %2520 = vmatprep.subr.bf16.mxu0 0
      %2521 = vmatpush2.bf16.msra.mxu0 0
      %2522 = vmatprep.subr.bf16.mxu0 0
      %2523 = vmatpush2.bf16.msra.mxu0 0
      %2524 = vmatprep.mubr.bf16.mxu0 0
      %2525 = vmatmul.mubr.bf16.gmra.mxu0 %v2490
      %v2526 = vpop.f32.mrf.mxu0
      %v2527 = vadd.f32 0.0, %v2526
      %v2528 = vpop.f32.mrf.mxu0
      %v2529 = vpop.f32.mrf.mxu0
      %v2530 = vpop.f32.mrf.mxu0
      %2531 = vdwg.mxu0
      %v2532 = vpack.c.bf16 %v2527, %v2527
      %v2534 = vsel %vm955, %v2532, 0
      %2536 = vmatprep.subr.bf16.mxu0 0
      %2537 = vmatpush1.bf16.msra.mxu0 0
      %2538 = vmatprep.subr.bf16.mxu0 0
      %2539 = vmatpush1.bf16.msra.mxu0 0
      %2540 = vmatprep.subr.bf16.mxu0 0
      %2541 = vmatpush1.bf16.msra.mxu0 0
      %2542 = vmatprep.subr.bf16.mxu0 0
      %2543 = vmatpush1.bf16.msra.mxu0 0
      %2544 = vmatprep.subr.bf16.mxu0 0
      %2545 = vmatpush1.bf16.msra.mxu0 %v1632
      %2546 = vmatprep.subr.bf16.mxu0 0
      %2547 = vmatpush1.bf16.msra.mxu0 %v1631
      %2548 = vmatprep.subr.bf16.mxu0 0
      %2549 = vmatpush1.bf16.msra.mxu0 %v1630
      %2550 = vmatprep.subr.bf16.mxu0 0
      %2551 = vmatpush1.bf16.msra.mxu0 %v1629
      %2552 = vmatprep.subr.bf16.mxu0 0
      %2553 = vmatpush2.bf16.msra.mxu0 0
      %2554 = vmatprep.subr.bf16.mxu0 0
      %2555 = vmatpush2.bf16.msra.mxu0 0
      %2556 = vmatprep.subr.bf16.mxu0 0
      %2557 = vmatpush2.bf16.msra.mxu0 0
      %2558 = vmatprep.subr.bf16.mxu0 0
      %2559 = vmatpush2.bf16.msra.mxu0 0
      %2560 = vmatprep.subr.bf16.mxu0 0
      %2561 = vmatpush2.bf16.msra.mxu0 0
      %2562 = vmatprep.subr.bf16.mxu0 0
      %2563 = vmatpush2.bf16.msra.mxu0 0
      %2564 = vmatprep.subr.bf16.mxu0 0
      %2565 = vmatpush2.bf16.msra.mxu0 0
      %2566 = vmatprep.subr.bf16.mxu0 0
      %2567 = vmatpush2.bf16.msra.mxu0 0
      %2568 = vmatprep.mubr.bf16.mxu0 0
      %2569 = vmatmul.mubr.bf16.gmra.mxu0 %v2534
      %v2570 = vpop.f32.mrf.mxu0
      %v2571 = vadd.f32 0.0, %v2570
      %v2572 = vpop.f32.mrf.mxu0
      %v2573 = vpop.f32.mrf.mxu0
      %v2574 = vpop.f32.mrf.mxu0
      %2575 = vdwg.mxu0
      %v2576 = vadd.f32 %v2486, %v2571
      %s2577 = scalar_lea.vmem %s5, 28
      %v2578 = vld [vmem:[%s2577] sm:$0xf]
      %v2580 = vsel %vm819, %v2578, 0
      %2582 = vmatprep.subr.bf16.mxu0 0
      %2583 = vmatpush1.bf16.msra.mxu0 0
      %2584 = vmatprep.subr.bf16.mxu0 0
      %2585 = vmatpush1.bf16.msra.mxu0 0
      %2586 = vmatprep.subr.bf16.mxu0 0
      %2587 = vmatpush1.bf16.msra.mxu0 0
      %2588 = vmatprep.subr.bf16.mxu0 0
      %2589 = vmatpush1.bf16.msra.mxu0 0
      %2590 = vmatprep.subr.bf16.mxu0 0
      %2591 = vmatpush1.bf16.msra.mxu0 0
      %2592 = vmatprep.subr.bf16.mxu0 0
      %2593 = vmatpush1.bf16.msra.mxu0 0
      %2594 = vmatprep.subr.bf16.mxu0 0
      %2595 = vmatpush1.bf16.msra.mxu0 0
      %2596 = vmatprep.subr.bf16.mxu0 0
      %2597 = vmatpush1.bf16.msra.mxu0 %v1952
      %2598 = vmatprep.subr.bf16.mxu0 0
      %2599 = vmatpush2.bf16.msra.mxu0 0
      %2600 = vmatprep.subr.bf16.mxu0 0
      %2601 = vmatpush2.bf16.msra.mxu0 0
      %2602 = vmatprep.subr.bf16.mxu0 0
      %2603 = vmatpush2.bf16.msra.mxu0 0
      %2604 = vmatprep.subr.bf16.mxu0 0
      %2605 = vmatpush2.bf16.msra.mxu0 0
      %2606 = vmatprep.subr.bf16.mxu0 0
      %2607 = vmatpush2.bf16.msra.mxu0 0
      %2608 = vmatprep.subr.bf16.mxu0 0
      %2609 = vmatpush2.bf16.msra.mxu0 0
      %2610 = vmatprep.subr.bf16.mxu0 0
      %2611 = vmatpush2.bf16.msra.mxu0 0
      %2612 = vmatprep.subr.bf16.mxu0 0
      %2613 = vmatpush2.bf16.msra.mxu0 0
      %2614 = vmatprep.mubr.bf16.mxu0 0
      %2615 = vmatmul.mubr.bf16.gmra.mxu0 %v2580
      %v2616 = vpop.f32.mrf.mxu0
      %v2617 = vadd.f32 0.0, %v2616
      %v2618 = vpop.f32.mrf.mxu0
      %v2619 = vpop.f32.mrf.mxu0
      %v2620 = vpop.f32.mrf.mxu0
      %2621 = vdwg.mxu0
      %v2622 = vpack.c.bf16 %v2617, %v2617
      %v2624 = vsel %vm955, %v2622, 0
      %2626 = vmatprep.subr.bf16.mxu0 0
      %2627 = vmatpush1.bf16.msra.mxu0 0
      %2628 = vmatprep.subr.bf16.mxu0 0
      %2629 = vmatpush1.bf16.msra.mxu0 0
      %2630 = vmatprep.subr.bf16.mxu0 0
      %2631 = vmatpush1.bf16.msra.mxu0 0
      %2632 = vmatprep.subr.bf16.mxu0 0
      %2633 = vmatpush1.bf16.msra.mxu0 0
      %2634 = vmatprep.subr.bf16.mxu0 0
      %2635 = vmatpush1.bf16.msra.mxu0 %v1755
      %2636 = vmatprep.subr.bf16.mxu0 0
      %2637 = vmatpush1.bf16.msra.mxu0 %v1754
      %2638 = vmatprep.subr.bf16.mxu0 0
      %2639 = vmatpush1.bf16.msra.mxu0 %v1753
      %2640 = vmatprep.subr.bf16.mxu0 0
      %2641 = vmatpush1.bf16.msra.mxu0 %v1752
      %2642 = vmatprep.subr.bf16.mxu0 0
      %2643 = vmatpush2.bf16.msra.mxu0 0
      %2644 = vmatprep.subr.bf16.mxu0 0
      %2645 = vmatpush2.bf16.msra.mxu0 0
      %2646 = vmatprep.subr.bf16.mxu0 0
      %2647 = vmatpush2.bf16.msra.mxu0 0
      %2648 = vmatprep.subr.bf16.mxu0 0
      %2649 = vmatpush2.bf16.msra.mxu0 0
      %2650 = vmatprep.subr.bf16.mxu0 0
      %2651 = vmatpush2.bf16.msra.mxu0 0
      %2652 = vmatprep.subr.bf16.mxu0 0
      %2653 = vmatpush2.bf16.msra.mxu0 0
      %2654 = vmatprep.subr.bf16.mxu0 0
      %2655 = vmatpush2.bf16.msra.mxu0 0
      %2656 = vmatprep.subr.bf16.mxu0 0
      %2657 = vmatpush2.bf16.msra.mxu0 0
      %2658 = vmatprep.mubr.bf16.mxu0 0
      %2659 = vmatmul.mubr.bf16.gmra.mxu0 %v2624
      %v2660 = vpop.f32.mrf.mxu0
      %v2661 = vadd.f32 0.0, %v2660
      %v2662 = vpop.f32.mrf.mxu0
      %v2663 = vpop.f32.mrf.mxu0
      %v2664 = vpop.f32.mrf.mxu0
      %2665 = vdwg.mxu0
      %v2666 = vadd.f32 %v2576, %v2661
      %s2667 = scalar_lea.vmem %s5, 32
      %v2668 = vld [vmem:[%s2667] sm:$0xf]
      %v2670 = vsel %vm819, %v2668, 0
      %2672 = vmatprep.subr.bf16.mxu0 0
      %2673 = vmatpush1.bf16.msra.mxu0 0
      %2674 = vmatprep.subr.bf16.mxu0 0
      %2675 = vmatpush1.bf16.msra.mxu0 0
      %2676 = vmatprep.subr.bf16.mxu0 0
      %2677 = vmatpush1.bf16.msra.mxu0 0
      %2678 = vmatprep.subr.bf16.mxu0 0
      %2679 = vmatpush1.bf16.msra.mxu0 0
      %2680 = vmatprep.subr.bf16.mxu0 0
      %2681 = vmatpush1.bf16.msra.mxu0 0
      %2682 = vmatprep.subr.bf16.mxu0 0
      %2683 = vmatpush1.bf16.msra.mxu0 0
      %2684 = vmatprep.subr.bf16.mxu0 0
      %2685 = vmatpush1.bf16.msra.mxu0 0
      %2686 = vmatprep.subr.bf16.mxu0 0
      %2687 = vmatpush1.bf16.msra.mxu0 %v1952
      %2688 = vmatprep.subr.bf16.mxu0 0
      %2689 = vmatpush2.bf16.msra.mxu0 0
      %2690 = vmatprep.subr.bf16.mxu0 0
      %2691 = vmatpush2.bf16.msra.mxu0 0
      %2692 = vmatprep.subr.bf16.mxu0 0
      %2693 = vmatpush2.bf16.msra.mxu0 0
      %2694 = vmatprep.subr.bf16.mxu0 0
      %2695 = vmatpush2.bf16.msra.mxu0 0
      %2696 = vmatprep.subr.bf16.mxu0 0
      %2697 = vmatpush2.bf16.msra.mxu0 0
      %2698 = vmatprep.subr.bf16.mxu0 0
      %2699 = vmatpush2.bf16.msra.mxu0 0
      %2700 = vmatprep.subr.bf16.mxu0 0
      %2701 = vmatpush2.bf16.msra.mxu0 0
      %2702 = vmatprep.subr.bf16.mxu0 0
      %2703 = vmatpush2.bf16.msra.mxu0 0
      %2704 = vmatprep.mubr.bf16.mxu0 0
      %2705 = vmatmul.mubr.bf16.gmra.mxu0 %v2670
      %v2706 = vpop.f32.mrf.mxu0
      %v2707 = vadd.f32 0.0, %v2706
      %v2708 = vpop.f32.mrf.mxu0
      %v2709 = vpop.f32.mrf.mxu0
      %v2710 = vpop.f32.mrf.mxu0
      %2711 = vdwg.mxu0
      %v2712 = vpack.c.bf16 %v2707, %v2707
      %v2714 = vsel %vm955, %v2712, 0
      %2716 = vmatprep.subr.bf16.mxu0 0
      %2717 = vmatpush1.bf16.msra.mxu0 0
      %2718 = vmatprep.subr.bf16.mxu0 0
      %2719 = vmatpush1.bf16.msra.mxu0 0
      %2720 = vmatprep.subr.bf16.mxu0 0
      %2721 = vmatpush1.bf16.msra.mxu0 0
      %2722 = vmatprep.subr.bf16.mxu0 0
      %2723 = vmatpush1.bf16.msra.mxu0 0
      %2724 = vmatprep.subr.bf16.mxu0 0
      %2725 = vmatpush1.bf16.msra.mxu0 %v1878
      %2726 = vmatprep.subr.bf16.mxu0 0
      %2727 = vmatpush1.bf16.msra.mxu0 %v1877
      %2728 = vmatprep.subr.bf16.mxu0 0
      %2729 = vmatpush1.bf16.msra.mxu0 %v1876
      %2730 = vmatprep.subr.bf16.mxu0 0
      %2731 = vmatpush1.bf16.msra.mxu0 %v1875
      %2732 = vmatprep.subr.bf16.mxu0 0
      %2733 = vmatpush2.bf16.msra.mxu0 0
      %2734 = vmatprep.subr.bf16.mxu0 0
      %2735 = vmatpush2.bf16.msra.mxu0 0
      %2736 = vmatprep.subr.bf16.mxu0 0
      %2737 = vmatpush2.bf16.msra.mxu0 0
      %2738 = vmatprep.subr.bf16.mxu0 0
      %2739 = vmatpush2.bf16.msra.mxu0 0
      %2740 = vmatprep.subr.bf16.mxu0 0
      %2741 = vmatpush2.bf16.msra.mxu0 0
      %2742 = vmatprep.subr.bf16.mxu0 0
      %2743 = vmatpush2.bf16.msra.mxu0 0
      %2744 = vmatprep.subr.bf16.mxu0 0
      %2745 = vmatpush2.bf16.msra.mxu0 0
      %2746 = vmatprep.subr.bf16.mxu0 0
      %2747 = vmatpush2.bf16.msra.mxu0 0
      %2748 = vmatprep.mubr.bf16.mxu0 0
      %2749 = vmatmul.mubr.bf16.gmra.mxu0 %v2714
      %v2750 = vpop.f32.mrf.mxu0
      %v2751 = vadd.f32 0.0, %v2750
      %v2752 = vpop.f32.mrf.mxu0
      %v2753 = vpop.f32.mrf.mxu0
      %v2754 = vpop.f32.mrf.mxu0
      %2755 = vdwg.mxu0
      %v2756 = vadd.f32 %v2666, %v2751
      %2758 = vset.pattern.permute.xlu0 0
      %2759 = vperm.xlu0 %2758, %v630
      %v2760 = vpop.permute.xlu0 %2759
      %v2762 = vadd.f32 %v2756, %v2760
      %2764 = vset.pattern.permute.xlu0 0
      %2765 = vperm.xlu0 %2764, %v645
      %v2766 = vpop.permute.xlu0 %2765
      %v2768 = vmul.f32 %v2762, %v2766
      %2770 = vset.pattern.permute.xlu0 0
      %2771 = vperm.xlu0 %2770, %v646
      %v2772 = vpop.permute.xlu0 %2771
      %v2774 = vadd.f32 %v2768, %v2772
      %v2775 = vmax.f32 %v2774, 0.0
      %v2776 = vld [vmem:[%s6] sm:$0xf]
      %v2777 = vld [vmem:[%s6 + $0x4] sm:$0xf]
      %v2778 = vpack.c.bf16 %v2775, %v2775
      %2780 = vset.pattern.permute.xlu0 0
      %2781 = vperm.xlu0 %2780, %v631
      %v2782 = vpop.permute.xlu0 %2781
      %2785 = vset.pattern.permute.xlu0 0
      %2786 = vperm.xlu0 %2785, %v632
      %v2787 = vpop.permute.xlu0 %2786
      %v2791 = vunpack.c.l.b16 %v2776
      %v2792 = vunpack.c.l.b16 %v2777
      %v2793 = vpack.c.b16 %v2792, %v2791
      %v2795 = vsel %vm819, %v2793, 0
      %v2798 = vsel %vm823, %v2778, 0
      %2800 = vmatprep.subr.bf16.mxu0 0
      %2801 = vmatpush1.bf16.msra.mxu0 0
      %2802 = vmatprep.subr.bf16.mxu0 0
      %2803 = vmatpush1.bf16.msra.mxu0 0
      %2804 = vmatprep.subr.bf16.mxu0 0
      %2805 = vmatpush1.bf16.msra.mxu0 0
      %2806 = vmatprep.subr.bf16.mxu0 0
      %2807 = vmatpush1.bf16.msra.mxu0 0
      %2808 = vmatprep.subr.bf16.mxu0 0
      %2809 = vmatpush1.bf16.msra.mxu0 0
      %2810 = vmatprep.subr.bf16.mxu0 0
      %2811 = vmatpush1.bf16.msra.mxu0 0
      %2812 = vmatprep.subr.bf16.mxu0 0
      %2813 = vmatpush1.bf16.msra.mxu0 0
      %2814 = vmatprep.subr.bf16.mxu0 0
      %2815 = vmatpush1.bf16.msra.mxu0 %v2798
      %2816 = vmatprep.subr.bf16.mxu0 0
      %2817 = vmatpush2.bf16.msra.mxu0 0
      %2818 = vmatprep.subr.bf16.mxu0 0
      %2819 = vmatpush2.bf16.msra.mxu0 0
      %2820 = vmatprep.subr.bf16.mxu0 0
      %2821 = vmatpush2.bf16.msra.mxu0 0
      %2822 = vmatprep.subr.bf16.mxu0 0
      %2823 = vmatpush2.bf16.msra.mxu0 0
      %2824 = vmatprep.subr.bf16.mxu0 0
      %2825 = vmatpush2.bf16.msra.mxu0 0
      %2826 = vmatprep.subr.bf16.mxu0 0
      %2827 = vmatpush2.bf16.msra.mxu0 0
      %2828 = vmatprep.subr.bf16.mxu0 0
      %2829 = vmatpush2.bf16.msra.mxu0 0
      %2830 = vmatprep.subr.bf16.mxu0 0
      %2831 = vmatpush2.bf16.msra.mxu0 0
      %2832 = vmatprep.mubr.bf16.mxu0 0
      %2833 = vmatmul.mubr.bf16.gmra.mxu0 %v2795
      %v2834 = vpop.f32.mrf.mxu0
      %v2835 = vadd.f32 %v2782, %v2834
      %v2836 = vpop.f32.mrf.mxu0
      %v2837 = vpop.f32.mrf.mxu0
      %v2838 = vadd.f32 %v2787, %v2837
      %v2839 = vpop.f32.mrf.mxu0
      %2840 = vdwg.mxu0
      %v2841 = vpack.c.bf16 %v625, %v624
      %v2843 = vsel %vm773, %v2841, 0
      %2845 = vmatprep.subr.bf16.mxu0 0
      %2846 = vmatpush1.bf16.msra.mxu0 0
      %2847 = vmatprep.subr.bf16.mxu0 0
      %2848 = vmatpush1.bf16.msra.mxu0 0
      %2849 = vmatprep.subr.bf16.mxu0 0
      %2850 = vmatpush1.bf16.msra.mxu0 0
      %2851 = vmatprep.subr.bf16.mxu0 0
      %2852 = vmatpush1.bf16.msra.mxu0 0
      %2853 = vmatprep.subr.bf16.mxu0 0
      %2854 = vmatpush1.bf16.msra.mxu0 0
      %2855 = vmatprep.subr.bf16.mxu0 0
      %2856 = vmatpush1.bf16.msra.mxu0 0
      %2857 = vmatprep.subr.bf16.mxu0 0
      %2858 = vmatpush1.bf16.msra.mxu0 0
      %2859 = vmatprep.subr.bf16.mxu0 0
      %2860 = vmatpush1.bf16.msra.mxu0 %v771
      %2861 = vmatprep.subr.bf16.mxu0 0
      %2862 = vmatpush2.bf16.msra.mxu0 0
      %2863 = vmatprep.subr.bf16.mxu0 0
      %2864 = vmatpush2.bf16.msra.mxu0 0
      %2865 = vmatprep.subr.bf16.mxu0 0
      %2866 = vmatpush2.bf16.msra.mxu0 0
      %2867 = vmatprep.subr.bf16.mxu0 0
      %2868 = vmatpush2.bf16.msra.mxu0 0
      %2869 = vmatprep.subr.bf16.mxu0 0
      %2870 = vmatpush2.bf16.msra.mxu0 0
      %2871 = vmatprep.subr.bf16.mxu0 0
      %2872 = vmatpush2.bf16.msra.mxu0 0
      %2873 = vmatprep.subr.bf16.mxu0 0
      %2874 = vmatpush2.bf16.msra.mxu0 0
      %2875 = vmatprep.subr.bf16.mxu0 0
      %2876 = vmatpush2.bf16.msra.mxu0 0
      %2877 = vmatprep.mubr.bf16.mxu0 0
      %2878 = vmatmul.mubr.bf16.gmra.mxu0 %v2843
      %v2879 = vpop.f32.mrf.mxu0
      %v2880 = vadd.f32 0.0, %v2879
      %v2881 = vpop.f32.mrf.mxu0
      %v2882 = vpop.f32.mrf.mxu0
      %v2883 = vadd.f32 0.0, %v2882
      %v2884 = vpop.f32.mrf.mxu0
      %2885 = vdwg.mxu0
      %v2886 = vadd.f32 %v2835, %v2880
      %v2887 = vadd.f32 %v2838, %v2883
      %v2888 = vpack.c.bf16 %v2887, %v2886
      %v2889 = vld [vmem:[%s9] sm:$0xf]
      %v2890 = vld [vmem:[%s9 + $0x4] sm:$0x3]
      %v2893 = vunpack.c.l.b16 %v2889
      %v2894 = vunpack.c.l.b16 %v2890
      %v2895 = vpack.c.b16 %v2894, %v2893
      %v2897 = vsel %vm773, %v2895, 0
      %2899 = vmatprep.subr.bf16.mxu0 0
      %2900 = vmatpush1.bf16.msra.mxu0 0
      %2901 = vmatprep.subr.bf16.mxu0 0
      %2902 = vmatpush1.bf16.msra.mxu0 0
      %2903 = vmatprep.subr.bf16.mxu0 0
      %2904 = vmatpush1.bf16.msra.mxu0 0
      %2905 = vmatprep.subr.bf16.mxu0 0
      %2906 = vmatpush1.bf16.msra.mxu0 0
      %2907 = vmatprep.subr.bf16.mxu0 0
      %2908 = vmatpush1.bf16.msra.mxu0 0
      %2909 = vmatprep.subr.bf16.mxu0 0
      %2910 = vmatpush1.bf16.msra.mxu0 0
      %2911 = vmatprep.subr.bf16.mxu0 0
      %2912 = vmatpush1.bf16.msra.mxu0 0
      %2913 = vmatprep.subr.bf16.mxu0 0
      %2914 = vmatpush1.bf16.msra.mxu0 %v2888
      %2915 = vmatprep.subr.bf16.mxu0 0
      %2916 = vmatpush2.bf16.msra.mxu0 0
      %2917 = vmatprep.subr.bf16.mxu0 0
      %2918 = vmatpush2.bf16.msra.mxu0 0
      %2919 = vmatprep.subr.bf16.mxu0 0
      %2920 = vmatpush2.bf16.msra.mxu0 0
      %2921 = vmatprep.subr.bf16.mxu0 0
      %2922 = vmatpush2.bf16.msra.mxu0 0
      %2923 = vmatprep.subr.bf16.mxu0 0
      %2924 = vmatpush2.bf16.msra.mxu0 0
      %2925 = vmatprep.subr.bf16.mxu0 0
      %2926 = vmatpush2.bf16.msra.mxu0 0
      %2927 = vmatprep.subr.bf16.mxu0 0
      %2928 = vmatpush2.bf16.msra.mxu0 0
      %2929 = vmatprep.subr.bf16.mxu0 0
      %2930 = vmatpush2.bf16.msra.mxu0 0
      %2931 = vmatprep.mubr.bf16.mxu0 0
      %2932 = vmatmul.mubr.bf16.gmra.mxu0 %v2897
      %v2933 = vpop.f32.mrf.mxu0
      %v2934 = vadd.f32 0.0, %v2933
      %v2935 = vpop.f32.mrf.mxu0
      %v2936 = vpop.f32.mrf.mxu0
      %v2937 = vadd.f32 0.0, %v2936
      %v2938 = vpop.f32.mrf.mxu0
      %2939 = vdwg.mxu0
      %v2940 = vpack.c.bf16 %v2937, %v2937
      %v2941 = vld [vmem:[%s11] sm:$0xf]
      %v2942 = vld [vmem:[%s11 + $0x4] sm:$0xf]
      %v2943 = vld [vmem:[%s11 + $0x8] sm:$0xf]
      %v2944 = vld [vmem:[%s11 + $0xc] sm:$0xf]
      %v2945 = vld [vmem:[%s11 + $0x10] sm:$0xf]
      %v2946 = vld [vmem:[%s11 + $0x14] sm:$0xf]
      %v2947 = vld [vmem:[%s11 + $0x18] sm:$0xf]
      %v2948 = vld [vmem:[%s11 + $0x1c] sm:$0xf]
      %v2950 = vrot.slane %v2940, 1
      %v2959 = vunpack.c.l.b16 %v2941
      %v2960 = vunpack.c.l.b16 %v2942
      %v2961 = vunpack.c.l.b16 %v2943
      %v2962 = vunpack.c.l.b16 %v2944
      %v2963 = vunpack.c.l.b16 %v2945
      %v2964 = vunpack.c.l.b16 %v2946
      %v2965 = vunpack.c.l.b16 %v2947
      %v2966 = vunpack.c.l.b16 %v2948
      %v2967 = vpack.c.b16 %v2960, %v2959
      %v2968 = vpack.c.b16 %v2962, %v2961
      %v2969 = vpack.c.b16 %v2964, %v2963
      %v2970 = vpack.c.b16 %v2966, %v2965
      %v2976 = vsel %vm955, %v2950, 0
      %2978 = vmatprep.subr.bf16.mxu0 0
      %2979 = vmatpush1.bf16.msra.mxu0 0
      %2980 = vmatprep.subr.bf16.mxu0 0
      %2981 = vmatpush1.bf16.msra.mxu0 0
      %2982 = vmatprep.subr.bf16.mxu0 0
      %2983 = vmatpush1.bf16.msra.mxu0 0
      %2984 = vmatprep.subr.bf16.mxu0 0
      %2985 = vmatpush1.bf16.msra.mxu0 0
      %2986 = vmatprep.subr.bf16.mxu0 0
      %2987 = vmatpush1.bf16.msra.mxu0 %v2970
      %2988 = vmatprep.subr.bf16.mxu0 0
      %2989 = vmatpush1.bf16.msra.mxu0 %v2969
      %2990 = vmatprep.subr.bf16.mxu0 0
      %2991 = vmatpush1.bf16.msra.mxu0 %v2968
      %2992 = vmatprep.subr.bf16.mxu0 0
      %2993 = vmatpush1.bf16.msra.mxu0 %v2967
      %2994 = vmatprep.subr.bf16.mxu0 0
      %2995 = vmatpush2.bf16.msra.mxu0 0
      %2996 = vmatprep.subr.bf16.mxu0 0
      %2997 = vmatpush2.bf16.msra.mxu0 0
      %2998 = vmatprep.subr.bf16.mxu0 0
      %2999 = vmatpush2.bf16.msra.mxu0 0
      %3000 = vmatprep.subr.bf16.mxu0 0
      %3001 = vmatpush2.bf16.msra.mxu0 0
      %3002 = vmatprep.subr.bf16.mxu0 0
      %3003 = vmatpush2.bf16.msra.mxu0 0
      %3004 = vmatprep.subr.bf16.mxu0 0
      %3005 = vmatpush2.bf16.msra.mxu0 0
      %3006 = vmatprep.subr.bf16.mxu0 0
      %3007 = vmatpush2.bf16.msra.mxu0 0
      %3008 = vmatprep.subr.bf16.mxu0 0
      %3009 = vmatpush2.bf16.msra.mxu0 0
      %3010 = vmatprep.mubr.bf16.mxu0 0
      %3011 = vmatmul.mubr.bf16.gmra.mxu0 %v2976
      %v3012 = vpop.f32.mrf.mxu0
      %v3013 = vadd.f32 0.0, %v3012
      %v3014 = vpop.f32.mrf.mxu0
      %v3015 = vpop.f32.mrf.mxu0
      %v3016 = vpop.f32.mrf.mxu0
      %3017 = vdwg.mxu0
      %s3018 = scalar_lea.vmem %s11, 32
      %v3019 = vld [vmem:[%s3018] sm:$0xf]
      %v3020 = vld [vmem:[%s3018 + $0x4] sm:$0xf]
      %v3021 = vld [vmem:[%s3018 + $0x8] sm:$0xf]
      %v3022 = vld [vmem:[%s3018 + $0xc] sm:$0xf]
      %v3023 = vld [vmem:[%s3018 + $0x10] sm:$0xf]
      %v3024 = vld [vmem:[%s3018 + $0x14] sm:$0xf]
      %v3025 = vld [vmem:[%s3018 + $0x18] sm:$0xf]
      %v3026 = vld [vmem:[%s3018 + $0x1c] sm:$0xf]
      %v3035 = vunpack.c.l.b16 %v3019
      %v3036 = vunpack.c.l.b16 %v3020
      %v3037 = vunpack.c.l.b16 %v3021
      %v3038 = vunpack.c.l.b16 %v3022
      %v3039 = vunpack.c.l.b16 %v3023
      %v3040 = vunpack.c.l.b16 %v3024
      %v3041 = vunpack.c.l.b16 %v3025
      %v3042 = vunpack.c.l.b16 %v3026
      %v3043 = vpack.c.b16 %v3036, %v3035
      %v3044 = vpack.c.b16 %v3038, %v3037
      %v3045 = vpack.c.b16 %v3040, %v3039
      %v3046 = vpack.c.b16 %v3042, %v3041
      %3051 = vmatprep.subr.bf16.mxu0 0
      %3052 = vmatpush1.bf16.msra.mxu0 0
      %3053 = vmatprep.subr.bf16.mxu0 0
      %3054 = vmatpush1.bf16.msra.mxu0 0
      %3055 = vmatprep.subr.bf16.mxu0 0
      %3056 = vmatpush1.bf16.msra.mxu0 0
      %3057 = vmatprep.subr.bf16.mxu0 0
      %3058 = vmatpush1.bf16.msra.mxu0 0
      %3059 = vmatprep.subr.bf16.mxu0 0
      %3060 = vmatpush1.bf16.msra.mxu0 %v3046
      %3061 = vmatprep.subr.bf16.mxu0 0
      %3062 = vmatpush1.bf16.msra.mxu0 %v3045
      %3063 = vmatprep.subr.bf16.mxu0 0
      %3064 = vmatpush1.bf16.msra.mxu0 %v3044
      %3065 = vmatprep.subr.bf16.mxu0 0
      %3066 = vmatpush1.bf16.msra.mxu0 %v3043
      %3067 = vmatprep.subr.bf16.mxu0 0
      %3068 = vmatpush2.bf16.msra.mxu0 0
      %3069 = vmatprep.subr.bf16.mxu0 0
      %3070 = vmatpush2.bf16.msra.mxu0 0
      %3071 = vmatprep.subr.bf16.mxu0 0
      %3072 = vmatpush2.bf16.msra.mxu0 0
      %3073 = vmatprep.subr.bf16.mxu0 0
      %3074 = vmatpush2.bf16.msra.mxu0 0
      %3075 = vmatprep.subr.bf16.mxu0 0
      %3076 = vmatpush2.bf16.msra.mxu0 0
      %3077 = vmatprep.subr.bf16.mxu0 0
      %3078 = vmatpush2.bf16.msra.mxu0 0
      %3079 = vmatprep.subr.bf16.mxu0 0
      %3080 = vmatpush2.bf16.msra.mxu0 0
      %3081 = vmatprep.subr.bf16.mxu0 0
      %3082 = vmatpush2.bf16.msra.mxu0 0
      %3083 = vmatprep.mubr.bf16.mxu0 0
      %3084 = vmatmul.mubr.bf16.gmra.mxu0 %v2976
      %v3085 = vpop.f32.mrf.mxu0
      %v3086 = vadd.f32 0.0, %v3085
      %v3087 = vpop.f32.mrf.mxu0
      %v3088 = vpop.f32.mrf.mxu0
      %v3089 = vpop.f32.mrf.mxu0
      %3090 = vdwg.mxu0
      %s3091 = scalar_lea.vmem %s11, 64
      %v3092 = vld [vmem:[%s3091] sm:$0xf]
      %v3093 = vld [vmem:[%s3091 + $0x4] sm:$0xf]
      %v3094 = vld [vmem:[%s3091 + $0x8] sm:$0xf]
      %v3095 = vld [vmem:[%s3091 + $0xc] sm:$0xf]
      %v3096 = vld [vmem:[%s3091 + $0x10] sm:$0xf]
      %v3097 = vld [vmem:[%s3091 + $0x14] sm:$0xf]
      %v3098 = vld [vmem:[%s3091 + $0x18] sm:$0xf]
      %v3099 = vld [vmem:[%s3091 + $0x1c] sm:$0xf]
      %v3108 = vunpack.c.l.b16 %v3092
      %v3109 = vunpack.c.l.b16 %v3093
      %v3110 = vunpack.c.l.b16 %v3094
      %v3111 = vunpack.c.l.b16 %v3095
      %v3112 = vunpack.c.l.b16 %v3096
      %v3113 = vunpack.c.l.b16 %v3097
      %v3114 = vunpack.c.l.b16 %v3098
      %v3115 = vunpack.c.l.b16 %v3099
      %v3116 = vpack.c.b16 %v3109, %v3108
      %v3117 = vpack.c.b16 %v3111, %v3110
      %v3118 = vpack.c.b16 %v3113, %v3112
      %v3119 = vpack.c.b16 %v3115, %v3114
      %3124 = vmatprep.subr.bf16.mxu0 0
      %3125 = vmatpush1.bf16.msra.mxu0 0
      %3126 = vmatprep.subr.bf16.mxu0 0
      %3127 = vmatpush1.bf16.msra.mxu0 0
      %3128 = vmatprep.subr.bf16.mxu0 0
      %3129 = vmatpush1.bf16.msra.mxu0 0
      %3130 = vmatprep.subr.bf16.mxu0 0
      %3131 = vmatpush1.bf16.msra.mxu0 0
      %3132 = vmatprep.subr.bf16.mxu0 0
      %3133 = vmatpush1.bf16.msra.mxu0 %v3119
      %3134 = vmatprep.subr.bf16.mxu0 0
      %3135 = vmatpush1.bf16.msra.mxu0 %v3118
      %3136 = vmatprep.subr.bf16.mxu0 0
      %3137 = vmatpush1.bf16.msra.mxu0 %v3117
      %3138 = vmatprep.subr.bf16.mxu0 0
      %3139 = vmatpush1.bf16.msra.mxu0 %v3116
      %3140 = vmatprep.subr.bf16.mxu0 0
      %3141 = vmatpush2.bf16.msra.mxu0 0
      %3142 = vmatprep.subr.bf16.mxu0 0
      %3143 = vmatpush2.bf16.msra.mxu0 0
      %3144 = vmatprep.subr.bf16.mxu0 0
      %3145 = vmatpush2.bf16.msra.mxu0 0
      %3146 = vmatprep.subr.bf16.mxu0 0
      %3147 = vmatpush2.bf16.msra.mxu0 0
      %3148 = vmatprep.subr.bf16.mxu0 0
      %3149 = vmatpush2.bf16.msra.mxu0 0
      %3150 = vmatprep.subr.bf16.mxu0 0
      %3151 = vmatpush2.bf16.msra.mxu0 0
      %3152 = vmatprep.subr.bf16.mxu0 0
      %3153 = vmatpush2.bf16.msra.mxu0 0
      %3154 = vmatprep.subr.bf16.mxu0 0
      %3155 = vmatpush2.bf16.msra.mxu0 0
      %3156 = vmatprep.mubr.bf16.mxu0 0
      %3157 = vmatmul.mubr.bf16.gmra.mxu0 %v2976
      %v3158 = vpop.f32.mrf.mxu0
      %v3159 = vadd.f32 0.0, %v3158
      %v3160 = vpop.f32.mrf.mxu0
      %v3161 = vpop.f32.mrf.mxu0
      %v3162 = vpop.f32.mrf.mxu0
      %3163 = vdwg.mxu0
      %s3164 = scalar_lea.vmem %s11, 96
      %v3165 = vld [vmem:[%s3164] sm:$0xf]
      %v3166 = vld [vmem:[%s3164 + $0x4] sm:$0xf]
      %v3167 = vld [vmem:[%s3164 + $0x8] sm:$0xf]
      %v3168 = vld [vmem:[%s3164 + $0xc] sm:$0xf]
      %v3169 = vld [vmem:[%s3164 + $0x10] sm:$0xf]
      %v3170 = vld [vmem:[%s3164 + $0x14] sm:$0xf]
      %v3171 = vld [vmem:[%s3164 + $0x18] sm:$0xf]
      %v3172 = vld [vmem:[%s3164 + $0x1c] sm:$0xf]
      %v3181 = vunpack.c.l.b16 %v3165
      %v3182 = vunpack.c.l.b16 %v3166
      %v3183 = vunpack.c.l.b16 %v3167
      %v3184 = vunpack.c.l.b16 %v3168
      %v3185 = vunpack.c.l.b16 %v3169
      %v3186 = vunpack.c.l.b16 %v3170
      %v3187 = vunpack.c.l.b16 %v3171
      %v3188 = vunpack.c.l.b16 %v3172
      %v3189 = vpack.c.b16 %v3182, %v3181
      %v3190 = vpack.c.b16 %v3184, %v3183
      %v3191 = vpack.c.b16 %v3186, %v3185
      %v3192 = vpack.c.b16 %v3188, %v3187
      %3197 = vmatprep.subr.bf16.mxu0 0
      %3198 = vmatpush1.bf16.msra.mxu0 0
      %3199 = vmatprep.subr.bf16.mxu0 0
      %3200 = vmatpush1.bf16.msra.mxu0 0
      %3201 = vmatprep.subr.bf16.mxu0 0
      %3202 = vmatpush1.bf16.msra.mxu0 0
      %3203 = vmatprep.subr.bf16.mxu0 0
      %3204 = vmatpush1.bf16.msra.mxu0 0
      %3205 = vmatprep.subr.bf16.mxu0 0
      %3206 = vmatpush1.bf16.msra.mxu0 %v3192
      %3207 = vmatprep.subr.bf16.mxu0 0
      %3208 = vmatpush1.bf16.msra.mxu0 %v3191
      %3209 = vmatprep.subr.bf16.mxu0 0
      %3210 = vmatpush1.bf16.msra.mxu0 %v3190
      %3211 = vmatprep.subr.bf16.mxu0 0
      %3212 = vmatpush1.bf16.msra.mxu0 %v3189
      %3213 = vmatprep.subr.bf16.mxu0 0
      %3214 = vmatpush2.bf16.msra.mxu0 0
      %3215 = vmatprep.subr.bf16.mxu0 0
      %3216 = vmatpush2.bf16.msra.mxu0 0
      %3217 = vmatprep.subr.bf16.mxu0 0
      %3218 = vmatpush2.bf16.msra.mxu0 0
      %3219 = vmatprep.subr.bf16.mxu0 0
      %3220 = vmatpush2.bf16.msra.mxu0 0
      %3221 = vmatprep.subr.bf16.mxu0 0
      %3222 = vmatpush2.bf16.msra.mxu0 0
      %3223 = vmatprep.subr.bf16.mxu0 0
      %3224 = vmatpush2.bf16.msra.mxu0 0
      %3225 = vmatprep.subr.bf16.mxu0 0
      %3226 = vmatpush2.bf16.msra.mxu0 0
      %3227 = vmatprep.subr.bf16.mxu0 0
      %3228 = vmatpush2.bf16.msra.mxu0 0
      %3229 = vmatprep.mubr.bf16.mxu0 0
      %3230 = vmatmul.mubr.bf16.gmra.mxu0 %v2976
      %v3231 = vpop.f32.mrf.mxu0
      %v3232 = vadd.f32 0.0, %v3231
      %v3233 = vpop.f32.mrf.mxu0
      %v3234 = vpop.f32.mrf.mxu0
      %v3235 = vpop.f32.mrf.mxu0
      %3236 = vdwg.mxu0
      %v3237 = vmax.f32 %v3013, %v3086
      %v3238 = vmax.f32 %v3159, %v3232
      %v3239 = vmax.f32 %v3237, %v3238
      %v3240 = vpack.c.bf16 %v2934, %v2934
      %v3242 = vsel %vm955, %v3240, 0
      %3244 = vmatprep.subr.bf16.mxu0 0
      %3245 = vmatpush1.bf16.msra.mxu0 0
      %3246 = vmatprep.subr.bf16.mxu0 0
      %3247 = vmatpush1.bf16.msra.mxu0 0
      %3248 = vmatprep.subr.bf16.mxu0 0
      %3249 = vmatpush1.bf16.msra.mxu0 0
      %3250 = vmatprep.subr.bf16.mxu0 0
      %3251 = vmatpush1.bf16.msra.mxu0 0
      %3252 = vmatprep.subr.bf16.mxu0 0
      %3253 = vmatpush1.bf16.msra.mxu0 %v2970
      %3254 = vmatprep.subr.bf16.mxu0 0
      %3255 = vmatpush1.bf16.msra.mxu0 %v2969
      %3256 = vmatprep.subr.bf16.mxu0 0
      %3257 = vmatpush1.bf16.msra.mxu0 %v2968
      %3258 = vmatprep.subr.bf16.mxu0 0
      %3259 = vmatpush1.bf16.msra.mxu0 %v2967
      %3260 = vmatprep.subr.bf16.mxu0 0
      %3261 = vmatpush2.bf16.msra.mxu0 0
      %3262 = vmatprep.subr.bf16.mxu0 0
      %3263 = vmatpush2.bf16.msra.mxu0 0
      %3264 = vmatprep.subr.bf16.mxu0 0
      %3265 = vmatpush2.bf16.msra.mxu0 0
      %3266 = vmatprep.subr.bf16.mxu0 0
      %3267 = vmatpush2.bf16.msra.mxu0 0
      %3268 = vmatprep.subr.bf16.mxu0 0
      %3269 = vmatpush2.bf16.msra.mxu0 0
      %3270 = vmatprep.subr.bf16.mxu0 0
      %3271 = vmatpush2.bf16.msra.mxu0 0
      %3272 = vmatprep.subr.bf16.mxu0 0
      %3273 = vmatpush2.bf16.msra.mxu0 0
      %3274 = vmatprep.subr.bf16.mxu0 0
      %3275 = vmatpush2.bf16.msra.mxu0 0
      %3276 = vmatprep.mubr.bf16.mxu0 0
      %3277 = vmatmul.mubr.bf16.gmra.mxu0 %v3242
      %v3278 = vpop.f32.mrf.mxu0
      %v3279 = vadd.f32 0.0, %v3278
      %v3280 = vpop.f32.mrf.mxu0
      %v3281 = vpop.f32.mrf.mxu0
      %v3282 = vpop.f32.mrf.mxu0
      %3283 = vdwg.mxu0
      %3284 = vmatprep.subr.bf16.mxu0 0
      %3285 = vmatpush1.bf16.msra.mxu0 0
      %3286 = vmatprep.subr.bf16.mxu0 0
      %3287 = vmatpush1.bf16.msra.mxu0 0
      %3288 = vmatprep.subr.bf16.mxu0 0
      %3289 = vmatpush1.bf16.msra.mxu0 0
      %3290 = vmatprep.subr.bf16.mxu0 0
      %3291 = vmatpush1.bf16.msra.mxu0 0
      %3292 = vmatprep.subr.bf16.mxu0 0
      %3293 = vmatpush1.bf16.msra.mxu0 %v3046
      %3294 = vmatprep.subr.bf16.mxu0 0
      %3295 = vmatpush1.bf16.msra.mxu0 %v3045
      %3296 = vmatprep.subr.bf16.mxu0 0
      %3297 = vmatpush1.bf16.msra.mxu0 %v3044
      %3298 = vmatprep.subr.bf16.mxu0 0
      %3299 = vmatpush1.bf16.msra.mxu0 %v3043
      %3300 = vmatprep.subr.bf16.mxu0 0
      %3301 = vmatpush2.bf16.msra.mxu0 0
      %3302 = vmatprep.subr.bf16.mxu0 0
      %3303 = vmatpush2.bf16.msra.mxu0 0
      %3304 = vmatprep.subr.bf16.mxu0 0
      %3305 = vmatpush2.bf16.msra.mxu0 0
      %3306 = vmatprep.subr.bf16.mxu0 0
      %3307 = vmatpush2.bf16.msra.mxu0 0
      %3308 = vmatprep.subr.bf16.mxu0 0
      %3309 = vmatpush2.bf16.msra.mxu0 0
      %3310 = vmatprep.subr.bf16.mxu0 0
      %3311 = vmatpush2.bf16.msra.mxu0 0
      %3312 = vmatprep.subr.bf16.mxu0 0
      %3313 = vmatpush2.bf16.msra.mxu0 0
      %3314 = vmatprep.subr.bf16.mxu0 0
      %3315 = vmatpush2.bf16.msra.mxu0 0
      %3316 = vmatprep.mubr.bf16.mxu0 0
      %3317 = vmatmul.mubr.bf16.gmra.mxu0 %v3242
      %v3318 = vpop.f32.mrf.mxu0
      %v3319 = vadd.f32 0.0, %v3318
      %v3320 = vpop.f32.mrf.mxu0
      %v3321 = vpop.f32.mrf.mxu0
      %v3322 = vpop.f32.mrf.mxu0
      %3323 = vdwg.mxu0
      %3324 = vmatprep.subr.bf16.mxu0 0
      %3325 = vmatpush1.bf16.msra.mxu0 0
      %3326 = vmatprep.subr.bf16.mxu0 0
      %3327 = vmatpush1.bf16.msra.mxu0 0
      %3328 = vmatprep.subr.bf16.mxu0 0
      %3329 = vmatpush1.bf16.msra.mxu0 0
      %3330 = vmatprep.subr.bf16.mxu0 0
      %3331 = vmatpush1.bf16.msra.mxu0 0
      %3332 = vmatprep.subr.bf16.mxu0 0
      %3333 = vmatpush1.bf16.msra.mxu0 %v3119
      %3334 = vmatprep.subr.bf16.mxu0 0
      %3335 = vmatpush1.bf16.msra.mxu0 %v3118
      %3336 = vmatprep.subr.bf16.mxu0 0
      %3337 = vmatpush1.bf16.msra.mxu0 %v3117
      %3338 = vmatprep.subr.bf16.mxu0 0
      %3339 = vmatpush1.bf16.msra.mxu0 %v3116
      %3340 = vmatprep.subr.bf16.mxu0 0
      %3341 = vmatpush2.bf16.msra.mxu0 0
      %3342 = vmatprep.subr.bf16.mxu0 0
      %3343 = vmatpush2.bf16.msra.mxu0 0
      %3344 = vmatprep.subr.bf16.mxu0 0
      %3345 = vmatpush2.bf16.msra.mxu0 0
      %3346 = vmatprep.subr.bf16.mxu0 0
      %3347 = vmatpush2.bf16.msra.mxu0 0
      %3348 = vmatprep.subr.bf16.mxu0 0
      %3349 = vmatpush2.bf16.msra.mxu0 0
      %3350 = vmatprep.subr.bf16.mxu0 0
      %3351 = vmatpush2.bf16.msra.mxu0 0
      %3352 = vmatprep.subr.bf16.mxu0 0
      %3353 = vmatpush2.bf16.msra.mxu0 0
      %3354 = vmatprep.subr.bf16.mxu0 0
      %3355 = vmatpush2.bf16.msra.mxu0 0
      %3356 = vmatprep.mubr.bf16.mxu0 0
      %3357 = vmatmul.mubr.bf16.gmra.mxu0 %v3242
      %v3358 = vpop.f32.mrf.mxu0
      %v3359 = vadd.f32 0.0, %v3358
      %v3360 = vpop.f32.mrf.mxu0
      %v3361 = vpop.f32.mrf.mxu0
      %v3362 = vpop.f32.mrf.mxu0
      %3363 = vdwg.mxu0
      %3364 = vmatprep.subr.bf16.mxu0 0
      %3365 = vmatpush1.bf16.msra.mxu0 0
      %3366 = vmatprep.subr.bf16.mxu0 0
      %3367 = vmatpush1.bf16.msra.mxu0 0
      %3368 = vmatprep.subr.bf16.mxu0 0
      %3369 = vmatpush1.bf16.msra.mxu0 0
      %3370 = vmatprep.subr.bf16.mxu0 0
      %3371 = vmatpush1.bf16.msra.mxu0 0
      %3372 = vmatprep.subr.bf16.mxu0 0
      %3373 = vmatpush1.bf16.msra.mxu0 %v3192
      %3374 = vmatprep.subr.bf16.mxu0 0
      %3375 = vmatpush1.bf16.msra.mxu0 %v3191
      %3376 = vmatprep.subr.bf16.mxu0 0
      %3377 = vmatpush1.bf16.msra.mxu0 %v3190
      %3378 = vmatprep.subr.bf16.mxu0 0
      %3379 = vmatpush1.bf16.msra.mxu0 %v3189
      %3380 = vmatprep.subr.bf16.mxu0 0
      %3381 = vmatpush2.bf16.msra.mxu0 0
      %3382 = vmatprep.subr.bf16.mxu0 0
      %3383 = vmatpush2.bf16.msra.mxu0 0
      %3384 = vmatprep.subr.bf16.mxu0 0
      %3385 = vmatpush2.bf16.msra.mxu0 0
      %3386 = vmatprep.subr.bf16.mxu0 0
      %3387 = vmatpush2.bf16.msra.mxu0 0
      %3388 = vmatprep.subr.bf16.mxu0 0
      %3389 = vmatpush2.bf16.msra.mxu0 0
      %3390 = vmatprep.subr.bf16.mxu0 0
      %3391 = vmatpush2.bf16.msra.mxu0 0
      %3392 = vmatprep.subr.bf16.mxu0 0
      %3393 = vmatpush2.bf16.msra.mxu0 0
      %3394 = vmatprep.subr.bf16.mxu0 0
      %3395 = vmatpush2.bf16.msra.mxu0 0
      %3396 = vmatprep.mubr.bf16.mxu0 0
      %3397 = vmatmul.mubr.bf16.gmra.mxu0 %v3242
      %v3398 = vpop.f32.mrf.mxu0
      %v3399 = vadd.f32 0.0, %v3398
      %v3400 = vpop.f32.mrf.mxu0
      %v3401 = vpop.f32.mrf.mxu0
      %v3402 = vpop.f32.mrf.mxu0
      %3403 = vdwg.mxu0
      %v3404 = vmax.f32 %v3279, %v3319
      %v3405 = vmax.f32 %v3359, %v3399
      %v3406 = vmax.f32 %v3404, %v3405
      %v3407 = vpack.c.bf16 %v3239, %v3239
      %3408 = vxpose.xlu0.c.b16.start [1/8] %v2940, 128
      %3409 = vxpose.xlu0.c.b16.cont [2/8] 0, 128
      %3410 = vxpose.xlu0.c.b16.cont [3/8] 0, 128
      %3411 = vxpose.xlu0.c.b16.cont [4/8] 0, 128
      %3412 = vxpose.xlu0.c.b16.cont [5/8] 0, 128
      %3413 = vxpose.xlu0.c.b16.cont [6/8] 0, 128
      %3414 = vxpose.xlu0.c.b16.cont [7/8] 0, 128
      %3415 = vxpose.xlu0.c.b16.end [8/8] 0, 128
      %v3416 = vpop.trf.xlu0
      %v3417 = vpop.trf.xlu0
      %v3418 = vpop.trf.xlu0
      %v3419 = vpop.trf.xlu0
      %v3420 = vpop.trf.xlu0
      %v3421 = vpop.trf.xlu0
      %v3422 = vpop.trf.xlu0
      %v3423 = vpop.trf.xlu0
      %vm3424 = vcmask 15360
      %v3426 = vsel %vm3424, %v3416, 0
      %v3429 = vsel %vm3424, %v3417, 0
      %v3432 = vsel %vm3424, %v3418, 0
      %v3435 = vsel %vm3424, %v3419, 0
      %vm3437 = vcmask 1040384
      %v3439 = vsel %vm3437, %v3407, 0
      %3441 = vmatprep.subr.bf16.mxu0 0
      %3442 = vmatpush1.bf16.msra.mxu0 0
      %3443 = vmatprep.subr.bf16.mxu0 0
      %3444 = vmatpush1.bf16.msra.mxu0 0
      %3445 = vmatprep.subr.bf16.mxu0 0
      %3446 = vmatpush1.bf16.msra.mxu0 0
      %3447 = vmatprep.subr.bf16.mxu0 0
      %3448 = vmatpush1.bf16.msra.mxu0 0
      %3449 = vmatprep.subr.bf16.mxu0 0
      %3450 = vmatpush1.bf16.msra.mxu0 0
      %3451 = vmatprep.subr.bf16.mxu0 0
      %3452 = vmatpush1.bf16.msra.mxu0 0
      %3453 = vmatprep.subr.bf16.mxu0 0
      %3454 = vmatpush1.bf16.msra.mxu0 0
      %3455 = vmatprep.subr.bf16.mxu0 0
      %3456 = vmatpush1.bf16.msra.mxu0 %v3439
      %3457 = vmatprep.subr.bf16.mxu0 0
      %3458 = vmatpush2.bf16.msra.mxu0 0
      %3459 = vmatprep.subr.bf16.mxu0 0
      %3460 = vmatpush2.bf16.msra.mxu0 0
      %3461 = vmatprep.subr.bf16.mxu0 0
      %3462 = vmatpush2.bf16.msra.mxu0 0
      %3463 = vmatprep.subr.bf16.mxu0 0
      %3464 = vmatpush2.bf16.msra.mxu0 0
      %3465 = vmatprep.subr.bf16.mxu0 0
      %3466 = vmatpush2.bf16.msra.mxu0 0
      %3467 = vmatprep.subr.bf16.mxu0 0
      %3468 = vmatpush2.bf16.msra.mxu0 0
      %3469 = vmatprep.subr.bf16.mxu0 0
      %3470 = vmatpush2.bf16.msra.mxu0 0
      %3471 = vmatprep.subr.bf16.mxu0 0
      %3472 = vmatpush2.bf16.msra.mxu0 0
      %3473 = vmatprep.mubr.bf16.mxu0 0
      %3474 = vmatmul.mubr.bf16.gmra.mxu0 %v3426
      %v3475 = vpop.f32.mrf.mxu0
      %v3476 = vadd.f32 0.0, %v3475
      %v3477 = vpop.f32.mrf.mxu0
      %v3478 = vpop.f32.mrf.mxu0
      %v3479 = vadd.f32 0.0, %v3478
      %v3480 = vpop.f32.mrf.mxu0
      %3481 = vmatprep.mubr.bf16.mxu0 0
      %3482 = vmatmul.mubr.bf16.gmra.mxu0 %v3429
      %v3483 = vpop.f32.mrf.mxu0
      %v3484 = vadd.f32 0.0, %v3483
      %v3485 = vpop.f32.mrf.mxu0
      %v3486 = vpop.f32.mrf.mxu0
      %v3487 = vadd.f32 0.0, %v3486
      %v3488 = vpop.f32.mrf.mxu0
      %3489 = vmatprep.mubr.bf16.mxu0 0
      %3490 = vmatmul.mubr.bf16.gmra.mxu0 %v3432
      %v3491 = vpop.f32.mrf.mxu0
      %v3492 = vadd.f32 0.0, %v3491
      %v3493 = vpop.f32.mrf.mxu0
      %v3494 = vpop.f32.mrf.mxu0
      %v3495 = vadd.f32 0.0, %v3494
      %v3496 = vpop.f32.mrf.mxu0
      %3497 = vmatprep.mubr.bf16.mxu0 0
      %3498 = vmatmul.mubr.bf16.gmra.mxu0 %v3435
      %v3499 = vpop.f32.mrf.mxu0
      %v3500 = vadd.f32 0.0, %v3499
      %v3501 = vpop.f32.mrf.mxu0
      %v3502 = vpop.f32.mrf.mxu0
      %v3503 = vadd.f32 0.0, %v3502
      %v3504 = vpop.f32.mrf.mxu0
      %3505 = vdwg.mxu0
      %v3506 = vsel %vm773, %v3476, -inf
      %3507 = vmax.xlane.f32.xlu0 %v3506
      %v3508 = vpop.xlane.xlu0 %3507
      %v3509 = vsel %vm773, %v3479, -inf
      %3510 = vmax.xlane.f32.xlu0 %v3509
      %v3511 = vpop.xlane.xlu0 %3510
      %v3512 = vsel %vm773, %v3484, -inf
      %3513 = vmax.xlane.f32.xlu0 %v3512
      %v3514 = vpop.xlane.xlu0 %3513
      %v3515 = vsel %vm773, %v3487, -inf
      %3516 = vmax.xlane.f32.xlu0 %v3515
      %v3517 = vpop.xlane.xlu0 %3516
      %v3518 = vsel %vm773, %v3492, -inf
      %3519 = vmax.xlane.f32.xlu0 %v3518
      %v3520 = vpop.xlane.xlu0 %3519
      %v3521 = vsel %vm773, %v3495, -inf
      %3522 = vmax.xlane.f32.xlu0 %v3521
      %v3523 = vpop.xlane.xlu0 %3522
      %v3524 = vsel %vm773, %v3500, -inf
      %3525 = vmax.xlane.f32.xlu0 %v3524
      %v3526 = vpop.xlane.xlu0 %3525
      %v3527 = vsel %vm773, %v3503, -inf
      %3528 = vmax.xlane.f32.xlu0 %v3527
      %v3529 = vpop.xlane.xlu0 %3528
      %v3530 = vsub.f32 %v3476, %v3508
      %v3531 = vsub.f32 %v3479, %v3511
      %v3532 = vsub.f32 %v3484, %v3514
      %v3533 = vsub.f32 %v3487, %v3517
      %v3534 = vsub.f32 %v3492, %v3520
      %v3535 = vsub.f32 %v3495, %v3523
      %v3536 = vsub.f32 %v3500, %v3526
      %v3537 = vsub.f32 %v3503, %v3529
      %v3538 = vmul.f32 %v3530, 1.442695
      %v3539 = vpow.pop %v3538
      %v3540 = vmul.f32 %v3531, 1.442695
      %v3541 = vpow.pop %v3540
      %v3542 = vmul.f32 %v3532, 1.442695
      %v3543 = vpow.pop %v3542
      %v3544 = vmul.f32 %v3533, 1.442695
      %v3545 = vpow.pop %v3544
      %v3546 = vmul.f32 %v3534, 1.442695
      %v3547 = vpow.pop %v3546
      %v3548 = vmul.f32 %v3535, 1.442695
      %v3549 = vpow.pop %v3548
      %v3550 = vmul.f32 %v3536, 1.442695
      %v3551 = vpow.pop %v3550
      %v3552 = vmul.f32 %v3537, 1.442695
      %v3553 = vpow.pop %v3552
      %v3554 = vsel %vm773, %v3539, 0.0
      %3555 = vadd.xlane.f32.xlu0 %v3554
      %v3556 = vpop.xlane.xlu0 %3555
      %v3557 = vsel %vm773, %v3541, 0.0
      %3558 = vadd.xlane.f32.xlu0 %v3557
      %v3559 = vpop.xlane.xlu0 %3558
      %v3560 = vsel %vm773, %v3543, 0.0
      %3561 = vadd.xlane.f32.xlu0 %v3560
      %v3562 = vpop.xlane.xlu0 %3561
      %v3563 = vsel %vm773, %v3545, 0.0
      %3564 = vadd.xlane.f32.xlu0 %v3563
      %v3565 = vpop.xlane.xlu0 %3564
      %v3566 = vsel %vm773, %v3547, 0.0
      %3567 = vadd.xlane.f32.xlu0 %v3566
      %v3568 = vpop.xlane.xlu0 %3567
      %v3569 = vsel %vm773, %v3549, 0.0
      %3570 = vadd.xlane.f32.xlu0 %v3569
      %v3571 = vpop.xlane.xlu0 %3570
      %v3572 = vsel %vm773, %v3551, 0.0
      %3573 = vadd.xlane.f32.xlu0 %v3572
      %v3574 = vpop.xlane.xlu0 %3573
      %v3575 = vsel %vm773, %v3553, 0.0
      %3576 = vadd.xlane.f32.xlu0 %v3575
      %v3577 = vpop.xlane.xlu0 %3576
      %v3578 = vrcp.pop %v3556
      %v3579 = vrcp.pop %v3559
      %v3580 = vrcp.pop %v3562
      %v3581 = vrcp.pop %v3565
      %v3582 = vrcp.pop %v3568
      %v3583 = vrcp.pop %v3571
      %v3584 = vrcp.pop %v3574
      %v3585 = vrcp.pop %v3577
      %v3586 = vmul.f32 %v3539, %v3578
      %v3587 = vmul.f32 %v3541, %v3579
      %v3588 = vmul.f32 %v3543, %v3580
      %v3589 = vmul.f32 %v3545, %v3581
      %v3590 = vmul.f32 %v3547, %v3582
      %v3591 = vmul.f32 %v3549, %v3583
      %v3592 = vmul.f32 %v3551, %v3584
      %v3593 = vmul.f32 %v3553, %v3585
      %v3594 = vpack.c.bf16 %v3406, %v3406
      %v3595 = vpack.c.bf16 %v3587, %v3586
      %v3596 = vpack.c.bf16 %v3589, %v3588
      %v3597 = vpack.c.bf16 %v3591, %v3590
      %v3598 = vpack.c.bf16 %v3593, %v3592
      %v3600 = vsel %vm773, %v3594, 0
      %v3603 = vsel %vm773, %v3595, 0
      %v3606 = vsel %vm773, %v3596, 0
      %v3609 = vsel %vm773, %v3597, 0
      %v3612 = vsel %vm773, %v3598, 0
      %3614 = vmatprep.subr.bf16.mxu0 0
      %3615 = vmatpush1.bf16.xpose.msra.mxu0 0
      %3616 = vmatprep.subr.bf16.mxu0 0
      %3617 = vmatpush1.bf16.xpose.msra.mxu0 0
      %3618 = vmatprep.subr.bf16.mxu0 0
      %3619 = vmatpush1.bf16.xpose.msra.mxu0 0
      %3620 = vmatprep.subr.bf16.mxu0 0
      %3621 = vmatpush1.bf16.xpose.msra.mxu0 0
      %3622 = vmatprep.subr.bf16.mxu0 0
      %3623 = vmatpush1.bf16.xpose.msra.mxu0 %v3612
      %3624 = vmatprep.subr.bf16.mxu0 0
      %3625 = vmatpush1.bf16.xpose.msra.mxu0 %v3609
      %3626 = vmatprep.subr.bf16.mxu0 0
      %3627 = vmatpush1.bf16.xpose.msra.mxu0 %v3606
      %3628 = vmatprep.subr.bf16.mxu0 0
      %3629 = vmatpush1.bf16.xpose.msra.mxu0 %v3603
      %3630 = vmatprep.subr.bf16.mxu0 0
      %3631 = vmatpush2.bf16.xpose.msra.mxu0 0
      %3632 = vmatprep.subr.bf16.mxu0 0
      %3633 = vmatpush2.bf16.xpose.msra.mxu0 0
      %3634 = vmatprep.subr.bf16.mxu0 0
      %3635 = vmatpush2.bf16.xpose.msra.mxu0 0
      %3636 = vmatprep.subr.bf16.mxu0 0
      %3637 = vmatpush2.bf16.xpose.msra.mxu0 0
      %3638 = vmatprep.subr.bf16.mxu0 0
      %3639 = vmatpush2.bf16.xpose.msra.mxu0 0
      %3640 = vmatprep.subr.bf16.mxu0 0
      %3641 = vmatpush2.bf16.xpose.msra.mxu0 0
      %3642 = vmatprep.subr.bf16.mxu0 0
      %3643 = vmatpush2.bf16.xpose.msra.mxu0 0
      %3644 = vmatprep.subr.bf16.mxu0 0
      %3645 = vmatpush2.bf16.xpose.msra.mxu0 0
      %3646 = vmatprep.mubr.bf16.mxu0 0
      %3647 = vmatmul.mubr.bf16.gmra.mxu0 %v3600
      %v3648 = vpop.f32.mrf.mxu0
      %v3649 = vadd.f32 0.0, %v3648
      %v3650 = vpop.f32.mrf.mxu0
      %v3651 = vpop.f32.mrf.mxu0
      %v3652 = vpop.f32.mrf.mxu0
      %3653 = vdwg.mxu0
      %v3654 = vld [vmem:[%s10] sm:$0xf]
      %v3655 = vld [vmem:[%s10 + $0x4] sm:$0xf]
      %v3656 = vpack.c.bf16 %v3649, %v3649
      %v3659 = vunpack.c.l.b16 %v3654
      %v3660 = vunpack.c.l.b16 %v3655
      %v3661 = vpack.c.b16 %v3660, %v3659
      %v3663 = vsel %vm819, %v3661, 0
      %v3666 = vsel %vm823, %v3656, 0
      %3668 = vmatprep.subr.bf16.mxu0 0
      %3669 = vmatpush1.bf16.msra.mxu0 0
      %3670 = vmatprep.subr.bf16.mxu0 0
      %3671 = vmatpush1.bf16.msra.mxu0 0
      %3672 = vmatprep.subr.bf16.mxu0 0
      %3673 = vmatpush1.bf16.msra.mxu0 0
      %3674 = vmatprep.subr.bf16.mxu0 0
      %3675 = vmatpush1.bf16.msra.mxu0 0
      %3676 = vmatprep.subr.bf16.mxu0 0
      %3677 = vmatpush1.bf16.msra.mxu0 0
      %3678 = vmatprep.subr.bf16.mxu0 0
      %3679 = vmatpush1.bf16.msra.mxu0 0
      %3680 = vmatprep.subr.bf16.mxu0 0
      %3681 = vmatpush1.bf16.msra.mxu0 0
      %3682 = vmatprep.subr.bf16.mxu0 0
      %3683 = vmatpush1.bf16.msra.mxu0 %v3666
      %3684 = vmatprep.subr.bf16.mxu0 0
      %3685 = vmatpush2.bf16.msra.mxu0 0
      %3686 = vmatprep.subr.bf16.mxu0 0
      %3687 = vmatpush2.bf16.msra.mxu0 0
      %3688 = vmatprep.subr.bf16.mxu0 0
      %3689 = vmatpush2.bf16.msra.mxu0 0
      %3690 = vmatprep.subr.bf16.mxu0 0
      %3691 = vmatpush2.bf16.msra.mxu0 0
      %3692 = vmatprep.subr.bf16.mxu0 0
      %3693 = vmatpush2.bf16.msra.mxu0 0
      %3694 = vmatprep.subr.bf16.mxu0 0
      %3695 = vmatpush2.bf16.msra.mxu0 0
      %3696 = vmatprep.subr.bf16.mxu0 0
      %3697 = vmatpush2.bf16.msra.mxu0 0
      %3698 = vmatprep.subr.bf16.mxu0 0
      %3699 = vmatpush2.bf16.msra.mxu0 0
      %3700 = vmatprep.mubr.bf16.mxu0 0
      %3701 = vmatmul.mubr.bf16.gmra.mxu0 %v3663
      %v3702 = vpop.f32.mrf.mxu0
      %v3703 = vadd.f32 0.0, %v3702
      %v3704 = vpop.f32.mrf.mxu0
      %v3705 = vpop.f32.mrf.mxu0
      %v3706 = vadd.f32 0.0, %v3705
      %v3707 = vpop.f32.mrf.mxu0
      %3708 = vdwg.mxu0
      %v3709 = vadd.f32 %v2886, %v3703
      %v3710 = vadd.f32 %v2887, %v3706
      %v3711 = vld [vmem:[%s2 + $0x28] sm:$0xf]
      %v3712 = vld [vmem:[%s2 + $0x30] sm:$0xf]
      %v3713 = vld [vmem:[%s2 + $0x38] sm:$0xf]
      %v3714 = vld [vmem:[%s2 + $0x40] sm:$0xff]
      %v3715 = vld [vmem:[%s617 + $0x70] sm:$0xff]
      %v3716 = vld [vmem:[%s617 + $0x78] sm:$0xff]
      %v3717 = vld [vmem:[%s617 + $0x80] sm:$0xff]
      %v3718 = vld [vmem:[%s617 + $0x88] sm:$0xff]
      %v3719 = vld [vmem:[%s617 + $0x90] sm:$0xf]
      %v3720 = vld [vmem:[%s617 + $0x98] sm:$0xf]
      %v3721 = vld [vmem:[%s617 + $0xa0] sm:$0xf]
      %v3722 = vld [vmem:[%s617 + $0xa8] sm:$0xf]
      %v3723 = vld [vmem:[%s617 + $0xb0] sm:$0xf]
      %v3724 = vld [vmem:[%s617 + $0xb8] sm:$0xf]
      %3726 = vset.pattern.permute.xlu0 0
      %3727 = vperm.xlu0 %3726, %v3715
      %v3728 = vpop.permute.xlu0 %3727
      %3731 = vset.pattern.permute.xlu0 0
      %3732 = vperm.xlu0 %3731, %v3716
      %v3733 = vpop.permute.xlu0 %3732
      %v3735 = vmul.f32 %v3709, %v3728
      %v3736 = vmul.f32 %v3710, %v3733
      %3738 = vset.pattern.permute.xlu0 0
      %3739 = vperm.xlu0 %3738, %v3717
      %v3740 = vpop.permute.xlu0 %3739
      %3743 = vset.pattern.permute.xlu0 0
      %3744 = vperm.xlu0 %3743, %v3718
      %v3745 = vpop.permute.xlu0 %3744
      %v3747 = vadd.f32 %v3735, %v3740
      %v3748 = vadd.f32 %v3736, %v3745
      %v3749 = vmax.f32 %v3747, 0.0
      %v3750 = vmax.f32 %v3748, 0.0
      %v3751 = vld [vmem:[%s12] sm:$0x3]
      %v3752 = vpack.c.bf16 %v3750, %v3749
      %3754 = vset.pattern.permute.xlu0 0
      %3755 = vperm.xlu0 %3754, %v3711
      %v3756 = vpop.permute.xlu0 %3755
      %v3759 = vsel %vm773, %v3751, 0
      %3761 = vmatprep.subr.bf16.mxu0 0
      %3762 = vmatpush1.bf16.msra.mxu0 0
      %3763 = vmatprep.subr.bf16.mxu0 0
      %3764 = vmatpush1.bf16.msra.mxu0 0
      %3765 = vmatprep.subr.bf16.mxu0 0
      %3766 = vmatpush1.bf16.msra.mxu0 0
      %3767 = vmatprep.subr.bf16.mxu0 0
      %3768 = vmatpush1.bf16.msra.mxu0 0
      %3769 = vmatprep.subr.bf16.mxu0 0
      %3770 = vmatpush1.bf16.msra.mxu0 0
      %3771 = vmatprep.subr.bf16.mxu0 0
      %3772 = vmatpush1.bf16.msra.mxu0 0
      %3773 = vmatprep.subr.bf16.mxu0 0
      %3774 = vmatpush1.bf16.msra.mxu0 0
      %3775 = vmatprep.subr.bf16.mxu0 0
      %3776 = vmatpush1.bf16.msra.mxu0 %v3752
      %3777 = vmatprep.subr.bf16.mxu0 0
      %3778 = vmatpush2.bf16.msra.mxu0 0
      %3779 = vmatprep.subr.bf16.mxu0 0
      %3780 = vmatpush2.bf16.msra.mxu0 0
      %3781 = vmatprep.subr.bf16.mxu0 0
      %3782 = vmatpush2.bf16.msra.mxu0 0
      %3783 = vmatprep.subr.bf16.mxu0 0
      %3784 = vmatpush2.bf16.msra.mxu0 0
      %3785 = vmatprep.subr.bf16.mxu0 0
      %3786 = vmatpush2.bf16.msra.mxu0 0
      %3787 = vmatprep.subr.bf16.mxu0 0
      %3788 = vmatpush2.bf16.msra.mxu0 0
      %3789 = vmatprep.subr.bf16.mxu0 0
      %3790 = vmatpush2.bf16.msra.mxu0 0
      %3791 = vmatprep.subr.bf16.mxu0 0
      %3792 = vmatpush2.bf16.msra.mxu0 0
      %3793 = vmatprep.mubr.bf16.mxu0 0
      %3794 = vmatmul.mubr.bf16.gmra.mxu0 %v3759
      %v3795 = vpop.f32.mrf.mxu0
      %v3796 = vadd.f32 %v3756, %v3795
      %v3797 = vpop.f32.mrf.mxu0
      %v3798 = vpop.f32.mrf.mxu0
      %v3799 = vpop.f32.mrf.mxu0
      %3800 = vdwg.mxu0
      %3802 = vset.pattern.permute.xlu0 0
      %3803 = vperm.xlu0 %3802, %v3719
      %v3804 = vpop.permute.xlu0 %3803
      %v3806 = vmul.f32 %v3796, %v3804
      %3808 = vset.pattern.permute.xlu0 0
      %3809 = vperm.xlu0 %3808, %v3720
      %v3810 = vpop.permute.xlu0 %3809
      %v3812 = vadd.f32 %v3806, %v3810
      %v3813 = vmax.f32 %v3812, 0.0
      %v3814 = vpack.c.bf16 %v3813, %v3813
      %v3815 = vld [vmem:[%s16] sm:$0xff]
      %v3816 = vld [vmem:[%s16 + $0x8] sm:$0xff]
      %v3817 = vld [vmem:[%s16 + $0x10] sm:$0xff]
      %v3818 = vld [vmem:[%s16 + $0x18] sm:$0xff]
      %v3819 = vld [vmem:[%s16 + $0x20] sm:$0xff]
      %v3820 = vld [vmem:[%s16 + $0x28] sm:$0xff]
      %v3821 = vld [vmem:[%s16 + $0x30] sm:$0xff]
      %v3822 = vld [vmem:[%s16 + $0x38] sm:$0xff]
      %v3831 = vunpack.c.l.b16 %v3815
      %v3832 = vunpack.c.h.b16 %v3815
      %v3833 = vunpack.c.l.b16 %v3816
      %v3834 = vunpack.c.h.b16 %v3816
      %v3835 = vunpack.c.l.b16 %v3817
      %v3836 = vunpack.c.h.b16 %v3817
      %v3837 = vunpack.c.l.b16 %v3818
      %v3838 = vunpack.c.h.b16 %v3818
      %v3839 = vunpack.c.l.b16 %v3819
      %v3840 = vunpack.c.h.b16 %v3819
      %v3841 = vunpack.c.l.b16 %v3820
      %v3842 = vunpack.c.h.b16 %v3820
      %v3843 = vunpack.c.l.b16 %v3821
      %v3844 = vunpack.c.h.b16 %v3821
      %v3845 = vunpack.c.l.b16 %v3822
      %v3846 = vunpack.c.h.b16 %v3822
      %v3847 = vpack.c.b16 %v3833, %v3831
      %v3848 = vpack.c.b16 %v3834, %v3832
      %v3849 = vpack.c.b16 %v3837, %v3835
      %v3850 = vpack.c.b16 %v3838, %v3836
      %v3851 = vpack.c.b16 %v3841, %v3839
      %v3852 = vpack.c.b16 %v3842, %v3840
      %v3853 = vpack.c.b16 %v3845, %v3843
      %v3854 = vpack.c.b16 %v3846, %v3844
      %v3864 = vsel %vm955, %v3814, 0
      %3866 = vmatprep.subr.bf16.mxu0 0
      %3867 = vmatpush1.bf16.msra.mxu0 0
      %3868 = vmatprep.subr.bf16.mxu0 0
      %3869 = vmatpush1.bf16.msra.mxu0 0
      %3870 = vmatprep.subr.bf16.mxu0 0
      %3871 = vmatpush1.bf16.msra.mxu0 0
      %3872 = vmatprep.subr.bf16.mxu0 0
      %3873 = vmatpush1.bf16.msra.mxu0 0
      %3874 = vmatprep.subr.bf16.mxu0 %v3854
      %3875 = vmatpush1.bf16.msra.mxu0 %v3853
      %3876 = vmatprep.subr.bf16.mxu0 %v3852
      %3877 = vmatpush1.bf16.msra.mxu0 %v3851
      %3878 = vmatprep.subr.bf16.mxu0 %v3850
      %3879 = vmatpush1.bf16.msra.mxu0 %v3849
      %3880 = vmatprep.subr.bf16.mxu0 %v3848
      %3881 = vmatpush1.bf16.msra.mxu0 %v3847
      %3882 = vmatprep.subr.bf16.mxu0 0
      %3883 = vmatpush2.bf16.msra.mxu0 0
      %3884 = vmatprep.subr.bf16.mxu0 0
      %3885 = vmatpush2.bf16.msra.mxu0 0
      %3886 = vmatprep.subr.bf16.mxu0 0
      %3887 = vmatpush2.bf16.msra.mxu0 0
      %3888 = vmatprep.subr.bf16.mxu0 0
      %3889 = vmatpush2.bf16.msra.mxu0 0
      %3890 = vmatprep.subr.bf16.mxu0 0
      %3891 = vmatpush2.bf16.msra.mxu0 0
      %3892 = vmatprep.subr.bf16.mxu0 0
      %3893 = vmatpush2.bf16.msra.mxu0 0
      %3894 = vmatprep.subr.bf16.mxu0 0
      %3895 = vmatpush2.bf16.msra.mxu0 0
      %3896 = vmatprep.subr.bf16.mxu0 0
      %3897 = vmatpush2.bf16.msra.mxu0 0
      %3898 = vmatprep.mubr.bf16.mxu0 0
      %3899 = vmatmul.mubr.bf16.gmra.mxu0 %v3864
      %v3900 = vpop.f32.mrf.mxu0
      %v3901 = vadd.f32 0.0, %v3900
      %v3902 = vpop.f32.mrf.mxu0
      %v3903 = vadd.f32 0.0, %v3902
      %v3904 = vpop.f32.mrf.mxu0
      %v3905 = vpop.f32.mrf.mxu0
      %3906 = vdwg.mxu0
      %3907 = vrot.lane.b32.xlu0 %v3901, 17
      %v3908 = vpop.permute.xlu0 %3907
      %3909 = vrot.lane.b32.xlu0 %v3903, 17
      %v3910 = vpop.permute.xlu0 %3909
      %v3911 = vlaneseq
      %v3912 = vand.u32 %v3911, 127
      %vm3913 = vcmp.lt.s32.totalorder %v3912, 17
      %v3914 = vsel %vm3913, %v3908, %v3910
      %v3915 = vsel %vm3913, %v3910, %v3908
      %v3916 = vld [vmem:[%s13] sm:$0x3]
      %v3917 = vpack.c.bf16 %v3915, %v3915
      %v3918 = vpack.c.bf16 %v3914, %v3914
      %vm3919 = vcmask 31744
      %v3921 = vsel %vm3919, %v3916, 0
      %vm3923 = vcmask 1041408
      %v3925 = vsel %vm3923, %v3917, 0
      %v3928 = vsel %vm3923, %v3918, 0
      %3930 = vmatprep.subr.bf16.mxu0 0
      %3931 = vmatpush1.bf16.msra.mxu0 0
      %3932 = vmatprep.subr.bf16.mxu0 0
      %3933 = vmatpush1.bf16.msra.mxu0 0
      %3934 = vmatprep.subr.bf16.mxu0 0
      %3935 = vmatpush1.bf16.msra.mxu0 0
      %3936 = vmatprep.subr.bf16.mxu0 0
      %3937 = vmatpush1.bf16.msra.mxu0 0
      %3938 = vmatprep.subr.bf16.mxu0 0
      %3939 = vmatpush1.bf16.msra.mxu0 0
      %3940 = vmatprep.subr.bf16.mxu0 0
      %3941 = vmatpush1.bf16.msra.mxu0 0
      %3942 = vmatprep.subr.bf16.mxu0 0
      %3943 = vmatpush1.bf16.msra.mxu0 0
      %3944 = vmatprep.subr.bf16.mxu0 %v3928
      %3945 = vmatpush1.bf16.msra.mxu0 %v3925
      %3946 = vmatprep.subr.bf16.mxu0 0
      %3947 = vmatpush2.bf16.msra.mxu0 0
      %3948 = vmatprep.subr.bf16.mxu0 0
      %3949 = vmatpush2.bf16.msra.mxu0 0
      %3950 = vmatprep.subr.bf16.mxu0 0
      %3951 = vmatpush2.bf16.msra.mxu0 0
      %3952 = vmatprep.subr.bf16.mxu0 0
      %3953 = vmatpush2.bf16.msra.mxu0 0
      %3954 = vmatprep.subr.bf16.mxu0 0
      %3955 = vmatpush2.bf16.msra.mxu0 0
      %3956 = vmatprep.subr.bf16.mxu0 0
      %3957 = vmatpush2.bf16.msra.mxu0 0
      %3958 = vmatprep.subr.bf16.mxu0 0
      %3959 = vmatpush2.bf16.msra.mxu0 0
      %3960 = vmatprep.subr.bf16.mxu0 0
      %3961 = vmatpush2.bf16.msra.mxu0 0
      %3962 = vmatprep.mubr.bf16.mxu0 0
      %3963 = vmatmul.mubr.bf16.gmra.mxu0 %v3921
      %v3964 = vpop.f32.mrf.mxu0
      %v3965 = vadd.f32 0.0, %v3964
      %v3966 = vpop.f32.mrf.mxu0
      %v3967 = vadd.f32 0.0, %v3966
      %v3968 = vpop.f32.mrf.mxu0
      %v3969 = vpop.f32.mrf.mxu0
      %3970 = vdwg.mxu0
      %v3971 = vld [vmem:[%s17] sm:$0x3]
      %v3973 = vlaneseq
      %v3974 = vshrl.u32 %v3973, 7
      %v3975 = vsub.s32 0, %v3974
      %v3976 = vrot.slane %v3971, %v3975
      %v3977 = vlaneseq
      %v3978 = vshrl.u32 %v3977, 7
      %v3979 = vsub.s32 1, %v3978
      %v3980 = vrot.slane %v3971, %v3979
      %v3983 = vmul.f32 %v3965, %v3976
      %v3984 = vmul.f32 %v3967, %v3980
      %v3985 = vadd.f32 %v3983, 0.0
      %v3986 = vadd.f32 %v3984, 0.0
      %3987 = vrot.lane.b32.xlu0 %v3901, 16
      %v3988 = vpop.permute.xlu0 %3987
      %3989 = vrot.lane.b32.xlu0 %v3903, 16
      %v3990 = vpop.permute.xlu0 %3989
      %vm3991 = vcmp.lt.s32.totalorder %v3912, 16
      %v3992 = vsel %vm3991, %v3988, %v3990
      %v3993 = vsel %vm3991, %v3990, %v3988
      %s3994 = scalar_lea.vmem %s13, 2
      %v3995 = vld [vmem:[%s3994] sm:$0x3]
      %v3996 = vpack.c.bf16 %v3993, %v3993
      %v3997 = vpack.c.bf16 %v3992, %v3992
      %v3999 = vsel %vm3919, %v3995, 0
      %v4002 = vsel %vm3923, %v3996, 0
      %v4005 = vsel %vm3923, %v3997, 0
      %4007 = vmatprep.subr.bf16.mxu0 0
      %4008 = vmatpush1.bf16.msra.mxu0 0
      %4009 = vmatprep.subr.bf16.mxu0 0
      %4010 = vmatpush1.bf16.msra.mxu0 0
      %4011 = vmatprep.subr.bf16.mxu0 0
      %4012 = vmatpush1.bf16.msra.mxu0 0
      %4013 = vmatprep.subr.bf16.mxu0 0
      %4014 = vmatpush1.bf16.msra.mxu0 0
      %4015 = vmatprep.subr.bf16.mxu0 0
      %4016 = vmatpush1.bf16.msra.mxu0 0
      %4017 = vmatprep.subr.bf16.mxu0 0
      %4018 = vmatpush1.bf16.msra.mxu0 0
      %4019 = vmatprep.subr.bf16.mxu0 0
      %4020 = vmatpush1.bf16.msra.mxu0 0
      %4021 = vmatprep.subr.bf16.mxu0 %v4005
      %4022 = vmatpush1.bf16.msra.mxu0 %v4002
      %4023 = vmatprep.subr.bf16.mxu0 0
      %4024 = vmatpush2.bf16.msra.mxu0 0
      %4025 = vmatprep.subr.bf16.mxu0 0
      %4026 = vmatpush2.bf16.msra.mxu0 0
      %4027 = vmatprep.subr.bf16.mxu0 0
      %4028 = vmatpush2.bf16.msra.mxu0 0
      %4029 = vmatprep.subr.bf16.mxu0 0
      %4030 = vmatpush2.bf16.msra.mxu0 0
      %4031 = vmatprep.subr.bf16.mxu0 0
      %4032 = vmatpush2.bf16.msra.mxu0 0
      %4033 = vmatprep.subr.bf16.mxu0 0
      %4034 = vmatpush2.bf16.msra.mxu0 0
      %4035 = vmatprep.subr.bf16.mxu0 0
      %4036 = vmatpush2.bf16.msra.mxu0 0
      %4037 = vmatprep.subr.bf16.mxu0 0
      %4038 = vmatpush2.bf16.msra.mxu0 0
      %4039 = vmatprep.mubr.bf16.mxu0 0
      %4040 = vmatmul.mubr.bf16.gmra.mxu0 %v3999
      %v4041 = vpop.f32.mrf.mxu0
      %v4042 = vadd.f32 0.0, %v4041
      %v4043 = vpop.f32.mrf.mxu0
      %v4044 = vadd.f32 0.0, %v4043
      %v4045 = vpop.f32.mrf.mxu0
      %v4046 = vpop.f32.mrf.mxu0
      %4047 = vdwg.mxu0
      %s4048 = scalar_lea.vmem %s17, 2
      %v4049 = vld [vmem:[%s4048] sm:$0x3]
      %v4051 = vlaneseq
      %v4052 = vshrl.u32 %v4051, 7
      %v4053 = vsub.s32 0, %v4052
      %v4054 = vrot.slane %v4049, %v4053
      %v4055 = vlaneseq
      %v4056 = vshrl.u32 %v4055, 7
      %v4057 = vsub.s32 1, %v4056
      %v4058 = vrot.slane %v4049, %v4057
      %v4061 = vmul.f32 %v4042, %v4054
      %v4062 = vmul.f32 %v4044, %v4058
      %v4063 = vadd.f32 %v3985, %v4061
      %v4064 = vadd.f32 %v3986, %v4062
      %4065 = vrot.lane.b32.xlu0 %v3901, 15
      %v4066 = vpop.permute.xlu0 %4065
      %4067 = vrot.lane.b32.xlu0 %v3903, 15
      %v4068 = vpop.permute.xlu0 %4067
      %vm4069 = vcmp.lt.s32.totalorder %v3912, 15
      %v4070 = vsel %vm4069, %v4066, %v4068
      %v4071 = vsel %vm4069, %v4068, %v4066
      %s4072 = scalar_lea.vmem %s13, 4
      %v4073 = vld [vmem:[%s4072] sm:$0x3]
      %v4074 = vpack.c.bf16 %v4071, %v4071
      %v4075 = vpack.c.bf16 %v4070, %v4070
      %v4077 = vsel %vm3919, %v4073, 0
      %v4080 = vsel %vm3923, %v4074, 0
      %v4083 = vsel %vm3923, %v4075, 0
      %4085 = vmatprep.subr.bf16.mxu0 0
      %4086 = vmatpush1.bf16.msra.mxu0 0
      %4087 = vmatprep.subr.bf16.mxu0 0
      %4088 = vmatpush1.bf16.msra.mxu0 0
      %4089 = vmatprep.subr.bf16.mxu0 0
      %4090 = vmatpush1.bf16.msra.mxu0 0
      %4091 = vmatprep.subr.bf16.mxu0 0
      %4092 = vmatpush1.bf16.msra.mxu0 0
      %4093 = vmatprep.subr.bf16.mxu0 0
      %4094 = vmatpush1.bf16.msra.mxu0 0
      %4095 = vmatprep.subr.bf16.mxu0 0
      %4096 = vmatpush1.bf16.msra.mxu0 0
      %4097 = vmatprep.subr.bf16.mxu0 0
      %4098 = vmatpush1.bf16.msra.mxu0 0
      %4099 = vmatprep.subr.bf16.mxu0 %v4083
      %4100 = vmatpush1.bf16.msra.mxu0 %v4080
      %4101 = vmatprep.subr.bf16.mxu0 0
      %4102 = vmatpush2.bf16.msra.mxu0 0
      %4103 = vmatprep.subr.bf16.mxu0 0
      %4104 = vmatpush2.bf16.msra.mxu0 0
      %4105 = vmatprep.subr.bf16.mxu0 0
      %4106 = vmatpush2.bf16.msra.mxu0 0
      %4107 = vmatprep.subr.bf16.mxu0 0
      %4108 = vmatpush2.bf16.msra.mxu0 0
      %4109 = vmatprep.subr.bf16.mxu0 0
      %4110 = vmatpush2.bf16.msra.mxu0 0
      %4111 = vmatprep.subr.bf16.mxu0 0
      %4112 = vmatpush2.bf16.msra.mxu0 0
      %4113 = vmatprep.subr.bf16.mxu0 0
      %4114 = vmatpush2.bf16.msra.mxu0 0
      %4115 = vmatprep.subr.bf16.mxu0 0
      %4116 = vmatpush2.bf16.msra.mxu0 0
      %4117 = vmatprep.mubr.bf16.mxu0 0
      %4118 = vmatmul.mubr.bf16.gmra.mxu0 %v4077
      %v4119 = vpop.f32.mrf.mxu0
      %v4120 = vadd.f32 0.0, %v4119
      %v4121 = vpop.f32.mrf.mxu0
      %v4122 = vadd.f32 0.0, %v4121
      %v4123 = vpop.f32.mrf.mxu0
      %v4124 = vpop.f32.mrf.mxu0
      %4125 = vdwg.mxu0
      %s4126 = scalar_lea.vmem %s17, 4
      %v4127 = vld [vmem:[%s4126] sm:$0x3]
      %v4129 = vlaneseq
      %v4130 = vshrl.u32 %v4129, 7
      %v4131 = vsub.s32 0, %v4130
      %v4132 = vrot.slane %v4127, %v4131
      %v4133 = vlaneseq
      %v4134 = vshrl.u32 %v4133, 7
      %v4135 = vsub.s32 1, %v4134
      %v4136 = vrot.slane %v4127, %v4135
      %v4139 = vmul.f32 %v4120, %v4132
      %v4140 = vmul.f32 %v4122, %v4136
      %v4141 = vadd.f32 %v4063, %v4139
      %v4142 = vadd.f32 %v4064, %v4140
      %4143 = vrot.lane.b32.xlu0 %v3901, 1
      %v4144 = vpop.permute.xlu0 %4143
      %4145 = vrot.lane.b32.xlu0 %v3903, 1
      %v4146 = vpop.permute.xlu0 %4145
      %vm4147 = vcmp.lt.s32.totalorder %v3912, 1
      %v4148 = vsel %vm4147, %v4144, %v4146
      %v4149 = vsel %vm4147, %v4146, %v4144
      %s4150 = scalar_lea.vmem %s13, 6
      %v4151 = vld [vmem:[%s4150] sm:$0x3]
      %v4152 = vpack.c.bf16 %v4149, %v4149
      %v4153 = vpack.c.bf16 %v4148, %v4148
      %v4155 = vsel %vm3919, %v4151, 0
      %v4158 = vsel %vm3923, %v4152, 0
      %v4161 = vsel %vm3923, %v4153, 0
      %4163 = vmatprep.subr.bf16.mxu0 0
      %4164 = vmatpush1.bf16.msra.mxu0 0
      %4165 = vmatprep.subr.bf16.mxu0 0
      %4166 = vmatpush1.bf16.msra.mxu0 0
      %4167 = vmatprep.subr.bf16.mxu0 0
      %4168 = vmatpush1.bf16.msra.mxu0 0
      %4169 = vmatprep.subr.bf16.mxu0 0
      %4170 = vmatpush1.bf16.msra.mxu0 0
      %4171 = vmatprep.subr.bf16.mxu0 0
      %4172 = vmatpush1.bf16.msra.mxu0 0
      %4173 = vmatprep.subr.bf16.mxu0 0
      %4174 = vmatpush1.bf16.msra.mxu0 0
      %4175 = vmatprep.subr.bf16.mxu0 0
      %4176 = vmatpush1.bf16.msra.mxu0 0
      %4177 = vmatprep.subr.bf16.mxu0 %v4161
      %4178 = vmatpush1.bf16.msra.mxu0 %v4158
      %4179 = vmatprep.subr.bf16.mxu0 0
      %4180 = vmatpush2.bf16.msra.mxu0 0
      %4181 = vmatprep.subr.bf16.mxu0 0
      %4182 = vmatpush2.bf16.msra.mxu0 0
      %4183 = vmatprep.subr.bf16.mxu0 0
      %4184 = vmatpush2.bf16.msra.mxu0 0
      %4185 = vmatprep.subr.bf16.mxu0 0
      %4186 = vmatpush2.bf16.msra.mxu0 0
      %4187 = vmatprep.subr.bf16.mxu0 0
      %4188 = vmatpush2.bf16.msra.mxu0 0
      %4189 = vmatprep.subr.bf16.mxu0 0
      %4190 = vmatpush2.bf16.msra.mxu0 0
      %4191 = vmatprep.subr.bf16.mxu0 0
      %4192 = vmatpush2.bf16.msra.mxu0 0
      %4193 = vmatprep.subr.bf16.mxu0 0
      %4194 = vmatpush2.bf16.msra.mxu0 0
      %4195 = vmatprep.mubr.bf16.mxu0 0
      %4196 = vmatmul.mubr.bf16.gmra.mxu0 %v4155
      %v4197 = vpop.f32.mrf.mxu0
      %v4198 = vadd.f32 0.0, %v4197
      %v4199 = vpop.f32.mrf.mxu0
      %v4200 = vadd.f32 0.0, %v4199
      %v4201 = vpop.f32.mrf.mxu0
      %v4202 = vpop.f32.mrf.mxu0
      %4203 = vdwg.mxu0
      %s4204 = scalar_lea.vmem %s17, 6
      %v4205 = vld [vmem:[%s4204] sm:$0x3]
      %v4207 = vlaneseq
      %v4208 = vshrl.u32 %v4207, 7
      %v4209 = vsub.s32 0, %v4208
      %v4210 = vrot.slane %v4205, %v4209
      %v4211 = vlaneseq
      %v4212 = vshrl.u32 %v4211, 7
      %v4213 = vsub.s32 1, %v4212
      %v4214 = vrot.slane %v4205, %v4213
      %v4217 = vmul.f32 %v4198, %v4210
      %v4218 = vmul.f32 %v4200, %v4214
      %v4219 = vadd.f32 %v4141, %v4217
      %v4220 = vadd.f32 %v4142, %v4218
      %s4221 = scalar_lea.vmem %s13, 8
      %v4222 = vld [vmem:[%s4221] sm:$0x3]
      %v4223 = vpack.c.bf16 %v3901, %v3901
      %v4224 = vpack.c.bf16 %v3903, %v3903
      %v4226 = vsel %vm3919, %v4222, 0
      %v4229 = vsel %vm3923, %v4223, 0
      %v4232 = vsel %vm3923, %v4224, 0
      %4234 = vmatprep.subr.bf16.mxu0 0
      %4235 = vmatpush1.bf16.msra.mxu0 0
      %4236 = vmatprep.subr.bf16.mxu0 0
      %4237 = vmatpush1.bf16.msra.mxu0 0
      %4238 = vmatprep.subr.bf16.mxu0 0
      %4239 = vmatpush1.bf16.msra.mxu0 0
      %4240 = vmatprep.subr.bf16.mxu0 0
      %4241 = vmatpush1.bf16.msra.mxu0 0
      %4242 = vmatprep.subr.bf16.mxu0 0
      %4243 = vmatpush1.bf16.msra.mxu0 0
      %4244 = vmatprep.subr.bf16.mxu0 0
      %4245 = vmatpush1.bf16.msra.mxu0 0
      %4246 = vmatprep.subr.bf16.mxu0 0
      %4247 = vmatpush1.bf16.msra.mxu0 0
      %4248 = vmatprep.subr.bf16.mxu0 %v4232
      %4249 = vmatpush1.bf16.msra.mxu0 %v4229
      %4250 = vmatprep.subr.bf16.mxu0 0
      %4251 = vmatpush2.bf16.msra.mxu0 0
      %4252 = vmatprep.subr.bf16.mxu0 0
      %4253 = vmatpush2.bf16.msra.mxu0 0
      %4254 = vmatprep.subr.bf16.mxu0 0
      %4255 = vmatpush2.bf16.msra.mxu0 0
      %4256 = vmatprep.subr.bf16.mxu0 0
      %4257 = vmatpush2.bf16.msra.mxu0 0
      %4258 = vmatprep.subr.bf16.mxu0 0
      %4259 = vmatpush2.bf16.msra.mxu0 0
      %4260 = vmatprep.subr.bf16.mxu0 0
      %4261 = vmatpush2.bf16.msra.mxu0 0
      %4262 = vmatprep.subr.bf16.mxu0 0
      %4263 = vmatpush2.bf16.msra.mxu0 0
      %4264 = vmatprep.subr.bf16.mxu0 0
      %4265 = vmatpush2.bf16.msra.mxu0 0
      %4266 = vmatprep.mubr.bf16.mxu0 0
      %4267 = vmatmul.mubr.bf16.gmra.mxu0 %v4226
      %v4268 = vpop.f32.mrf.mxu0
      %v4269 = vadd.f32 0.0, %v4268
      %v4270 = vpop.f32.mrf.mxu0
      %v4271 = vadd.f32 0.0, %v4270
      %v4272 = vpop.f32.mrf.mxu0
      %v4273 = vpop.f32.mrf.mxu0
      %4274 = vdwg.mxu0
      %v4275 = vadd.f32 %v4219, %v4269
      %v4276 = vadd.f32 %v4220, %v4271
      %4277 = vrot.lane.b32.xlu0 %v3901, 127
      %v4278 = vpop.permute.xlu0 %4277
      %4279 = vrot.lane.b32.xlu0 %v3903, 127
      %v4280 = vpop.permute.xlu0 %4279
      %vm4281 = vcmp.lt.s32.totalorder %v3912, 127
      %v4282 = vsel %vm4281, %v4278, %v4280
      %v4283 = vsel %vm4281, %v4280, %v4278
      %s4284 = scalar_lea.vmem %s13, 10
      %v4285 = vld [vmem:[%s4284] sm:$0x3]
      %v4286 = vpack.c.bf16 %v4282, %v4282
      %v4287 = vpack.c.bf16 %v4283, %v4283
      %v4289 = vsel %vm3919, %v4285, 0
      %v4292 = vsel %vm3923, %v4286, 0
      %v4295 = vsel %vm3923, %v4287, 0
      %4297 = vmatprep.subr.bf16.mxu0 0
      %4298 = vmatpush1.bf16.msra.mxu0 0
      %4299 = vmatprep.subr.bf16.mxu0 0
      %4300 = vmatpush1.bf16.msra.mxu0 0
      %4301 = vmatprep.subr.bf16.mxu0 0
      %4302 = vmatpush1.bf16.msra.mxu0 0
      %4303 = vmatprep.subr.bf16.mxu0 0
      %4304 = vmatpush1.bf16.msra.mxu0 0
      %4305 = vmatprep.subr.bf16.mxu0 0
      %4306 = vmatpush1.bf16.msra.mxu0 0
      %4307 = vmatprep.subr.bf16.mxu0 0
      %4308 = vmatpush1.bf16.msra.mxu0 0
      %4309 = vmatprep.subr.bf16.mxu0 0
      %4310 = vmatpush1.bf16.msra.mxu0 0
      %4311 = vmatprep.subr.bf16.mxu0 %v4295
      %4312 = vmatpush1.bf16.msra.mxu0 %v4292
      %4313 = vmatprep.subr.bf16.mxu0 0
      %4314 = vmatpush2.bf16.msra.mxu0 0
      %4315 = vmatprep.subr.bf16.mxu0 0
      %4316 = vmatpush2.bf16.msra.mxu0 0
      %4317 = vmatprep.subr.bf16.mxu0 0
      %4318 = vmatpush2.bf16.msra.mxu0 0
      %4319 = vmatprep.subr.bf16.mxu0 0
      %4320 = vmatpush2.bf16.msra.mxu0 0
      %4321 = vmatprep.subr.bf16.mxu0 0
      %4322 = vmatpush2.bf16.msra.mxu0 0
      %4323 = vmatprep.subr.bf16.mxu0 0
      %4324 = vmatpush2.bf16.msra.mxu0 0
      %4325 = vmatprep.subr.bf16.mxu0 0
      %4326 = vmatpush2.bf16.msra.mxu0 0
      %4327 = vmatprep.subr.bf16.mxu0 0
      %4328 = vmatpush2.bf16.msra.mxu0 0
      %4329 = vmatprep.mubr.bf16.mxu0 0
      %4330 = vmatmul.mubr.bf16.gmra.mxu0 %v4289
      %v4331 = vpop.f32.mrf.mxu0
      %v4332 = vadd.f32 0.0, %v4331
      %v4333 = vpop.f32.mrf.mxu0
      %v4334 = vadd.f32 0.0, %v4333
      %v4335 = vpop.f32.mrf.mxu0
      %v4336 = vpop.f32.mrf.mxu0
      %4337 = vdwg.mxu0
      %s4338 = scalar_lea.vmem %s17, 10
      %v4339 = vld [vmem:[%s4338] sm:$0x3]
      %v4341 = vlaneseq
      %v4342 = vshrl.u32 %v4341, 7
      %v4343 = vsub.s32 0, %v4342
      %v4344 = vrot.slane %v4339, %v4343
      %v4345 = vlaneseq
      %v4346 = vshrl.u32 %v4345, 7
      %v4347 = vsub.s32 1, %v4346
      %v4348 = vrot.slane %v4339, %v4347
      %v4351 = vmul.f32 %v4332, %v4344
      %v4352 = vmul.f32 %v4334, %v4348
      %v4353 = vadd.f32 %v4275, %v4351
      %v4354 = vadd.f32 %v4276, %v4352
      %4355 = vrot.lane.b32.xlu0 %v3901, 113
      %v4356 = vpop.permute.xlu0 %4355
      %4357 = vrot.lane.b32.xlu0 %v3903, 113
      %v4358 = vpop.permute.xlu0 %4357
      %vm4359 = vcmp.lt.s32.totalorder %v3912, 113
      %v4360 = vsel %vm4359, %v4356, %v4358
      %v4361 = vsel %vm4359, %v4358, %v4356
      %s4362 = scalar_lea.vmem %s13, 12
      %v4363 = vld [vmem:[%s4362] sm:$0x3]
      %v4364 = vpack.c.bf16 %v4360, %v4360
      %v4365 = vpack.c.bf16 %v4361, %v4361
      %v4367 = vsel %vm3919, %v4363, 0
      %v4370 = vsel %vm3923, %v4364, 0
      %v4373 = vsel %vm3923, %v4365, 0
      %4375 = vmatprep.subr.bf16.mxu0 0
      %4376 = vmatpush1.bf16.msra.mxu0 0
      %4377 = vmatprep.subr.bf16.mxu0 0
      %4378 = vmatpush1.bf16.msra.mxu0 0
      %4379 = vmatprep.subr.bf16.mxu0 0
      %4380 = vmatpush1.bf16.msra.mxu0 0
      %4381 = vmatprep.subr.bf16.mxu0 0
      %4382 = vmatpush1.bf16.msra.mxu0 0
      %4383 = vmatprep.subr.bf16.mxu0 0
      %4384 = vmatpush1.bf16.msra.mxu0 0
      %4385 = vmatprep.subr.bf16.mxu0 0
      %4386 = vmatpush1.bf16.msra.mxu0 0
      %4387 = vmatprep.subr.bf16.mxu0 0
      %4388 = vmatpush1.bf16.msra.mxu0 0
      %4389 = vmatprep.subr.bf16.mxu0 %v4373
      %4390 = vmatpush1.bf16.msra.mxu0 %v4370
      %4391 = vmatprep.subr.bf16.mxu0 0
      %4392 = vmatpush2.bf16.msra.mxu0 0
      %4393 = vmatprep.subr.bf16.mxu0 0
      %4394 = vmatpush2.bf16.msra.mxu0 0
      %4395 = vmatprep.subr.bf16.mxu0 0
      %4396 = vmatpush2.bf16.msra.mxu0 0
      %4397 = vmatprep.subr.bf16.mxu0 0
      %4398 = vmatpush2.bf16.msra.mxu0 0
      %4399 = vmatprep.subr.bf16.mxu0 0
      %4400 = vmatpush2.bf16.msra.mxu0 0
      %4401 = vmatprep.subr.bf16.mxu0 0
      %4402 = vmatpush2.bf16.msra.mxu0 0
      %4403 = vmatprep.subr.bf16.mxu0 0
      %4404 = vmatpush2.bf16.msra.mxu0 0
      %4405 = vmatprep.subr.bf16.mxu0 0
      %4406 = vmatpush2.bf16.msra.mxu0 0
      %4407 = vmatprep.mubr.bf16.mxu0 0
      %4408 = vmatmul.mubr.bf16.gmra.mxu0 %v4367
      %v4409 = vpop.f32.mrf.mxu0
      %v4410 = vadd.f32 0.0, %v4409
      %v4411 = vpop.f32.mrf.mxu0
      %v4412 = vadd.f32 0.0, %v4411
      %v4413 = vpop.f32.mrf.mxu0
      %v4414 = vpop.f32.mrf.mxu0
      %4415 = vdwg.mxu0
      %s4416 = scalar_lea.vmem %s17, 12
      %v4417 = vld [vmem:[%s4416] sm:$0x3]
      %v4419 = vlaneseq
      %v4420 = vshrl.u32 %v4419, 7
      %v4421 = vsub.s32 0, %v4420
      %v4422 = vrot.slane %v4417, %v4421
      %v4423 = vlaneseq
      %v4424 = vshrl.u32 %v4423, 7
      %v4425 = vsub.s32 1, %v4424
      %v4426 = vrot.slane %v4417, %v4425
      %v4429 = vmul.f32 %v4410, %v4422
      %v4430 = vmul.f32 %v4412, %v4426
      %v4431 = vadd.f32 %v4353, %v4429
      %v4432 = vadd.f32 %v4354, %v4430
      %4433 = vrot.lane.b32.xlu0 %v3901, 112
      %v4434 = vpop.permute.xlu0 %4433
      %4435 = vrot.lane.b32.xlu0 %v3903, 112
      %v4436 = vpop.permute.xlu0 %4435
      %vm4437 = vcmp.lt.s32.totalorder %v3912, 112
      %v4438 = vsel %vm4437, %v4434, %v4436
      %v4439 = vsel %vm4437, %v4436, %v4434
      %s4440 = scalar_lea.vmem %s13, 14
      %v4441 = vld [vmem:[%s4440] sm:$0x3]
      %v4442 = vpack.c.bf16 %v4438, %v4438
      %v4443 = vpack.c.bf16 %v4439, %v4439
      %v4445 = vsel %vm3919, %v4441, 0
      %v4448 = vsel %vm3923, %v4442, 0
      %v4451 = vsel %vm3923, %v4443, 0
      %4453 = vmatprep.subr.bf16.mxu0 0
      %4454 = vmatpush1.bf16.msra.mxu0 0
      %4455 = vmatprep.subr.bf16.mxu0 0
      %4456 = vmatpush1.bf16.msra.mxu0 0
      %4457 = vmatprep.subr.bf16.mxu0 0
      %4458 = vmatpush1.bf16.msra.mxu0 0
      %4459 = vmatprep.subr.bf16.mxu0 0
      %4460 = vmatpush1.bf16.msra.mxu0 0
      %4461 = vmatprep.subr.bf16.mxu0 0
      %4462 = vmatpush1.bf16.msra.mxu0 0
      %4463 = vmatprep.subr.bf16.mxu0 0
      %4464 = vmatpush1.bf16.msra.mxu0 0
      %4465 = vmatprep.subr.bf16.mxu0 0
      %4466 = vmatpush1.bf16.msra.mxu0 0
      %4467 = vmatprep.subr.bf16.mxu0 %v4451
      %4468 = vmatpush1.bf16.msra.mxu0 %v4448
      %4469 = vmatprep.subr.bf16.mxu0 0
      %4470 = vmatpush2.bf16.msra.mxu0 0
      %4471 = vmatprep.subr.bf16.mxu0 0
      %4472 = vmatpush2.bf16.msra.mxu0 0
      %4473 = vmatprep.subr.bf16.mxu0 0
      %4474 = vmatpush2.bf16.msra.mxu0 0
      %4475 = vmatprep.subr.bf16.mxu0 0
      %4476 = vmatpush2.bf16.msra.mxu0 0
      %4477 = vmatprep.subr.bf16.mxu0 0
      %4478 = vmatpush2.bf16.msra.mxu0 0
      %4479 = vmatprep.subr.bf16.mxu0 0
      %4480 = vmatpush2.bf16.msra.mxu0 0
      %4481 = vmatprep.subr.bf16.mxu0 0
      %4482 = vmatpush2.bf16.msra.mxu0 0
      %4483 = vmatprep.subr.bf16.mxu0 0
      %4484 = vmatpush2.bf16.msra.mxu0 0
      %4485 = vmatprep.mubr.bf16.mxu0 0
      %4486 = vmatmul.mubr.bf16.gmra.mxu0 %v4445
      %v4487 = vpop.f32.mrf.mxu0
      %v4488 = vadd.f32 0.0, %v4487
      %v4489 = vpop.f32.mrf.mxu0
      %v4490 = vadd.f32 0.0, %v4489
      %v4491 = vpop.f32.mrf.mxu0
      %v4492 = vpop.f32.mrf.mxu0
      %4493 = vdwg.mxu0
      %s4494 = scalar_lea.vmem %s17, 14
      %v4495 = vld [vmem:[%s4494] sm:$0x3]
      %v4497 = vlaneseq
      %v4498 = vshrl.u32 %v4497, 7
      %v4499 = vsub.s32 0, %v4498
      %v4500 = vrot.slane %v4495, %v4499
      %v4501 = vlaneseq
      %v4502 = vshrl.u32 %v4501, 7
      %v4503 = vsub.s32 1, %v4502
      %v4504 = vrot.slane %v4495, %v4503
      %v4507 = vmul.f32 %v4488, %v4500
      %v4508 = vmul.f32 %v4490, %v4504
      %v4509 = vadd.f32 %v4431, %v4507
      %v4510 = vadd.f32 %v4432, %v4508
      %4511 = vrot.lane.b32.xlu0 %v3901, 111
      %v4512 = vpop.permute.xlu0 %4511
      %4513 = vrot.lane.b32.xlu0 %v3903, 111
      %v4514 = vpop.permute.xlu0 %4513
      %vm4515 = vcmp.lt.s32.totalorder %v3912, 111
      %v4516 = vsel %vm4515, %v4512, %v4514
      %v4517 = vsel %vm4515, %v4514, %v4512
      %s4518 = scalar_lea.vmem %s13, 16
      %v4519 = vld [vmem:[%s4518] sm:$0x3]
      %v4520 = vpack.c.bf16 %v4516, %v4516
      %v4521 = vpack.c.bf16 %v4517, %v4517
      %v4523 = vsel %vm3919, %v4519, 0
      %v4526 = vsel %vm3923, %v4520, 0
      %v4529 = vsel %vm3923, %v4521, 0
      %4531 = vmatprep.subr.bf16.mxu0 0
      %4532 = vmatpush1.bf16.msra.mxu0 0
      %4533 = vmatprep.subr.bf16.mxu0 0
      %4534 = vmatpush1.bf16.msra.mxu0 0
      %4535 = vmatprep.subr.bf16.mxu0 0
      %4536 = vmatpush1.bf16.msra.mxu0 0
      %4537 = vmatprep.subr.bf16.mxu0 0
      %4538 = vmatpush1.bf16.msra.mxu0 0
      %4539 = vmatprep.subr.bf16.mxu0 0
      %4540 = vmatpush1.bf16.msra.mxu0 0
      %4541 = vmatprep.subr.bf16.mxu0 0
      %4542 = vmatpush1.bf16.msra.mxu0 0
      %4543 = vmatprep.subr.bf16.mxu0 0
      %4544 = vmatpush1.bf16.msra.mxu0 0
      %4545 = vmatprep.subr.bf16.mxu0 %v4529
      %4546 = vmatpush1.bf16.msra.mxu0 %v4526
      %4547 = vmatprep.subr.bf16.mxu0 0
      %4548 = vmatpush2.bf16.msra.mxu0 0
      %4549 = vmatprep.subr.bf16.mxu0 0
      %4550 = vmatpush2.bf16.msra.mxu0 0
      %4551 = vmatprep.subr.bf16.mxu0 0
      %4552 = vmatpush2.bf16.msra.mxu0 0
      %4553 = vmatprep.subr.bf16.mxu0 0
      %4554 = vmatpush2.bf16.msra.mxu0 0
      %4555 = vmatprep.subr.bf16.mxu0 0
      %4556 = vmatpush2.bf16.msra.mxu0 0
      %4557 = vmatprep.subr.bf16.mxu0 0
      %4558 = vmatpush2.bf16.msra.mxu0 0
      %4559 = vmatprep.subr.bf16.mxu0 0
      %4560 = vmatpush2.bf16.msra.mxu0 0
      %4561 = vmatprep.subr.bf16.mxu0 0
      %4562 = vmatpush2.bf16.msra.mxu0 0
      %4563 = vmatprep.mubr.bf16.mxu0 0
      %4564 = vmatmul.mubr.bf16.gmra.mxu0 %v4523
      %v4565 = vpop.f32.mrf.mxu0
      %v4566 = vadd.f32 0.0, %v4565
      %v4567 = vpop.f32.mrf.mxu0
      %v4568 = vadd.f32 0.0, %v4567
      %v4569 = vpop.f32.mrf.mxu0
      %v4570 = vpop.f32.mrf.mxu0
      %4571 = vdwg.mxu0
      %s4572 = scalar_lea.vmem %s17, 16
      %v4573 = vld [vmem:[%s4572] sm:$0x3]
      %v4575 = vlaneseq
      %v4576 = vshrl.u32 %v4575, 7
      %v4577 = vsub.s32 0, %v4576
      %v4578 = vrot.slane %v4573, %v4577
      %v4579 = vlaneseq
      %v4580 = vshrl.u32 %v4579, 7
      %v4581 = vsub.s32 1, %v4580
      %v4582 = vrot.slane %v4573, %v4581
      %v4585 = vmul.f32 %v4566, %v4578
      %v4586 = vmul.f32 %v4568, %v4582
      %v4587 = vadd.f32 %v4509, %v4585
      %v4588 = vadd.f32 %v4510, %v4586
      %4590 = vset.pattern.permute.xlu0 0
      %4591 = vperm.xlu0 %4590, %v3712
      %v4592 = vpop.permute.xlu0 %4591
      %v4594 = vadd.f32 %v4587, %v4592
      %v4595 = vadd.f32 %v4588, %v4592
      %4597 = vset.pattern.permute.xlu0 0
      %4598 = vperm.xlu0 %4597, %v3721
      %v4599 = vpop.permute.xlu0 %4598
      %v4601 = vmul.f32 %v4594, %v4599
      %v4602 = vmul.f32 %v4595, %v4599
      %4604 = vset.pattern.permute.xlu0 0
      %4605 = vperm.xlu0 %4604, %v3722
      %v4606 = vpop.permute.xlu0 %4605
      %v4608 = vadd.f32 %v4601, %v4606
      %v4609 = vadd.f32 %v4602, %v4606
      %v4610 = vmax.f32 %v4608, 0.0
      %v4611 = vmax.f32 %v4609, 0.0
      %4612 = vrot.lane.b32.xlu0 %v4610, 17
      %v4613 = vpop.permute.xlu0 %4612
      %4614 = vrot.lane.b32.xlu0 %v4611, 17
      %v4615 = vpop.permute.xlu0 %4614
      %v4616 = vsel %vm3913, %v4613, %v4615
      %v4617 = vsel %vm3913, %v4615, %v4613
      %v4618 = vld [vmem:[%s14] sm:$0x3]
      %v4619 = vpack.c.bf16 %v4617, %v4617
      %v4620 = vpack.c.bf16 %v4616, %v4616
      %v4622 = vsel %vm3919, %v4618, 0
      %v4625 = vsel %vm3923, %v4619, 0
      %v4628 = vsel %vm3923, %v4620, 0
      %4630 = vmatprep.subr.bf16.mxu0 0
      %4631 = vmatpush1.bf16.msra.mxu0 0
      %4632 = vmatprep.subr.bf16.mxu0 0
      %4633 = vmatpush1.bf16.msra.mxu0 0
      %4634 = vmatprep.subr.bf16.mxu0 0
      %4635 = vmatpush1.bf16.msra.mxu0 0
      %4636 = vmatprep.subr.bf16.mxu0 0
      %4637 = vmatpush1.bf16.msra.mxu0 0
      %4638 = vmatprep.subr.bf16.mxu0 0
      %4639 = vmatpush1.bf16.msra.mxu0 0
      %4640 = vmatprep.subr.bf16.mxu0 0
      %4641 = vmatpush1.bf16.msra.mxu0 0
      %4642 = vmatprep.subr.bf16.mxu0 0
      %4643 = vmatpush1.bf16.msra.mxu0 0
      %4644 = vmatprep.subr.bf16.mxu0 %v4628
      %4645 = vmatpush1.bf16.msra.mxu0 %v4625
      %4646 = vmatprep.subr.bf16.mxu0 0
      %4647 = vmatpush2.bf16.msra.mxu0 0
      %4648 = vmatprep.subr.bf16.mxu0 0
      %4649 = vmatpush2.bf16.msra.mxu0 0
      %4650 = vmatprep.subr.bf16.mxu0 0
      %4651 = vmatpush2.bf16.msra.mxu0 0
      %4652 = vmatprep.subr.bf16.mxu0 0
      %4653 = vmatpush2.bf16.msra.mxu0 0
      %4654 = vmatprep.subr.bf16.mxu0 0
      %4655 = vmatpush2.bf16.msra.mxu0 0
      %4656 = vmatprep.subr.bf16.mxu0 0
      %4657 = vmatpush2.bf16.msra.mxu0 0
      %4658 = vmatprep.subr.bf16.mxu0 0
      %4659 = vmatpush2.bf16.msra.mxu0 0
      %4660 = vmatprep.subr.bf16.mxu0 0
      %4661 = vmatpush2.bf16.msra.mxu0 0
      %4662 = vmatprep.mubr.bf16.mxu0 0
      %4663 = vmatmul.mubr.bf16.gmra.mxu0 %v4622
      %v4664 = vpop.f32.mrf.mxu0
      %v4665 = vadd.f32 0.0, %v4664
      %v4666 = vpop.f32.mrf.mxu0
      %v4667 = vadd.f32 0.0, %v4666
      %v4668 = vpop.f32.mrf.mxu0
      %v4669 = vpop.f32.mrf.mxu0
      %4670 = vdwg.mxu0
      %v4671 = vmul.f32 %v4665, %v3976
      %v4672 = vmul.f32 %v4667, %v3980
      %v4673 = vadd.f32 %v4671, 0.0
      %v4674 = vadd.f32 %v4672, 0.0
      %4675 = vrot.lane.b32.xlu0 %v4610, 16
      %v4676 = vpop.permute.xlu0 %4675
      %4677 = vrot.lane.b32.xlu0 %v4611, 16
      %v4678 = vpop.permute.xlu0 %4677
      %v4679 = vsel %vm3991, %v4676, %v4678
      %v4680 = vsel %vm3991, %v4678, %v4676
      %s4681 = scalar_lea.vmem %s14, 2
      %v4682 = vld [vmem:[%s4681] sm:$0x3]
      %v4683 = vpack.c.bf16 %v4680, %v4680
      %v4684 = vpack.c.bf16 %v4679, %v4679
      %v4686 = vsel %vm3919, %v4682, 0
      %v4689 = vsel %vm3923, %v4683, 0
      %v4692 = vsel %vm3923, %v4684, 0
      %4694 = vmatprep.subr.bf16.mxu0 0
      %4695 = vmatpush1.bf16.msra.mxu0 0
      %4696 = vmatprep.subr.bf16.mxu0 0
      %4697 = vmatpush1.bf16.msra.mxu0 0
      %4698 = vmatprep.subr.bf16.mxu0 0
      %4699 = vmatpush1.bf16.msra.mxu0 0
      %4700 = vmatprep.subr.bf16.mxu0 0
      %4701 = vmatpush1.bf16.msra.mxu0 0
      %4702 = vmatprep.subr.bf16.mxu0 0
      %4703 = vmatpush1.bf16.msra.mxu0 0
      %4704 = vmatprep.subr.bf16.mxu0 0
      %4705 = vmatpush1.bf16.msra.mxu0 0
      %4706 = vmatprep.subr.bf16.mxu0 0
      %4707 = vmatpush1.bf16.msra.mxu0 0
      %4708 = vmatprep.subr.bf16.mxu0 %v4692
      %4709 = vmatpush1.bf16.msra.mxu0 %v4689
      %4710 = vmatprep.subr.bf16.mxu0 0
      %4711 = vmatpush2.bf16.msra.mxu0 0
      %4712 = vmatprep.subr.bf16.mxu0 0
      %4713 = vmatpush2.bf16.msra.mxu0 0
      %4714 = vmatprep.subr.bf16.mxu0 0
      %4715 = vmatpush2.bf16.msra.mxu0 0
      %4716 = vmatprep.subr.bf16.mxu0 0
      %4717 = vmatpush2.bf16.msra.mxu0 0
      %4718 = vmatprep.subr.bf16.mxu0 0
      %4719 = vmatpush2.bf16.msra.mxu0 0
      %4720 = vmatprep.subr.bf16.mxu0 0
      %4721 = vmatpush2.bf16.msra.mxu0 0
      %4722 = vmatprep.subr.bf16.mxu0 0
      %4723 = vmatpush2.bf16.msra.mxu0 0
      %4724 = vmatprep.subr.bf16.mxu0 0
      %4725 = vmatpush2.bf16.msra.mxu0 0
      %4726 = vmatprep.mubr.bf16.mxu0 0
      %4727 = vmatmul.mubr.bf16.gmra.mxu0 %v4686
      %v4728 = vpop.f32.mrf.mxu0
      %v4729 = vadd.f32 0.0, %v4728
      %v4730 = vpop.f32.mrf.mxu0
      %v4731 = vadd.f32 0.0, %v4730
      %v4732 = vpop.f32.mrf.mxu0
      %v4733 = vpop.f32.mrf.mxu0
      %4734 = vdwg.mxu0
      %v4735 = vmul.f32 %v4729, %v4054
      %v4736 = vmul.f32 %v4731, %v4058
      %v4737 = vadd.f32 %v4673, %v4735
      %v4738 = vadd.f32 %v4674, %v4736
      %4739 = vrot.lane.b32.xlu0 %v4610, 15
      %v4740 = vpop.permute.xlu0 %4739
      %4741 = vrot.lane.b32.xlu0 %v4611, 15
      %v4742 = vpop.permute.xlu0 %4741
      %v4743 = vsel %vm4069, %v4740, %v4742
      %v4744 = vsel %vm4069, %v4742, %v4740
      %s4745 = scalar_lea.vmem %s14, 4
      %v4746 = vld [vmem:[%s4745] sm:$0x3]
      %v4747 = vpack.c.bf16 %v4744, %v4744
      %v4748 = vpack.c.bf16 %v4743, %v4743
      %v4750 = vsel %vm3919, %v4746, 0
      %v4753 = vsel %vm3923, %v4747, 0
      %v4756 = vsel %vm3923, %v4748, 0
      %4758 = vmatprep.subr.bf16.mxu0 0
      %4759 = vmatpush1.bf16.msra.mxu0 0
      %4760 = vmatprep.subr.bf16.mxu0 0
      %4761 = vmatpush1.bf16.msra.mxu0 0
      %4762 = vmatprep.subr.bf16.mxu0 0
      %4763 = vmatpush1.bf16.msra.mxu0 0
      %4764 = vmatprep.subr.bf16.mxu0 0
      %4765 = vmatpush1.bf16.msra.mxu0 0
      %4766 = vmatprep.subr.bf16.mxu0 0
      %4767 = vmatpush1.bf16.msra.mxu0 0
      %4768 = vmatprep.subr.bf16.mxu0 0
      %4769 = vmatpush1.bf16.msra.mxu0 0
      %4770 = vmatprep.subr.bf16.mxu0 0
      %4771 = vmatpush1.bf16.msra.mxu0 0
      %4772 = vmatprep.subr.bf16.mxu0 %v4756
      %4773 = vmatpush1.bf16.msra.mxu0 %v4753
      %4774 = vmatprep.subr.bf16.mxu0 0
      %4775 = vmatpush2.bf16.msra.mxu0 0
      %4776 = vmatprep.subr.bf16.mxu0 0
      %4777 = vmatpush2.bf16.msra.mxu0 0
      %4778 = vmatprep.subr.bf16.mxu0 0
      %4779 = vmatpush2.bf16.msra.mxu0 0
      %4780 = vmatprep.subr.bf16.mxu0 0
      %4781 = vmatpush2.bf16.msra.mxu0 0
      %4782 = vmatprep.subr.bf16.mxu0 0
      %4783 = vmatpush2.bf16.msra.mxu0 0
      %4784 = vmatprep.subr.bf16.mxu0 0
      %4785 = vmatpush2.bf16.msra.mxu0 0
      %4786 = vmatprep.subr.bf16.mxu0 0
      %4787 = vmatpush2.bf16.msra.mxu0 0
      %4788 = vmatprep.subr.bf16.mxu0 0
      %4789 = vmatpush2.bf16.msra.mxu0 0
      %4790 = vmatprep.mubr.bf16.mxu0 0
      %4791 = vmatmul.mubr.bf16.gmra.mxu0 %v4750
      %v4792 = vpop.f32.mrf.mxu0
      %v4793 = vadd.f32 0.0, %v4792
      %v4794 = vpop.f32.mrf.mxu0
      %v4795 = vadd.f32 0.0, %v4794
      %v4796 = vpop.f32.mrf.mxu0
      %v4797 = vpop.f32.mrf.mxu0
      %4798 = vdwg.mxu0
      %v4799 = vmul.f32 %v4793, %v4132
      %v4800 = vmul.f32 %v4795, %v4136
      %v4801 = vadd.f32 %v4737, %v4799
      %v4802 = vadd.f32 %v4738, %v4800
      %4803 = vrot.lane.b32.xlu0 %v4610, 1
      %v4804 = vpop.permute.xlu0 %4803
      %4805 = vrot.lane.b32.xlu0 %v4611, 1
      %v4806 = vpop.permute.xlu0 %4805
      %v4807 = vsel %vm4147, %v4804, %v4806
      %v4808 = vsel %vm4147, %v4806, %v4804
      %s4809 = scalar_lea.vmem %s14, 6
      %v4810 = vld [vmem:[%s4809] sm:$0x3]
      %v4811 = vpack.c.bf16 %v4808, %v4808
      %v4812 = vpack.c.bf16 %v4807, %v4807
      %v4814 = vsel %vm3919, %v4810, 0
      %v4817 = vsel %vm3923, %v4811, 0
      %v4820 = vsel %vm3923, %v4812, 0
      %4822 = vmatprep.subr.bf16.mxu0 0
      %4823 = vmatpush1.bf16.msra.mxu0 0
      %4824 = vmatprep.subr.bf16.mxu0 0
      %4825 = vmatpush1.bf16.msra.mxu0 0
      %4826 = vmatprep.subr.bf16.mxu0 0
      %4827 = vmatpush1.bf16.msra.mxu0 0
      %4828 = vmatprep.subr.bf16.mxu0 0
      %4829 = vmatpush1.bf16.msra.mxu0 0
      %4830 = vmatprep.subr.bf16.mxu0 0
      %4831 = vmatpush1.bf16.msra.mxu0 0
      %4832 = vmatprep.subr.bf16.mxu0 0
      %4833 = vmatpush1.bf16.msra.mxu0 0
      %4834 = vmatprep.subr.bf16.mxu0 0
      %4835 = vmatpush1.bf16.msra.mxu0 0
      %4836 = vmatprep.subr.bf16.mxu0 %v4820
      %4837 = vmatpush1.bf16.msra.mxu0 %v4817
      %4838 = vmatprep.subr.bf16.mxu0 0
      %4839 = vmatpush2.bf16.msra.mxu0 0
      %4840 = vmatprep.subr.bf16.mxu0 0
      %4841 = vmatpush2.bf16.msra.mxu0 0
      %4842 = vmatprep.subr.bf16.mxu0 0
      %4843 = vmatpush2.bf16.msra.mxu0 0
      %4844 = vmatprep.subr.bf16.mxu0 0
      %4845 = vmatpush2.bf16.msra.mxu0 0
      %4846 = vmatprep.subr.bf16.mxu0 0
      %4847 = vmatpush2.bf16.msra.mxu0 0
      %4848 = vmatprep.subr.bf16.mxu0 0
      %4849 = vmatpush2.bf16.msra.mxu0 0
      %4850 = vmatprep.subr.bf16.mxu0 0
      %4851 = vmatpush2.bf16.msra.mxu0 0
      %4852 = vmatprep.subr.bf16.mxu0 0
      %4853 = vmatpush2.bf16.msra.mxu0 0
      %4854 = vmatprep.mubr.bf16.mxu0 0
      %4855 = vmatmul.mubr.bf16.gmra.mxu0 %v4814
      %v4856 = vpop.f32.mrf.mxu0
      %v4857 = vadd.f32 0.0, %v4856
      %v4858 = vpop.f32.mrf.mxu0
      %v4859 = vadd.f32 0.0, %v4858
      %v4860 = vpop.f32.mrf.mxu0
      %v4861 = vpop.f32.mrf.mxu0
      %4862 = vdwg.mxu0
      %v4863 = vmul.f32 %v4857, %v4210
      %v4864 = vmul.f32 %v4859, %v4214
      %v4865 = vadd.f32 %v4801, %v4863
      %v4866 = vadd.f32 %v4802, %v4864
      %s4867 = scalar_lea.vmem %s14, 8
      %v4868 = vld [vmem:[%s4867] sm:$0x3]
      %v4869 = vpack.c.bf16 %v4610, %v4610
      %v4870 = vpack.c.bf16 %v4611, %v4611
      %v4872 = vsel %vm3919, %v4868, 0
      %v4875 = vsel %vm3923, %v4869, 0
      %v4878 = vsel %vm3923, %v4870, 0
      %4880 = vmatprep.subr.bf16.mxu0 0
      %4881 = vmatpush1.bf16.msra.mxu0 0
      %4882 = vmatprep.subr.bf16.mxu0 0
      %4883 = vmatpush1.bf16.msra.mxu0 0
      %4884 = vmatprep.subr.bf16.mxu0 0
      %4885 = vmatpush1.bf16.msra.mxu0 0
      %4886 = vmatprep.subr.bf16.mxu0 0
      %4887 = vmatpush1.bf16.msra.mxu0 0
      %4888 = vmatprep.subr.bf16.mxu0 0
      %4889 = vmatpush1.bf16.msra.mxu0 0
      %4890 = vmatprep.subr.bf16.mxu0 0
      %4891 = vmatpush1.bf16.msra.mxu0 0
      %4892 = vmatprep.subr.bf16.mxu0 0
      %4893 = vmatpush1.bf16.msra.mxu0 0
      %4894 = vmatprep.subr.bf16.mxu0 %v4878
      %4895 = vmatpush1.bf16.msra.mxu0 %v4875
      %4896 = vmatprep.subr.bf16.mxu0 0
      %4897 = vmatpush2.bf16.msra.mxu0 0
      %4898 = vmatprep.subr.bf16.mxu0 0
      %4899 = vmatpush2.bf16.msra.mxu0 0
      %4900 = vmatprep.subr.bf16.mxu0 0
      %4901 = vmatpush2.bf16.msra.mxu0 0
      %4902 = vmatprep.subr.bf16.mxu0 0
      %4903 = vmatpush2.bf16.msra.mxu0 0
      %4904 = vmatprep.subr.bf16.mxu0 0
      %4905 = vmatpush2.bf16.msra.mxu0 0
      %4906 = vmatprep.subr.bf16.mxu0 0
      %4907 = vmatpush2.bf16.msra.mxu0 0
      %4908 = vmatprep.subr.bf16.mxu0 0
      %4909 = vmatpush2.bf16.msra.mxu0 0
      %4910 = vmatprep.subr.bf16.mxu0 0
      %4911 = vmatpush2.bf16.msra.mxu0 0
      %4912 = vmatprep.mubr.bf16.mxu0 0
      %4913 = vmatmul.mubr.bf16.gmra.mxu0 %v4872
      %v4914 = vpop.f32.mrf.mxu0
      %v4915 = vadd.f32 0.0, %v4914
      %v4916 = vpop.f32.mrf.mxu0
      %v4917 = vadd.f32 0.0, %v4916
      %v4918 = vpop.f32.mrf.mxu0
      %v4919 = vpop.f32.mrf.mxu0
      %4920 = vdwg.mxu0
      %v4921 = vadd.f32 %v4865, %v4915
      %v4922 = vadd.f32 %v4866, %v4917
      %4923 = vrot.lane.b32.xlu0 %v4610, 127
      %v4924 = vpop.permute.xlu0 %4923
      %4925 = vrot.lane.b32.xlu0 %v4611, 127
      %v4926 = vpop.permute.xlu0 %4925
      %v4927 = vsel %vm4281, %v4924, %v4926
      %v4928 = vsel %vm4281, %v4926, %v4924
      %s4929 = scalar_lea.vmem %s14, 10
      %v4930 = vld [vmem:[%s4929] sm:$0x3]
      %v4931 = vpack.c.bf16 %v4927, %v4927
      %v4932 = vpack.c.bf16 %v4928, %v4928
      %v4934 = vsel %vm3919, %v4930, 0
      %v4937 = vsel %vm3923, %v4931, 0
      %v4940 = vsel %vm3923, %v4932, 0
      %4942 = vmatprep.subr.bf16.mxu0 0
      %4943 = vmatpush1.bf16.msra.mxu0 0
      %4944 = vmatprep.subr.bf16.mxu0 0
      %4945 = vmatpush1.bf16.msra.mxu0 0
      %4946 = vmatprep.subr.bf16.mxu0 0
      %4947 = vmatpush1.bf16.msra.mxu0 0
      %4948 = vmatprep.subr.bf16.mxu0 0
      %4949 = vmatpush1.bf16.msra.mxu0 0
      %4950 = vmatprep.subr.bf16.mxu0 0
      %4951 = vmatpush1.bf16.msra.mxu0 0
      %4952 = vmatprep.subr.bf16.mxu0 0
      %4953 = vmatpush1.bf16.msra.mxu0 0
      %4954 = vmatprep.subr.bf16.mxu0 0
      %4955 = vmatpush1.bf16.msra.mxu0 0
      %4956 = vmatprep.subr.bf16.mxu0 %v4940
      %4957 = vmatpush1.bf16.msra.mxu0 %v4937
      %4958 = vmatprep.subr.bf16.mxu0 0
      %4959 = vmatpush2.bf16.msra.mxu0 0
      %4960 = vmatprep.subr.bf16.mxu0 0
      %4961 = vmatpush2.bf16.msra.mxu0 0
      %4962 = vmatprep.subr.bf16.mxu0 0
      %4963 = vmatpush2.bf16.msra.mxu0 0
      %4964 = vmatprep.subr.bf16.mxu0 0
      %4965 = vmatpush2.bf16.msra.mxu0 0
      %4966 = vmatprep.subr.bf16.mxu0 0
      %4967 = vmatpush2.bf16.msra.mxu0 0
      %4968 = vmatprep.subr.bf16.mxu0 0
      %4969 = vmatpush2.bf16.msra.mxu0 0
      %4970 = vmatprep.subr.bf16.mxu0 0
      %4971 = vmatpush2.bf16.msra.mxu0 0
      %4972 = vmatprep.subr.bf16.mxu0 0
      %4973 = vmatpush2.bf16.msra.mxu0 0
      %4974 = vmatprep.mubr.bf16.mxu0 0
      %4975 = vmatmul.mubr.bf16.gmra.mxu0 %v4934
      %v4976 = vpop.f32.mrf.mxu0
      %v4977 = vadd.f32 0.0, %v4976
      %v4978 = vpop.f32.mrf.mxu0
      %v4979 = vadd.f32 0.0, %v4978
      %v4980 = vpop.f32.mrf.mxu0
      %v4981 = vpop.f32.mrf.mxu0
      %4982 = vdwg.mxu0
      %v4983 = vmul.f32 %v4977, %v4344
      %v4984 = vmul.f32 %v4979, %v4348
      %v4985 = vadd.f32 %v4921, %v4983
      %v4986 = vadd.f32 %v4922, %v4984
      %4987 = vrot.lane.b32.xlu0 %v4610, 113
      %v4988 = vpop.permute.xlu0 %4987
      %4989 = vrot.lane.b32.xlu0 %v4611, 113
      %v4990 = vpop.permute.xlu0 %4989
      %v4991 = vsel %vm4359, %v4988, %v4990
      %v4992 = vsel %vm4359, %v4990, %v4988
      %s4993 = scalar_lea.vmem %s14, 12
      %v4994 = vld [vmem:[%s4993] sm:$0x3]
      %v4995 = vpack.c.bf16 %v4991, %v4991
      %v4996 = vpack.c.bf16 %v4992, %v4992
      %v4998 = vsel %vm3919, %v4994, 0
      %v5001 = vsel %vm3923, %v4995, 0
      %v5004 = vsel %vm3923, %v4996, 0
      %5006 = vmatprep.subr.bf16.mxu0 0
      %5007 = vmatpush1.bf16.msra.mxu0 0
      %5008 = vmatprep.subr.bf16.mxu0 0
      %5009 = vmatpush1.bf16.msra.mxu0 0
      %5010 = vmatprep.subr.bf16.mxu0 0
      %5011 = vmatpush1.bf16.msra.mxu0 0
      %5012 = vmatprep.subr.bf16.mxu0 0
      %5013 = vmatpush1.bf16.msra.mxu0 0
      %5014 = vmatprep.subr.bf16.mxu0 0
      %5015 = vmatpush1.bf16.msra.mxu0 0
      %5016 = vmatprep.subr.bf16.mxu0 0
      %5017 = vmatpush1.bf16.msra.mxu0 0
      %5018 = vmatprep.subr.bf16.mxu0 0
      %5019 = vmatpush1.bf16.msra.mxu0 0
      %5020 = vmatprep.subr.bf16.mxu0 %v5004
      %5021 = vmatpush1.bf16.msra.mxu0 %v5001
      %5022 = vmatprep.subr.bf16.mxu0 0
      %5023 = vmatpush2.bf16.msra.mxu0 0
      %5024 = vmatprep.subr.bf16.mxu0 0
      %5025 = vmatpush2.bf16.msra.mxu0 0
      %5026 = vmatprep.subr.bf16.mxu0 0
      %5027 = vmatpush2.bf16.msra.mxu0 0
      %5028 = vmatprep.subr.bf16.mxu0 0
      %5029 = vmatpush2.bf16.msra.mxu0 0
      %5030 = vmatprep.subr.bf16.mxu0 0
      %5031 = vmatpush2.bf16.msra.mxu0 0
      %5032 = vmatprep.subr.bf16.mxu0 0
      %5033 = vmatpush2.bf16.msra.mxu0 0
      %5034 = vmatprep.subr.bf16.mxu0 0
      %5035 = vmatpush2.bf16.msra.mxu0 0
      %5036 = vmatprep.subr.bf16.mxu0 0
      %5037 = vmatpush2.bf16.msra.mxu0 0
      %5038 = vmatprep.mubr.bf16.mxu0 0
      %5039 = vmatmul.mubr.bf16.gmra.mxu0 %v4998
      %v5040 = vpop.f32.mrf.mxu0
      %v5041 = vadd.f32 0.0, %v5040
      %v5042 = vpop.f32.mrf.mxu0
      %v5043 = vadd.f32 0.0, %v5042
      %v5044 = vpop.f32.mrf.mxu0
      %v5045 = vpop.f32.mrf.mxu0
      %5046 = vdwg.mxu0
      %v5047 = vmul.f32 %v5041, %v4422
      %v5048 = vmul.f32 %v5043, %v4426
      %v5049 = vadd.f32 %v4985, %v5047
      %v5050 = vadd.f32 %v4986, %v5048
      %5051 = vrot.lane.b32.xlu0 %v4610, 112
      %v5052 = vpop.permute.xlu0 %5051
      %5053 = vrot.lane.b32.xlu0 %v4611, 112
      %v5054 = vpop.permute.xlu0 %5053
      %v5055 = vsel %vm4437, %v5052, %v5054
      %v5056 = vsel %vm4437, %v5054, %v5052
      %s5057 = scalar_lea.vmem %s14, 14
      %v5058 = vld [vmem:[%s5057] sm:$0x3]
      %v5059 = vpack.c.bf16 %v5055, %v5055
      %v5060 = vpack.c.bf16 %v5056, %v5056
      %v5062 = vsel %vm3919, %v5058, 0
      %v5065 = vsel %vm3923, %v5059, 0
      %v5068 = vsel %vm3923, %v5060, 0
      %5070 = vmatprep.subr.bf16.mxu0 0
      %5071 = vmatpush1.bf16.msra.mxu0 0
      %5072 = vmatprep.subr.bf16.mxu0 0
      %5073 = vmatpush1.bf16.msra.mxu0 0
      %5074 = vmatprep.subr.bf16.mxu0 0
      %5075 = vmatpush1.bf16.msra.mxu0 0
      %5076 = vmatprep.subr.bf16.mxu0 0
      %5077 = vmatpush1.bf16.msra.mxu0 0
      %5078 = vmatprep.subr.bf16.mxu0 0
      %5079 = vmatpush1.bf16.msra.mxu0 0
      %5080 = vmatprep.subr.bf16.mxu0 0
      %5081 = vmatpush1.bf16.msra.mxu0 0
      %5082 = vmatprep.subr.bf16.mxu0 0
      %5083 = vmatpush1.bf16.msra.mxu0 0
      %5084 = vmatprep.subr.bf16.mxu0 %v5068
      %5085 = vmatpush1.bf16.msra.mxu0 %v5065
      %5086 = vmatprep.subr.bf16.mxu0 0
      %5087 = vmatpush2.bf16.msra.mxu0 0
      %5088 = vmatprep.subr.bf16.mxu0 0
      %5089 = vmatpush2.bf16.msra.mxu0 0
      %5090 = vmatprep.subr.bf16.mxu0 0
      %5091 = vmatpush2.bf16.msra.mxu0 0
      %5092 = vmatprep.subr.bf16.mxu0 0
      %5093 = vmatpush2.bf16.msra.mxu0 0
      %5094 = vmatprep.subr.bf16.mxu0 0
      %5095 = vmatpush2.bf16.msra.mxu0 0
      %5096 = vmatprep.subr.bf16.mxu0 0
      %5097 = vmatpush2.bf16.msra.mxu0 0
      %5098 = vmatprep.subr.bf16.mxu0 0
      %5099 = vmatpush2.bf16.msra.mxu0 0
      %5100 = vmatprep.subr.bf16.mxu0 0
      %5101 = vmatpush2.bf16.msra.mxu0 0
      %5102 = vmatprep.mubr.bf16.mxu0 0
      %5103 = vmatmul.mubr.bf16.gmra.mxu0 %v5062
      %v5104 = vpop.f32.mrf.mxu0
      %v5105 = vadd.f32 0.0, %v5104
      %v5106 = vpop.f32.mrf.mxu0
      %v5107 = vadd.f32 0.0, %v5106
      %v5108 = vpop.f32.mrf.mxu0
      %v5109 = vpop.f32.mrf.mxu0
      %5110 = vdwg.mxu0
      %v5111 = vmul.f32 %v5105, %v4500
      %v5112 = vmul.f32 %v5107, %v4504
      %v5113 = vadd.f32 %v5049, %v5111
      %v5114 = vadd.f32 %v5050, %v5112
      %5115 = vrot.lane.b32.xlu0 %v4610, 111
      %v5116 = vpop.permute.xlu0 %5115
      %5117 = vrot.lane.b32.xlu0 %v4611, 111
      %v5118 = vpop.permute.xlu0 %5117
      %v5119 = vsel %vm4515, %v5116, %v5118
      %v5120 = vsel %vm4515, %v5118, %v5116
      %s5121 = scalar_lea.vmem %s14, 16
      %v5122 = vld [vmem:[%s5121] sm:$0x3]
      %v5123 = vpack.c.bf16 %v5119, %v5119
      %v5124 = vpack.c.bf16 %v5120, %v5120
      %v5126 = vsel %vm3919, %v5122, 0
      %v5129 = vsel %vm3923, %v5123, 0
      %v5132 = vsel %vm3923, %v5124, 0
      %5134 = vmatprep.subr.bf16.mxu0 0
      %5135 = vmatpush1.bf16.msra.mxu0 0
      %5136 = vmatprep.subr.bf16.mxu0 0
      %5137 = vmatpush1.bf16.msra.mxu0 0
      %5138 = vmatprep.subr.bf16.mxu0 0
      %5139 = vmatpush1.bf16.msra.mxu0 0
      %5140 = vmatprep.subr.bf16.mxu0 0
      %5141 = vmatpush1.bf16.msra.mxu0 0
      %5142 = vmatprep.subr.bf16.mxu0 0
      %5143 = vmatpush1.bf16.msra.mxu0 0
      %5144 = vmatprep.subr.bf16.mxu0 0
      %5145 = vmatpush1.bf16.msra.mxu0 0
      %5146 = vmatprep.subr.bf16.mxu0 0
      %5147 = vmatpush1.bf16.msra.mxu0 0
      %5148 = vmatprep.subr.bf16.mxu0 %v5132
      %5149 = vmatpush1.bf16.msra.mxu0 %v5129
      %5150 = vmatprep.subr.bf16.mxu0 0
      %5151 = vmatpush2.bf16.msra.mxu0 0
      %5152 = vmatprep.subr.bf16.mxu0 0
      %5153 = vmatpush2.bf16.msra.mxu0 0
      %5154 = vmatprep.subr.bf16.mxu0 0
      %5155 = vmatpush2.bf16.msra.mxu0 0
      %5156 = vmatprep.subr.bf16.mxu0 0
      %5157 = vmatpush2.bf16.msra.mxu0 0
      %5158 = vmatprep.subr.bf16.mxu0 0
      %5159 = vmatpush2.bf16.msra.mxu0 0
      %5160 = vmatprep.subr.bf16.mxu0 0
      %5161 = vmatpush2.bf16.msra.mxu0 0
      %5162 = vmatprep.subr.bf16.mxu0 0
      %5163 = vmatpush2.bf16.msra.mxu0 0
      %5164 = vmatprep.subr.bf16.mxu0 0
      %5165 = vmatpush2.bf16.msra.mxu0 0
      %5166 = vmatprep.mubr.bf16.mxu0 0
      %5167 = vmatmul.mubr.bf16.gmra.mxu0 %v5126
      %v5168 = vpop.f32.mrf.mxu0
      %v5169 = vadd.f32 0.0, %v5168
      %v5170 = vpop.f32.mrf.mxu0
      %v5171 = vadd.f32 0.0, %v5170
      %v5172 = vpop.f32.mrf.mxu0
      %v5173 = vpop.f32.mrf.mxu0
      %5174 = vdwg.mxu0
      %v5175 = vmul.f32 %v5169, %v4578
      %v5176 = vmul.f32 %v5171, %v4582
      %v5177 = vadd.f32 %v5113, %v5175
      %v5178 = vadd.f32 %v5114, %v5176
      %5180 = vset.pattern.permute.xlu0 0
      %5181 = vperm.xlu0 %5180, %v3713
      %v5182 = vpop.permute.xlu0 %5181
      %v5184 = vadd.f32 %v5177, %v5182
      %v5185 = vadd.f32 %v5178, %v5182
      %5187 = vset.pattern.permute.xlu0 0
      %5188 = vperm.xlu0 %5187, %v3723
      %v5189 = vpop.permute.xlu0 %5188
      %v5191 = vmul.f32 %v5184, %v5189
      %v5192 = vmul.f32 %v5185, %v5189
      %5194 = vset.pattern.permute.xlu0 0
      %5195 = vperm.xlu0 %5194, %v3724
      %v5196 = vpop.permute.xlu0 %5195
      %v5198 = vadd.f32 %v5191, %v5196
      %v5199 = vadd.f32 %v5192, %v5196
      %v5200 = vmax.f32 %v5198, 0.0
      %v5201 = vmax.f32 %v5199, 0.0
      %v5202 = vld [vmem:[%s15] sm:$0xf]
      %v5203 = vpack.c.bf16 %v5200, %v5200
      %v5204 = vpack.c.bf16 %v5201, %v5201
      %5206 = vset.pattern.permute.xlu0 0
      %5207 = vperm.xlu0 %5206, %v3714
      %v5208 = vpop.permute.xlu0 %5207
      %v5211 = vsel %vm3919, %v5202, 0
      %v5214 = vsel %vm3923, %v5203, 0
      %v5217 = vsel %vm3923, %v5204, 0
      %5219 = vmatprep.subr.bf16.mxu0 0
      %5220 = vmatpush1.bf16.msra.mxu0 0
      %5221 = vmatprep.subr.bf16.mxu0 0
      %5222 = vmatpush1.bf16.msra.mxu0 0
      %5223 = vmatprep.subr.bf16.mxu0 0
      %5224 = vmatpush1.bf16.msra.mxu0 0
      %5225 = vmatprep.subr.bf16.mxu0 0
      %5226 = vmatpush1.bf16.msra.mxu0 0
      %5227 = vmatprep.subr.bf16.mxu0 0
      %5228 = vmatpush1.bf16.msra.mxu0 0
      %5229 = vmatprep.subr.bf16.mxu0 0
      %5230 = vmatpush1.bf16.msra.mxu0 0
      %5231 = vmatprep.subr.bf16.mxu0 0
      %5232 = vmatpush1.bf16.msra.mxu0 0
      %5233 = vmatprep.subr.bf16.mxu0 %v5217
      %5234 = vmatpush1.bf16.msra.mxu0 %v5214
      %5235 = vmatprep.subr.bf16.mxu0 0
      %5236 = vmatpush2.bf16.msra.mxu0 0
      %5237 = vmatprep.subr.bf16.mxu0 0
      %5238 = vmatpush2.bf16.msra.mxu0 0
      %5239 = vmatprep.subr.bf16.mxu0 0
      %5240 = vmatpush2.bf16.msra.mxu0 0
      %5241 = vmatprep.subr.bf16.mxu0 0
      %5242 = vmatpush2.bf16.msra.mxu0 0
      %5243 = vmatprep.subr.bf16.mxu0 0
      %5244 = vmatpush2.bf16.msra.mxu0 0
      %5245 = vmatprep.subr.bf16.mxu0 0
      %5246 = vmatpush2.bf16.msra.mxu0 0
      %5247 = vmatprep.subr.bf16.mxu0 0
      %5248 = vmatpush2.bf16.msra.mxu0 0
      %5249 = vmatprep.subr.bf16.mxu0 0
      %5250 = vmatpush2.bf16.msra.mxu0 0
      %5251 = vmatprep.mubr.bf16.mxu0 0
      %5252 = vmatmul.mubr.bf16.gmra.mxu0 %v5211
      %v5253 = vpop.f32.mrf.mxu0
      %v5254 = vadd.f32 %v5208, %v5253
      %v5255 = vpop.f32.mrf.mxu0
      %v5256 = vadd.f32 %v5208, %v5255
      %v5257 = vpop.f32.mrf.mxu0
      %v5258 = vpop.f32.mrf.mxu0
      %5259 = vdwg.mxu0
      %v5260 = vpack.c.bf16 %v3709, %v3709
      %v5262 = vsel %vm955, %v5260, 0
      %5264 = vmatprep.subr.bf16.mxu0 0
      %5265 = vmatpush1.bf16.msra.mxu0 0
      %5266 = vmatprep.subr.bf16.mxu0 0
      %5267 = vmatpush1.bf16.msra.mxu0 0
      %5268 = vmatprep.subr.bf16.mxu0 0
      %5269 = vmatpush1.bf16.msra.mxu0 0
      %5270 = vmatprep.subr.bf16.mxu0 0
      %5271 = vmatpush1.bf16.msra.mxu0 0
      %5272 = vmatprep.subr.bf16.mxu0 %v3854
      %5273 = vmatpush1.bf16.msra.mxu0 %v3853
      %5274 = vmatprep.subr.bf16.mxu0 %v3852
      %5275 = vmatpush1.bf16.msra.mxu0 %v3851
      %5276 = vmatprep.subr.bf16.mxu0 %v3850
      %5277 = vmatpush1.bf16.msra.mxu0 %v3849
      %5278 = vmatprep.subr.bf16.mxu0 %v3848
      %5279 = vmatpush1.bf16.msra.mxu0 %v3847
      %5280 = vmatprep.subr.bf16.mxu0 0
      %5281 = vmatpush2.bf16.msra.mxu0 0
      %5282 = vmatprep.subr.bf16.mxu0 0
      %5283 = vmatpush2.bf16.msra.mxu0 0
      %5284 = vmatprep.subr.bf16.mxu0 0
      %5285 = vmatpush2.bf16.msra.mxu0 0
      %5286 = vmatprep.subr.bf16.mxu0 0
      %5287 = vmatpush2.bf16.msra.mxu0 0
      %5288 = vmatprep.subr.bf16.mxu0 0
      %5289 = vmatpush2.bf16.msra.mxu0 0
      %5290 = vmatprep.subr.bf16.mxu0 0
      %5291 = vmatpush2.bf16.msra.mxu0 0
      %5292 = vmatprep.subr.bf16.mxu0 0
      %5293 = vmatpush2.bf16.msra.mxu0 0
      %5294 = vmatprep.subr.bf16.mxu0 0
      %5295 = vmatpush2.bf16.msra.mxu0 0
      %5296 = vmatprep.mubr.bf16.mxu0 0
      %5297 = vmatmul.mubr.bf16.gmra.mxu0 %v5262
      %v5298 = vpop.f32.mrf.mxu0
      %v5299 = vadd.f32 0.0, %v5298
      %v5300 = vpop.f32.mrf.mxu0
      %v5301 = vadd.f32 0.0, %v5300
      %v5302 = vpop.f32.mrf.mxu0
      %v5303 = vpop.f32.mrf.mxu0
      %5304 = vdwg.mxu0
      %v5305 = vadd.f32 %v5254, %v5299
      %v5306 = vadd.f32 %v5256, %v5301
      %v5307 = vld [vmem:[%s2 + $0x48] sm:$0xff]
      %v5308 = vld [vmem:[%s2 + $0x50] sm:$0xff]
      %5310 = vset.pattern.permute.xlu0 0
      %5311 = vperm.xlu0 %5310, %v5307
      %v5312 = vpop.permute.xlu0 %5311
      %v5314 = vmul.f32 %v5305, %v5312
      %v5315 = vmul.f32 %v5306, %v5312
      %5317 = vset.pattern.permute.xlu0 0
      %5318 = vperm.xlu0 %5317, %v5308
      %v5319 = vpop.permute.xlu0 %5318
      %v5321 = vadd.f32 %v5314, %v5319
      %v5322 = vadd.f32 %v5315, %v5319
      %v5323 = vmax.f32 %v5321, 0.0
      %v5324 = vmax.f32 %v5322, 0.0
      %v5325 = vld [vmem:[%s2 + $0x58] sm:$0x7]
      %5326 = vrot.lane.b32.xlu0 %v5323, 17
      %v5327 = vpop.permute.xlu0 %5326
      %5328 = vrot.lane.b32.xlu0 %v5324, 17
      %v5329 = vpop.permute.xlu0 %5328
      %v5330 = vsel %vm3913, %v5327, %v5329
      %v5331 = vsel %vm3913, %v5329, %v5327
      %v5332 = vld [vmem:[%s18] sm:$0x3]
      %v5333 = vpack.c.bf16 %v5331, %v5331
      %v5334 = vpack.c.bf16 %v5330, %v5330
      %v5336 = vsel %vm819, %v5332, 0
      %v5339 = vsel %vm823, %v5333, 0
      %v5342 = vsel %vm823, %v5334, 0
      %5344 = vmatprep.subr.bf16.mxu0 0
      %5345 = vmatpush1.bf16.msra.mxu0 0
      %5346 = vmatprep.subr.bf16.mxu0 0
      %5347 = vmatpush1.bf16.msra.mxu0 0
      %5348 = vmatprep.subr.bf16.mxu0 0
      %5349 = vmatpush1.bf16.msra.mxu0 0
      %5350 = vmatprep.subr.bf16.mxu0 0
      %5351 = vmatpush1.bf16.msra.mxu0 0
      %5352 = vmatprep.subr.bf16.mxu0 0
      %5353 = vmatpush1.bf16.msra.mxu0 0
      %5354 = vmatprep.subr.bf16.mxu0 0
      %5355 = vmatpush1.bf16.msra.mxu0 0
      %5356 = vmatprep.subr.bf16.mxu0 0
      %5357 = vmatpush1.bf16.msra.mxu0 0
      %5358 = vmatprep.subr.bf16.mxu0 %v5342
      %5359 = vmatpush1.bf16.msra.mxu0 %v5339
      %5360 = vmatprep.subr.bf16.mxu0 0
      %5361 = vmatpush2.bf16.msra.mxu0 0
      %5362 = vmatprep.subr.bf16.mxu0 0
      %5363 = vmatpush2.bf16.msra.mxu0 0
      %5364 = vmatprep.subr.bf16.mxu0 0
      %5365 = vmatpush2.bf16.msra.mxu0 0
      %5366 = vmatprep.subr.bf16.mxu0 0
      %5367 = vmatpush2.bf16.msra.mxu0 0
      %5368 = vmatprep.subr.bf16.mxu0 0
      %5369 = vmatpush2.bf16.msra.mxu0 0
      %5370 = vmatprep.subr.bf16.mxu0 0
      %5371 = vmatpush2.bf16.msra.mxu0 0
      %5372 = vmatprep.subr.bf16.mxu0 0
      %5373 = vmatpush2.bf16.msra.mxu0 0
      %5374 = vmatprep.subr.bf16.mxu0 0
      %5375 = vmatpush2.bf16.msra.mxu0 0
      %5376 = vmatprep.mubr.bf16.mxu0 0
      %5377 = vmatmul.mubr.bf16.gmra.mxu0 %v5336
      %v5378 = vpop.f32.mrf.mxu0
      %v5379 = vadd.f32 0.0, %v5378
      %v5380 = vpop.f32.mrf.mxu0
      %v5381 = vadd.f32 0.0, %v5380
      %v5382 = vpop.f32.mrf.mxu0
      %v5383 = vpop.f32.mrf.mxu0
      %5384 = vdwg.mxu0
      %v5385 = vmul.f32 %v5379, %v3976
      %v5386 = vmul.f32 %v5381, %v3980
      %v5387 = vadd.f32 %v5385, 0.0
      %v5388 = vadd.f32 %v5386, 0.0
      %5389 = vrot.lane.b32.xlu0 %v5323, 16
      %v5390 = vpop.permute.xlu0 %5389
      %5391 = vrot.lane.b32.xlu0 %v5324, 16
      %v5392 = vpop.permute.xlu0 %5391
      %v5393 = vsel %vm3991, %v5390, %v5392
      %v5394 = vsel %vm3991, %v5392, %v5390
      %s5395 = scalar_lea.vmem %s18, 2
      %v5396 = vld [vmem:[%s5395] sm:$0x3]
      %v5397 = vpack.c.bf16 %v5394, %v5394
      %v5398 = vpack.c.bf16 %v5393, %v5393
      %v5400 = vsel %vm819, %v5396, 0
      %v5403 = vsel %vm823, %v5397, 0
      %v5406 = vsel %vm823, %v5398, 0
      %5408 = vmatprep.subr.bf16.mxu0 0
      %5409 = vmatpush1.bf16.msra.mxu0 0
      %5410 = vmatprep.subr.bf16.mxu0 0
      %5411 = vmatpush1.bf16.msra.mxu0 0
      %5412 = vmatprep.subr.bf16.mxu0 0
      %5413 = vmatpush1.bf16.msra.mxu0 0
      %5414 = vmatprep.subr.bf16.mxu0 0
      %5415 = vmatpush1.bf16.msra.mxu0 0
      %5416 = vmatprep.subr.bf16.mxu0 0
      %5417 = vmatpush1.bf16.msra.mxu0 0
      %5418 = vmatprep.subr.bf16.mxu0 0
      %5419 = vmatpush1.bf16.msra.mxu0 0
      %5420 = vmatprep.subr.bf16.mxu0 0
      %5421 = vmatpush1.bf16.msra.mxu0 0
      %5422 = vmatprep.subr.bf16.mxu0 %v5406
      %5423 = vmatpush1.bf16.msra.mxu0 %v5403
      %5424 = vmatprep.subr.bf16.mxu0 0
      %5425 = vmatpush2.bf16.msra.mxu0 0
      %5426 = vmatprep.subr.bf16.mxu0 0
      %5427 = vmatpush2.bf16.msra.mxu0 0
      %5428 = vmatprep.subr.bf16.mxu0 0
      %5429 = vmatpush2.bf16.msra.mxu0 0
      %5430 = vmatprep.subr.bf16.mxu0 0
      %5431 = vmatpush2.bf16.msra.mxu0 0
      %5432 = vmatprep.subr.bf16.mxu0 0
      %5433 = vmatpush2.bf16.msra.mxu0 0
      %5434 = vmatprep.subr.bf16.mxu0 0
      %5435 = vmatpush2.bf16.msra.mxu0 0
      %5436 = vmatprep.subr.bf16.mxu0 0
      %5437 = vmatpush2.bf16.msra.mxu0 0
      %5438 = vmatprep.subr.bf16.mxu0 0
      %5439 = vmatpush2.bf16.msra.mxu0 0
      %5440 = vmatprep.mubr.bf16.mxu0 0
      %5441 = vmatmul.mubr.bf16.gmra.mxu0 %v5400
      %v5442 = vpop.f32.mrf.mxu0
      %v5443 = vadd.f32 0.0, %v5442
      %v5444 = vpop.f32.mrf.mxu0
      %v5445 = vadd.f32 0.0, %v5444
      %v5446 = vpop.f32.mrf.mxu0
      %v5447 = vpop.f32.mrf.mxu0
      %5448 = vdwg.mxu0
      %v5449 = vmul.f32 %v5443, %v4054
      %v5450 = vmul.f32 %v5445, %v4058
      %v5451 = vadd.f32 %v5387, %v5449
      %v5452 = vadd.f32 %v5388, %v5450
      %5453 = vrot.lane.b32.xlu0 %v5323, 15
      %v5454 = vpop.permute.xlu0 %5453
      %5455 = vrot.lane.b32.xlu0 %v5324, 15
      %v5456 = vpop.permute.xlu0 %5455
      %v5457 = vsel %vm4069, %v5454, %v5456
      %v5458 = vsel %vm4069, %v5456, %v5454
      %s5459 = scalar_lea.vmem %s18, 4
      %v5460 = vld [vmem:[%s5459] sm:$0x3]
      %v5461 = vpack.c.bf16 %v5458, %v5458
      %v5462 = vpack.c.bf16 %v5457, %v5457
      %v5464 = vsel %vm819, %v5460, 0
      %v5467 = vsel %vm823, %v5461, 0
      %v5470 = vsel %vm823, %v5462, 0
      %5472 = vmatprep.subr.bf16.mxu0 0
      %5473 = vmatpush1.bf16.msra.mxu0 0
      %5474 = vmatprep.subr.bf16.mxu0 0
      %5475 = vmatpush1.bf16.msra.mxu0 0
      %5476 = vmatprep.subr.bf16.mxu0 0
      %5477 = vmatpush1.bf16.msra.mxu0 0
      %5478 = vmatprep.subr.bf16.mxu0 0
      %5479 = vmatpush1.bf16.msra.mxu0 0
      %5480 = vmatprep.subr.bf16.mxu0 0
      %5481 = vmatpush1.bf16.msra.mxu0 0
      %5482 = vmatprep.subr.bf16.mxu0 0
      %5483 = vmatpush1.bf16.msra.mxu0 0
      %5484 = vmatprep.subr.bf16.mxu0 0
      %5485 = vmatpush1.bf16.msra.mxu0 0
      %5486 = vmatprep.subr.bf16.mxu0 %v5470
      %5487 = vmatpush1.bf16.msra.mxu0 %v5467
      %5488 = vmatprep.subr.bf16.mxu0 0
      %5489 = vmatpush2.bf16.msra.mxu0 0
      %5490 = vmatprep.subr.bf16.mxu0 0
      %5491 = vmatpush2.bf16.msra.mxu0 0
      %5492 = vmatprep.subr.bf16.mxu0 0
      %5493 = vmatpush2.bf16.msra.mxu0 0
      %5494 = vmatprep.subr.bf16.mxu0 0
      %5495 = vmatpush2.bf16.msra.mxu0 0
      %5496 = vmatprep.subr.bf16.mxu0 0
      %5497 = vmatpush2.bf16.msra.mxu0 0
      %5498 = vmatprep.subr.bf16.mxu0 0
      %5499 = vmatpush2.bf16.msra.mxu0 0
      %5500 = vmatprep.subr.bf16.mxu0 0
      %5501 = vmatpush2.bf16.msra.mxu0 0
      %5502 = vmatprep.subr.bf16.mxu0 0
      %5503 = vmatpush2.bf16.msra.mxu0 0
      %5504 = vmatprep.mubr.bf16.mxu0 0
      %5505 = vmatmul.mubr.bf16.gmra.mxu0 %v5464
      %v5506 = vpop.f32.mrf.mxu0
      %v5507 = vadd.f32 0.0, %v5506
      %v5508 = vpop.f32.mrf.mxu0
      %v5509 = vadd.f32 0.0, %v5508
      %v5510 = vpop.f32.mrf.mxu0
      %v5511 = vpop.f32.mrf.mxu0
      %5512 = vdwg.mxu0
      %v5513 = vmul.f32 %v5507, %v4132
      %v5514 = vmul.f32 %v5509, %v4136
      %v5515 = vadd.f32 %v5451, %v5513
      %v5516 = vadd.f32 %v5452, %v5514
      %5517 = vrot.lane.b32.xlu0 %v5323, 1
      %v5518 = vpop.permute.xlu0 %5517
      %5519 = vrot.lane.b32.xlu0 %v5324, 1
      %v5520 = vpop.permute.xlu0 %5519
      %v5521 = vsel %vm4147, %v5518, %v5520
      %v5522 = vsel %vm4147, %v5520, %v5518
      %s5523 = scalar_lea.vmem %s18, 6
      %v5524 = vld [vmem:[%s5523] sm:$0x3]
      %v5525 = vpack.c.bf16 %v5522, %v5522
      %v5526 = vpack.c.bf16 %v5521, %v5521
      %v5528 = vsel %vm819, %v5524, 0
      %v5531 = vsel %vm823, %v5525, 0
      %v5534 = vsel %vm823, %v5526, 0
      %5536 = vmatprep.subr.bf16.mxu0 0
      %5537 = vmatpush1.bf16.msra.mxu0 0
      %5538 = vmatprep.subr.bf16.mxu0 0
      %5539 = vmatpush1.bf16.msra.mxu0 0
      %5540 = vmatprep.subr.bf16.mxu0 0
      %5541 = vmatpush1.bf16.msra.mxu0 0
      %5542 = vmatprep.subr.bf16.mxu0 0
      %5543 = vmatpush1.bf16.msra.mxu0 0
      %5544 = vmatprep.subr.bf16.mxu0 0
      %5545 = vmatpush1.bf16.msra.mxu0 0
      %5546 = vmatprep.subr.bf16.mxu0 0
      %5547 = vmatpush1.bf16.msra.mxu0 0
      %5548 = vmatprep.subr.bf16.mxu0 0
      %5549 = vmatpush1.bf16.msra.mxu0 0
      %5550 = vmatprep.subr.bf16.mxu0 %v5534
      %5551 = vmatpush1.bf16.msra.mxu0 %v5531
      %5552 = vmatprep.subr.bf16.mxu0 0
      %5553 = vmatpush2.bf16.msra.mxu0 0
      %5554 = vmatprep.subr.bf16.mxu0 0
      %5555 = vmatpush2.bf16.msra.mxu0 0
      %5556 = vmatprep.subr.bf16.mxu0 0
      %5557 = vmatpush2.bf16.msra.mxu0 0
      %5558 = vmatprep.subr.bf16.mxu0 0
      %5559 = vmatpush2.bf16.msra.mxu0 0
      %5560 = vmatprep.subr.bf16.mxu0 0
      %5561 = vmatpush2.bf16.msra.mxu0 0
      %5562 = vmatprep.subr.bf16.mxu0 0
      %5563 = vmatpush2.bf16.msra.mxu0 0
      %5564 = vmatprep.subr.bf16.mxu0 0
      %5565 = vmatpush2.bf16.msra.mxu0 0
      %5566 = vmatprep.subr.bf16.mxu0 0
      %5567 = vmatpush2.bf16.msra.mxu0 0
      %5568 = vmatprep.mubr.bf16.mxu0 0
      %5569 = vmatmul.mubr.bf16.gmra.mxu0 %v5528
      %v5570 = vpop.f32.mrf.mxu0
      %v5571 = vadd.f32 0.0, %v5570
      %v5572 = vpop.f32.mrf.mxu0
      %v5573 = vadd.f32 0.0, %v5572
      %v5574 = vpop.f32.mrf.mxu0
      %v5575 = vpop.f32.mrf.mxu0
      %5576 = vdwg.mxu0
      %v5577 = vmul.f32 %v5571, %v4210
      %v5578 = vmul.f32 %v5573, %v4214
      %v5579 = vadd.f32 %v5515, %v5577
      %v5580 = vadd.f32 %v5516, %v5578
      %s5581 = scalar_lea.vmem %s18, 8
      %v5582 = vld [vmem:[%s5581] sm:$0x3]
      %v5583 = vpack.c.bf16 %v5323, %v5323
      %v5584 = vpack.c.bf16 %v5324, %v5324
      %v5586 = vsel %vm819, %v5582, 0
      %v5589 = vsel %vm823, %v5583, 0
      %v5592 = vsel %vm823, %v5584, 0
      %5594 = vmatprep.subr.bf16.mxu0 0
      %5595 = vmatpush1.bf16.msra.mxu0 0
      %5596 = vmatprep.subr.bf16.mxu0 0
      %5597 = vmatpush1.bf16.msra.mxu0 0
      %5598 = vmatprep.subr.bf16.mxu0 0
      %5599 = vmatpush1.bf16.msra.mxu0 0
      %5600 = vmatprep.subr.bf16.mxu0 0
      %5601 = vmatpush1.bf16.msra.mxu0 0
      %5602 = vmatprep.subr.bf16.mxu0 0
      %5603 = vmatpush1.bf16.msra.mxu0 0
      %5604 = vmatprep.subr.bf16.mxu0 0
      %5605 = vmatpush1.bf16.msra.mxu0 0
      %5606 = vmatprep.subr.bf16.mxu0 0
      %5607 = vmatpush1.bf16.msra.mxu0 0
      %5608 = vmatprep.subr.bf16.mxu0 %v5592
      %5609 = vmatpush1.bf16.msra.mxu0 %v5589
      %5610 = vmatprep.subr.bf16.mxu0 0
      %5611 = vmatpush2.bf16.msra.mxu0 0
      %5612 = vmatprep.subr.bf16.mxu0 0
      %5613 = vmatpush2.bf16.msra.mxu0 0
      %5614 = vmatprep.subr.bf16.mxu0 0
      %5615 = vmatpush2.bf16.msra.mxu0 0
      %5616 = vmatprep.subr.bf16.mxu0 0
      %5617 = vmatpush2.bf16.msra.mxu0 0
      %5618 = vmatprep.subr.bf16.mxu0 0
      %5619 = vmatpush2.bf16.msra.mxu0 0
      %5620 = vmatprep.subr.bf16.mxu0 0
      %5621 = vmatpush2.bf16.msra.mxu0 0
      %5622 = vmatprep.subr.bf16.mxu0 0
      %5623 = vmatpush2.bf16.msra.mxu0 0
      %5624 = vmatprep.subr.bf16.mxu0 0
      %5625 = vmatpush2.bf16.msra.mxu0 0
      %5626 = vmatprep.mubr.bf16.mxu0 0
      %5627 = vmatmul.mubr.bf16.gmra.mxu0 %v5586
      %v5628 = vpop.f32.mrf.mxu0
      %v5629 = vadd.f32 0.0, %v5628
      %v5630 = vpop.f32.mrf.mxu0
      %v5631 = vadd.f32 0.0, %v5630
      %v5632 = vpop.f32.mrf.mxu0
      %v5633 = vpop.f32.mrf.mxu0
      %5634 = vdwg.mxu0
      %v5635 = vadd.f32 %v5579, %v5629
      %v5636 = vadd.f32 %v5580, %v5631
      %5637 = vrot.lane.b32.xlu0 %v5323, 127
      %v5638 = vpop.permute.xlu0 %5637
      %5639 = vrot.lane.b32.xlu0 %v5324, 127
      %v5640 = vpop.permute.xlu0 %5639
      %v5641 = vsel %vm4281, %v5638, %v5640
      %v5642 = vsel %vm4281, %v5640, %v5638
      %s5643 = scalar_lea.vmem %s18, 10
      %v5644 = vld [vmem:[%s5643] sm:$0x3]
      %v5645 = vpack.c.bf16 %v5641, %v5641
      %v5646 = vpack.c.bf16 %v5642, %v5642
      %v5648 = vsel %vm819, %v5644, 0
      %v5651 = vsel %vm823, %v5645, 0
      %v5654 = vsel %vm823, %v5646, 0
      %5656 = vmatprep.subr.bf16.mxu0 0
      %5657 = vmatpush1.bf16.msra.mxu0 0
      %5658 = vmatprep.subr.bf16.mxu0 0
      %5659 = vmatpush1.bf16.msra.mxu0 0
      %5660 = vmatprep.subr.bf16.mxu0 0
      %5661 = vmatpush1.bf16.msra.mxu0 0
      %5662 = vmatprep.subr.bf16.mxu0 0
      %5663 = vmatpush1.bf16.msra.mxu0 0
      %5664 = vmatprep.subr.bf16.mxu0 0
      %5665 = vmatpush1.bf16.msra.mxu0 0
      %5666 = vmatprep.subr.bf16.mxu0 0
      %5667 = vmatpush1.bf16.msra.mxu0 0
      %5668 = vmatprep.subr.bf16.mxu0 0
      %5669 = vmatpush1.bf16.msra.mxu0 0
      %5670 = vmatprep.subr.bf16.mxu0 %v5654
      %5671 = vmatpush1.bf16.msra.mxu0 %v5651
      %5672 = vmatprep.subr.bf16.mxu0 0
      %5673 = vmatpush2.bf16.msra.mxu0 0
      %5674 = vmatprep.subr.bf16.mxu0 0
      %5675 = vmatpush2.bf16.msra.mxu0 0
      %5676 = vmatprep.subr.bf16.mxu0 0
      %5677 = vmatpush2.bf16.msra.mxu0 0
      %5678 = vmatprep.subr.bf16.mxu0 0
      %5679 = vmatpush2.bf16.msra.mxu0 0
      %5680 = vmatprep.subr.bf16.mxu0 0
      %5681 = vmatpush2.bf16.msra.mxu0 0
      %5682 = vmatprep.subr.bf16.mxu0 0
      %5683 = vmatpush2.bf16.msra.mxu0 0
      %5684 = vmatprep.subr.bf16.mxu0 0
      %5685 = vmatpush2.bf16.msra.mxu0 0
      %5686 = vmatprep.subr.bf16.mxu0 0
      %5687 = vmatpush2.bf16.msra.mxu0 0
      %5688 = vmatprep.mubr.bf16.mxu0 0
      %5689 = vmatmul.mubr.bf16.gmra.mxu0 %v5648
      %v5690 = vpop.f32.mrf.mxu0
      %v5691 = vadd.f32 0.0, %v5690
      %v5692 = vpop.f32.mrf.mxu0
      %v5693 = vadd.f32 0.0, %v5692
      %v5694 = vpop.f32.mrf.mxu0
      %v5695 = vpop.f32.mrf.mxu0
      %5696 = vdwg.mxu0
      %v5697 = vmul.f32 %v5691, %v4344
      %v5698 = vmul.f32 %v5693, %v4348
      %v5699 = vadd.f32 %v5635, %v5697
      %v5700 = vadd.f32 %v5636, %v5698
      %5701 = vrot.lane.b32.xlu0 %v5323, 113
      %v5702 = vpop.permute.xlu0 %5701
      %5703 = vrot.lane.b32.xlu0 %v5324, 113
      %v5704 = vpop.permute.xlu0 %5703
      %v5705 = vsel %vm4359, %v5702, %v5704
      %v5706 = vsel %vm4359, %v5704, %v5702
      %s5707 = scalar_lea.vmem %s18, 12
      %v5708 = vld [vmem:[%s5707] sm:$0x3]
      %v5709 = vpack.c.bf16 %v5705, %v5705
      %v5710 = vpack.c.bf16 %v5706, %v5706
      %v5712 = vsel %vm819, %v5708, 0
      %v5715 = vsel %vm823, %v5709, 0
      %v5718 = vsel %vm823, %v5710, 0
      %5720 = vmatprep.subr.bf16.mxu0 0
      %5721 = vmatpush1.bf16.msra.mxu0 0
      %5722 = vmatprep.subr.bf16.mxu0 0
      %5723 = vmatpush1.bf16.msra.mxu0 0
      %5724 = vmatprep.subr.bf16.mxu0 0
      %5725 = vmatpush1.bf16.msra.mxu0 0
      %5726 = vmatprep.subr.bf16.mxu0 0
      %5727 = vmatpush1.bf16.msra.mxu0 0
      %5728 = vmatprep.subr.bf16.mxu0 0
      %5729 = vmatpush1.bf16.msra.mxu0 0
      %5730 = vmatprep.subr.bf16.mxu0 0
      %5731 = vmatpush1.bf16.msra.mxu0 0
      %5732 = vmatprep.subr.bf16.mxu0 0
      %5733 = vmatpush1.bf16.msra.mxu0 0
      %5734 = vmatprep.subr.bf16.mxu0 %v5718
      %5735 = vmatpush1.bf16.msra.mxu0 %v5715
      %5736 = vmatprep.subr.bf16.mxu0 0
      %5737 = vmatpush2.bf16.msra.mxu0 0
      %5738 = vmatprep.subr.bf16.mxu0 0
      %5739 = vmatpush2.bf16.msra.mxu0 0
      %5740 = vmatprep.subr.bf16.mxu0 0
      %5741 = vmatpush2.bf16.msra.mxu0 0
      %5742 = vmatprep.subr.bf16.mxu0 0
      %5743 = vmatpush2.bf16.msra.mxu0 0
      %5744 = vmatprep.subr.bf16.mxu0 0
      %5745 = vmatpush2.bf16.msra.mxu0 0
      %5746 = vmatprep.subr.bf16.mxu0 0
      %5747 = vmatpush2.bf16.msra.mxu0 0
      %5748 = vmatprep.subr.bf16.mxu0 0
      %5749 = vmatpush2.bf16.msra.mxu0 0
      %5750 = vmatprep.subr.bf16.mxu0 0
      %5751 = vmatpush2.bf16.msra.mxu0 0
      %5752 = vmatprep.mubr.bf16.mxu0 0
      %5753 = vmatmul.mubr.bf16.gmra.mxu0 %v5712
      %v5754 = vpop.f32.mrf.mxu0
      %v5755 = vadd.f32 0.0, %v5754
      %v5756 = vpop.f32.mrf.mxu0
      %v5757 = vadd.f32 0.0, %v5756
      %v5758 = vpop.f32.mrf.mxu0
      %v5759 = vpop.f32.mrf.mxu0
      %5760 = vdwg.mxu0
      %v5761 = vmul.f32 %v5755, %v4422
      %v5762 = vmul.f32 %v5757, %v4426
      %v5763 = vadd.f32 %v5699, %v5761
      %v5764 = vadd.f32 %v5700, %v5762
      %5765 = vrot.lane.b32.xlu0 %v5323, 112
      %v5766 = vpop.permute.xlu0 %5765
      %5767 = vrot.lane.b32.xlu0 %v5324, 112
      %v5768 = vpop.permute.xlu0 %5767
      %v5769 = vsel %vm4437, %v5766, %v5768
      %v5770 = vsel %vm4437, %v5768, %v5766
      %s5771 = scalar_lea.vmem %s18, 14
      %v5772 = vld [vmem:[%s5771] sm:$0x3]
      %v5773 = vpack.c.bf16 %v5769, %v5769
      %v5774 = vpack.c.bf16 %v5770, %v5770
      %v5776 = vsel %vm819, %v5772, 0
      %v5779 = vsel %vm823, %v5773, 0
      %v5782 = vsel %vm823, %v5774, 0
      %5784 = vmatprep.subr.bf16.mxu0 0
      %5785 = vmatpush1.bf16.msra.mxu0 0
      %5786 = vmatprep.subr.bf16.mxu0 0
      %5787 = vmatpush1.bf16.msra.mxu0 0
      %5788 = vmatprep.subr.bf16.mxu0 0
      %5789 = vmatpush1.bf16.msra.mxu0 0
      %5790 = vmatprep.subr.bf16.mxu0 0
      %5791 = vmatpush1.bf16.msra.mxu0 0
      %5792 = vmatprep.subr.bf16.mxu0 0
      %5793 = vmatpush1.bf16.msra.mxu0 0
      %5794 = vmatprep.subr.bf16.mxu0 0
      %5795 = vmatpush1.bf16.msra.mxu0 0
      %5796 = vmatprep.subr.bf16.mxu0 0
      %5797 = vmatpush1.bf16.msra.mxu0 0
      %5798 = vmatprep.subr.bf16.mxu0 %v5782
      %5799 = vmatpush1.bf16.msra.mxu0 %v5779
      %5800 = vmatprep.subr.bf16.mxu0 0
      %5801 = vmatpush2.bf16.msra.mxu0 0
      %5802 = vmatprep.subr.bf16.mxu0 0
      %5803 = vmatpush2.bf16.msra.mxu0 0
      %5804 = vmatprep.subr.bf16.mxu0 0
      %5805 = vmatpush2.bf16.msra.mxu0 0
      %5806 = vmatprep.subr.bf16.mxu0 0
      %5807 = vmatpush2.bf16.msra.mxu0 0
      %5808 = vmatprep.subr.bf16.mxu0 0
      %5809 = vmatpush2.bf16.msra.mxu0 0
      %5810 = vmatprep.subr.bf16.mxu0 0
      %5811 = vmatpush2.bf16.msra.mxu0 0
      %5812 = vmatprep.subr.bf16.mxu0 0
      %5813 = vmatpush2.bf16.msra.mxu0 0
      %5814 = vmatprep.subr.bf16.mxu0 0
      %5815 = vmatpush2.bf16.msra.mxu0 0
      %5816 = vmatprep.mubr.bf16.mxu0 0
      %5817 = vmatmul.mubr.bf16.gmra.mxu0 %v5776
      %v5818 = vpop.f32.mrf.mxu0
      %v5819 = vadd.f32 0.0, %v5818
      %v5820 = vpop.f32.mrf.mxu0
      %v5821 = vadd.f32 0.0, %v5820
      %v5822 = vpop.f32.mrf.mxu0
      %v5823 = vpop.f32.mrf.mxu0
      %5824 = vdwg.mxu0
      %v5825 = vmul.f32 %v5819, %v4500
      %v5826 = vmul.f32 %v5821, %v4504
      %v5827 = vadd.f32 %v5763, %v5825
      %v5828 = vadd.f32 %v5764, %v5826
      %5829 = vrot.lane.b32.xlu0 %v5323, 111
      %v5830 = vpop.permute.xlu0 %5829
      %5831 = vrot.lane.b32.xlu0 %v5324, 111
      %v5832 = vpop.permute.xlu0 %5831
      %v5833 = vsel %vm4515, %v5830, %v5832
      %v5834 = vsel %vm4515, %v5832, %v5830
      %s5835 = scalar_lea.vmem %s18, 16
      %v5836 = vld [vmem:[%s5835] sm:$0x3]
      %v5837 = vpack.c.bf16 %v5833, %v5833
      %v5838 = vpack.c.bf16 %v5834, %v5834
      %v5840 = vsel %vm819, %v5836, 0
      %v5843 = vsel %vm823, %v5837, 0
      %v5846 = vsel %vm823, %v5838, 0
      %5848 = vmatprep.subr.bf16.mxu0 0
      %5849 = vmatpush1.bf16.msra.mxu0 0
      %5850 = vmatprep.subr.bf16.mxu0 0
      %5851 = vmatpush1.bf16.msra.mxu0 0
      %5852 = vmatprep.subr.bf16.mxu0 0
      %5853 = vmatpush1.bf16.msra.mxu0 0
      %5854 = vmatprep.subr.bf16.mxu0 0
      %5855 = vmatpush1.bf16.msra.mxu0 0
      %5856 = vmatprep.subr.bf16.mxu0 0
      %5857 = vmatpush1.bf16.msra.mxu0 0
      %5858 = vmatprep.subr.bf16.mxu0 0
      %5859 = vmatpush1.bf16.msra.mxu0 0
      %5860 = vmatprep.subr.bf16.mxu0 0
      %5861 = vmatpush1.bf16.msra.mxu0 0
      %5862 = vmatprep.subr.bf16.mxu0 %v5846
      %5863 = vmatpush1.bf16.msra.mxu0 %v5843
      %5864 = vmatprep.subr.bf16.mxu0 0
      %5865 = vmatpush2.bf16.msra.mxu0 0
      %5866 = vmatprep.subr.bf16.mxu0 0
      %5867 = vmatpush2.bf16.msra.mxu0 0
      %5868 = vmatprep.subr.bf16.mxu0 0
      %5869 = vmatpush2.bf16.msra.mxu0 0
      %5870 = vmatprep.subr.bf16.mxu0 0
      %5871 = vmatpush2.bf16.msra.mxu0 0
      %5872 = vmatprep.subr.bf16.mxu0 0
      %5873 = vmatpush2.bf16.msra.mxu0 0
      %5874 = vmatprep.subr.bf16.mxu0 0
      %5875 = vmatpush2.bf16.msra.mxu0 0
      %5876 = vmatprep.subr.bf16.mxu0 0
      %5877 = vmatpush2.bf16.msra.mxu0 0
      %5878 = vmatprep.subr.bf16.mxu0 0
      %5879 = vmatpush2.bf16.msra.mxu0 0
      %5880 = vmatprep.mubr.bf16.mxu0 0
      %5881 = vmatmul.mubr.bf16.gmra.mxu0 %v5840
      %v5882 = vpop.f32.mrf.mxu0
      %v5883 = vadd.f32 0.0, %v5882
      %v5884 = vpop.f32.mrf.mxu0
      %v5885 = vadd.f32 0.0, %v5884
      %v5886 = vpop.f32.mrf.mxu0
      %v5887 = vpop.f32.mrf.mxu0
      %5888 = vdwg.mxu0
      %v5889 = vmul.f32 %v5883, %v4578
      %v5890 = vmul.f32 %v5885, %v4582
      %v5891 = vadd.f32 %v5827, %v5889
      %v5892 = vadd.f32 %v5828, %v5890
      %5894 = vset.pattern.permute.xlu0 0
      %5895 = vperm.xlu0 %5894, %v5325
      %v5896 = vpop.permute.xlu0 %5895
      %v5898 = vadd.f32 %v5891, %v5896
      %v5899 = vadd.f32 %v5892, %v5896
      %v5900 = vtanh.pop %v5898
      %v5901 = vtanh.pop %v5899
      %v5904 = vcombine.low %v5900, %v5901
      %5906 = vst [vmem:[%s622] sm:$0x77] %v5904
      %p5907 = scmp.lt.s32.totalorder %s30, 1
      %s5908 = scalar_select %p5907, %s30, 1
      %s5909 = smul.addr %s5908, 2
      %s5910 = smul.addr %s5909, 4
      %s5911 = scalar_lea.vmem %s19, %s5910
      // Predicated region
      $region97: #{_forward_impl.1} parent=95 // pred_check
        %p5912 = pneg %p457
      $region98: #{_forward_impl.1} parent=95 // pred_check_branch
        %5914 = sbr.rel (%p5912) target = $region100
      $region99: #{_forward_impl.1} parent=95 // pred_region
        _
      $region100: #{_forward_impl.1} parent=95 // pred_fallthru
        _
    $region96: #{_forward_impl.1} parent=5 // pred_fallthru
      _
    %p5915 = scmp.le.s32.totalorder 2, %s25
    // Predicated region
    $region101: #{_forward_impl.1} parent=5 // pred_check
      %p5916 = pneg %p5915
    $region102: #{_forward_impl.1} parent=5 // pred_check_branch
      %5918 = sbr.rel (%p5916) target = $region104
    $region103: #{_forward_impl.1} parent=5 // pred_region
      %s5919 = ssub.s32 %s25, 2
      // Predicated region
      $region105: #{_forward_impl.1} parent=103 // pred_check
        %p5920 = pneg %p463
      $region106: #{_forward_impl.1} parent=103 // pred_check_branch
        %5922 = sbr.rel (%p5920) target = $region108
      $region107: #{_forward_impl.1} parent=103 // pred_region
        %p5923 = scmp.lt.s32.totalorder %s31, 1
        %s5924 = scalar_select %p5923, %s31, 1
        %s5925 = smul.addr %s5924, 2
        %s5926 = smul.addr %s5925, 4
        %s5927 = scalar_lea.vmem %s19, %s5926
      $region108: #{_forward_impl.1} parent=103 // pred_fallthru
        _
    $region104: #{_forward_impl.1} parent=5 // pred_fallthru
      _
  $region6: #{_forward_impl.1} parent=0 // loop_footer
    %s29 = sadd.s32 1, %s25
  $region7: #{_forward_impl.1} parent=0 // loop_footer_branch
    %24 = sbr.rel target = $region3
  $region8: #{_forward_impl.1} parent=0 // loop_exit
    _

</llo_original>
